<compile_context>
chip_gen: v7x
topology: tpu7x:2x2x1
jax: 0.10.0
libtpu: 0.0.40
codegen_flags: <defaults>
</compile_context>

<pallas_src>
import jax
import jax.numpy as jnp
from jax.experimental import pallas as pl
from jax.experimental.pallas import tpu as pltpu


# ----------------------------- Pallas kernels ------------------------------

def _conv_matmul_kernel(w_ref, p_ref, b_ref, o_ref):
    """Transposed conv matmul: o = relu(W @ patches_T + b).

    w: (O, C*kh*kw) bf16, p: (C*kh*kw, N*Ho*Wo) bf16, b: (O, 1) f32.
    Output (O, N*Ho*Wo) bf16 — lane-dense last dim.
    """
    y = jnp.dot(w_ref[...], p_ref[...], preferred_element_type=jnp.float32)
    y = jnp.maximum(y + b_ref[...], 0.0)          # f32 epilogue
    o_ref[...] = y.astype(o_ref.dtype)


def pallas_conv_matmul(w, p, b):
    O, CK = w.shape
    NHW = p.shape[1]
    cost = pl.CostEstimate(
        flops=2 * O * CK * NHW,
        transcendentals=0,
        bytes_accessed=int(w.size * w.dtype.itemsize
                           + p.size * p.dtype.itemsize
                           + b.size * b.dtype.itemsize
                           + O * NHW * 2),
    )
    return pl.pallas_call(
        _conv_matmul_kernel,
        out_shape=jax.ShapeDtypeStruct((O, NHW), jnp.bfloat16),
        grid=(1,),
        in_specs=[
            pl.BlockSpec((O, CK), lambda i: (0, 0)),
            pl.BlockSpec((CK, NHW), lambda i: (0, 0)),
            pl.BlockSpec((O, 1), lambda i: (0, 0)),
        ],
        out_specs=pl.BlockSpec((O, NHW), lambda i: (0, 0)),
        cost_estimate=cost,
        compiler_params=pltpu.CompilerParams(dimension_semantics=("arbitrary",)),
    )(w, p, b)


def _dueling_head_kernel(x_ref, wfc_ref, bfc_ref, wv_ref, bv_ref, wa_ref,
                         ba_ref, o_ref):
    """Fused dueling head (both FCs + both heads + combine) in one kernel.

    x:   (B, 1280) bf16
    wfc: (1280, 1024) bf16 = [value_fc.T | advantage_fc.T], bfc: (1, 1024) f32
    wv:  (512, 1) bf16, bv: (1, 1) f32      (value head)
    wa:  (512, A) bf16, ba: (1, A) f32      (advantage head)
    out: (B, A) f32 = val + adv - mean(adv)
    """
    h = jnp.dot(x_ref[...], wfc_ref[...], preferred_element_type=jnp.float32)
    h = jnp.maximum(h + bfc_ref[...], 0.0)                     # (B, 1024) f32
    hv = h[:, :512].astype(wv_ref.dtype)                       # 128-aligned slice
    ha = h[:, 512:].astype(wa_ref.dtype)
    val = jnp.dot(hv, wv_ref[...], preferred_element_type=jnp.float32) + bv_ref[...]
    adv = jnp.dot(ha, wa_ref[...], preferred_element_type=jnp.float32) + ba_ref[...]
    adv_mean = jnp.mean(adv, axis=1, keepdims=True)
    o_ref[...] = (val + adv - adv_mean).astype(o_ref.dtype)


def pallas_dueling_head(x_flat, wfc, bfc, wv, bv, wa, ba):
    B, K = x_flat.shape
    Hh = wfc.shape[1]
    A = wa.shape[1]
    cost = pl.CostEstimate(
        flops=2 * B * K * Hh + 2 * B * (Hh // 2) * (1 + A),
        transcendentals=0,
        bytes_accessed=int(sum(int(a.size) * a.dtype.itemsize
                               for a in (x_flat, wfc, bfc, wv, bv, wa, ba))
                           + B * A * 4),
    )

    def full(shape):
        return pl.BlockSpec(shape, lambda i: (0,) * len(shape))

    return pl.pallas_call(
        _dueling_head_kernel,
        out_shape=jax.ShapeDtypeStruct((B, A), jnp.float32),
        grid=(1,),
        in_specs=[full(x_flat.shape), full(wfc.shape), full(bfc.shape),
                  full(wv.shape), full(bv.shape), full(wa.shape), full(ba.shape)],
        out_specs=full((B, A)),
        cost_estimate=cost,
        compiler_params=pltpu.CompilerParams(dimension_semantics=("arbitrary",)),
    )(x_flat, wfc, bfc, wv, bv, wa, ba)


# ------------------------------ JAX glue ----------------------------------

def im2col_T(x_cnhw, kh, kw, stride):
    """x: (C, N, H, W) -> patches_T (C*kh*kw, N*Ho*Wo).

    Rows ordered (c, kh, kw) to match PyTorch weight.reshape(O, -1) column
    order; columns ordered (n, ho, wo). In this layout only stack + reshape
    are needed (no transpose between the XLA glue and the kernel).
    """
    C, N, H, W = x_cnhw.shape
    Ho = (H - kh) // stride + 1
    Wo = (W - kw) // stride + 1
    slices = []
    for i in range(kh):
        for j in range(kw):
            slices.append(x_cnhw[:, :, i:i + stride * Ho:stride,
                                 j:j + stride * Wo:stride])
    p = jnp.stack(slices, axis=1)                    # (C, kh*kw, N, Ho, Wo)
    return p.reshape(C * kh * kw, N * Ho * Wo), Ho, Wo


def conv2d_relu(x_cnhw, w_flat, b_col, kh, kw, stride):
    """x: (C, N, H, W) bf16; w_flat: (O, C*kh*kw) bf16; b_col: (O, 1) f32.
    Returns (O, N, Ho, Wo) bf16 with ReLU applied; matmul/bias/ReLU in Pallas."""
    C, N, H, W = x_cnhw.shape
    O = w_flat.shape[0]
    patches_T, Ho, Wo = im2col_T(x_cnhw, kh, kw, stride)
    y = pallas_conv_matmul(w_flat, patches_T, b_col)   # (O, N*Ho*Wo)
    return y.reshape(O, N, Ho, Wo)


# ------------------------------ parameters --------------------------------

def init_params(key, stack_size, nb_actions):
    """Parameters in PyTorch layout (as a torch state_dict would provide)."""
    ks = jax.random.split(key, 14)
    s = 0.05  # small deterministic scale

    def w(k, shape):
        return s * jax.random.normal(k, shape, dtype=jnp.float32)

    return {
        "conv1_w": w(ks[0], (32, stack_size, 8, 8)),
        "conv1_b": w(ks[1], (32,)),
        "conv2_w": w(ks[2], (64, 32, 4, 4)),
        "conv2_b": w(ks[3], (64,)),
        "conv3_w": w(ks[4], (64, 64, 3, 3)),
        "conv3_b": w(ks[5], (64,)),
        "value_fc_w": w(ks[6], (512, 64 * 5 * 4)),
        "value_fc_b": w(ks[7], (512,)),
        "value_w": w(ks[8], (1, 512)),
        "value_b": w(ks[9], (1,)),
        "advantage_fc_w": w(ks[10], (512, 64 * 5 * 4)),
        "advantage_fc_b": w(ks[11], (512,)),
        "advantage_w": w(ks[12], (nb_actions, 512)),
        "advantage_b": w(ks[13], (nb_actions,)),
    }


def prepare_params(params):
    """One-time layout/dtype prep (run outside the traced forward):
    flatten conv weights to (O, C*kh*kw), pre-transpose FC weights to (K, N),
    concatenate value_fc/advantage_fc into one (1280, 1024) weight, and cast
    MXU operands to bf16 (biases stay f32 for the f32 epilogue)."""
    bf16 = jnp.bfloat16
    prep = {}
    for i in (1, 2, 3):
        wc = params[f"conv{i}_w"]                                   # (O, C, kh, kw)
        O = wc.shape[0]
        prep[f"conv{i}_w"] = wc.reshape(O, -1).astype(bf16)         # (O, C*kh*kw)
        prep[f"conv{i}_b"] = params[f"conv{i}_b"].reshape(O, 1)     # (O, 1) f32
    prep["fc_w"] = jnp.concatenate(
        [params["value_fc_w"].T, params["advantage_fc_w"].T], axis=1).astype(bf16)
    prep["fc_b"] = jnp.concatenate(
        [params["value_fc_b"], params["advantage_fc_b"]]).reshape(1, -1)
    prep["value_w"] = params["value_w"].T.astype(bf16)              # (512, 1)
    prep["value_b"] = params["value_b"].reshape(1, 1)
    prep["adv_w"] = params["advantage_w"].T.astype(bf16)            # (512, A)
    prep["adv_b"] = params["advantage_b"].reshape(1, -1)
    return prep


# ------------------------------ forward pass -------------------------------

def dddqnet_forward(prep, x):
    """x: (N, stack_size, 100, 84) f32 NCHW. Returns (N, nb_actions) f32."""
    # (N, C, H, W) -> (C, N, H, W): the transposed-matmul conv keeps this
    # layout end-to-end (each conv output reshapes straight to it).
    x = jnp.transpose(x, (1, 0, 2, 3)).astype(jnp.bfloat16)
    x = conv2d_relu(x, prep["conv1_w"], prep["conv1_b"], kh=8, kw=8, stride=4)  # (32,N,24,20)
    x = conv2d_relu(x, prep["conv2_w"], prep["conv2_b"], kh=4, kw=4, stride=2)  # (64,N,11,9)
    x = conv2d_relu(x, prep["conv3_w"], prep["conv3_b"], kh=3, kw=3, stride=2)  # (64,N,5,4)

    B = x.shape[1]
    # (O, N, Ho, Wo) -> (N, O*Ho*Wo): matches torch's x.view(B, -1) order.
    x_flat = jnp.transpose(x, (1, 0, 2, 3)).reshape(B, -1)                      # (N, 1280) bf16

    # Fused dueling head: both 1280->512 FCs, both heads and the
    # val + adv - mean(adv) combine in a single pallas_call.
    return pallas_dueling_head(x_flat, prep["fc_w"], prep["fc_b"],
                               prep["value_w"], prep["value_b"],
                               prep["adv_w"], prep["adv_b"])


# --------------------------------- main ------------------------------------

if __name__ == "__main__":
    stack_size = 4
    nb_actions = 6
    batch = 2
    # Spatial size 100x84 is what the module's 64*5*4 flatten implies:
    # 100x84 -> conv1(k8,s4) 24x20 -> conv2(k4,s2) 11x9 -> conv3(k3,s2) 5x4.
    H, W = 100, 84

    key = jax.random.PRNGKey(0)
    k_params, k_x = jax.random.split(key)
    params = init_params(k_params, stack_size, nb_actions)
    prep = prepare_params(params)          # one-time layout/dtype prep
    x = jax.random.normal(k_x, (batch, stack_size, H, W), dtype=jnp.float32)

    out = jax.jit(dddqnet_forward)(prep, x)
    out = jax.block_until_ready(out)
    assert out.shape == (batch, nb_actions), out.shape
    assert out.dtype == jnp.float32
    print("KERNEL_OK")
</pallas_src>

<mosaic_0001>
module attributes {stable_mosaic.version = 11 : i64} {
  func.func @_conv_matmul_kernel(%arg0: i32, %arg1: memref<32x256xbf16, #tpu.memory_space<vmem>>, %arg2: memref<256x960xbf16, #tpu.memory_space<vmem>>, %arg3: memref<32x1xf32, #tpu.memory_space<vmem>>, %arg4: memref<32x960xbf16, #tpu.memory_space<vmem>>) attributes {dimension_semantics = [#tpu.dimension_semantics<arbitrary>], iteration_bounds = array<i64: 1>, scalar_prefetch = 0 : i64, scratch_operands = 0 : i64, tpu.core_type = #tpu.core_type<tc>, window_params = [{pipeline_mode = #tpu.pipeline_mode<synchronous>, transform_indices = @transform_0, window_bounds = array<i64: 32, 256>}, {pipeline_mode = #tpu.pipeline_mode<synchronous>, transform_indices = @transform_1, window_bounds = array<i64: 256, 960>}, {pipeline_mode = #tpu.pipeline_mode<synchronous>, transform_indices = @transform_2, window_bounds = array<i64: 32, 1>}, {pipeline_mode = #tpu.pipeline_mode<synchronous>, transform_indices = @transform_3, window_bounds = array<i64: 32, 960>}]} {
    %c0 = arith.constant 0 : index
    %c0_0 = arith.constant 0 : index
    %0 = vector.load %arg1[%c0, %c0_0] : memref<32x256xbf16, #tpu.memory_space<vmem>>, vector<32x256xbf16>
    %c0_1 = arith.constant 0 : index
    %c0_2 = arith.constant 0 : index
    %1 = vector.load %arg2[%c0_1, %c0_2] : memref<256x960xbf16, #tpu.memory_space<vmem>>, vector<256x960xbf16>
    %cst = arith.constant dense<0.000000e+00> : vector<32x960xf32>
    %2 = tpu.matmul %0, %1, %cst {dimension_numbers = #tpu.dot_dimension_numbers<[1], [0], [0], [1], [0, 0, 1, 1], [], []>} : vector<32x256xbf16>, vector<256x960xbf16>, vector<32x960xf32> -> vector<32x960xf32>
    %c0_3 = arith.constant 0 : index
    %c0_4 = arith.constant 0 : index
    %3 = vector.load %arg3[%c0_3, %c0_4] : memref<32x1xf32, #tpu.memory_space<vmem>>, vector<32x1xf32>
    %4 = vector.broadcast %3 : vector<32x1xf32> to vector<32x960xf32>
    %5 = arith.addf %2, %4 : vector<32x960xf32>
    %cst_5 = arith.constant 0.000000e+00 : f32
    %6 = vector.broadcast %cst_5 : f32 to vector<32x960xf32>
    %7 = arith.maximumf %5, %6 : vector<32x960xf32>
    %8 = arith.truncf %7 : vector<32x960xf32> to vector<32x960xbf16>
    %c0_6 = arith.constant 0 : index
    %c0_7 = arith.constant 0 : index
    %9 = vector.load %arg4[%c0_6, %c0_7] : memref<32x960xbf16, #tpu.memory_space<vmem>>, vector<32x960xbf16>
    tpu.vector_store %arg4[%c0_6, %c0_7], %8 {strides = array<i32>} : memref<32x960xbf16, #tpu.memory_space<vmem>>, vector<32x960xbf16>,
    return
  }
  func.func @transform_0(%arg0: i32) -> (i32, i32) {
    %c0_i32 = arith.constant 0 : i32
    %c0_i32_0 = arith.constant 0 : i32
    %c0_i32_1 = arith.constant 0 : i32
    return %c0_i32, %c0_i32_0 : i32, i32
  }
  func.func @transform_1(%arg0: i32) -> (i32, i32) {
    %c0_i32 = arith.constant 0 : i32
    %c0_i32_0 = arith.constant 0 : i32
    %c0_i32_1 = arith.constant 0 : i32
    return %c0_i32, %c0_i32_0 : i32, i32
  }
  func.func @transform_2(%arg0: i32) -> (i32, i32) {
    %c0_i32 = arith.constant 0 : i32
    %c0_i32_0 = arith.constant 0 : i32
    %c0_i32_1 = arith.constant 0 : i32
    return %c0_i32, %c0_i32_0 : i32, i32
  }
  func.func @transform_3(%arg0: i32) -> (i32, i32) {
    %c0_i32 = arith.constant 0 : i32
    %c0_i32_0 = arith.constant 0 : i32
    %c0_i32_1 = arith.constant 0 : i32
    return %c0_i32, %c0_i32_0 : i32, i32
  }
}

module attributes {stable_mosaic.version = 11 : i64} {
  func.func @_conv_matmul_kernel(%arg0: i32, %arg1: memref<64x512xbf16, #tpu.memory_space<vmem>>, %arg2: memref<512x198xbf16, #tpu.memory_space<vmem>>, %arg3: memref<64x1xf32, #tpu.memory_space<vmem>>, %arg4: memref<64x198xbf16, #tpu.memory_space<vmem>>) attributes {dimension_semantics = [#tpu.dimension_semantics<arbitrary>], iteration_bounds = array<i64: 1>, scalar_prefetch = 0 : i64, scratch_operands = 0 : i64, tpu.core_type = #tpu.core_type<tc>, window_params = [{pipeline_mode = #tpu.pipeline_mode<synchronous>, transform_indices = @transform_0, window_bounds = array<i64: 64, 512>}, {pipeline_mode = #tpu.pipeline_mode<synchronous>, transform_indices = @transform_1, window_bounds = array<i64: 512, 198>}, {pipeline_mode = #tpu.pipeline_mode<synchronous>, transform_indices = @transform_2, window_bounds = array<i64: 64, 1>}, {pipeline_mode = #tpu.pipeline_mode<synchronous>, transform_indices = @transform_3, window_bounds = array<i64: 64, 198>}]} {
    %c0 = arith.constant 0 : index
    %c0_0 = arith.constant 0 : index
    %0 = vector.load %arg1[%c0, %c0_0] : memref<64x512xbf16, #tpu.memory_space<vmem>>, vector<64x512xbf16>
    %c0_1 = arith.constant 0 : index
    %c0_2 = arith.constant 0 : index
    %1 = vector.load %arg2[%c0_1, %c0_2] : memref<512x198xbf16, #tpu.memory_space<vmem>>, vector<512x198xbf16>
    %cst = arith.constant dense<0.000000e+00> : vector<64x198xf32>
    %2 = tpu.matmul %0, %1, %cst {dimension_numbers = #tpu.dot_dimension_numbers<[1], [0], [0], [1], [0, 0, 1, 1], [], []>} : vector<64x512xbf16>, vector<512x198xbf16>, vector<64x198xf32> -> vector<64x198xf32>
    %c0_3 = arith.constant 0 : index
    %c0_4 = arith.constant 0 : index
    %3 = vector.load %arg3[%c0_3, %c0_4] : memref<64x1xf32, #tpu.memory_space<vmem>>, vector<64x1xf32>
    %4 = vector.broadcast %3 : vector<64x1xf32> to vector<64x198xf32>
    %5 = arith.addf %2, %4 : vector<64x198xf32>
    %cst_5 = arith.constant 0.000000e+00 : f32
    %6 = vector.broadcast %cst_5 : f32 to vector<64x198xf32>
    %7 = arith.maximumf %5, %6 : vector<64x198xf32>
    %8 = arith.truncf %7 : vector<64x198xf32> to vector<64x198xbf16>
    %c0_6 = arith.constant 0 : index
    %c0_7 = arith.constant 0 : index
    %9 = vector.load %arg4[%c0_6, %c0_7] : memref<64x198xbf16, #tpu.memory_space<vmem>>, vector<64x198xbf16>
    tpu.vector_store %arg4[%c0_6, %c0_7], %8 {strides = array<i32>} : memref<64x198xbf16, #tpu.memory_space<vmem>>, vector<64x198xbf16>,
    return
  }
  func.func @transform_0(%arg0: i32) -> (i32, i32) {
    %c0_i32 = arith.constant 0 : i32
    %c0_i32_0 = arith.constant 0 : i32
    %c0_i32_1 = arith.constant 0 : i32
    return %c0_i32, %c0_i32_0 : i32, i32
  }
  func.func @transform_1(%arg0: i32) -> (i32, i32) {
    %c0_i32 = arith.constant 0 : i32
    %c0_i32_0 = arith.constant 0 : i32
    %c0_i32_1 = arith.constant 0 : i32
    return %c0_i32, %c0_i32_0 : i32, i32
  }
  func.func @transform_2(%arg0: i32) -> (i32, i32) {
    %c0_i32 = arith.constant 0 : i32
    %c0_i32_0 = arith.constant 0 : i32
    %c0_i32_1 = arith.constant 0 : i32
    return %c0_i32, %c0_i32_0 : i32, i32
  }
  func.func @transform_3(%arg0: i32) -> (i32, i32) {
    %c0_i32 = arith.constant 0 : i32
    %c0_i32_0 = arith.constant 0 : i32
    %c0_i32_1 = arith.constant 0 : i32
    return %c0_i32, %c0_i32_0 : i32, i32
  }
}

module attributes {stable_mosaic.version = 11 : i64} {
  func.func @_conv_matmul_kernel(%arg0: i32, %arg1: memref<64x576xbf16, #tpu.memory_space<vmem>>, %arg2: memref<576x40xbf16, #tpu.memory_space<vmem>>, %arg3: memref<64x1xf32, #tpu.memory_space<vmem>>, %arg4: memref<64x40xbf16, #tpu.memory_space<vmem>>) attributes {dimension_semantics = [#tpu.dimension_semantics<arbitrary>], iteration_bounds = array<i64: 1>, scalar_prefetch = 0 : i64, scratch_operands = 0 : i64, tpu.core_type = #tpu.core_type<tc>, window_params = [{pipeline_mode = #tpu.pipeline_mode<synchronous>, transform_indices = @transform_0, window_bounds = array<i64: 64, 576>}, {pipeline_mode = #tpu.pipeline_mode<synchronous>, transform_indices = @transform_1, window_bounds = array<i64: 576, 40>}, {pipeline_mode = #tpu.pipeline_mode<synchronous>, transform_indices = @transform_2, window_bounds = array<i64: 64, 1>}, {pipeline_mode = #tpu.pipeline_mode<synchronous>, transform_indices = @transform_3, window_bounds = array<i64: 64, 40>}]} {
    %c0 = arith.constant 0 : index
    %c0_0 = arith.constant 0 : index
    %0 = vector.load %arg1[%c0, %c0_0] : memref<64x576xbf16, #tpu.memory_space<vmem>>, vector<64x576xbf16>
    %c0_1 = arith.constant 0 : index
    %c0_2 = arith.constant 0 : index
    %1 = vector.load %arg2[%c0_1, %c0_2] : memref<576x40xbf16, #tpu.memory_space<vmem>>, vector<576x40xbf16>
    %cst = arith.constant dense<0.000000e+00> : vector<64x40xf32>
    %2 = tpu.matmul %0, %1, %cst {dimension_numbers = #tpu.dot_dimension_numbers<[1], [0], [0], [1], [0, 0, 1, 1], [], []>} : vector<64x576xbf16>, vector<576x40xbf16>, vector<64x40xf32> -> vector<64x40xf32>
    %c0_3 = arith.constant 0 : index
    %c0_4 = arith.constant 0 : index
    %3 = vector.load %arg3[%c0_3, %c0_4] : memref<64x1xf32, #tpu.memory_space<vmem>>, vector<64x1xf32>
    %4 = vector.broadcast %3 : vector<64x1xf32> to vector<64x40xf32>
    %5 = arith.addf %2, %4 : vector<64x40xf32>
    %cst_5 = arith.constant 0.000000e+00 : f32
    %6 = vector.broadcast %cst_5 : f32 to vector<64x40xf32>
    %7 = arith.maximumf %5, %6 : vector<64x40xf32>
    %8 = arith.truncf %7 : vector<64x40xf32> to vector<64x40xbf16>
    %c0_6 = arith.constant 0 : index
    %c0_7 = arith.constant 0 : index
    %9 = vector.load %arg4[%c0_6, %c0_7] : memref<64x40xbf16, #tpu.memory_space<vmem>>, vector<64x40xbf16>
    tpu.vector_store %arg4[%c0_6, %c0_7], %8 {strides = array<i32>} : memref<64x40xbf16, #tpu.memory_space<vmem>>, vector<64x40xbf16>,
    return
  }
  func.func @transform_0(%arg0: i32) -> (i32, i32) {
    %c0_i32 = arith.constant 0 : i32
    %c0_i32_0 = arith.constant 0 : i32
    %c0_i32_1 = arith.constant 0 : i32
    return %c0_i32, %c0_i32_0 : i32, i32
  }
  func.func @transform_1(%arg0: i32) -> (i32, i32) {
    %c0_i32 = arith.constant 0 : i32
    %c0_i32_0 = arith.constant 0 : i32
    %c0_i32_1 = arith.constant 0 : i32
    return %c0_i32, %c0_i32_0 : i32, i32
  }
  func.func @transform_2(%arg0: i32) -> (i32, i32) {
    %c0_i32 = arith.constant 0 : i32
    %c0_i32_0 = arith.constant 0 : i32
    %c0_i32_1 = arith.constant 0 : i32
    return %c0_i32, %c0_i32_0 : i32, i32
  }
  func.func @transform_3(%arg0: i32) -> (i32, i32) {
    %c0_i32 = arith.constant 0 : i32
    %c0_i32_0 = arith.constant 0 : i32
    %c0_i32_1 = arith.constant 0 : i32
    return %c0_i32, %c0_i32_0 : i32, i32
  }
}

module attributes {stable_mosaic.version = 11 : i64} {
  func.func @_dueling_head_kernel(%arg0: i32, %arg1: memref<2x1280xbf16, #tpu.memory_space<vmem>>, %arg2: memref<1280x1024xbf16, #tpu.memory_space<vmem>>, %arg3: memref<1x1024xf32, #tpu.memory_space<vmem>>, %arg4: memref<512x1xbf16, #tpu.memory_space<vmem>>, %arg5: memref<1x1xf32, #tpu.memory_space<vmem>>, %arg6: memref<512x6xbf16, #tpu.memory_space<vmem>>, %arg7: memref<1x6xf32, #tpu.memory_space<vmem>>, %arg8: memref<2x6xf32, #tpu.memory_space<vmem>>) attributes {dimension_semantics = [#tpu.dimension_semantics<arbitrary>], iteration_bounds = array<i64: 1>, scalar_prefetch = 0 : i64, scratch_operands = 0 : i64, tpu.core_type = #tpu.core_type<tc>, window_params = [{pipeline_mode = #tpu.pipeline_mode<synchronous>, transform_indices = @transform_0, window_bounds = array<i64: 2, 1280>}, {pipeline_mode = #tpu.pipeline_mode<synchronous>, transform_indices = @transform_1, window_bounds = array<i64: 1280, 1024>}, {pipeline_mode = #tpu.pipeline_mode<synchronous>, transform_indices = @transform_2, window_bounds = array<i64: 1, 1024>}, {pipeline_mode = #tpu.pipeline_mode<synchronous>, transform_indices = @transform_3, window_bounds = array<i64: 512, 1>}, {pipeline_mode = #tpu.pipeline_mode<synchronous>, transform_indices = @transform_4, window_bounds = array<i64: 1, 1>}, {pipeline_mode = #tpu.pipeline_mode<synchronous>, transform_indices = @transform_5, window_bounds = array<i64: 512, 6>}, {pipeline_mode = #tpu.pipeline_mode<synchronous>, transform_indices = @transform_6, window_bounds = array<i64: 1, 6>}, {pipeline_mode = #tpu.pipeline_mode<synchronous>, transform_indices = @transform_7, window_bounds = array<i64: 2, 6>}]} {
    %c0 = arith.constant 0 : index
    %c0_0 = arith.constant 0 : index
    %0 = vector.load %arg1[%c0, %c0_0] : memref<2x1280xbf16, #tpu.memory_space<vmem>>, vector<2x1280xbf16>
    %c0_1 = arith.constant 0 : index
    %c0_2 = arith.constant 0 : index
    %1 = vector.load %arg2[%c0_1, %c0_2] : memref<1280x1024xbf16, #tpu.memory_space<vmem>>, vector<1280x1024xbf16>
    %cst = arith.constant dense<0.000000e+00> : vector<2x1024xf32>
    %2 = tpu.matmul %0, %1, %cst {dimension_numbers = #tpu.dot_dimension_numbers<[1], [0], [0], [1], [0, 0, 1, 1], [], []>} : vector<2x1280xbf16>, vector<1280x1024xbf16>, vector<2x1024xf32> -> vector<2x1024xf32>
    %c0_3 = arith.constant 0 : index
    %c0_4 = arith.constant 0 : index
    %3 = vector.load %arg3[%c0_3, %c0_4] : memref<1x1024xf32, #tpu.memory_space<vmem>>, vector<1x1024xf32>
    %4 = vector.broadcast %3 : vector<1x1024xf32> to vector<2x1024xf32>
    %5 = arith.addf %2, %4 : vector<2x1024xf32>
    %cst_5 = arith.constant 0.000000e+00 : f32
    %6 = vector.broadcast %cst_5 : f32 to vector<2x1024xf32>
    %7 = arith.maximumf %5, %6 : vector<2x1024xf32>
    %8 = vector.extract_strided_slice %7 {offsets = [0, 0], sizes = [2, 512], strides = [1, 1]} : vector<2x1024xf32> to vector<2x512xf32>
    %9 = arith.truncf %8 : vector<2x512xf32> to vector<2x512xbf16>
    %10 = vector.extract_strided_slice %7 {offsets = [0, 512], sizes = [2, 512], strides = [1, 1]} : vector<2x1024xf32> to vector<2x512xf32>
    %11 = arith.truncf %10 : vector<2x512xf32> to vector<2x512xbf16>
    %c0_6 = arith.constant 0 : index
    %c0_7 = arith.constant 0 : index
    %12 = vector.load %arg4[%c0_6, %c0_7] : memref<512x1xbf16, #tpu.memory_space<vmem>>, vector<512x1xbf16>
    %cst_8 = arith.constant dense<0.000000e+00> : vector<2x1xf32>
    %13 = tpu.matmul %9, %12, %cst_8 {dimension_numbers = #tpu.dot_dimension_numbers<[1], [0], [0], [1], [0, 0, 1, 1], [], []>} : vector<2x512xbf16>, vector<512x1xbf16>, vector<2x1xf32> -> vector<2x1xf32>
    %c0_9 = arith.constant 0 : index
    %c0_10 = arith.constant 0 : index
    %14 = vector.load %arg5[%c0_9, %c0_10] : memref<1x1xf32, #tpu.memory_space<vmem>>, vector<1x1xf32>
    %15 = vector.broadcast %14 : vector<1x1xf32> to vector<2x1xf32>
    %16 = arith.addf %13, %15 : vector<2x1xf32>
    %c0_11 = arith.constant 0 : index
    %c0_12 = arith.constant 0 : index
    %17 = vector.load %arg6[%c0_11, %c0_12] : memref<512x6xbf16, #tpu.memory_space<vmem>>, vector<512x6xbf16>
    %cst_13 = arith.constant dense<0.000000e+00> : vector<2x6xf32>
    %18 = tpu.matmul %11, %17, %cst_13 {dimension_numbers = #tpu.dot_dimension_numbers<[1], [0], [0], [1], [0, 0, 1, 1], [], []>} : vector<2x512xbf16>, vector<512x6xbf16>, vector<2x6xf32> -> vector<2x6xf32>
    %c0_14 = arith.constant 0 : index
    %c0_15 = arith.constant 0 : index
    %19 = vector.load %arg7[%c0_14, %c0_15] : memref<1x6xf32, #tpu.memory_space<vmem>>, vector<1x6xf32>
    %20 = vector.broadcast %19 : vector<1x6xf32> to vector<2x6xf32>
    %21 = arith.addf %18, %20 : vector<2x6xf32>
    %cst_16 = arith.constant dense<0.000000e+00> : vector<2xf32>
    %22 = vector.multi_reduction <add>, %21, %cst_16 [1] : vector<2x6xf32> to vector<2xf32>
    %23 = vector.shape_cast %22 : vector<2xf32> to vector<2x1xf32>
    %cst_17 = arith.constant 6.000000e+00 : f32
    %24 = vector.broadcast %cst_17 : f32 to vector<2x1xf32>
    %25 = arith.divf %23, %24 : vector<2x1xf32>
    %26 = vector.broadcast %16 : vector<2x1xf32> to vector<2x6xf32>
    %27 = arith.addf %26, %21 : vector<2x6xf32>
    %28 = vector.broadcast %25 : vector<2x1xf32> to vector<2x6xf32>
    %29 = arith.subf %27, %28 : vector<2x6xf32>
    %c0_18 = arith.constant 0 : index
    %c0_19 = arith.constant 0 : index
    %30 = vector.load %arg8[%c0_18, %c0_19] : memref<2x6xf32, #tpu.memory_space<vmem>>, vector<2x6xf32>
    tpu.vector_store %arg8[%c0_18, %c0_19], %29 {strides = array<i32>} : memref<2x6xf32, #tpu.memory_space<vmem>>, vector<2x6xf32>,
    return
  }
  func.func @transform_0(%arg0: i32) -> (i32, i32) {
    %c0_i32 = arith.constant 0 : i32
    %c0_i32_0 = arith.constant 0 : i32
    %c0_i32_1 = arith.constant 0 : i32
    return %c0_i32, %c0_i32_0 : i32, i32
  }
  func.func @transform_1(%arg0: i32) -> (i32, i32) {
    %c0_i32 = arith.constant 0 : i32
    %c0_i32_0 = arith.constant 0 : i32
    %c0_i32_1 = arith.constant 0 : i32
    return %c0_i32, %c0_i32_0 : i32, i32
  }
  func.func @transform_2(%arg0: i32) -> (i32, i32) {
    %c0_i32 = arith.constant 0 : i32
    %c0_i32_0 = arith.constant 0 : i32
    %c0_i32_1 = arith.constant 0 : i32
    return %c0_i32, %c0_i32_0 : i32, i32
  }
  func.func @transform_3(%arg0: i32) -> (i32, i32) {
    %c0_i32 = arith.constant 0 : i32
    %c0_i32_0 = arith.constant 0 : i32
    %c0_i32_1 = arith.constant 0 : i32
    return %c0_i32, %c0_i32_0 : i32, i32
  }
  func.func @transform_4(%arg0: i32) -> (i32, i32) {
    %c0_i32 = arith.constant 0 : i32
    %c0_i32_0 = arith.constant 0 : i32
    %c0_i32_1 = arith.constant 0 : i32
    return %c0_i32, %c0_i32_0 : i32, i32
  }
  func.func @transform_5(%arg0: i32) -> (i32, i32) {
    %c0_i32 = arith.constant 0 : i32
    %c0_i32_0 = arith.constant 0 : i32
    %c0_i32_1 = arith.constant 0 : i32
    return %c0_i32, %c0_i32_0 : i32, i32
  }
  func.func @transform_6(%arg0: i32) -> (i32, i32) {
    %c0_i32 = arith.constant 0 : i32
    %c0_i32_0 = arith.constant 0 : i32
    %c0_i32_1 = arith.constant 0 : i32
    return %c0_i32, %c0_i32_0 : i32, i32
  }
  func.func @transform_7(%arg0: i32) -> (i32, i32) {
    %c0_i32 = arith.constant 0 : i32
    %c0_i32_0 = arith.constant 0 : i32
    %c0_i32_1 = arith.constant 0 : i32
    return %c0_i32, %c0_i32_0 : i32, i32
  }
}

</mosaic_0001>

<llo_original>
// kernel: dddqnet_forward.4
$region0: #{dddqnet_forward.4}
  #allocation0 [shape = 'u32[]', space=smem, size = 0x4, offset = 0x4, fixed_abs, tag = 'smem constant byte address 0x4 - core index']
  #allocation1 [shape = 'u32[144,128]{1,0:T(1,128)}', space=vmem, size = 0x12000, scoped, tag = 'internal scratch']
  %s0 = inlined_call_operand.vmem [shape: bf16[32,256], index: 0, kind: input, shape index: {}]
  %s1 = inlined_call_operand.vmem [shape: bf16[256,960], index: 1, kind: input, shape index: {}]
  %s2 = inlined_call_operand.vmem [shape: f32[32,1], index: 2, kind: input, shape index: {}]
  %s3 = inlined_call_operand.vmem [shape: bf16[32,960], index: 3, kind: output, shape index: {}]
  %s4 = sld [smem:[#allocation0]]
  $region22: #{dddqnet_forward.4} parent=0
    _
  %s6 = ssub.s32 1, %s4
  %s7 = scalar_select 0, %s6, %s4
  // Predicated region
  $region2: #{dddqnet_forward.4} parent=0 // pred_check
    _
  $region3: #{dddqnet_forward.4} parent=0 // pred_check_branch
    %9 = sbr.rel (0) target = $region5
  $region4: #{dddqnet_forward.4} parent=0 // pred_region
    _
  $region5: #{dddqnet_forward.4} parent=0 // pred_fallthru
    _
  // Predicated region
  $region6: #{dddqnet_forward.4} parent=0 // pred_check
    _
  $region7: #{dddqnet_forward.4} parent=0 // pred_check_branch
    %11 = sbr.rel (0) target = $region9
  $region8: #{dddqnet_forward.4} parent=0 // pred_region
    _
  $region9: #{dddqnet_forward.4} parent=0 // pred_fallthru
    _
  // Predicated region
  $region10: #{dddqnet_forward.4} parent=0 // pred_check
    _
  $region11: #{dddqnet_forward.4} parent=0 // pred_check_branch
    %13 = sbr.rel (0) target = $region13
  $region12: #{dddqnet_forward.4} parent=0 // pred_region
    _
  $region13: #{dddqnet_forward.4} parent=0 // pred_fallthru
    _
  %v14 = vld [vmem:[%s0] sm:$0xff]
  %v15 = vld [vmem:[%s0 + $0x8] sm:$0xff]
  %v16 = vld [vmem:[%s0 + $0x10] sm:$0xff]
  %v17 = vld [vmem:[%s0 + $0x18] sm:$0xff]
  %v18 = vld [vmem:[%s1] sm:$0xff]
  %v19 = vld [vmem:[%s1 + $0x8] sm:$0xff]
  %v20 = vld [vmem:[%s1 + $0x10] sm:$0xff]
  %v21 = vld [vmem:[%s1 + $0x18] sm:$0xff]
  %v22 = vld [vmem:[%s1 + $0x20] sm:$0xff]
  %v23 = vld [vmem:[%s1 + $0x28] sm:$0xff]
  %v24 = vld [vmem:[%s1 + $0x30] sm:$0xff]
  %v25 = vld [vmem:[%s1 + $0x38] sm:$0xff]
  %v26 = vld [vmem:[%s1 + $0x40] sm:$0xff]
  %v27 = vld [vmem:[%s1 + $0x48] sm:$0xff]
  %v28 = vld [vmem:[%s1 + $0x50] sm:$0xff]
  %v29 = vld [vmem:[%s1 + $0x58] sm:$0xff]
  %v30 = vld [vmem:[%s1 + $0x60] sm:$0xff]
  %v31 = vld [vmem:[%s1 + $0x68] sm:$0xff]
  %v32 = vld [vmem:[%s1 + $0x70] sm:$0xff]
  %v33 = vld [vmem:[%s1 + $0x78] sm:$0xff]
  %v34 = vld [vmem:[%s1 + $0x80] sm:$0xff]
  %v35 = vld [vmem:[%s1 + $0x88] sm:$0xff]
  %v36 = vld [vmem:[%s1 + $0x90] sm:$0xff]
  %v37 = vld [vmem:[%s1 + $0x98] sm:$0xff]
  %v38 = vld [vmem:[%s1 + $0xa0] sm:$0xff]
  %v39 = vld [vmem:[%s1 + $0xa8] sm:$0xff]
  %v40 = vld [vmem:[%s1 + $0xb0] sm:$0xff]
  %v41 = vld [vmem:[%s1 + $0xb8] sm:$0xff]
  %v42 = vld [vmem:[%s1 + $0xc0] sm:$0xff]
  %v43 = vld [vmem:[%s1 + $0xc8] sm:$0xff]
  %v44 = vld [vmem:[%s1 + $0xd0] sm:$0xff]
  %v45 = vld [vmem:[%s1 + $0xd8] sm:$0xff]
  %v46 = vld [vmem:[%s1 + $0xe0] sm:$0xff]
  %v47 = vld [vmem:[%s1 + $0xe8] sm:$0xff]
  %v48 = vld [vmem:[%s1 + $0xf0] sm:$0xff]
  %v49 = vld [vmem:[%s1 + $0xf8] sm:$0xff]
  %v50 = vld [vmem:[%s1 + $0x100] sm:$0xff]
  %v51 = vld [vmem:[%s1 + $0x108] sm:$0xff]
  %v52 = vld [vmem:[%s1 + $0x110] sm:$0xff]
  %v53 = vld [vmem:[%s1 + $0x118] sm:$0xff]
  %v54 = vld [vmem:[%s1 + $0x120] sm:$0xff]
  %v55 = vld [vmem:[%s1 + $0x128] sm:$0xff]
  %v56 = vld [vmem:[%s1 + $0x130] sm:$0xff]
  %v57 = vld [vmem:[%s1 + $0x138] sm:$0xff]
  %v58 = vld [vmem:[%s1 + $0x140] sm:$0xff]
  %v59 = vld [vmem:[%s1 + $0x148] sm:$0xff]
  %v60 = vld [vmem:[%s1 + $0x150] sm:$0xff]
  %v61 = vld [vmem:[%s1 + $0x158] sm:$0xff]
  %v62 = vld [vmem:[%s1 + $0x160] sm:$0xff]
  %v63 = vld [vmem:[%s1 + $0x168] sm:$0xff]
  %v64 = vld [vmem:[%s1 + $0x170] sm:$0xff]
  %v65 = vld [vmem:[%s1 + $0x178] sm:$0xff]
  %v66 = vld [vmem:[%s1 + $0x180] sm:$0xff]
  %v67 = vld [vmem:[%s1 + $0x188] sm:$0xff]
  %v68 = vld [vmem:[%s1 + $0x190] sm:$0xff]
  %v69 = vld [vmem:[%s1 + $0x198] sm:$0xff]
  %v70 = vld [vmem:[%s1 + $0x1a0] sm:$0xff]
  %v71 = vld [vmem:[%s1 + $0x1a8] sm:$0xff]
  %v72 = vld [vmem:[%s1 + $0x1b0] sm:$0xff]
  %v73 = vld [vmem:[%s1 + $0x1b8] sm:$0xff]
  %v74 = vld [vmem:[%s1 + $0x1c0] sm:$0xff]
  %v75 = vld [vmem:[%s1 + $0x1c8] sm:$0xff]
  %v76 = vld [vmem:[%s1 + $0x1d0] sm:$0xff]
  %v77 = vld [vmem:[%s1 + $0x1d8] sm:$0xff]
  %v78 = vld [vmem:[%s1 + $0x1e0] sm:$0xff]
  %v79 = vld [vmem:[%s1 + $0x1e8] sm:$0xff]
  %v80 = vld [vmem:[%s1 + $0x1f0] sm:$0xff]
  %v81 = vld [vmem:[%s1 + $0x1f8] sm:$0xff]
  %v82 = vld [vmem:[%s1 + $0x200] sm:$0xff]
  %v83 = vld [vmem:[%s1 + $0x208] sm:$0xff]
  %v84 = vld [vmem:[%s1 + $0x210] sm:$0xff]
  %v85 = vld [vmem:[%s1 + $0x218] sm:$0xff]
  %v86 = vld [vmem:[%s1 + $0x220] sm:$0xff]
  %v87 = vld [vmem:[%s1 + $0x228] sm:$0xff]
  %v88 = vld [vmem:[%s1 + $0x230] sm:$0xff]
  %v89 = vld [vmem:[%s1 + $0x238] sm:$0xff]
  %v90 = vld [vmem:[%s1 + $0x240] sm:$0xff]
  %v91 = vld [vmem:[%s1 + $0x248] sm:$0xff]
  %v92 = vld [vmem:[%s1 + $0x250] sm:$0xff]
  %v93 = vld [vmem:[%s1 + $0x258] sm:$0xff]
  %v94 = vld [vmem:[%s1 + $0x260] sm:$0xff]
  %v95 = vld [vmem:[%s1 + $0x268] sm:$0xff]
  %v96 = vld [vmem:[%s1 + $0x270] sm:$0xff]
  %v97 = vld [vmem:[%s1 + $0x278] sm:$0xff]
  %v98 = vld [vmem:[%s1 + $0x280] sm:$0xff]
  %v99 = vld [vmem:[%s1 + $0x288] sm:$0xff]
  %v100 = vld [vmem:[%s1 + $0x290] sm:$0xff]
  %v101 = vld [vmem:[%s1 + $0x298] sm:$0xff]
  %v102 = vld [vmem:[%s1 + $0x2a0] sm:$0xff]
  %v103 = vld [vmem:[%s1 + $0x2a8] sm:$0xff]
  %v104 = vld [vmem:[%s1 + $0x2b0] sm:$0xff]
  %v105 = vld [vmem:[%s1 + $0x2b8] sm:$0xff]
  %v106 = vld [vmem:[%s1 + $0x2c0] sm:$0xff]
  %v107 = vld [vmem:[%s1 + $0x2c8] sm:$0xff]
  %v108 = vld [vmem:[%s1 + $0x2d0] sm:$0xff]
  %v109 = vld [vmem:[%s1 + $0x2d8] sm:$0xff]
  %v110 = vld [vmem:[%s1 + $0x2e0] sm:$0xff]
  %v111 = vld [vmem:[%s1 + $0x2e8] sm:$0xff]
  %v112 = vld [vmem:[%s1 + $0x2f0] sm:$0xff]
  %v113 = vld [vmem:[%s1 + $0x2f8] sm:$0xff]
  %v114 = vld [vmem:[%s1 + $0x300] sm:$0xff]
  %v115 = vld [vmem:[%s1 + $0x308] sm:$0xff]
  %v116 = vld [vmem:[%s1 + $0x310] sm:$0xff]
  %v117 = vld [vmem:[%s1 + $0x318] sm:$0xff]
  %v118 = vld [vmem:[%s1 + $0x320] sm:$0xff]
  %v119 = vld [vmem:[%s1 + $0x328] sm:$0xff]
  %v120 = vld [vmem:[%s1 + $0x330] sm:$0xff]
  %v121 = vld [vmem:[%s1 + $0x338] sm:$0xff]
  %v122 = vld [vmem:[%s1 + $0x340] sm:$0xff]
  %v123 = vld [vmem:[%s1 + $0x348] sm:$0xff]
  %v124 = vld [vmem:[%s1 + $0x350] sm:$0xff]
  %v125 = vld [vmem:[%s1 + $0x358] sm:$0xff]
  %v126 = vld [vmem:[%s1 + $0x360] sm:$0xff]
  %v127 = vld [vmem:[%s1 + $0x368] sm:$0xff]
  %v128 = vld [vmem:[%s1 + $0x370] sm:$0xff]
  %v129 = vld [vmem:[%s1 + $0x378] sm:$0xff]
  %v130 = vld [vmem:[%s1 + $0x380] sm:$0xff]
  %v131 = vld [vmem:[%s1 + $0x388] sm:$0xff]
  %v132 = vld [vmem:[%s1 + $0x390] sm:$0xff]
  %v133 = vld [vmem:[%s1 + $0x398] sm:$0xff]
  %v134 = vld [vmem:[%s1 + $0x3a0] sm:$0xff]
  %v135 = vld [vmem:[%s1 + $0x3a8] sm:$0xff]
  %v136 = vld [vmem:[%s1 + $0x3b0] sm:$0xff]
  %v137 = vld [vmem:[%s1 + $0x3b8] sm:$0xff]
  %v138 = vld [vmem:[%s1 + $0x3c0] sm:$0xff]
  %v139 = vld [vmem:[%s1 + $0x3c8] sm:$0xff]
  %v140 = vld [vmem:[%s1 + $0x3d0] sm:$0xff]
  %v141 = vld [vmem:[%s1 + $0x3d8] sm:$0xff]
  %v142 = vld [vmem:[%s1 + $0x3e0] sm:$0xff]
  %v143 = vld [vmem:[%s1 + $0x3e8] sm:$0xff]
  %v144 = vld [vmem:[%s1 + $0x3f0] sm:$0xff]
  %v145 = vld [vmem:[%s1 + $0x3f8] sm:$0xff]
  %v146 = vld [vmem:[%s2] sm:$0xff]
  %v147 = vld [vmem:[%s2 + $0x8] sm:$0xff]
  %v148 = vld [vmem:[%s2 + $0x10] sm:$0xff]
  %v149 = vld [vmem:[%s2 + $0x18] sm:$0xff]
  %151 = vset.pattern.permute.xlu0 0
  %152 = vperm.xlu0 %151, %v146
  %v153 = vpop.permute.xlu0 %152
  %156 = vset.pattern.permute.xlu0 0
  %157 = vperm.xlu0 %156, %v147
  %v158 = vpop.permute.xlu0 %157
  %161 = vset.pattern.permute.xlu0 0
  %162 = vperm.xlu0 %161, %v148
  %v163 = vpop.permute.xlu0 %162
  %166 = vset.pattern.permute.xlu0 0
  %167 = vperm.xlu0 %166, %v149
  %v168 = vpop.permute.xlu0 %167
  %v174 = vunpack.c.l.b16 %v14
  %v175 = vunpack.c.h.b16 %v14
  %v176 = vunpack.c.l.b16 %v15
  %v177 = vunpack.c.h.b16 %v15
  %v178 = vunpack.c.l.b16 %v16
  %v179 = vunpack.c.h.b16 %v16
  %v180 = vunpack.c.l.b16 %v17
  %v181 = vunpack.c.h.b16 %v17
  %v182 = vpack.c.b16 %v176, %v174
  %v183 = vpack.c.b16 %v177, %v175
  %v184 = vpack.c.b16 %v180, %v178
  %v185 = vpack.c.b16 %v181, %v179
  %v318 = vunpack.c.l.b16 %v18
  %v319 = vunpack.c.h.b16 %v18
  %v320 = vunpack.c.l.b16 %v19
  %v321 = vunpack.c.h.b16 %v19
  %v322 = vunpack.c.l.b16 %v20
  %v323 = vunpack.c.h.b16 %v20
  %v324 = vunpack.c.l.b16 %v21
  %v325 = vunpack.c.h.b16 %v21
  %v326 = vunpack.c.l.b16 %v22
  %v327 = vunpack.c.h.b16 %v22
  %v328 = vunpack.c.l.b16 %v23
  %v329 = vunpack.c.h.b16 %v23
  %v330 = vunpack.c.l.b16 %v24
  %v331 = vunpack.c.h.b16 %v24
  %v332 = vunpack.c.l.b16 %v25
  %v333 = vunpack.c.h.b16 %v25
  %v334 = vunpack.c.l.b16 %v26
  %v335 = vunpack.c.h.b16 %v26
  %v336 = vunpack.c.l.b16 %v27
  %v337 = vunpack.c.h.b16 %v27
  %v338 = vunpack.c.l.b16 %v28
  %v339 = vunpack.c.h.b16 %v28
  %v340 = vunpack.c.l.b16 %v29
  %v341 = vunpack.c.h.b16 %v29
  %v342 = vunpack.c.l.b16 %v30
  %v343 = vunpack.c.h.b16 %v30
  %v344 = vunpack.c.l.b16 %v31
  %v345 = vunpack.c.h.b16 %v31
  %v346 = vunpack.c.l.b16 %v32
  %v347 = vunpack.c.h.b16 %v32
  %v348 = vunpack.c.l.b16 %v33
  %v349 = vunpack.c.h.b16 %v33
  %v350 = vunpack.c.l.b16 %v34
  %v351 = vunpack.c.h.b16 %v34
  %v352 = vunpack.c.l.b16 %v35
  %v353 = vunpack.c.h.b16 %v35
  %v354 = vunpack.c.l.b16 %v36
  %v355 = vunpack.c.h.b16 %v36
  %v356 = vunpack.c.l.b16 %v37
  %v357 = vunpack.c.h.b16 %v37
  %v358 = vunpack.c.l.b16 %v38
  %v359 = vunpack.c.h.b16 %v38
  %v360 = vunpack.c.l.b16 %v39
  %v361 = vunpack.c.h.b16 %v39
  %v362 = vunpack.c.l.b16 %v40
  %v363 = vunpack.c.h.b16 %v40
  %v364 = vunpack.c.l.b16 %v41
  %v365 = vunpack.c.h.b16 %v41
  %v366 = vunpack.c.l.b16 %v42
  %v367 = vunpack.c.h.b16 %v42
  %v368 = vunpack.c.l.b16 %v43
  %v369 = vunpack.c.h.b16 %v43
  %v370 = vunpack.c.l.b16 %v44
  %v371 = vunpack.c.h.b16 %v44
  %v372 = vunpack.c.l.b16 %v45
  %v373 = vunpack.c.h.b16 %v45
  %v374 = vunpack.c.l.b16 %v46
  %v375 = vunpack.c.h.b16 %v46
  %v376 = vunpack.c.l.b16 %v47
  %v377 = vunpack.c.h.b16 %v47
  %v378 = vunpack.c.l.b16 %v48
  %v379 = vunpack.c.h.b16 %v48
  %v380 = vunpack.c.l.b16 %v49
  %v381 = vunpack.c.h.b16 %v49
  %v382 = vunpack.c.l.b16 %v50
  %v383 = vunpack.c.h.b16 %v50
  %v384 = vunpack.c.l.b16 %v51
  %v385 = vunpack.c.h.b16 %v51
  %v386 = vunpack.c.l.b16 %v52
  %v387 = vunpack.c.h.b16 %v52
  %v388 = vunpack.c.l.b16 %v53
  %v389 = vunpack.c.h.b16 %v53
  %v390 = vunpack.c.l.b16 %v54
  %v391 = vunpack.c.h.b16 %v54
  %v392 = vunpack.c.l.b16 %v55
  %v393 = vunpack.c.h.b16 %v55
  %v394 = vunpack.c.l.b16 %v56
  %v395 = vunpack.c.h.b16 %v56
  %v396 = vunpack.c.l.b16 %v57
  %v397 = vunpack.c.h.b16 %v57
  %v398 = vunpack.c.l.b16 %v58
  %v399 = vunpack.c.h.b16 %v58
  %v400 = vunpack.c.l.b16 %v59
  %v401 = vunpack.c.h.b16 %v59
  %v402 = vunpack.c.l.b16 %v60
  %v403 = vunpack.c.h.b16 %v60
  %v404 = vunpack.c.l.b16 %v61
  %v405 = vunpack.c.h.b16 %v61
  %v406 = vunpack.c.l.b16 %v62
  %v407 = vunpack.c.h.b16 %v62
  %v408 = vunpack.c.l.b16 %v63
  %v409 = vunpack.c.h.b16 %v63
  %v410 = vunpack.c.l.b16 %v64
  %v411 = vunpack.c.h.b16 %v64
  %v412 = vunpack.c.l.b16 %v65
  %v413 = vunpack.c.h.b16 %v65
  %v414 = vunpack.c.l.b16 %v66
  %v415 = vunpack.c.h.b16 %v66
  %v416 = vunpack.c.l.b16 %v67
  %v417 = vunpack.c.h.b16 %v67
  %v418 = vunpack.c.l.b16 %v68
  %v419 = vunpack.c.h.b16 %v68
  %v420 = vunpack.c.l.b16 %v69
  %v421 = vunpack.c.h.b16 %v69
  %v422 = vunpack.c.l.b16 %v70
  %v423 = vunpack.c.h.b16 %v70
  %v424 = vunpack.c.l.b16 %v71
  %v425 = vunpack.c.h.b16 %v71
  %v426 = vunpack.c.l.b16 %v72
  %v427 = vunpack.c.h.b16 %v72
  %v428 = vunpack.c.l.b16 %v73
  %v429 = vunpack.c.h.b16 %v73
  %v430 = vunpack.c.l.b16 %v74
  %v431 = vunpack.c.h.b16 %v74
  %v432 = vunpack.c.l.b16 %v75
  %v433 = vunpack.c.h.b16 %v75
  %v434 = vunpack.c.l.b16 %v76
  %v435 = vunpack.c.h.b16 %v76
  %v436 = vunpack.c.l.b16 %v77
  %v437 = vunpack.c.h.b16 %v77
  %v438 = vunpack.c.l.b16 %v78
  %v439 = vunpack.c.h.b16 %v78
  %v440 = vunpack.c.l.b16 %v79
  %v441 = vunpack.c.h.b16 %v79
  %v442 = vunpack.c.l.b16 %v80
  %v443 = vunpack.c.h.b16 %v80
  %v444 = vunpack.c.l.b16 %v81
  %v445 = vunpack.c.h.b16 %v81
  %v446 = vunpack.c.l.b16 %v82
  %v447 = vunpack.c.h.b16 %v82
  %v448 = vunpack.c.l.b16 %v83
  %v449 = vunpack.c.h.b16 %v83
  %v450 = vunpack.c.l.b16 %v84
  %v451 = vunpack.c.h.b16 %v84
  %v452 = vunpack.c.l.b16 %v85
  %v453 = vunpack.c.h.b16 %v85
  %v454 = vunpack.c.l.b16 %v86
  %v455 = vunpack.c.h.b16 %v86
  %v456 = vunpack.c.l.b16 %v87
  %v457 = vunpack.c.h.b16 %v87
  %v458 = vunpack.c.l.b16 %v88
  %v459 = vunpack.c.h.b16 %v88
  %v460 = vunpack.c.l.b16 %v89
  %v461 = vunpack.c.h.b16 %v89
  %v462 = vunpack.c.l.b16 %v90
  %v463 = vunpack.c.h.b16 %v90
  %v464 = vunpack.c.l.b16 %v91
  %v465 = vunpack.c.h.b16 %v91
  %v466 = vunpack.c.l.b16 %v92
  %v467 = vunpack.c.h.b16 %v92
  %v468 = vunpack.c.l.b16 %v93
  %v469 = vunpack.c.h.b16 %v93
  %v470 = vunpack.c.l.b16 %v94
  %v471 = vunpack.c.h.b16 %v94
  %v472 = vunpack.c.l.b16 %v95
  %v473 = vunpack.c.h.b16 %v95
  %v474 = vunpack.c.l.b16 %v96
  %v475 = vunpack.c.h.b16 %v96
  %v476 = vunpack.c.l.b16 %v97
  %v477 = vunpack.c.h.b16 %v97
  %v478 = vunpack.c.l.b16 %v98
  %v479 = vunpack.c.h.b16 %v98
  %v480 = vunpack.c.l.b16 %v99
  %v481 = vunpack.c.h.b16 %v99
  %v482 = vunpack.c.l.b16 %v100
  %v483 = vunpack.c.h.b16 %v100
  %v484 = vunpack.c.l.b16 %v101
  %v485 = vunpack.c.h.b16 %v101
  %v486 = vunpack.c.l.b16 %v102
  %v487 = vunpack.c.h.b16 %v102
  %v488 = vunpack.c.l.b16 %v103
  %v489 = vunpack.c.h.b16 %v103
  %v490 = vunpack.c.l.b16 %v104
  %v491 = vunpack.c.h.b16 %v104
  %v492 = vunpack.c.l.b16 %v105
  %v493 = vunpack.c.h.b16 %v105
  %v494 = vunpack.c.l.b16 %v106
  %v495 = vunpack.c.h.b16 %v106
  %v496 = vunpack.c.l.b16 %v107
  %v497 = vunpack.c.h.b16 %v107
  %v498 = vunpack.c.l.b16 %v108
  %v499 = vunpack.c.h.b16 %v108
  %v500 = vunpack.c.l.b16 %v109
  %v501 = vunpack.c.h.b16 %v109
  %v502 = vunpack.c.l.b16 %v110
  %v503 = vunpack.c.h.b16 %v110
  %v504 = vunpack.c.l.b16 %v111
  %v505 = vunpack.c.h.b16 %v111
  %v506 = vunpack.c.l.b16 %v112
  %v507 = vunpack.c.h.b16 %v112
  %v508 = vunpack.c.l.b16 %v113
  %v509 = vunpack.c.h.b16 %v113
  %v510 = vunpack.c.l.b16 %v114
  %v511 = vunpack.c.h.b16 %v114
  %v512 = vunpack.c.l.b16 %v115
  %v513 = vunpack.c.h.b16 %v115
  %v514 = vunpack.c.l.b16 %v116
  %v515 = vunpack.c.h.b16 %v116
  %v516 = vunpack.c.l.b16 %v117
  %v517 = vunpack.c.h.b16 %v117
  %v518 = vunpack.c.l.b16 %v118
  %v519 = vunpack.c.h.b16 %v118
  %v520 = vunpack.c.l.b16 %v119
  %v521 = vunpack.c.h.b16 %v119
  %v522 = vunpack.c.l.b16 %v120
  %v523 = vunpack.c.h.b16 %v120
  %v524 = vunpack.c.l.b16 %v121
  %v525 = vunpack.c.h.b16 %v121
  %v526 = vunpack.c.l.b16 %v122
  %v527 = vunpack.c.h.b16 %v122
  %v528 = vunpack.c.l.b16 %v123
  %v529 = vunpack.c.h.b16 %v123
  %v530 = vunpack.c.l.b16 %v124
  %v531 = vunpack.c.h.b16 %v124
  %v532 = vunpack.c.l.b16 %v125
  %v533 = vunpack.c.h.b16 %v125
  %v534 = vunpack.c.l.b16 %v126
  %v535 = vunpack.c.h.b16 %v126
  %v536 = vunpack.c.l.b16 %v127
  %v537 = vunpack.c.h.b16 %v127
  %v538 = vunpack.c.l.b16 %v128
  %v539 = vunpack.c.h.b16 %v128
  %v540 = vunpack.c.l.b16 %v129
  %v541 = vunpack.c.h.b16 %v129
  %v542 = vunpack.c.l.b16 %v130
  %v543 = vunpack.c.h.b16 %v130
  %v544 = vunpack.c.l.b16 %v131
  %v545 = vunpack.c.h.b16 %v131
  %v546 = vunpack.c.l.b16 %v132
  %v547 = vunpack.c.h.b16 %v132
  %v548 = vunpack.c.l.b16 %v133
  %v549 = vunpack.c.h.b16 %v133
  %v550 = vunpack.c.l.b16 %v134
  %v551 = vunpack.c.h.b16 %v134
  %v552 = vunpack.c.l.b16 %v135
  %v553 = vunpack.c.h.b16 %v135
  %v554 = vunpack.c.l.b16 %v136
  %v555 = vunpack.c.h.b16 %v136
  %v556 = vunpack.c.l.b16 %v137
  %v557 = vunpack.c.h.b16 %v137
  %v558 = vunpack.c.l.b16 %v138
  %v559 = vunpack.c.h.b16 %v138
  %v560 = vunpack.c.l.b16 %v139
  %v561 = vunpack.c.h.b16 %v139
  %v562 = vunpack.c.l.b16 %v140
  %v563 = vunpack.c.h.b16 %v140
  %v564 = vunpack.c.l.b16 %v141
  %v565 = vunpack.c.h.b16 %v141
  %v566 = vunpack.c.l.b16 %v142
  %v567 = vunpack.c.h.b16 %v142
  %v568 = vunpack.c.l.b16 %v143
  %v569 = vunpack.c.h.b16 %v143
  %v570 = vunpack.c.l.b16 %v144
  %v571 = vunpack.c.h.b16 %v144
  %v572 = vunpack.c.l.b16 %v145
  %v573 = vunpack.c.h.b16 %v145
  %v574 = vpack.c.b16 %v326, %v318
  %v575 = vpack.c.b16 %v327, %v319
  %v576 = vpack.c.b16 %v328, %v320
  %v577 = vpack.c.b16 %v329, %v321
  %v578 = vpack.c.b16 %v330, %v322
  %v579 = vpack.c.b16 %v331, %v323
  %v580 = vpack.c.b16 %v332, %v324
  %v581 = vpack.c.b16 %v333, %v325
  %v582 = vpack.c.b16 %v342, %v334
  %v583 = vpack.c.b16 %v343, %v335
  %v584 = vpack.c.b16 %v344, %v336
  %v585 = vpack.c.b16 %v345, %v337
  %v586 = vpack.c.b16 %v346, %v338
  %v587 = vpack.c.b16 %v347, %v339
  %v588 = vpack.c.b16 %v348, %v340
  %v589 = vpack.c.b16 %v349, %v341
  %v590 = vpack.c.b16 %v358, %v350
  %v591 = vpack.c.b16 %v359, %v351
  %v592 = vpack.c.b16 %v360, %v352
  %v593 = vpack.c.b16 %v361, %v353
  %v594 = vpack.c.b16 %v362, %v354
  %v595 = vpack.c.b16 %v363, %v355
  %v596 = vpack.c.b16 %v364, %v356
  %v597 = vpack.c.b16 %v365, %v357
  %v598 = vpack.c.b16 %v374, %v366
  %v599 = vpack.c.b16 %v375, %v367
  %v600 = vpack.c.b16 %v376, %v368
  %v601 = vpack.c.b16 %v377, %v369
  %v602 = vpack.c.b16 %v378, %v370
  %v603 = vpack.c.b16 %v379, %v371
  %v604 = vpack.c.b16 %v380, %v372
  %v605 = vpack.c.b16 %v381, %v373
  %v606 = vpack.c.b16 %v390, %v382
  %v607 = vpack.c.b16 %v391, %v383
  %v608 = vpack.c.b16 %v392, %v384
  %v609 = vpack.c.b16 %v393, %v385
  %v610 = vpack.c.b16 %v394, %v386
  %v611 = vpack.c.b16 %v395, %v387
  %v612 = vpack.c.b16 %v396, %v388
  %v613 = vpack.c.b16 %v397, %v389
  %v614 = vpack.c.b16 %v406, %v398
  %v615 = vpack.c.b16 %v407, %v399
  %v616 = vpack.c.b16 %v408, %v400
  %v617 = vpack.c.b16 %v409, %v401
  %v618 = vpack.c.b16 %v410, %v402
  %v619 = vpack.c.b16 %v411, %v403
  %v620 = vpack.c.b16 %v412, %v404
  %v621 = vpack.c.b16 %v413, %v405
  %v622 = vpack.c.b16 %v422, %v414
  %v623 = vpack.c.b16 %v423, %v415
  %v624 = vpack.c.b16 %v424, %v416
  %v625 = vpack.c.b16 %v425, %v417
  %v626 = vpack.c.b16 %v426, %v418
  %v627 = vpack.c.b16 %v427, %v419
  %v628 = vpack.c.b16 %v428, %v420
  %v629 = vpack.c.b16 %v429, %v421
  %v630 = vpack.c.b16 %v438, %v430
  %v631 = vpack.c.b16 %v439, %v431
  %v632 = vpack.c.b16 %v440, %v432
  %v633 = vpack.c.b16 %v441, %v433
  %v634 = vpack.c.b16 %v442, %v434
  %v635 = vpack.c.b16 %v443, %v435
  %v636 = vpack.c.b16 %v444, %v436
  %v637 = vpack.c.b16 %v445, %v437
  %v638 = vpack.c.b16 %v454, %v446
  %v639 = vpack.c.b16 %v455, %v447
  %v640 = vpack.c.b16 %v456, %v448
  %v641 = vpack.c.b16 %v457, %v449
  %v642 = vpack.c.b16 %v458, %v450
  %v643 = vpack.c.b16 %v459, %v451
  %v644 = vpack.c.b16 %v460, %v452
  %v645 = vpack.c.b16 %v461, %v453
  %v646 = vpack.c.b16 %v470, %v462
  %v647 = vpack.c.b16 %v471, %v463
  %v648 = vpack.c.b16 %v472, %v464
  %v649 = vpack.c.b16 %v473, %v465
  %v650 = vpack.c.b16 %v474, %v466
  %v651 = vpack.c.b16 %v475, %v467
  %v652 = vpack.c.b16 %v476, %v468
  %v653 = vpack.c.b16 %v477, %v469
  %v654 = vpack.c.b16 %v486, %v478
  %v655 = vpack.c.b16 %v487, %v479
  %v656 = vpack.c.b16 %v488, %v480
  %v657 = vpack.c.b16 %v489, %v481
  %v658 = vpack.c.b16 %v490, %v482
  %v659 = vpack.c.b16 %v491, %v483
  %v660 = vpack.c.b16 %v492, %v484
  %v661 = vpack.c.b16 %v493, %v485
  %v662 = vpack.c.b16 %v502, %v494
  %v663 = vpack.c.b16 %v503, %v495
  %v664 = vpack.c.b16 %v504, %v496
  %v665 = vpack.c.b16 %v505, %v497
  %v666 = vpack.c.b16 %v506, %v498
  %v667 = vpack.c.b16 %v507, %v499
  %v668 = vpack.c.b16 %v508, %v500
  %v669 = vpack.c.b16 %v509, %v501
  %v670 = vpack.c.b16 %v518, %v510
  %v671 = vpack.c.b16 %v519, %v511
  %v672 = vpack.c.b16 %v520, %v512
  %v673 = vpack.c.b16 %v521, %v513
  %v674 = vpack.c.b16 %v522, %v514
  %v675 = vpack.c.b16 %v523, %v515
  %v676 = vpack.c.b16 %v524, %v516
  %v677 = vpack.c.b16 %v525, %v517
  %v678 = vpack.c.b16 %v534, %v526
  %v679 = vpack.c.b16 %v535, %v527
  %v680 = vpack.c.b16 %v536, %v528
  %v681 = vpack.c.b16 %v537, %v529
  %v682 = vpack.c.b16 %v538, %v530
  %v683 = vpack.c.b16 %v539, %v531
  %v684 = vpack.c.b16 %v540, %v532
  %v685 = vpack.c.b16 %v541, %v533
  %v686 = vpack.c.b16 %v550, %v542
  %v687 = vpack.c.b16 %v551, %v543
  %v688 = vpack.c.b16 %v552, %v544
  %v689 = vpack.c.b16 %v553, %v545
  %v690 = vpack.c.b16 %v554, %v546
  %v691 = vpack.c.b16 %v555, %v547
  %v692 = vpack.c.b16 %v556, %v548
  %v693 = vpack.c.b16 %v557, %v549
  %v694 = vpack.c.b16 %v566, %v558
  %v695 = vpack.c.b16 %v567, %v559
  %v696 = vpack.c.b16 %v568, %v560
  %v697 = vpack.c.b16 %v569, %v561
  %v698 = vpack.c.b16 %v570, %v562
  %v699 = vpack.c.b16 %v571, %v563
  %v700 = vpack.c.b16 %v572, %v564
  %v701 = vpack.c.b16 %v573, %v565
  %830 = vmatprep.subr.bf16.mxu0 %v575
  %831 = vmatpush1.bf16.msra.mxu0 %v574
  %832 = vmatprep.subr.bf16.mxu0 %v583
  %833 = vmatpush1.bf16.msra.mxu0 %v582
  %834 = vmatprep.subr.bf16.mxu0 %v591
  %835 = vmatpush1.bf16.msra.mxu0 %v590
  %836 = vmatprep.subr.bf16.mxu0 %v599
  %837 = vmatpush1.bf16.msra.mxu0 %v598
  %838 = vmatprep.subr.bf16.mxu0 %v607
  %839 = vmatpush1.bf16.msra.mxu0 %v606
  %840 = vmatprep.subr.bf16.mxu0 %v615
  %841 = vmatpush1.bf16.msra.mxu0 %v614
  %842 = vmatprep.subr.bf16.mxu0 %v623
  %843 = vmatpush1.bf16.msra.mxu0 %v622
  %844 = vmatprep.subr.bf16.mxu0 %v631
  %845 = vmatpush1.bf16.msra.mxu0 %v630
  %846 = vmatprep.subr.bf16.mxu0 %v639
  %847 = vmatpush1.bf16.msra.mxu0 %v638
  %848 = vmatprep.subr.bf16.mxu0 %v647
  %849 = vmatpush1.bf16.msra.mxu0 %v646
  %850 = vmatprep.subr.bf16.mxu0 %v655
  %851 = vmatpush1.bf16.msra.mxu0 %v654
  %852 = vmatprep.subr.bf16.mxu0 %v663
  %853 = vmatpush1.bf16.msra.mxu0 %v662
  %854 = vmatprep.subr.bf16.mxu0 %v671
  %855 = vmatpush1.bf16.msra.mxu0 %v670
  %856 = vmatprep.subr.bf16.mxu0 %v679
  %857 = vmatpush1.bf16.msra.mxu0 %v678
  %858 = vmatprep.subr.bf16.mxu0 %v687
  %859 = vmatpush1.bf16.msra.mxu0 %v686
  %860 = vmatprep.subr.bf16.mxu0 %v695
  %861 = vmatpush1.bf16.msra.mxu0 %v694
  %862 = vmatprep.mubr.bf16.mxu0 %v183
  %863 = vmatmul.mubr.bf16.gmra.mrb[0].mxu0 %v182
  %v864 = vpop.f32.mrb[0].mxu0
  %v865 = vadd.f32 %v153, %v864
  %v866 = vpop.f32.mrb[0].mxu0
  %v867 = vadd.f32 %v153, %v866
  %v868 = vpop.f32.mrb[0].mxu0
  %v869 = vadd.f32 %v158, %v868
  %v870 = vpop.f32.mrb[0].mxu0
  %v871 = vadd.f32 %v158, %v870
  %872 = vmatprep.mubr.bf16.mxu0 %v185
  %873 = vmatmul.mubr.bf16.gmra.mrb[0].mxu0 %v184
  %v874 = vpop.f32.mrb[0].mxu0
  %v875 = vadd.f32 %v163, %v874
  %v876 = vpop.f32.mrb[0].mxu0
  %v877 = vadd.f32 %v163, %v876
  %v878 = vpop.f32.mrb[0].mxu0
  %v879 = vadd.f32 %v168, %v878
  %v880 = vpop.f32.mrb[0].mxu0
  %v881 = vadd.f32 %v168, %v880
  %882 = vdwg.mxu0
  %883 = vmatprep.subr.bf16.mxu0 %v577
  %884 = vmatpush1.bf16.msra.mxu0 %v576
  %885 = vmatprep.subr.bf16.mxu0 %v585
  %886 = vmatpush1.bf16.msra.mxu0 %v584
  %887 = vmatprep.subr.bf16.mxu0 %v593
  %888 = vmatpush1.bf16.msra.mxu0 %v592
  %889 = vmatprep.subr.bf16.mxu0 %v601
  %890 = vmatpush1.bf16.msra.mxu0 %v600
  %891 = vmatprep.subr.bf16.mxu0 %v609
  %892 = vmatpush1.bf16.msra.mxu0 %v608
  %893 = vmatprep.subr.bf16.mxu0 %v617
  %894 = vmatpush1.bf16.msra.mxu0 %v616
  %895 = vmatprep.subr.bf16.mxu0 %v625
  %896 = vmatpush1.bf16.msra.mxu0 %v624
  %897 = vmatprep.subr.bf16.mxu0 %v633
  %898 = vmatpush1.bf16.msra.mxu0 %v632
  %899 = vmatprep.subr.bf16.mxu0 %v641
  %900 = vmatpush1.bf16.msra.mxu0 %v640
  %901 = vmatprep.subr.bf16.mxu0 %v649
  %902 = vmatpush1.bf16.msra.mxu0 %v648
  %903 = vmatprep.subr.bf16.mxu0 %v657
  %904 = vmatpush1.bf16.msra.mxu0 %v656
  %905 = vmatprep.subr.bf16.mxu0 %v665
  %906 = vmatpush1.bf16.msra.mxu0 %v664
  %907 = vmatprep.subr.bf16.mxu0 %v673
  %908 = vmatpush1.bf16.msra.mxu0 %v672
  %909 = vmatprep.subr.bf16.mxu0 %v681
  %910 = vmatpush1.bf16.msra.mxu0 %v680
  %911 = vmatprep.subr.bf16.mxu0 %v689
  %912 = vmatpush1.bf16.msra.mxu0 %v688
  %913 = vmatprep.subr.bf16.mxu0 %v697
  %914 = vmatpush1.bf16.msra.mxu0 %v696
  %915 = vmatprep.mubr.bf16.mxu0 %v183
  %916 = vmatmul.mubr.bf16.gmra.mrb[0].mxu0 %v182
  %v917 = vpop.f32.mrb[0].mxu0
  %v918 = vadd.f32 %v153, %v917
  %v919 = vpop.f32.mrb[0].mxu0
  %v920 = vadd.f32 %v153, %v919
  %v921 = vpop.f32.mrb[0].mxu0
  %v922 = vadd.f32 %v158, %v921
  %v923 = vpop.f32.mrb[0].mxu0
  %v924 = vadd.f32 %v158, %v923
  %925 = vmatprep.mubr.bf16.mxu0 %v185
  %926 = vmatmul.mubr.bf16.gmra.mrb[0].mxu0 %v184
  %v927 = vpop.f32.mrb[0].mxu0
  %v928 = vadd.f32 %v163, %v927
  %v929 = vpop.f32.mrb[0].mxu0
  %v930 = vadd.f32 %v163, %v929
  %v931 = vpop.f32.mrb[0].mxu0
  %v932 = vadd.f32 %v168, %v931
  %v933 = vpop.f32.mrb[0].mxu0
  %v934 = vadd.f32 %v168, %v933
  %935 = vdwg.mxu0
  %936 = vmatprep.subr.bf16.mxu0 %v579
  %937 = vmatpush1.bf16.msra.mxu0 %v578
  %938 = vmatprep.subr.bf16.mxu0 %v587
  %939 = vmatpush1.bf16.msra.mxu0 %v586
  %940 = vmatprep.subr.bf16.mxu0 %v595
  %941 = vmatpush1.bf16.msra.mxu0 %v594
  %942 = vmatprep.subr.bf16.mxu0 %v603
  %943 = vmatpush1.bf16.msra.mxu0 %v602
  %944 = vmatprep.subr.bf16.mxu0 %v611
  %945 = vmatpush1.bf16.msra.mxu0 %v610
  %946 = vmatprep.subr.bf16.mxu0 %v619
  %947 = vmatpush1.bf16.msra.mxu0 %v618
  %948 = vmatprep.subr.bf16.mxu0 %v627
  %949 = vmatpush1.bf16.msra.mxu0 %v626
  %950 = vmatprep.subr.bf16.mxu0 %v635
  %951 = vmatpush1.bf16.msra.mxu0 %v634
  %952 = vmatprep.subr.bf16.mxu0 %v643
  %953 = vmatpush1.bf16.msra.mxu0 %v642
  %954 = vmatprep.subr.bf16.mxu0 %v651
  %955 = vmatpush1.bf16.msra.mxu0 %v650
  %956 = vmatprep.subr.bf16.mxu0 %v659
  %957 = vmatpush1.bf16.msra.mxu0 %v658
  %958 = vmatprep.subr.bf16.mxu0 %v667
  %959 = vmatpush1.bf16.msra.mxu0 %v666
  %960 = vmatprep.subr.bf16.mxu0 %v675
  %961 = vmatpush1.bf16.msra.mxu0 %v674
  %962 = vmatprep.subr.bf16.mxu0 %v683
  %963 = vmatpush1.bf16.msra.mxu0 %v682
  %964 = vmatprep.subr.bf16.mxu0 %v691
  %965 = vmatpush1.bf16.msra.mxu0 %v690
  %966 = vmatprep.subr.bf16.mxu0 %v699
  %967 = vmatpush1.bf16.msra.mxu0 %v698
  %968 = vmatprep.mubr.bf16.mxu0 %v183
  %969 = vmatmul.mubr.bf16.gmra.mrb[0].mxu0 %v182
  %v970 = vpop.f32.mrb[0].mxu0
  %v971 = vadd.f32 %v153, %v970
  %v972 = vpop.f32.mrb[0].mxu0
  %v973 = vadd.f32 %v153, %v972
  %v974 = vpop.f32.mrb[0].mxu0
  %v975 = vadd.f32 %v158, %v974
  %v976 = vpop.f32.mrb[0].mxu0
  %v977 = vadd.f32 %v158, %v976
  %978 = vmatprep.mubr.bf16.mxu0 %v185
  %979 = vmatmul.mubr.bf16.gmra.mrb[0].mxu0 %v184
  %v980 = vpop.f32.mrb[0].mxu0
  %v981 = vadd.f32 %v163, %v980
  %v982 = vpop.f32.mrb[0].mxu0
  %v983 = vadd.f32 %v163, %v982
  %v984 = vpop.f32.mrb[0].mxu0
  %v985 = vadd.f32 %v168, %v984
  %v986 = vpop.f32.mrb[0].mxu0
  %v987 = vadd.f32 %v168, %v986
  %988 = vdwg.mxu0
  %989 = vmatprep.subr.bf16.mxu0 %v581
  %990 = vmatpush1.bf16.msra.mxu0 %v580
  %991 = vmatprep.subr.bf16.mxu0 %v589
  %992 = vmatpush1.bf16.msra.mxu0 %v588
  %993 = vmatprep.subr.bf16.mxu0 %v597
  %994 = vmatpush1.bf16.msra.mxu0 %v596
  %995 = vmatprep.subr.bf16.mxu0 %v605
  %996 = vmatpush1.bf16.msra.mxu0 %v604
  %997 = vmatprep.subr.bf16.mxu0 %v613
  %998 = vmatpush1.bf16.msra.mxu0 %v612
  %999 = vmatprep.subr.bf16.mxu0 %v621
  %1000 = vmatpush1.bf16.msra.mxu0 %v620
  %1001 = vmatprep.subr.bf16.mxu0 %v629
  %1002 = vmatpush1.bf16.msra.mxu0 %v628
  %1003 = vmatprep.subr.bf16.mxu0 %v637
  %1004 = vmatpush1.bf16.msra.mxu0 %v636
  %1005 = vmatprep.subr.bf16.mxu0 %v645
  %1006 = vmatpush1.bf16.msra.mxu0 %v644
  %1007 = vmatprep.subr.bf16.mxu0 %v653
  %1008 = vmatpush1.bf16.msra.mxu0 %v652
  %1009 = vmatprep.subr.bf16.mxu0 %v661
  %1010 = vmatpush1.bf16.msra.mxu0 %v660
  %1011 = vmatprep.subr.bf16.mxu0 %v669
  %1012 = vmatpush1.bf16.msra.mxu0 %v668
  %1013 = vmatprep.subr.bf16.mxu0 %v677
  %1014 = vmatpush1.bf16.msra.mxu0 %v676
  %1015 = vmatprep.subr.bf16.mxu0 %v685
  %1016 = vmatpush1.bf16.msra.mxu0 %v684
  %1017 = vmatprep.subr.bf16.mxu0 %v693
  %1018 = vmatpush1.bf16.msra.mxu0 %v692
  %1019 = vmatprep.subr.bf16.mxu0 %v701
  %1020 = vmatpush1.bf16.msra.mxu0 %v700
  %1021 = vmatprep.mubr.bf16.mxu0 %v183
  %1022 = vmatmul.mubr.bf16.gmra.mrb[0].mxu0 %v182
  %v1023 = vpop.f32.mrb[0].mxu0
  %v1024 = vadd.f32 %v153, %v1023
  %v1025 = vpop.f32.mrb[0].mxu0
  %v1026 = vadd.f32 %v153, %v1025
  %v1027 = vpop.f32.mrb[0].mxu0
  %v1028 = vadd.f32 %v158, %v1027
  %v1029 = vpop.f32.mrb[0].mxu0
  %v1030 = vadd.f32 %v158, %v1029
  %1031 = vmatprep.mubr.bf16.mxu0 %v185
  %1032 = vmatmul.mubr.bf16.gmra.mrb[0].mxu0 %v184
  %v1033 = vpop.f32.mrb[0].mxu0
  %v1034 = vadd.f32 %v163, %v1033
  %v1035 = vpop.f32.mrb[0].mxu0
  %v1036 = vadd.f32 %v163, %v1035
  %v1037 = vpop.f32.mrb[0].mxu0
  %v1038 = vadd.f32 %v168, %v1037
  %v1039 = vpop.f32.mrb[0].mxu0
  %v1040 = vadd.f32 %v168, %v1039
  %1041 = vdwg.mxu0
  %v1042 = vmax.f32 %v865, 0.0
  %v1043 = vmax.f32 %v867, 0.0
  %v1044 = vmax.f32 %v918, 0.0
  %v1045 = vmax.f32 %v920, 0.0
  %v1046 = vmax.f32 %v971, 0.0
  %v1047 = vmax.f32 %v973, 0.0
  %v1048 = vmax.f32 %v1024, 0.0
  %v1049 = vmax.f32 %v1026, 0.0
  %v1050 = vmax.f32 %v869, 0.0
  %v1051 = vmax.f32 %v871, 0.0
  %v1052 = vmax.f32 %v922, 0.0
  %v1053 = vmax.f32 %v924, 0.0
  %v1054 = vmax.f32 %v975, 0.0
  %v1055 = vmax.f32 %v977, 0.0
  %v1056 = vmax.f32 %v1028, 0.0
  %v1057 = vmax.f32 %v1030, 0.0
  %v1058 = vmax.f32 %v875, 0.0
  %v1059 = vmax.f32 %v877, 0.0
  %v1060 = vmax.f32 %v928, 0.0
  %v1061 = vmax.f32 %v930, 0.0
  %v1062 = vmax.f32 %v981, 0.0
  %v1063 = vmax.f32 %v983, 0.0
  %v1064 = vmax.f32 %v1034, 0.0
  %v1065 = vmax.f32 %v1036, 0.0
  %v1066 = vmax.f32 %v879, 0.0
  %v1067 = vmax.f32 %v881, 0.0
  %v1068 = vmax.f32 %v932, 0.0
  %v1069 = vmax.f32 %v934, 0.0
  %v1070 = vmax.f32 %v985, 0.0
  %v1071 = vmax.f32 %v987, 0.0
  %v1072 = vmax.f32 %v1038, 0.0
  %v1073 = vmax.f32 %v1040, 0.0
  %v1074 = vpack.c.bf16 %v1050, %v1042
  %v1075 = vpack.c.bf16 %v1051, %v1043
  %v1076 = vpack.c.bf16 %v1052, %v1044
  %v1077 = vpack.c.bf16 %v1053, %v1045
  %v1078 = vpack.c.bf16 %v1054, %v1046
  %v1079 = vpack.c.bf16 %v1055, %v1047
  %v1080 = vpack.c.bf16 %v1056, %v1048
  %v1081 = vpack.c.bf16 %v1057, %v1049
  %v1082 = vpack.c.bf16 %v1066, %v1058
  %v1083 = vpack.c.bf16 %v1067, %v1059
  %v1084 = vpack.c.bf16 %v1068, %v1060
  %v1085 = vpack.c.bf16 %v1069, %v1061
  %v1086 = vpack.c.bf16 %v1070, %v1062
  %v1087 = vpack.c.bf16 %v1071, %v1063
  %v1088 = vpack.c.bf16 %v1072, %v1064
  %v1089 = vpack.c.bf16 %v1073, %v1065
  %v1106 = vunpack.c.l.b16 %v1074
  %v1107 = vunpack.c.l.b16 %v1075
  %v1108 = vunpack.c.l.b16 %v1076
  %v1109 = vunpack.c.l.b16 %v1077
  %v1110 = vunpack.c.l.b16 %v1078
  %v1111 = vunpack.c.l.b16 %v1079
  %v1112 = vunpack.c.l.b16 %v1080
  %v1113 = vunpack.c.l.b16 %v1081
  %v1114 = vunpack.c.h.b16 %v1074
  %v1115 = vunpack.c.h.b16 %v1075
  %v1116 = vunpack.c.h.b16 %v1076
  %v1117 = vunpack.c.h.b16 %v1077
  %v1118 = vunpack.c.h.b16 %v1078
  %v1119 = vunpack.c.h.b16 %v1079
  %v1120 = vunpack.c.h.b16 %v1080
  %v1121 = vunpack.c.h.b16 %v1081
  %v1122 = vunpack.c.l.b16 %v1082
  %v1123 = vunpack.c.l.b16 %v1083
  %v1124 = vunpack.c.l.b16 %v1084
  %v1125 = vunpack.c.l.b16 %v1085
  %v1126 = vunpack.c.l.b16 %v1086
  %v1127 = vunpack.c.l.b16 %v1087
  %v1128 = vunpack.c.l.b16 %v1088
  %v1129 = vunpack.c.l.b16 %v1089
  %v1130 = vunpack.c.h.b16 %v1082
  %v1131 = vunpack.c.h.b16 %v1083
  %v1132 = vunpack.c.h.b16 %v1084
  %v1133 = vunpack.c.h.b16 %v1085
  %v1134 = vunpack.c.h.b16 %v1086
  %v1135 = vunpack.c.h.b16 %v1087
  %v1136 = vunpack.c.h.b16 %v1088
  %v1137 = vunpack.c.h.b16 %v1089
  %v1138 = vpack.c.b16 %v1107, %v1106
  %v1139 = vpack.c.b16 %v1109, %v1108
  %v1140 = vpack.c.b16 %v1111, %v1110
  %v1141 = vpack.c.b16 %v1113, %v1112
  %v1142 = vpack.c.b16 %v1115, %v1114
  %v1143 = vpack.c.b16 %v1117, %v1116
  %v1144 = vpack.c.b16 %v1119, %v1118
  %v1145 = vpack.c.b16 %v1121, %v1120
  %v1146 = vpack.c.b16 %v1123, %v1122
  %v1147 = vpack.c.b16 %v1125, %v1124
  %v1148 = vpack.c.b16 %v1127, %v1126
  %v1149 = vpack.c.b16 %v1129, %v1128
  %v1150 = vpack.c.b16 %v1131, %v1130
  %v1151 = vpack.c.b16 %v1133, %v1132
  %v1152 = vpack.c.b16 %v1135, %v1134
  %v1153 = vpack.c.b16 %v1137, %v1136
  %1170 = vst [vmem:[%s3] sm:$0xff] %v1138
  %1171 = vst [vmem:[%s3 + $0x8] sm:$0xff] %v1139
  %1172 = vst [vmem:[%s3 + $0x10] sm:$0xff] %v1140
  %vm1173 = vcmask 1043456
  %vm1174 = vcmask 523268
  %vm1175 = vmor %vm1174, %vm1173
  %1176 = vst.msk [vmem:[%s3 + $0x18] sm:$0xff] %vm1175, %v1141
  %1177 = vst [vmem:[%s3 + $0x20] sm:$0xff] %v1142
  %1178 = vst [vmem:[%s3 + $0x28] sm:$0xff] %v1143
  %1179 = vst [vmem:[%s3 + $0x30] sm:$0xff] %v1144
  %1180 = vst.msk [vmem:[%s3 + $0x38] sm:$0xff] %vm1175, %v1145
  %1181 = vst [vmem:[%s3 + $0x40] sm:$0xff] %v1146
  %1182 = vst [vmem:[%s3 + $0x48] sm:$0xff] %v1147
  %1183 = vst [vmem:[%s3 + $0x50] sm:$0xff] %v1148
  %1184 = vst.msk [vmem:[%s3 + $0x58] sm:$0xff] %vm1175, %v1149
  %1185 = vst [vmem:[%s3 + $0x60] sm:$0xff] %v1150
  %1186 = vst [vmem:[%s3 + $0x68] sm:$0xff] %v1151
  %1187 = vst [vmem:[%s3 + $0x70] sm:$0xff] %v1152
  %1188 = vst.msk [vmem:[%s3 + $0x78] sm:$0xff] %vm1175, %v1153
  // Predicated region
  $region14: #{dddqnet_forward.4} parent=0 // pred_check
    _
  $region15: #{dddqnet_forward.4} parent=0 // pred_check_branch
    %1190 = sbr.rel (0) target = $region17
  $region16: #{dddqnet_forward.4} parent=0 // pred_region
    _
  $region17: #{dddqnet_forward.4} parent=0 // pred_fallthru
    _
  // Predicated region
  $region18: #{dddqnet_forward.4} parent=0 // pred_check
    _
  $region19: #{dddqnet_forward.4} parent=0 // pred_check_branch
    %1192 = sbr.rel (0) target = $region21
  $region20: #{dddqnet_forward.4} parent=0 // pred_region
    _
  $region21: #{dddqnet_forward.4} parent=0 // pred_fallthru
    _

// kernel: dddqnet_forward.5
$region0: #{dddqnet_forward.5}
  #allocation0 [shape = 'u32[]', space=smem, size = 0x4, offset = 0x4, fixed_abs, tag = 'smem constant byte address 0x4 - core index']
  #allocation1 [shape = 'u32[144,128]{1,0:T(1,128)}', space=vmem, size = 0x12000, scoped, tag = 'internal scratch']
  %s0 = inlined_call_operand.vmem [shape: bf16[64,512], index: 0, kind: input, shape index: {}]
  %s1 = inlined_call_operand.vmem [shape: bf16[512,198], index: 1, kind: input, shape index: {}]
  %s2 = inlined_call_operand.vmem [shape: f32[64,1], index: 2, kind: input, shape index: {}]
  %s3 = inlined_call_operand.vmem [shape: bf16[64,198], index: 3, kind: output, shape index: {}]
  %s4 = sld [smem:[#allocation0]]
  $region22: #{dddqnet_forward.5} parent=0
    _
  %s6 = ssub.s32 1, %s4
  %s7 = scalar_select 0, %s6, %s4
  // Predicated region
  $region2: #{dddqnet_forward.5} parent=0 // pred_check
    _
  $region3: #{dddqnet_forward.5} parent=0 // pred_check_branch
    %9 = sbr.rel (0) target = $region5
  $region4: #{dddqnet_forward.5} parent=0 // pred_region
    _
  $region5: #{dddqnet_forward.5} parent=0 // pred_fallthru
    _
  // Predicated region
  $region6: #{dddqnet_forward.5} parent=0 // pred_check
    _
  $region7: #{dddqnet_forward.5} parent=0 // pred_check_branch
    %11 = sbr.rel (0) target = $region9
  $region8: #{dddqnet_forward.5} parent=0 // pred_region
    _
  $region9: #{dddqnet_forward.5} parent=0 // pred_fallthru
    _
  // Predicated region
  $region10: #{dddqnet_forward.5} parent=0 // pred_check
    _
  $region11: #{dddqnet_forward.5} parent=0 // pred_check_branch
    %13 = sbr.rel (0) target = $region13
  $region12: #{dddqnet_forward.5} parent=0 // pred_region
    _
  $region13: #{dddqnet_forward.5} parent=0 // pred_fallthru
    _
  %v14 = vld [vmem:[%s0] sm:$0xff]
  %v15 = vld [vmem:[%s0 + $0x8] sm:$0xff]
  %v16 = vld [vmem:[%s0 + $0x10] sm:$0xff]
  %v17 = vld [vmem:[%s0 + $0x18] sm:$0xff]
  %v18 = vld [vmem:[%s0 + $0x20] sm:$0xff]
  %v19 = vld [vmem:[%s0 + $0x28] sm:$0xff]
  %v20 = vld [vmem:[%s0 + $0x30] sm:$0xff]
  %v21 = vld [vmem:[%s0 + $0x38] sm:$0xff]
  %v22 = vld [vmem:[%s0 + $0x40] sm:$0xff]
  %v23 = vld [vmem:[%s0 + $0x48] sm:$0xff]
  %v24 = vld [vmem:[%s0 + $0x50] sm:$0xff]
  %v25 = vld [vmem:[%s0 + $0x58] sm:$0xff]
  %v26 = vld [vmem:[%s0 + $0x60] sm:$0xff]
  %v27 = vld [vmem:[%s0 + $0x68] sm:$0xff]
  %v28 = vld [vmem:[%s0 + $0x70] sm:$0xff]
  %v29 = vld [vmem:[%s0 + $0x78] sm:$0xff]
  %v30 = vld [vmem:[%s1] sm:$0xff]
  %v31 = vld [vmem:[%s1 + $0x8] sm:$0xff]
  %v32 = vld [vmem:[%s1 + $0x10] sm:$0xff]
  %v33 = vld [vmem:[%s1 + $0x18] sm:$0xff]
  %v34 = vld [vmem:[%s1 + $0x20] sm:$0xff]
  %v35 = vld [vmem:[%s1 + $0x28] sm:$0xff]
  %v36 = vld [vmem:[%s1 + $0x30] sm:$0xff]
  %v37 = vld [vmem:[%s1 + $0x38] sm:$0xff]
  %v38 = vld [vmem:[%s1 + $0x40] sm:$0xff]
  %v39 = vld [vmem:[%s1 + $0x48] sm:$0xff]
  %v40 = vld [vmem:[%s1 + $0x50] sm:$0xff]
  %v41 = vld [vmem:[%s1 + $0x58] sm:$0xff]
  %v42 = vld [vmem:[%s1 + $0x60] sm:$0xff]
  %v43 = vld [vmem:[%s1 + $0x68] sm:$0xff]
  %v44 = vld [vmem:[%s1 + $0x70] sm:$0xff]
  %v45 = vld [vmem:[%s1 + $0x78] sm:$0xff]
  %v46 = vld [vmem:[%s1 + $0x80] sm:$0xff]
  %v47 = vld [vmem:[%s1 + $0x88] sm:$0xff]
  %v48 = vld [vmem:[%s1 + $0x90] sm:$0xff]
  %v49 = vld [vmem:[%s1 + $0x98] sm:$0xff]
  %v50 = vld [vmem:[%s1 + $0xa0] sm:$0xff]
  %v51 = vld [vmem:[%s1 + $0xa8] sm:$0xff]
  %v52 = vld [vmem:[%s1 + $0xb0] sm:$0xff]
  %v53 = vld [vmem:[%s1 + $0xb8] sm:$0xff]
  %v54 = vld [vmem:[%s1 + $0xc0] sm:$0xff]
  %v55 = vld [vmem:[%s1 + $0xc8] sm:$0xff]
  %v56 = vld [vmem:[%s1 + $0xd0] sm:$0xff]
  %v57 = vld [vmem:[%s1 + $0xd8] sm:$0xff]
  %v58 = vld [vmem:[%s1 + $0xe0] sm:$0xff]
  %v59 = vld [vmem:[%s1 + $0xe8] sm:$0xff]
  %v60 = vld [vmem:[%s1 + $0xf0] sm:$0xff]
  %v61 = vld [vmem:[%s1 + $0xf8] sm:$0xff]
  %v62 = vld [vmem:[%s1 + $0x100] sm:$0xff]
  %v63 = vld [vmem:[%s1 + $0x108] sm:$0xff]
  %v64 = vld [vmem:[%s1 + $0x110] sm:$0xff]
  %v65 = vld [vmem:[%s1 + $0x118] sm:$0xff]
  %v66 = vld [vmem:[%s1 + $0x120] sm:$0xff]
  %v67 = vld [vmem:[%s1 + $0x128] sm:$0xff]
  %v68 = vld [vmem:[%s1 + $0x130] sm:$0xff]
  %v69 = vld [vmem:[%s1 + $0x138] sm:$0xff]
  %v70 = vld [vmem:[%s1 + $0x140] sm:$0xff]
  %v71 = vld [vmem:[%s1 + $0x148] sm:$0xff]
  %v72 = vld [vmem:[%s1 + $0x150] sm:$0xff]
  %v73 = vld [vmem:[%s1 + $0x158] sm:$0xff]
  %v74 = vld [vmem:[%s1 + $0x160] sm:$0xff]
  %v75 = vld [vmem:[%s1 + $0x168] sm:$0xff]
  %v76 = vld [vmem:[%s1 + $0x170] sm:$0xff]
  %v77 = vld [vmem:[%s1 + $0x178] sm:$0xff]
  %v78 = vld [vmem:[%s1 + $0x180] sm:$0xff]
  %v79 = vld [vmem:[%s1 + $0x188] sm:$0xff]
  %v80 = vld [vmem:[%s1 + $0x190] sm:$0xff]
  %v81 = vld [vmem:[%s1 + $0x198] sm:$0xff]
  %v82 = vld [vmem:[%s1 + $0x1a0] sm:$0xff]
  %v83 = vld [vmem:[%s1 + $0x1a8] sm:$0xff]
  %v84 = vld [vmem:[%s1 + $0x1b0] sm:$0xff]
  %v85 = vld [vmem:[%s1 + $0x1b8] sm:$0xff]
  %v86 = vld [vmem:[%s1 + $0x1c0] sm:$0xff]
  %v87 = vld [vmem:[%s1 + $0x1c8] sm:$0xff]
  %v88 = vld [vmem:[%s1 + $0x1d0] sm:$0xff]
  %v89 = vld [vmem:[%s1 + $0x1d8] sm:$0xff]
  %v90 = vld [vmem:[%s1 + $0x1e0] sm:$0xff]
  %v91 = vld [vmem:[%s1 + $0x1e8] sm:$0xff]
  %v92 = vld [vmem:[%s1 + $0x1f0] sm:$0xff]
  %v93 = vld [vmem:[%s1 + $0x1f8] sm:$0xff]
  %v94 = vld [vmem:[%s2] sm:$0xff]
  %v95 = vld [vmem:[%s2 + $0x8] sm:$0xff]
  %v96 = vld [vmem:[%s2 + $0x10] sm:$0xff]
  %v97 = vld [vmem:[%s2 + $0x18] sm:$0xff]
  %v98 = vld [vmem:[%s2 + $0x20] sm:$0xff]
  %v99 = vld [vmem:[%s2 + $0x28] sm:$0xff]
  %v100 = vld [vmem:[%s2 + $0x30] sm:$0xff]
  %v101 = vld [vmem:[%s2 + $0x38] sm:$0xff]
  %103 = vset.pattern.permute.xlu0 0
  %104 = vperm.xlu0 %103, %v94
  %v105 = vpop.permute.xlu0 %104
  %108 = vset.pattern.permute.xlu0 0
  %109 = vperm.xlu0 %108, %v95
  %v110 = vpop.permute.xlu0 %109
  %113 = vset.pattern.permute.xlu0 0
  %114 = vperm.xlu0 %113, %v96
  %v115 = vpop.permute.xlu0 %114
  %118 = vset.pattern.permute.xlu0 0
  %119 = vperm.xlu0 %118, %v97
  %v120 = vpop.permute.xlu0 %119
  %123 = vset.pattern.permute.xlu0 0
  %124 = vperm.xlu0 %123, %v98
  %v125 = vpop.permute.xlu0 %124
  %128 = vset.pattern.permute.xlu0 0
  %129 = vperm.xlu0 %128, %v99
  %v130 = vpop.permute.xlu0 %129
  %133 = vset.pattern.permute.xlu0 0
  %134 = vperm.xlu0 %133, %v100
  %v135 = vpop.permute.xlu0 %134
  %138 = vset.pattern.permute.xlu0 0
  %139 = vperm.xlu0 %138, %v101
  %v140 = vpop.permute.xlu0 %139
  %v158 = vunpack.c.l.b16 %v14
  %v159 = vunpack.c.h.b16 %v14
  %v160 = vunpack.c.l.b16 %v15
  %v161 = vunpack.c.h.b16 %v15
  %v162 = vunpack.c.l.b16 %v16
  %v163 = vunpack.c.h.b16 %v16
  %v164 = vunpack.c.l.b16 %v17
  %v165 = vunpack.c.h.b16 %v17
  %v166 = vunpack.c.l.b16 %v18
  %v167 = vunpack.c.h.b16 %v18
  %v168 = vunpack.c.l.b16 %v19
  %v169 = vunpack.c.h.b16 %v19
  %v170 = vunpack.c.l.b16 %v20
  %v171 = vunpack.c.h.b16 %v20
  %v172 = vunpack.c.l.b16 %v21
  %v173 = vunpack.c.h.b16 %v21
  %v174 = vunpack.c.l.b16 %v22
  %v175 = vunpack.c.h.b16 %v22
  %v176 = vunpack.c.l.b16 %v23
  %v177 = vunpack.c.h.b16 %v23
  %v178 = vunpack.c.l.b16 %v24
  %v179 = vunpack.c.h.b16 %v24
  %v180 = vunpack.c.l.b16 %v25
  %v181 = vunpack.c.h.b16 %v25
  %v182 = vunpack.c.l.b16 %v26
  %v183 = vunpack.c.h.b16 %v26
  %v184 = vunpack.c.l.b16 %v27
  %v185 = vunpack.c.h.b16 %v27
  %v186 = vunpack.c.l.b16 %v28
  %v187 = vunpack.c.h.b16 %v28
  %v188 = vunpack.c.l.b16 %v29
  %v189 = vunpack.c.h.b16 %v29
  %v190 = vpack.c.b16 %v162, %v158
  %v191 = vpack.c.b16 %v163, %v159
  %v192 = vpack.c.b16 %v164, %v160
  %v193 = vpack.c.b16 %v165, %v161
  %v194 = vpack.c.b16 %v170, %v166
  %v195 = vpack.c.b16 %v171, %v167
  %v196 = vpack.c.b16 %v172, %v168
  %v197 = vpack.c.b16 %v173, %v169
  %v198 = vpack.c.b16 %v178, %v174
  %v199 = vpack.c.b16 %v179, %v175
  %v200 = vpack.c.b16 %v180, %v176
  %v201 = vpack.c.b16 %v181, %v177
  %v202 = vpack.c.b16 %v186, %v182
  %v203 = vpack.c.b16 %v187, %v183
  %v204 = vpack.c.b16 %v188, %v184
  %v205 = vpack.c.b16 %v189, %v185
  %v286 = vunpack.c.l.b16 %v30
  %v287 = vunpack.c.h.b16 %v30
  %v288 = vunpack.c.l.b16 %v31
  %v289 = vunpack.c.h.b16 %v31
  %v290 = vunpack.c.l.b16 %v32
  %v291 = vunpack.c.h.b16 %v32
  %v292 = vunpack.c.l.b16 %v33
  %v293 = vunpack.c.h.b16 %v33
  %v294 = vunpack.c.l.b16 %v34
  %v295 = vunpack.c.h.b16 %v34
  %v296 = vunpack.c.l.b16 %v35
  %v297 = vunpack.c.h.b16 %v35
  %v298 = vunpack.c.l.b16 %v36
  %v299 = vunpack.c.h.b16 %v36
  %v300 = vunpack.c.l.b16 %v37
  %v301 = vunpack.c.h.b16 %v37
  %v302 = vunpack.c.l.b16 %v38
  %v303 = vunpack.c.h.b16 %v38
  %v304 = vunpack.c.l.b16 %v39
  %v305 = vunpack.c.h.b16 %v39
  %v306 = vunpack.c.l.b16 %v40
  %v307 = vunpack.c.h.b16 %v40
  %v308 = vunpack.c.l.b16 %v41
  %v309 = vunpack.c.h.b16 %v41
  %v310 = vunpack.c.l.b16 %v42
  %v311 = vunpack.c.h.b16 %v42
  %v312 = vunpack.c.l.b16 %v43
  %v313 = vunpack.c.h.b16 %v43
  %v314 = vunpack.c.l.b16 %v44
  %v315 = vunpack.c.h.b16 %v44
  %v316 = vunpack.c.l.b16 %v45
  %v317 = vunpack.c.h.b16 %v45
  %v318 = vunpack.c.l.b16 %v46
  %v319 = vunpack.c.h.b16 %v46
  %v320 = vunpack.c.l.b16 %v47
  %v321 = vunpack.c.h.b16 %v47
  %v322 = vunpack.c.l.b16 %v48
  %v323 = vunpack.c.h.b16 %v48
  %v324 = vunpack.c.l.b16 %v49
  %v325 = vunpack.c.h.b16 %v49
  %v326 = vunpack.c.l.b16 %v50
  %v327 = vunpack.c.h.b16 %v50
  %v328 = vunpack.c.l.b16 %v51
  %v329 = vunpack.c.h.b16 %v51
  %v330 = vunpack.c.l.b16 %v52
  %v331 = vunpack.c.h.b16 %v52
  %v332 = vunpack.c.l.b16 %v53
  %v333 = vunpack.c.h.b16 %v53
  %v334 = vunpack.c.l.b16 %v54
  %v335 = vunpack.c.h.b16 %v54
  %v336 = vunpack.c.l.b16 %v55
  %v337 = vunpack.c.h.b16 %v55
  %v338 = vunpack.c.l.b16 %v56
  %v339 = vunpack.c.h.b16 %v56
  %v340 = vunpack.c.l.b16 %v57
  %v341 = vunpack.c.h.b16 %v57
  %v342 = vunpack.c.l.b16 %v58
  %v343 = vunpack.c.h.b16 %v58
  %v344 = vunpack.c.l.b16 %v59
  %v345 = vunpack.c.h.b16 %v59
  %v346 = vunpack.c.l.b16 %v60
  %v347 = vunpack.c.h.b16 %v60
  %v348 = vunpack.c.l.b16 %v61
  %v349 = vunpack.c.h.b16 %v61
  %v350 = vunpack.c.l.b16 %v62
  %v351 = vunpack.c.h.b16 %v62
  %v352 = vunpack.c.l.b16 %v63
  %v353 = vunpack.c.h.b16 %v63
  %v354 = vunpack.c.l.b16 %v64
  %v355 = vunpack.c.h.b16 %v64
  %v356 = vunpack.c.l.b16 %v65
  %v357 = vunpack.c.h.b16 %v65
  %v358 = vunpack.c.l.b16 %v66
  %v359 = vunpack.c.h.b16 %v66
  %v360 = vunpack.c.l.b16 %v67
  %v361 = vunpack.c.h.b16 %v67
  %v362 = vunpack.c.l.b16 %v68
  %v363 = vunpack.c.h.b16 %v68
  %v364 = vunpack.c.l.b16 %v69
  %v365 = vunpack.c.h.b16 %v69
  %v366 = vunpack.c.l.b16 %v70
  %v367 = vunpack.c.h.b16 %v70
  %v368 = vunpack.c.l.b16 %v71
  %v369 = vunpack.c.h.b16 %v71
  %v370 = vunpack.c.l.b16 %v72
  %v371 = vunpack.c.h.b16 %v72
  %v372 = vunpack.c.l.b16 %v73
  %v373 = vunpack.c.h.b16 %v73
  %v374 = vunpack.c.l.b16 %v74
  %v375 = vunpack.c.h.b16 %v74
  %v376 = vunpack.c.l.b16 %v75
  %v377 = vunpack.c.h.b16 %v75
  %v378 = vunpack.c.l.b16 %v76
  %v379 = vunpack.c.h.b16 %v76
  %v380 = vunpack.c.l.b16 %v77
  %v381 = vunpack.c.h.b16 %v77
  %v382 = vunpack.c.l.b16 %v78
  %v383 = vunpack.c.h.b16 %v78
  %v384 = vunpack.c.l.b16 %v79
  %v385 = vunpack.c.h.b16 %v79
  %v386 = vunpack.c.l.b16 %v80
  %v387 = vunpack.c.h.b16 %v80
  %v388 = vunpack.c.l.b16 %v81
  %v389 = vunpack.c.h.b16 %v81
  %v390 = vunpack.c.l.b16 %v82
  %v391 = vunpack.c.h.b16 %v82
  %v392 = vunpack.c.l.b16 %v83
  %v393 = vunpack.c.h.b16 %v83
  %v394 = vunpack.c.l.b16 %v84
  %v395 = vunpack.c.h.b16 %v84
  %v396 = vunpack.c.l.b16 %v85
  %v397 = vunpack.c.h.b16 %v85
  %v398 = vunpack.c.l.b16 %v86
  %v399 = vunpack.c.h.b16 %v86
  %v400 = vunpack.c.l.b16 %v87
  %v401 = vunpack.c.h.b16 %v87
  %v402 = vunpack.c.l.b16 %v88
  %v403 = vunpack.c.h.b16 %v88
  %v404 = vunpack.c.l.b16 %v89
  %v405 = vunpack.c.h.b16 %v89
  %v406 = vunpack.c.l.b16 %v90
  %v407 = vunpack.c.h.b16 %v90
  %v408 = vunpack.c.l.b16 %v91
  %v409 = vunpack.c.h.b16 %v91
  %v410 = vunpack.c.l.b16 %v92
  %v411 = vunpack.c.h.b16 %v92
  %v412 = vunpack.c.l.b16 %v93
  %v413 = vunpack.c.h.b16 %v93
  %v414 = vpack.c.b16 %v288, %v286
  %v415 = vpack.c.b16 %v289, %v287
  %v416 = vpack.c.b16 %v292, %v290
  %v417 = vpack.c.b16 %v293, %v291
  %v418 = vpack.c.b16 %v296, %v294
  %v419 = vpack.c.b16 %v297, %v295
  %v420 = vpack.c.b16 %v300, %v298
  %v421 = vpack.c.b16 %v301, %v299
  %v422 = vpack.c.b16 %v304, %v302
  %v423 = vpack.c.b16 %v305, %v303
  %v424 = vpack.c.b16 %v308, %v306
  %v425 = vpack.c.b16 %v309, %v307
  %v426 = vpack.c.b16 %v312, %v310
  %v427 = vpack.c.b16 %v313, %v311
  %v428 = vpack.c.b16 %v316, %v314
  %v429 = vpack.c.b16 %v317, %v315
  %v430 = vpack.c.b16 %v320, %v318
  %v431 = vpack.c.b16 %v321, %v319
  %v432 = vpack.c.b16 %v324, %v322
  %v433 = vpack.c.b16 %v325, %v323
  %v434 = vpack.c.b16 %v328, %v326
  %v435 = vpack.c.b16 %v329, %v327
  %v436 = vpack.c.b16 %v332, %v330
  %v437 = vpack.c.b16 %v333, %v331
  %v438 = vpack.c.b16 %v336, %v334
  %v439 = vpack.c.b16 %v337, %v335
  %v440 = vpack.c.b16 %v340, %v338
  %v441 = vpack.c.b16 %v341, %v339
  %v442 = vpack.c.b16 %v344, %v342
  %v443 = vpack.c.b16 %v345, %v343
  %v444 = vpack.c.b16 %v348, %v346
  %v445 = vpack.c.b16 %v349, %v347
  %v446 = vpack.c.b16 %v352, %v350
  %v447 = vpack.c.b16 %v353, %v351
  %v448 = vpack.c.b16 %v356, %v354
  %v449 = vpack.c.b16 %v357, %v355
  %v450 = vpack.c.b16 %v360, %v358
  %v451 = vpack.c.b16 %v361, %v359
  %v452 = vpack.c.b16 %v364, %v362
  %v453 = vpack.c.b16 %v365, %v363
  %v454 = vpack.c.b16 %v368, %v366
  %v455 = vpack.c.b16 %v369, %v367
  %v456 = vpack.c.b16 %v372, %v370
  %v457 = vpack.c.b16 %v373, %v371
  %v458 = vpack.c.b16 %v376, %v374
  %v459 = vpack.c.b16 %v377, %v375
  %v460 = vpack.c.b16 %v380, %v378
  %v461 = vpack.c.b16 %v381, %v379
  %v462 = vpack.c.b16 %v384, %v382
  %v463 = vpack.c.b16 %v385, %v383
  %v464 = vpack.c.b16 %v388, %v386
  %v465 = vpack.c.b16 %v389, %v387
  %v466 = vpack.c.b16 %v392, %v390
  %v467 = vpack.c.b16 %v393, %v391
  %v468 = vpack.c.b16 %v396, %v394
  %v469 = vpack.c.b16 %v397, %v395
  %v470 = vpack.c.b16 %v400, %v398
  %v471 = vpack.c.b16 %v401, %v399
  %v472 = vpack.c.b16 %v404, %v402
  %v473 = vpack.c.b16 %v405, %v403
  %v474 = vpack.c.b16 %v408, %v406
  %v475 = vpack.c.b16 %v409, %v407
  %v476 = vpack.c.b16 %v412, %v410
  %v477 = vpack.c.b16 %v413, %v411
  %542 = vmatprep.subr.bf16.mxu0 %v415
  %543 = vmatpush1.bf16.msra.mxu0 %v414
  %544 = vmatprep.subr.bf16.mxu0 %v417
  %545 = vmatpush1.bf16.msra.mxu0 %v416
  %546 = vmatprep.subr.bf16.mxu0 %v419
  %547 = vmatpush1.bf16.msra.mxu0 %v418
  %548 = vmatprep.subr.bf16.mxu0 %v421
  %549 = vmatpush1.bf16.msra.mxu0 %v420
  %550 = vmatprep.subr.bf16.mxu0 %v423
  %551 = vmatpush1.bf16.msra.mxu0 %v422
  %552 = vmatprep.subr.bf16.mxu0 %v425
  %553 = vmatpush1.bf16.msra.mxu0 %v424
  %554 = vmatprep.subr.bf16.mxu0 %v427
  %555 = vmatpush1.bf16.msra.mxu0 %v426
  %556 = vmatprep.subr.bf16.mxu0 %v429
  %557 = vmatpush1.bf16.msra.mxu0 %v428
  %558 = vmatprep.subr.bf16.mxu0 %v431
  %559 = vmatpush1.bf16.msra.mxu0 %v430
  %560 = vmatprep.subr.bf16.mxu0 %v433
  %561 = vmatpush1.bf16.msra.mxu0 %v432
  %562 = vmatprep.subr.bf16.mxu0 %v435
  %563 = vmatpush1.bf16.msra.mxu0 %v434
  %564 = vmatprep.subr.bf16.mxu0 %v437
  %565 = vmatpush1.bf16.msra.mxu0 %v436
  %566 = vmatprep.subr.bf16.mxu0 %v439
  %567 = vmatpush1.bf16.msra.mxu0 %v438
  %568 = vmatprep.subr.bf16.mxu0 %v441
  %569 = vmatpush1.bf16.msra.mxu0 %v440
  %570 = vmatprep.subr.bf16.mxu0 %v443
  %571 = vmatpush1.bf16.msra.mxu0 %v442
  %572 = vmatprep.subr.bf16.mxu0 %v445
  %573 = vmatpush1.bf16.msra.mxu0 %v444
  %574 = vmatprep.mubr.bf16.mxu0 %v191
  %575 = vmatmul.mubr.bf16.gmra.mrb[0].mxu0 %v190
  %v576 = vpop.f32.mrb[0].mxu0
  %v577 = vadd.f32 %v105, %v576
  %v578 = vpop.f32.mrb[0].mxu0
  %v579 = vadd.f32 %v105, %v578
  %v580 = vpop.f32.mrb[0].mxu0
  %v581 = vadd.f32 %v110, %v580
  %v582 = vpop.f32.mrb[0].mxu0
  %v583 = vadd.f32 %v110, %v582
  %584 = vmatprep.mubr.bf16.mxu0 %v195
  %585 = vmatmul.mubr.bf16.gmra.mrb[0].mxu0 %v194
  %v586 = vpop.f32.mrb[0].mxu0
  %v587 = vadd.f32 %v115, %v586
  %v588 = vpop.f32.mrb[0].mxu0
  %v589 = vadd.f32 %v115, %v588
  %v590 = vpop.f32.mrb[0].mxu0
  %v591 = vadd.f32 %v120, %v590
  %v592 = vpop.f32.mrb[0].mxu0
  %v593 = vadd.f32 %v120, %v592
  %594 = vmatprep.mubr.bf16.mxu0 %v199
  %595 = vmatmul.mubr.bf16.gmra.mrb[0].mxu0 %v198
  %v596 = vpop.f32.mrb[0].mxu0
  %v597 = vadd.f32 %v125, %v596
  %v598 = vpop.f32.mrb[0].mxu0
  %v599 = vadd.f32 %v125, %v598
  %v600 = vpop.f32.mrb[0].mxu0
  %v601 = vadd.f32 %v130, %v600
  %v602 = vpop.f32.mrb[0].mxu0
  %v603 = vadd.f32 %v130, %v602
  %604 = vmatprep.mubr.bf16.mxu0 %v203
  %605 = vmatmul.mubr.bf16.gmra.mrb[0].mxu0 %v202
  %v606 = vpop.f32.mrb[0].mxu0
  %v607 = vadd.f32 %v135, %v606
  %v608 = vpop.f32.mrb[0].mxu0
  %v609 = vadd.f32 %v135, %v608
  %v610 = vpop.f32.mrb[0].mxu0
  %v611 = vadd.f32 %v140, %v610
  %v612 = vpop.f32.mrb[0].mxu0
  %v613 = vadd.f32 %v140, %v612
  %614 = vdwg.mxu0
  %615 = vmatprep.subr.bf16.mxu0 %v447
  %616 = vmatpush1.bf16.msra.mxu0 %v446
  %617 = vmatprep.subr.bf16.mxu0 %v449
  %618 = vmatpush1.bf16.msra.mxu0 %v448
  %619 = vmatprep.subr.bf16.mxu0 %v451
  %620 = vmatpush1.bf16.msra.mxu0 %v450
  %621 = vmatprep.subr.bf16.mxu0 %v453
  %622 = vmatpush1.bf16.msra.mxu0 %v452
  %623 = vmatprep.subr.bf16.mxu0 %v455
  %624 = vmatpush1.bf16.msra.mxu0 %v454
  %625 = vmatprep.subr.bf16.mxu0 %v457
  %626 = vmatpush1.bf16.msra.mxu0 %v456
  %627 = vmatprep.subr.bf16.mxu0 %v459
  %628 = vmatpush1.bf16.msra.mxu0 %v458
  %629 = vmatprep.subr.bf16.mxu0 %v461
  %630 = vmatpush1.bf16.msra.mxu0 %v460
  %631 = vmatprep.subr.bf16.mxu0 %v463
  %632 = vmatpush1.bf16.msra.mxu0 %v462
  %633 = vmatprep.subr.bf16.mxu0 %v465
  %634 = vmatpush1.bf16.msra.mxu0 %v464
  %635 = vmatprep.subr.bf16.mxu0 %v467
  %636 = vmatpush1.bf16.msra.mxu0 %v466
  %637 = vmatprep.subr.bf16.mxu0 %v469
  %638 = vmatpush1.bf16.msra.mxu0 %v468
  %639 = vmatprep.subr.bf16.mxu0 %v471
  %640 = vmatpush1.bf16.msra.mxu0 %v470
  %641 = vmatprep.subr.bf16.mxu0 %v473
  %642 = vmatpush1.bf16.msra.mxu0 %v472
  %643 = vmatprep.subr.bf16.mxu0 %v475
  %644 = vmatpush1.bf16.msra.mxu0 %v474
  %645 = vmatprep.subr.bf16.mxu0 %v477
  %646 = vmatpush1.bf16.msra.mxu0 %v476
  %647 = vmatprep.mubr.bf16.mxu0 %v193
  %648 = vmatmul.mubr.bf16.gmra.mrb[0].mxu0 %v192
  %v649 = vpop.f32.mrb[0].mxu0
  %v650 = vadd.f32 %v577, %v649
  %v651 = vpop.f32.mrb[0].mxu0
  %v652 = vadd.f32 %v579, %v651
  %v653 = vpop.f32.mrb[0].mxu0
  %v654 = vadd.f32 %v581, %v653
  %v655 = vpop.f32.mrb[0].mxu0
  %v656 = vadd.f32 %v583, %v655
  %657 = vmatprep.mubr.bf16.mxu0 %v197
  %658 = vmatmul.mubr.bf16.gmra.mrb[0].mxu0 %v196
  %v659 = vpop.f32.mrb[0].mxu0
  %v660 = vadd.f32 %v587, %v659
  %v661 = vpop.f32.mrb[0].mxu0
  %v662 = vadd.f32 %v589, %v661
  %v663 = vpop.f32.mrb[0].mxu0
  %v664 = vadd.f32 %v591, %v663
  %v665 = vpop.f32.mrb[0].mxu0
  %v666 = vadd.f32 %v593, %v665
  %667 = vmatprep.mubr.bf16.mxu0 %v201
  %668 = vmatmul.mubr.bf16.gmra.mrb[0].mxu0 %v200
  %v669 = vpop.f32.mrb[0].mxu0
  %v670 = vadd.f32 %v597, %v669
  %v671 = vpop.f32.mrb[0].mxu0
  %v672 = vadd.f32 %v599, %v671
  %v673 = vpop.f32.mrb[0].mxu0
  %v674 = vadd.f32 %v601, %v673
  %v675 = vpop.f32.mrb[0].mxu0
  %v676 = vadd.f32 %v603, %v675
  %677 = vmatprep.mubr.bf16.mxu0 %v205
  %678 = vmatmul.mubr.bf16.gmra.mrb[0].mxu0 %v204
  %v679 = vpop.f32.mrb[0].mxu0
  %v680 = vadd.f32 %v607, %v679
  %v681 = vpop.f32.mrb[0].mxu0
  %v682 = vadd.f32 %v609, %v681
  %v683 = vpop.f32.mrb[0].mxu0
  %v684 = vadd.f32 %v611, %v683
  %v685 = vpop.f32.mrb[0].mxu0
  %v686 = vadd.f32 %v613, %v685
  %687 = vdwg.mxu0
  %v688 = vmax.f32 %v650, 0.0
  %v689 = vmax.f32 %v652, 0.0
  %v690 = vmax.f32 %v654, 0.0
  %v691 = vmax.f32 %v656, 0.0
  %v692 = vmax.f32 %v660, 0.0
  %v693 = vmax.f32 %v662, 0.0
  %v694 = vmax.f32 %v664, 0.0
  %v695 = vmax.f32 %v666, 0.0
  %v696 = vmax.f32 %v670, 0.0
  %v697 = vmax.f32 %v672, 0.0
  %v698 = vmax.f32 %v674, 0.0
  %v699 = vmax.f32 %v676, 0.0
  %v700 = vmax.f32 %v680, 0.0
  %v701 = vmax.f32 %v682, 0.0
  %v702 = vmax.f32 %v684, 0.0
  %v703 = vmax.f32 %v686, 0.0
  %v704 = vpack.c.bf16 %v690, %v688
  %v705 = vpack.c.bf16 %v691, %v689
  %v706 = vpack.c.bf16 %v694, %v692
  %v707 = vpack.c.bf16 %v695, %v693
  %v708 = vpack.c.bf16 %v698, %v696
  %v709 = vpack.c.bf16 %v699, %v697
  %v710 = vpack.c.bf16 %v702, %v700
  %v711 = vpack.c.bf16 %v703, %v701
  %v720 = vunpack.c.l.b16 %v704
  %v721 = vunpack.c.l.b16 %v705
  %v722 = vunpack.c.h.b16 %v704
  %v723 = vunpack.c.h.b16 %v705
  %v724 = vunpack.c.l.b16 %v706
  %v725 = vunpack.c.l.b16 %v707
  %v726 = vunpack.c.h.b16 %v706
  %v727 = vunpack.c.h.b16 %v707
  %v728 = vunpack.c.l.b16 %v708
  %v729 = vunpack.c.l.b16 %v709
  %v730 = vunpack.c.h.b16 %v708
  %v731 = vunpack.c.h.b16 %v709
  %v732 = vunpack.c.l.b16 %v710
  %v733 = vunpack.c.l.b16 %v711
  %v734 = vunpack.c.h.b16 %v710
  %v735 = vunpack.c.h.b16 %v711
  %v736 = vpack.c.b16 %v721, %v720
  %v737 = vpack.c.b16 %v723, %v722
  %v738 = vpack.c.b16 %v725, %v724
  %v739 = vpack.c.b16 %v727, %v726
  %v740 = vpack.c.b16 %v729, %v728
  %v741 = vpack.c.b16 %v731, %v730
  %v742 = vpack.c.b16 %v733, %v732
  %v743 = vpack.c.b16 %v735, %v734
  %vm752 = vcmask 1043456
  %vm753 = vcmask 572420
  %vm754 = vmor %vm753, %vm752
  %755 = vst.msk [vmem:[%s3] sm:$0xff] %vm754, %v736
  %756 = vst.msk [vmem:[%s3 + $0x8] sm:$0xff] %vm754, %v737
  %757 = vst.msk [vmem:[%s3 + $0x10] sm:$0xff] %vm754, %v738
  %758 = vst.msk [vmem:[%s3 + $0x18] sm:$0xff] %vm754, %v739
  %759 = vst.msk [vmem:[%s3 + $0x20] sm:$0xff] %vm754, %v740
  %760 = vst.msk [vmem:[%s3 + $0x28] sm:$0xff] %vm754, %v741
  %761 = vst.msk [vmem:[%s3 + $0x30] sm:$0xff] %vm754, %v742
  %762 = vst.msk [vmem:[%s3 + $0x38] sm:$0xff] %vm754, %v743
  // Predicated region
  $region14: #{dddqnet_forward.5} parent=0 // pred_check
    _
  $region15: #{dddqnet_forward.5} parent=0 // pred_check_branch
    %764 = sbr.rel (0) target = $region17
  $region16: #{dddqnet_forward.5} parent=0 // pred_region
    _
  $region17: #{dddqnet_forward.5} parent=0 // pred_fallthru
    _
  // Predicated region
  $region18: #{dddqnet_forward.5} parent=0 // pred_check
    _
  $region19: #{dddqnet_forward.5} parent=0 // pred_check_branch
    %766 = sbr.rel (0) target = $region21
  $region20: #{dddqnet_forward.5} parent=0 // pred_region
    _
  $region21: #{dddqnet_forward.5} parent=0 // pred_fallthru
    _

// kernel: dddqnet_forward.6
$region0: #{dddqnet_forward.6}
  #allocation0 [shape = 'u32[]', space=smem, size = 0x4, offset = 0x4, fixed_abs, tag = 'smem constant byte address 0x4 - core index']
  #allocation1 [shape = 'u32[144,128]{1,0:T(1,128)}', space=vmem, size = 0x12000, scoped, tag = 'internal scratch']
  %s0 = inlined_call_operand.vmem [shape: bf16[64,576], index: 0, kind: input, shape index: {}]
  %s1 = inlined_call_operand.vmem [shape: bf16[576,40], index: 1, kind: input, shape index: {}]
  %s2 = inlined_call_operand.vmem [shape: f32[64,1], index: 2, kind: input, shape index: {}]
  %s3 = inlined_call_operand.vmem [shape: bf16[64,40], index: 3, kind: output, shape index: {}]
  %s4 = sld [smem:[#allocation0]]
  $region22: #{dddqnet_forward.6} parent=0
    _
  %s6 = ssub.s32 1, %s4
  %s7 = scalar_select 0, %s6, %s4
  // Predicated region
  $region2: #{dddqnet_forward.6} parent=0 // pred_check
    _
  $region3: #{dddqnet_forward.6} parent=0 // pred_check_branch
    %9 = sbr.rel (0) target = $region5
  $region4: #{dddqnet_forward.6} parent=0 // pred_region
    _
  $region5: #{dddqnet_forward.6} parent=0 // pred_fallthru
    _
  // Predicated region
  $region6: #{dddqnet_forward.6} parent=0 // pred_check
    _
  $region7: #{dddqnet_forward.6} parent=0 // pred_check_branch
    %11 = sbr.rel (0) target = $region9
  $region8: #{dddqnet_forward.6} parent=0 // pred_region
    _
  $region9: #{dddqnet_forward.6} parent=0 // pred_fallthru
    _
  // Predicated region
  $region10: #{dddqnet_forward.6} parent=0 // pred_check
    _
  $region11: #{dddqnet_forward.6} parent=0 // pred_check_branch
    %13 = sbr.rel (0) target = $region13
  $region12: #{dddqnet_forward.6} parent=0 // pred_region
    _
  $region13: #{dddqnet_forward.6} parent=0 // pred_fallthru
    _
  %v15 = vld [vmem:[%s0] sm:$0xff]
  %v16 = vld [vmem:[%s0 + $0x8] sm:$0xff]
  %v17 = vld [vmem:[%s0 + $0x10] sm:$0xf]
  %v18 = vld [vmem:[%s0 + $0x14] sm:$0xff]
  %v19 = vld [vmem:[%s0 + $0x1c] sm:$0xff]
  %v20 = vld [vmem:[%s0 + $0x24] sm:$0xf]
  %v21 = vld [vmem:[%s0 + $0x28] sm:$0xff]
  %v22 = vld [vmem:[%s0 + $0x30] sm:$0xff]
  %v23 = vld [vmem:[%s0 + $0x38] sm:$0xf]
  %v24 = vld [vmem:[%s0 + $0x3c] sm:$0xff]
  %v25 = vld [vmem:[%s0 + $0x44] sm:$0xff]
  %v26 = vld [vmem:[%s0 + $0x4c] sm:$0xf]
  %v27 = vld [vmem:[%s0 + $0x50] sm:$0xff]
  %v28 = vld [vmem:[%s0 + $0x58] sm:$0xff]
  %v29 = vld [vmem:[%s0 + $0x60] sm:$0xf]
  %v30 = vld [vmem:[%s0 + $0x64] sm:$0xff]
  %v31 = vld [vmem:[%s0 + $0x6c] sm:$0xff]
  %v32 = vld [vmem:[%s0 + $0x74] sm:$0xf]
  %v33 = vld [vmem:[%s0 + $0x78] sm:$0xff]
  %v34 = vld [vmem:[%s0 + $0x80] sm:$0xff]
  %v35 = vld [vmem:[%s0 + $0x88] sm:$0xf]
  %v36 = vld [vmem:[%s0 + $0x8c] sm:$0xff]
  %v37 = vld [vmem:[%s0 + $0x94] sm:$0xff]
  %v38 = vld [vmem:[%s0 + $0x9c] sm:$0xf]
  %v39 = vld [vmem:[%s1] sm:$0xf]
  %v40 = vld [vmem:[%s1 + $0x4] sm:$0xf]
  %v41 = vld [vmem:[%s1 + $0x8] sm:$0xf]
  %v42 = vld [vmem:[%s1 + $0xc] sm:$0xf]
  %v43 = vld [vmem:[%s1 + $0x10] sm:$0xf]
  %v44 = vld [vmem:[%s1 + $0x14] sm:$0xf]
  %v45 = vld [vmem:[%s1 + $0x18] sm:$0xf]
  %v46 = vld [vmem:[%s1 + $0x1c] sm:$0xf]
  %v47 = vld [vmem:[%s1 + $0x20] sm:$0xf]
  %v48 = vld [vmem:[%s1 + $0x24] sm:$0xf]
  %v49 = vld [vmem:[%s1 + $0x28] sm:$0xf]
  %v50 = vld [vmem:[%s1 + $0x2c] sm:$0xf]
  %v51 = vld [vmem:[%s1 + $0x30] sm:$0xf]
  %v52 = vld [vmem:[%s1 + $0x34] sm:$0xf]
  %v53 = vld [vmem:[%s1 + $0x38] sm:$0xf]
  %v54 = vld [vmem:[%s1 + $0x3c] sm:$0xf]
  %v55 = vld [vmem:[%s1 + $0x40] sm:$0xf]
  %v56 = vld [vmem:[%s1 + $0x44] sm:$0xf]
  %v57 = vld [vmem:[%s1 + $0x48] sm:$0xf]
  %v58 = vld [vmem:[%s1 + $0x4c] sm:$0xf]
  %v59 = vld [vmem:[%s1 + $0x50] sm:$0xf]
  %v60 = vld [vmem:[%s1 + $0x54] sm:$0xf]
  %v61 = vld [vmem:[%s1 + $0x58] sm:$0xf]
  %v62 = vld [vmem:[%s1 + $0x5c] sm:$0xf]
  %v63 = vld [vmem:[%s1 + $0x60] sm:$0xf]
  %v64 = vld [vmem:[%s1 + $0x64] sm:$0xf]
  %v65 = vld [vmem:[%s1 + $0x68] sm:$0xf]
  %v66 = vld [vmem:[%s1 + $0x6c] sm:$0xf]
  %v67 = vld [vmem:[%s1 + $0x70] sm:$0xf]
  %v68 = vld [vmem:[%s1 + $0x74] sm:$0xf]
  %v69 = vld [vmem:[%s1 + $0x78] sm:$0xf]
  %v70 = vld [vmem:[%s1 + $0x7c] sm:$0xf]
  %v71 = vld [vmem:[%s1 + $0x80] sm:$0xf]
  %v72 = vld [vmem:[%s1 + $0x84] sm:$0xf]
  %v73 = vld [vmem:[%s1 + $0x88] sm:$0xf]
  %v74 = vld [vmem:[%s1 + $0x8c] sm:$0xf]
  %v75 = vld [vmem:[%s1 + $0x90] sm:$0xf]
  %v76 = vld [vmem:[%s1 + $0x94] sm:$0xf]
  %v77 = vld [vmem:[%s1 + $0x98] sm:$0xf]
  %v78 = vld [vmem:[%s1 + $0x9c] sm:$0xf]
  %v79 = vld [vmem:[%s1 + $0xa0] sm:$0xf]
  %v80 = vld [vmem:[%s1 + $0xa4] sm:$0xf]
  %v81 = vld [vmem:[%s1 + $0xa8] sm:$0xf]
  %v82 = vld [vmem:[%s1 + $0xac] sm:$0xf]
  %v83 = vld [vmem:[%s1 + $0xb0] sm:$0xf]
  %v84 = vld [vmem:[%s1 + $0xb4] sm:$0xf]
  %v85 = vld [vmem:[%s1 + $0xb8] sm:$0xf]
  %v86 = vld [vmem:[%s1 + $0xbc] sm:$0xf]
  %v87 = vld [vmem:[%s1 + $0xc0] sm:$0xf]
  %v88 = vld [vmem:[%s1 + $0xc4] sm:$0xf]
  %v89 = vld [vmem:[%s1 + $0xc8] sm:$0xf]
  %v90 = vld [vmem:[%s1 + $0xcc] sm:$0xf]
  %v91 = vld [vmem:[%s1 + $0xd0] sm:$0xf]
  %v92 = vld [vmem:[%s1 + $0xd4] sm:$0xf]
  %v93 = vld [vmem:[%s1 + $0xd8] sm:$0xf]
  %v94 = vld [vmem:[%s1 + $0xdc] sm:$0xf]
  %v95 = vld [vmem:[%s1 + $0xe0] sm:$0xf]
  %v96 = vld [vmem:[%s1 + $0xe4] sm:$0xf]
  %v97 = vld [vmem:[%s1 + $0xe8] sm:$0xf]
  %v98 = vld [vmem:[%s1 + $0xec] sm:$0xf]
  %v99 = vld [vmem:[%s1 + $0xf0] sm:$0xf]
  %v100 = vld [vmem:[%s1 + $0xf4] sm:$0xf]
  %v101 = vld [vmem:[%s1 + $0xf8] sm:$0xf]
  %v102 = vld [vmem:[%s1 + $0xfc] sm:$0xf]
  %v103 = vld [vmem:[%s1 + $0x100] sm:$0xf]
  %v104 = vld [vmem:[%s1 + $0x104] sm:$0xf]
  %v105 = vld [vmem:[%s1 + $0x108] sm:$0xf]
  %v106 = vld [vmem:[%s1 + $0x10c] sm:$0xf]
  %v107 = vld [vmem:[%s1 + $0x110] sm:$0xf]
  %v108 = vld [vmem:[%s1 + $0x114] sm:$0xf]
  %v109 = vld [vmem:[%s1 + $0x118] sm:$0xf]
  %v110 = vld [vmem:[%s1 + $0x11c] sm:$0xf]
  %v111 = vld [vmem:[%s2] sm:$0xff]
  %v112 = vld [vmem:[%s2 + $0x8] sm:$0xff]
  %v113 = vld [vmem:[%s2 + $0x10] sm:$0xff]
  %v114 = vld [vmem:[%s2 + $0x18] sm:$0xff]
  %v115 = vld [vmem:[%s2 + $0x20] sm:$0xff]
  %v116 = vld [vmem:[%s2 + $0x28] sm:$0xff]
  %v117 = vld [vmem:[%s2 + $0x30] sm:$0xff]
  %v118 = vld [vmem:[%s2 + $0x38] sm:$0xff]
  %120 = vset.pattern.permute.xlu0 0
  %121 = vperm.xlu0 %120, %v111
  %v122 = vpop.permute.xlu0 %121
  %125 = vset.pattern.permute.xlu0 0
  %126 = vperm.xlu0 %125, %v112
  %v127 = vpop.permute.xlu0 %126
  %130 = vset.pattern.permute.xlu0 0
  %131 = vperm.xlu0 %130, %v113
  %v132 = vpop.permute.xlu0 %131
  %135 = vset.pattern.permute.xlu0 0
  %136 = vperm.xlu0 %135, %v114
  %v137 = vpop.permute.xlu0 %136
  %140 = vset.pattern.permute.xlu0 0
  %141 = vperm.xlu0 %140, %v115
  %v142 = vpop.permute.xlu0 %141
  %145 = vset.pattern.permute.xlu0 0
  %146 = vperm.xlu0 %145, %v116
  %v147 = vpop.permute.xlu0 %146
  %150 = vset.pattern.permute.xlu0 0
  %151 = vperm.xlu0 %150, %v117
  %v152 = vpop.permute.xlu0 %151
  %155 = vset.pattern.permute.xlu0 0
  %156 = vperm.xlu0 %155, %v118
  %v157 = vpop.permute.xlu0 %156
  %v183 = vunpack.c.l.b16 %v15
  %v184 = vunpack.c.h.b16 %v15
  %v185 = vunpack.c.l.b16 %v16
  %v186 = vunpack.c.h.b16 %v16
  %v187 = vunpack.c.l.b16 %v17
  %v188 = vunpack.c.l.b16 %v18
  %v189 = vunpack.c.h.b16 %v18
  %v190 = vunpack.c.l.b16 %v19
  %v191 = vunpack.c.h.b16 %v19
  %v192 = vunpack.c.l.b16 %v20
  %v193 = vunpack.c.l.b16 %v21
  %v194 = vunpack.c.h.b16 %v21
  %v195 = vunpack.c.l.b16 %v22
  %v196 = vunpack.c.h.b16 %v22
  %v197 = vunpack.c.l.b16 %v23
  %v198 = vunpack.c.l.b16 %v24
  %v199 = vunpack.c.h.b16 %v24
  %v200 = vunpack.c.l.b16 %v25
  %v201 = vunpack.c.h.b16 %v25
  %v202 = vunpack.c.l.b16 %v26
  %v203 = vunpack.c.l.b16 %v27
  %v204 = vunpack.c.h.b16 %v27
  %v205 = vunpack.c.l.b16 %v28
  %v206 = vunpack.c.h.b16 %v28
  %v207 = vunpack.c.l.b16 %v29
  %v208 = vunpack.c.l.b16 %v30
  %v209 = vunpack.c.h.b16 %v30
  %v210 = vunpack.c.l.b16 %v31
  %v211 = vunpack.c.h.b16 %v31
  %v212 = vunpack.c.l.b16 %v32
  %v213 = vunpack.c.l.b16 %v33
  %v214 = vunpack.c.h.b16 %v33
  %v215 = vunpack.c.l.b16 %v34
  %v216 = vunpack.c.h.b16 %v34
  %v217 = vunpack.c.l.b16 %v35
  %v218 = vunpack.c.l.b16 %v36
  %v219 = vunpack.c.h.b16 %v36
  %v220 = vunpack.c.l.b16 %v37
  %v221 = vunpack.c.h.b16 %v37
  %v222 = vunpack.c.l.b16 %v38
  %v223 = vpack.c.b16 %v188, %v183
  %v224 = vpack.c.b16 %v189, %v184
  %v225 = vpack.c.b16 %v190, %v185
  %v226 = vpack.c.b16 %v191, %v186
  %v227 = vpack.c.b16 %v192, %v187
  %v228 = vpack.c.b16 %v198, %v193
  %v229 = vpack.c.b16 %v199, %v194
  %v230 = vpack.c.b16 %v200, %v195
  %v231 = vpack.c.b16 %v201, %v196
  %v232 = vpack.c.b16 %v202, %v197
  %v233 = vpack.c.b16 %v208, %v203
  %v234 = vpack.c.b16 %v209, %v204
  %v235 = vpack.c.b16 %v210, %v205
  %v236 = vpack.c.b16 %v211, %v206
  %v237 = vpack.c.b16 %v212, %v207
  %v238 = vpack.c.b16 %v218, %v213
  %v239 = vpack.c.b16 %v219, %v214
  %v240 = vpack.c.b16 %v220, %v215
  %v241 = vpack.c.b16 %v221, %v216
  %v242 = vpack.c.b16 %v222, %v217
  %v331 = vunpack.c.l.b16 %v39
  %v332 = vunpack.c.l.b16 %v40
  %v333 = vunpack.c.l.b16 %v41
  %v334 = vunpack.c.l.b16 %v42
  %v335 = vunpack.c.l.b16 %v43
  %v336 = vunpack.c.l.b16 %v44
  %v337 = vunpack.c.l.b16 %v45
  %v338 = vunpack.c.l.b16 %v46
  %v339 = vunpack.c.l.b16 %v47
  %v340 = vunpack.c.l.b16 %v48
  %v341 = vunpack.c.l.b16 %v49
  %v342 = vunpack.c.l.b16 %v50
  %v343 = vunpack.c.l.b16 %v51
  %v344 = vunpack.c.l.b16 %v52
  %v345 = vunpack.c.l.b16 %v53
  %v346 = vunpack.c.l.b16 %v54
  %v347 = vunpack.c.l.b16 %v55
  %v348 = vunpack.c.l.b16 %v56
  %v349 = vunpack.c.l.b16 %v57
  %v350 = vunpack.c.l.b16 %v58
  %v351 = vunpack.c.l.b16 %v59
  %v352 = vunpack.c.l.b16 %v60
  %v353 = vunpack.c.l.b16 %v61
  %v354 = vunpack.c.l.b16 %v62
  %v355 = vunpack.c.l.b16 %v63
  %v356 = vunpack.c.l.b16 %v64
  %v357 = vunpack.c.l.b16 %v65
  %v358 = vunpack.c.l.b16 %v66
  %v359 = vunpack.c.l.b16 %v67
  %v360 = vunpack.c.l.b16 %v68
  %v361 = vunpack.c.l.b16 %v69
  %v362 = vunpack.c.l.b16 %v70
  %v363 = vunpack.c.l.b16 %v71
  %v364 = vunpack.c.l.b16 %v72
  %v365 = vunpack.c.l.b16 %v73
  %v366 = vunpack.c.l.b16 %v74
  %v367 = vunpack.c.l.b16 %v75
  %v368 = vunpack.c.l.b16 %v76
  %v369 = vunpack.c.l.b16 %v77
  %v370 = vunpack.c.l.b16 %v78
  %v371 = vunpack.c.l.b16 %v79
  %v372 = vunpack.c.l.b16 %v80
  %v373 = vunpack.c.l.b16 %v81
  %v374 = vunpack.c.l.b16 %v82
  %v375 = vunpack.c.l.b16 %v83
  %v376 = vunpack.c.l.b16 %v84
  %v377 = vunpack.c.l.b16 %v85
  %v378 = vunpack.c.l.b16 %v86
  %v379 = vunpack.c.l.b16 %v87
  %v380 = vunpack.c.l.b16 %v88
  %v381 = vunpack.c.l.b16 %v89
  %v382 = vunpack.c.l.b16 %v90
  %v383 = vunpack.c.l.b16 %v91
  %v384 = vunpack.c.l.b16 %v92
  %v385 = vunpack.c.l.b16 %v93
  %v386 = vunpack.c.l.b16 %v94
  %v387 = vunpack.c.l.b16 %v95
  %v388 = vunpack.c.l.b16 %v96
  %v389 = vunpack.c.l.b16 %v97
  %v390 = vunpack.c.l.b16 %v98
  %v391 = vunpack.c.l.b16 %v99
  %v392 = vunpack.c.l.b16 %v100
  %v393 = vunpack.c.l.b16 %v101
  %v394 = vunpack.c.l.b16 %v102
  %v395 = vunpack.c.l.b16 %v103
  %v396 = vunpack.c.l.b16 %v104
  %v397 = vunpack.c.l.b16 %v105
  %v398 = vunpack.c.l.b16 %v106
  %v399 = vunpack.c.l.b16 %v107
  %v400 = vunpack.c.l.b16 %v108
  %v401 = vunpack.c.l.b16 %v109
  %v402 = vunpack.c.l.b16 %v110
  %v403 = vpack.c.b16 %v332, %v331
  %v404 = vpack.c.b16 %v334, %v333
  %v405 = vpack.c.b16 %v336, %v335
  %v406 = vpack.c.b16 %v338, %v337
  %v407 = vpack.c.b16 %v340, %v339
  %v408 = vpack.c.b16 %v342, %v341
  %v409 = vpack.c.b16 %v344, %v343
  %v410 = vpack.c.b16 %v346, %v345
  %v411 = vpack.c.b16 %v348, %v347
  %v412 = vpack.c.b16 %v350, %v349
  %v413 = vpack.c.b16 %v352, %v351
  %v414 = vpack.c.b16 %v354, %v353
  %v415 = vpack.c.b16 %v356, %v355
  %v416 = vpack.c.b16 %v358, %v357
  %v417 = vpack.c.b16 %v360, %v359
  %v418 = vpack.c.b16 %v362, %v361
  %v419 = vpack.c.b16 %v364, %v363
  %v420 = vpack.c.b16 %v366, %v365
  %v421 = vpack.c.b16 %v368, %v367
  %v422 = vpack.c.b16 %v370, %v369
  %v423 = vpack.c.b16 %v372, %v371
  %v424 = vpack.c.b16 %v374, %v373
  %v425 = vpack.c.b16 %v376, %v375
  %v426 = vpack.c.b16 %v378, %v377
  %v427 = vpack.c.b16 %v380, %v379
  %v428 = vpack.c.b16 %v382, %v381
  %v429 = vpack.c.b16 %v384, %v383
  %v430 = vpack.c.b16 %v386, %v385
  %v431 = vpack.c.b16 %v388, %v387
  %v432 = vpack.c.b16 %v390, %v389
  %v433 = vpack.c.b16 %v392, %v391
  %v434 = vpack.c.b16 %v394, %v393
  %v435 = vpack.c.b16 %v396, %v395
  %v436 = vpack.c.b16 %v398, %v397
  %v437 = vpack.c.b16 %v400, %v399
  %v438 = vpack.c.b16 %v402, %v401
  %vm475 = vcmask 523264
  %v477 = vsel %vm475, %v227, 0
  %v480 = vsel %vm475, %v232, 0
  %v483 = vsel %vm475, %v237, 0
  %v486 = vsel %vm475, %v242, 0
  %488 = vmatprep.subr.bf16.mxu0 0
  %489 = vmatpush1.bf16.msra.mxu0 %v403
  %490 = vmatprep.subr.bf16.mxu0 0
  %491 = vmatpush1.bf16.msra.mxu0 %v404
  %492 = vmatprep.subr.bf16.mxu0 0
  %493 = vmatpush1.bf16.msra.mxu0 %v405
  %494 = vmatprep.subr.bf16.mxu0 0
  %495 = vmatpush1.bf16.msra.mxu0 %v406
  %496 = vmatprep.subr.bf16.mxu0 0
  %497 = vmatpush1.bf16.msra.mxu0 %v407
  %498 = vmatprep.subr.bf16.mxu0 0
  %499 = vmatpush1.bf16.msra.mxu0 %v408
  %500 = vmatprep.subr.bf16.mxu0 0
  %501 = vmatpush1.bf16.msra.mxu0 %v409
  %502 = vmatprep.subr.bf16.mxu0 0
  %503 = vmatpush1.bf16.msra.mxu0 %v410
  %504 = vmatprep.subr.bf16.mxu0 0
  %505 = vmatpush1.bf16.msra.mxu0 %v411
  %506 = vmatprep.subr.bf16.mxu0 0
  %507 = vmatpush1.bf16.msra.mxu0 %v412
  %508 = vmatprep.subr.bf16.mxu0 0
  %509 = vmatpush1.bf16.msra.mxu0 %v413
  %510 = vmatprep.subr.bf16.mxu0 0
  %511 = vmatpush1.bf16.msra.mxu0 %v414
  %512 = vmatprep.subr.bf16.mxu0 0
  %513 = vmatpush1.bf16.msra.mxu0 %v415
  %514 = vmatprep.subr.bf16.mxu0 0
  %515 = vmatpush1.bf16.msra.mxu0 %v416
  %516 = vmatprep.subr.bf16.mxu0 0
  %517 = vmatpush1.bf16.msra.mxu0 %v417
  %518 = vmatprep.subr.bf16.mxu0 0
  %519 = vmatpush1.bf16.msra.mxu0 %v418
  %520 = vmatprep.mubr.bf16.mxu0 %v224
  %521 = vmatmul.mubr.bf16.gmra.mrb[0].mxu0 %v223
  %v522 = vpop.f32.mrb[0].mxu0
  %v523 = vadd.f32 %v122, %v522
  %v524 = vpop.f32.mrb[0].mxu0
  %v525 = vpop.f32.mrb[0].mxu0
  %v526 = vadd.f32 %v127, %v525
  %v527 = vpop.f32.mrb[0].mxu0
  %528 = vmatprep.mubr.bf16.mxu0 %v229
  %529 = vmatmul.mubr.bf16.gmra.mrb[0].mxu0 %v228
  %v530 = vpop.f32.mrb[0].mxu0
  %v531 = vadd.f32 %v132, %v530
  %v532 = vpop.f32.mrb[0].mxu0
  %v533 = vpop.f32.mrb[0].mxu0
  %v534 = vadd.f32 %v137, %v533
  %v535 = vpop.f32.mrb[0].mxu0
  %536 = vmatprep.mubr.bf16.mxu0 %v234
  %537 = vmatmul.mubr.bf16.gmra.mrb[0].mxu0 %v233
  %v538 = vpop.f32.mrb[0].mxu0
  %v539 = vadd.f32 %v142, %v538
  %v540 = vpop.f32.mrb[0].mxu0
  %v541 = vpop.f32.mrb[0].mxu0
  %v542 = vadd.f32 %v147, %v541
  %v543 = vpop.f32.mrb[0].mxu0
  %544 = vmatprep.mubr.bf16.mxu0 %v239
  %545 = vmatmul.mubr.bf16.gmra.mrb[0].mxu0 %v238
  %v546 = vpop.f32.mrb[0].mxu0
  %v547 = vadd.f32 %v152, %v546
  %v548 = vpop.f32.mrb[0].mxu0
  %v549 = vpop.f32.mrb[0].mxu0
  %v550 = vadd.f32 %v157, %v549
  %v551 = vpop.f32.mrb[0].mxu0
  %552 = vdwg.mxu0
  %553 = vmatprep.subr.bf16.mxu0 0
  %554 = vmatpush1.bf16.msra.mxu0 %v419
  %555 = vmatprep.subr.bf16.mxu0 0
  %556 = vmatpush1.bf16.msra.mxu0 %v420
  %557 = vmatprep.subr.bf16.mxu0 0
  %558 = vmatpush1.bf16.msra.mxu0 %v421
  %559 = vmatprep.subr.bf16.mxu0 0
  %560 = vmatpush1.bf16.msra.mxu0 %v422
  %561 = vmatprep.subr.bf16.mxu0 0
  %562 = vmatpush1.bf16.msra.mxu0 %v423
  %563 = vmatprep.subr.bf16.mxu0 0
  %564 = vmatpush1.bf16.msra.mxu0 %v424
  %565 = vmatprep.subr.bf16.mxu0 0
  %566 = vmatpush1.bf16.msra.mxu0 %v425
  %567 = vmatprep.subr.bf16.mxu0 0
  %568 = vmatpush1.bf16.msra.mxu0 %v426
  %569 = vmatprep.subr.bf16.mxu0 0
  %570 = vmatpush1.bf16.msra.mxu0 %v427
  %571 = vmatprep.subr.bf16.mxu0 0
  %572 = vmatpush1.bf16.msra.mxu0 %v428
  %573 = vmatprep.subr.bf16.mxu0 0
  %574 = vmatpush1.bf16.msra.mxu0 %v429
  %575 = vmatprep.subr.bf16.mxu0 0
  %576 = vmatpush1.bf16.msra.mxu0 %v430
  %577 = vmatprep.subr.bf16.mxu0 0
  %578 = vmatpush1.bf16.msra.mxu0 %v431
  %579 = vmatprep.subr.bf16.mxu0 0
  %580 = vmatpush1.bf16.msra.mxu0 %v432
  %581 = vmatprep.subr.bf16.mxu0 0
  %582 = vmatpush1.bf16.msra.mxu0 %v433
  %583 = vmatprep.subr.bf16.mxu0 0
  %584 = vmatpush1.bf16.msra.mxu0 %v434
  %585 = vmatprep.mubr.bf16.mxu0 %v226
  %586 = vmatmul.mubr.bf16.gmra.mrb[0].mxu0 %v225
  %v587 = vpop.f32.mrb[0].mxu0
  %v588 = vadd.f32 %v523, %v587
  %v589 = vpop.f32.mrb[0].mxu0
  %v590 = vpop.f32.mrb[0].mxu0
  %v591 = vadd.f32 %v526, %v590
  %v592 = vpop.f32.mrb[0].mxu0
  %593 = vmatprep.mubr.bf16.mxu0 %v231
  %594 = vmatmul.mubr.bf16.gmra.mrb[0].mxu0 %v230
  %v595 = vpop.f32.mrb[0].mxu0
  %v596 = vadd.f32 %v531, %v595
  %v597 = vpop.f32.mrb[0].mxu0
  %v598 = vpop.f32.mrb[0].mxu0
  %v599 = vadd.f32 %v534, %v598
  %v600 = vpop.f32.mrb[0].mxu0
  %601 = vmatprep.mubr.bf16.mxu0 %v236
  %602 = vmatmul.mubr.bf16.gmra.mrb[0].mxu0 %v235
  %v603 = vpop.f32.mrb[0].mxu0
  %v604 = vadd.f32 %v539, %v603
  %v605 = vpop.f32.mrb[0].mxu0
  %v606 = vpop.f32.mrb[0].mxu0
  %v607 = vadd.f32 %v542, %v606
  %v608 = vpop.f32.mrb[0].mxu0
  %609 = vmatprep.mubr.bf16.mxu0 %v241
  %610 = vmatmul.mubr.bf16.gmra.mrb[0].mxu0 %v240
  %v611 = vpop.f32.mrb[0].mxu0
  %v612 = vadd.f32 %v547, %v611
  %v613 = vpop.f32.mrb[0].mxu0
  %v614 = vpop.f32.mrb[0].mxu0
  %v615 = vadd.f32 %v550, %v614
  %v616 = vpop.f32.mrb[0].mxu0
  %617 = vdwg.mxu0
  %618 = vmatprep.subr.bf16.mxu0 0
  %619 = vmatpush1.bf16.msra.mxu0 %v435
  %620 = vmatprep.subr.bf16.mxu0 0
  %621 = vmatpush1.bf16.msra.mxu0 %v436
  %622 = vmatprep.subr.bf16.mxu0 0
  %623 = vmatpush1.bf16.msra.mxu0 %v437
  %624 = vmatprep.subr.bf16.mxu0 0
  %625 = vmatpush1.bf16.msra.mxu0 %v438
  %626 = vmatprep.subr.bf16.mxu0 0
  %627 = vmatpush1.bf16.msra.mxu0 0
  %628 = vmatprep.subr.bf16.mxu0 0
  %629 = vmatpush1.bf16.msra.mxu0 0
  %630 = vmatprep.subr.bf16.mxu0 0
  %631 = vmatpush1.bf16.msra.mxu0 0
  %632 = vmatprep.subr.bf16.mxu0 0
  %633 = vmatpush1.bf16.msra.mxu0 0
  %634 = vmatprep.subr.bf16.mxu0 0
  %635 = vmatpush1.bf16.msra.mxu0 0
  %636 = vmatprep.subr.bf16.mxu0 0
  %637 = vmatpush1.bf16.msra.mxu0 0
  %638 = vmatprep.subr.bf16.mxu0 0
  %639 = vmatpush1.bf16.msra.mxu0 0
  %640 = vmatprep.subr.bf16.mxu0 0
  %641 = vmatpush1.bf16.msra.mxu0 0
  %642 = vmatprep.subr.bf16.mxu0 0
  %643 = vmatpush1.bf16.msra.mxu0 0
  %644 = vmatprep.subr.bf16.mxu0 0
  %645 = vmatpush1.bf16.msra.mxu0 0
  %646 = vmatprep.subr.bf16.mxu0 0
  %647 = vmatpush1.bf16.msra.mxu0 0
  %648 = vmatprep.subr.bf16.mxu0 0
  %649 = vmatpush1.bf16.msra.mxu0 0
  %650 = vmatprep.mubr.bf16.mxu0 0
  %651 = vmatmul.mubr.bf16.gmra.mrb[0].mxu0 %v477
  %v652 = vpop.f32.mrb[0].mxu0
  %v653 = vadd.f32 %v588, %v652
  %v654 = vpop.f32.mrb[0].mxu0
  %v655 = vpop.f32.mrb[0].mxu0
  %v656 = vadd.f32 %v591, %v655
  %v657 = vpop.f32.mrb[0].mxu0
  %658 = vmatprep.mubr.bf16.mxu0 0
  %659 = vmatmul.mubr.bf16.gmra.mrb[0].mxu0 %v480
  %v660 = vpop.f32.mrb[0].mxu0
  %v661 = vadd.f32 %v596, %v660
  %v662 = vpop.f32.mrb[0].mxu0
  %v663 = vpop.f32.mrb[0].mxu0
  %v664 = vadd.f32 %v599, %v663
  %v665 = vpop.f32.mrb[0].mxu0
  %666 = vmatprep.mubr.bf16.mxu0 0
  %667 = vmatmul.mubr.bf16.gmra.mrb[0].mxu0 %v483
  %v668 = vpop.f32.mrb[0].mxu0
  %v669 = vadd.f32 %v604, %v668
  %v670 = vpop.f32.mrb[0].mxu0
  %v671 = vpop.f32.mrb[0].mxu0
  %v672 = vadd.f32 %v607, %v671
  %v673 = vpop.f32.mrb[0].mxu0
  %674 = vmatprep.mubr.bf16.mxu0 0
  %675 = vmatmul.mubr.bf16.gmra.mrb[0].mxu0 %v486
  %v676 = vpop.f32.mrb[0].mxu0
  %v677 = vadd.f32 %v612, %v676
  %v678 = vpop.f32.mrb[0].mxu0
  %v679 = vpop.f32.mrb[0].mxu0
  %v680 = vadd.f32 %v615, %v679
  %v681 = vpop.f32.mrb[0].mxu0
  %682 = vdwg.mxu0
  %v683 = vmax.f32 %v653, 0.0
  %v684 = vmax.f32 %v656, 0.0
  %v685 = vmax.f32 %v661, 0.0
  %v686 = vmax.f32 %v664, 0.0
  %v687 = vmax.f32 %v669, 0.0
  %v688 = vmax.f32 %v672, 0.0
  %v689 = vmax.f32 %v677, 0.0
  %v690 = vmax.f32 %v680, 0.0
  %v691 = vpack.c.bf16 %v684, %v683
  %v692 = vpack.c.bf16 %v686, %v685
  %v693 = vpack.c.bf16 %v688, %v687
  %v694 = vpack.c.bf16 %v690, %v689
  %v699 = vunpack.c.l.b16 %v691
  %v700 = vunpack.c.h.b16 %v691
  %v701 = vunpack.c.l.b16 %v692
  %v702 = vunpack.c.h.b16 %v692
  %v703 = vunpack.c.l.b16 %v693
  %v704 = vunpack.c.h.b16 %v693
  %v705 = vunpack.c.l.b16 %v694
  %v706 = vunpack.c.h.b16 %v694
  %v707 = vpack.c.b16 %v699, %v699
  %v708 = vpack.c.b16 %v700, %v700
  %v709 = vpack.c.b16 %v701, %v701
  %v710 = vpack.c.b16 %v702, %v702
  %v711 = vpack.c.b16 %v703, %v703
  %v712 = vpack.c.b16 %v704, %v704
  %v713 = vpack.c.b16 %v705, %v705
  %v714 = vpack.c.b16 %v706, %v706
  %vm723 = vcmask 322560
  %724 = vst.msk [vmem:[%s3] sm:$0xf] %vm723, %v707
  %725 = vst.msk [vmem:[%s3 + $0x4] sm:$0xf] %vm723, %v708
  %726 = vst.msk [vmem:[%s3 + $0x8] sm:$0xf] %vm723, %v709
  %727 = vst.msk [vmem:[%s3 + $0xc] sm:$0xf] %vm723, %v710
  %728 = vst.msk [vmem:[%s3 + $0x10] sm:$0xf] %vm723, %v711
  %729 = vst.msk [vmem:[%s3 + $0x14] sm:$0xf] %vm723, %v712
  %730 = vst.msk [vmem:[%s3 + $0x18] sm:$0xf] %vm723, %v713
  %731 = vst.msk [vmem:[%s3 + $0x1c] sm:$0xf] %vm723, %v714
  // Predicated region
  $region14: #{dddqnet_forward.6} parent=0 // pred_check
    _
  $region15: #{dddqnet_forward.6} parent=0 // pred_check_branch
    %733 = sbr.rel (0) target = $region17
  $region16: #{dddqnet_forward.6} parent=0 // pred_region
    _
  $region17: #{dddqnet_forward.6} parent=0 // pred_fallthru
    _
  // Predicated region
  $region18: #{dddqnet_forward.6} parent=0 // pred_check
    _
  $region19: #{dddqnet_forward.6} parent=0 // pred_check_branch
    %735 = sbr.rel (0) target = $region21
  $region20: #{dddqnet_forward.6} parent=0 // pred_region
    _
  $region21: #{dddqnet_forward.6} parent=0 // pred_fallthru
    _

// kernel: dddqnet_forward.7
$region0: #{dddqnet_forward.7}
  #allocation0 [shape = 'u32[]', space=smem, size = 0x4, offset = 0x4, fixed_abs, tag = 'smem constant byte address 0x4 - core index']
  #allocation1 [shape = 'u32[144,128]{1,0:T(1,128)}', space=vmem, size = 0x12000, scoped, tag = 'internal scratch']
  #allocation2 [shape = 'f32[1,1]{1,0:T(1,128)S(1)}', space=vmem, size = 0x200, scoped, tag = 'scoped memory for dddqnet_forward.7']
  %s0 = inlined_call_operand.vmem [shape: bf16[2,1280], index: 0, kind: input, shape index: {}]
  %s1 = inlined_call_operand.vmem [shape: bf16[1280,1024], index: 1, kind: input, shape index: {}]
  %s2 = inlined_call_operand.vmem [shape: f32[1,1024], index: 2, kind: input, shape index: {}]
  %s3 = inlined_call_operand.vmem [shape: bf16[512,1], index: 3, kind: input, shape index: {}]
  %s4 = inlined_call_operand.<no memory space> [shape: f32[1,1], index: 4, kind: input, shape index: {}]
  %s5 = inlined_call_operand.vmem [shape: bf16[512,6], index: 5, kind: input, shape index: {}]
  %s6 = inlined_call_operand.vmem [shape: f32[1,6], index: 6, kind: input, shape index: {}]
  %s7 = inlined_call_operand.hbm [shape: f32[2,6], index: 7, kind: output, shape index: {}]
  %s8 = sld [smem:[#allocation0]]
  $region38: #{dddqnet_forward.7} parent=0
    _
  %s10 = ssub.s32 1, %s8
  %s11 = scalar_select 0, %s10, %s8
  %v12 = vstv %s4
  %13 = vst [vmem:[#allocation2] sm:$0x1] %v12
  $region1: #{dddqnet_forward.7} parent=0
    #allocation3 [shape = 'u8[1024]{0}', space=vmem, size = 0x400, scoped, tag = 'output window, operand 0, single buffered']
    #allocation4 [shape = 's32[1]{0}', space=sflag, size = 0x4, scoped, tag = 'scoped memory for dddqnet_forward.7']
    %14 = vsyncpa [#allocation4], 0
    // Predicated region
    $region2: #{dddqnet_forward.7} parent=1 // pred_check
      _
    $region3: #{dddqnet_forward.7} parent=1 // pred_check_branch
      %16 = sbr.rel (0) target = $region5
    $region4: #{dddqnet_forward.7} parent=1 // pred_region
      _
    $region5: #{dddqnet_forward.7} parent=1 // pred_fallthru
      _
    // Predicated region
    $region6: #{dddqnet_forward.7} parent=1 // pred_check
      _
    $region7: #{dddqnet_forward.7} parent=1 // pred_check_branch
      %18 = sbr.rel (0) target = $region9
    $region8: #{dddqnet_forward.7} parent=1 // pred_region
      _
    $region9: #{dddqnet_forward.7} parent=1 // pred_fallthru
      _
    // Predicated region
    $region10: #{dddqnet_forward.7} parent=1 // pred_check
      _
    $region11: #{dddqnet_forward.7} parent=1 // pred_check_branch
      %20 = sbr.rel (0) target = $region13
    $region12: #{dddqnet_forward.7} parent=1 // pred_region
      _
    $region13: #{dddqnet_forward.7} parent=1 // pred_fallthru
      _
    // Predicated region
    $region14: #{dddqnet_forward.7} parent=1 // pred_check
      _
    $region15: #{dddqnet_forward.7} parent=1 // pred_check_branch
      %22 = sbr.rel (0) target = $region17
    $region16: #{dddqnet_forward.7} parent=1 // pred_region
      _
    $region17: #{dddqnet_forward.7} parent=1 // pred_fallthru
      _
    // Predicated region
    $region18: #{dddqnet_forward.7} parent=1 // pred_check
      _
    $region19: #{dddqnet_forward.7} parent=1 // pred_check_branch
      %24 = sbr.rel (0) target = $region21
    $region20: #{dddqnet_forward.7} parent=1 // pred_region
      _
    $region21: #{dddqnet_forward.7} parent=1 // pred_fallthru
      _
    // Predicated region
    $region22: #{dddqnet_forward.7} parent=1 // pred_check
      _
    $region23: #{dddqnet_forward.7} parent=1 // pred_check_branch
      %26 = sbr.rel (0) target = $region25
    $region24: #{dddqnet_forward.7} parent=1 // pred_region
      _
    $region25: #{dddqnet_forward.7} parent=1 // pred_fallthru
      _
    // Predicated region
    $region26: #{dddqnet_forward.7} parent=1 // pred_check
      _
    $region27: #{dddqnet_forward.7} parent=1 // pred_check_branch
      %28 = sbr.rel (0) target = $region29
    $region28: #{dddqnet_forward.7} parent=1 // pred_region
      _
    $region29: #{dddqnet_forward.7} parent=1 // pred_fallthru
      _
    %v30 = vld [vmem:[%s0] sm:$0xff]
    %v31 = vld [vmem:[%s0 + $0x8] sm:$0x3]
    %v32 = vld [vmem:[%s1] sm:$0xff]
    %v33 = vld [vmem:[%s1 + $0x8] sm:$0xff]
    %v34 = vld [vmem:[%s1 + $0x10] sm:$0xff]
    %v35 = vld [vmem:[%s1 + $0x18] sm:$0xff]
    %v36 = vld [vmem:[%s1 + $0x20] sm:$0xff]
    %v37 = vld [vmem:[%s1 + $0x28] sm:$0xff]
    %v38 = vld [vmem:[%s1 + $0x30] sm:$0xff]
    %v39 = vld [vmem:[%s1 + $0x38] sm:$0xff]
    %v40 = vld [vmem:[%s1 + $0x40] sm:$0xff]
    %v41 = vld [vmem:[%s1 + $0x48] sm:$0xff]
    %v42 = vld [vmem:[%s1 + $0x50] sm:$0xff]
    %v43 = vld [vmem:[%s1 + $0x58] sm:$0xff]
    %v44 = vld [vmem:[%s1 + $0x60] sm:$0xff]
    %v45 = vld [vmem:[%s1 + $0x68] sm:$0xff]
    %v46 = vld [vmem:[%s1 + $0x70] sm:$0xff]
    %v47 = vld [vmem:[%s1 + $0x78] sm:$0xff]
    %v48 = vld [vmem:[%s1 + $0x80] sm:$0xff]
    %v49 = vld [vmem:[%s1 + $0x88] sm:$0xff]
    %v50 = vld [vmem:[%s1 + $0x90] sm:$0xff]
    %v51 = vld [vmem:[%s1 + $0x98] sm:$0xff]
    %v52 = vld [vmem:[%s1 + $0xa0] sm:$0xff]
    %v53 = vld [vmem:[%s1 + $0xa8] sm:$0xff]
    %v54 = vld [vmem:[%s1 + $0xb0] sm:$0xff]
    %v55 = vld [vmem:[%s1 + $0xb8] sm:$0xff]
    %v56 = vld [vmem:[%s1 + $0xc0] sm:$0xff]
    %v57 = vld [vmem:[%s1 + $0xc8] sm:$0xff]
    %v58 = vld [vmem:[%s1 + $0xd0] sm:$0xff]
    %v59 = vld [vmem:[%s1 + $0xd8] sm:$0xff]
    %v60 = vld [vmem:[%s1 + $0xe0] sm:$0xff]
    %v61 = vld [vmem:[%s1 + $0xe8] sm:$0xff]
    %v62 = vld [vmem:[%s1 + $0xf0] sm:$0xff]
    %v63 = vld [vmem:[%s1 + $0xf8] sm:$0xff]
    %v64 = vld [vmem:[%s1 + $0x100] sm:$0xff]
    %v65 = vld [vmem:[%s1 + $0x108] sm:$0xff]
    %v66 = vld [vmem:[%s1 + $0x110] sm:$0xff]
    %v67 = vld [vmem:[%s1 + $0x118] sm:$0xff]
    %v68 = vld [vmem:[%s1 + $0x120] sm:$0xff]
    %v69 = vld [vmem:[%s1 + $0x128] sm:$0xff]
    %v70 = vld [vmem:[%s1 + $0x130] sm:$0xff]
    %v71 = vld [vmem:[%s1 + $0x138] sm:$0xff]
    %v72 = vld [vmem:[%s1 + $0x140] sm:$0xff]
    %v73 = vld [vmem:[%s1 + $0x148] sm:$0xff]
    %v74 = vld [vmem:[%s1 + $0x150] sm:$0xff]
    %v75 = vld [vmem:[%s1 + $0x158] sm:$0xff]
    %v76 = vld [vmem:[%s1 + $0x160] sm:$0xff]
    %v77 = vld [vmem:[%s1 + $0x168] sm:$0xff]
    %v78 = vld [vmem:[%s1 + $0x170] sm:$0xff]
    %v79 = vld [vmem:[%s1 + $0x178] sm:$0xff]
    %v80 = vld [vmem:[%s1 + $0x180] sm:$0xff]
    %v81 = vld [vmem:[%s1 + $0x188] sm:$0xff]
    %v82 = vld [vmem:[%s1 + $0x190] sm:$0xff]
    %v83 = vld [vmem:[%s1 + $0x198] sm:$0xff]
    %v84 = vld [vmem:[%s1 + $0x1a0] sm:$0xff]
    %v85 = vld [vmem:[%s1 + $0x1a8] sm:$0xff]
    %v86 = vld [vmem:[%s1 + $0x1b0] sm:$0xff]
    %v87 = vld [vmem:[%s1 + $0x1b8] sm:$0xff]
    %v88 = vld [vmem:[%s1 + $0x1c0] sm:$0xff]
    %v89 = vld [vmem:[%s1 + $0x1c8] sm:$0xff]
    %v90 = vld [vmem:[%s1 + $0x1d0] sm:$0xff]
    %v91 = vld [vmem:[%s1 + $0x1d8] sm:$0xff]
    %v92 = vld [vmem:[%s1 + $0x1e0] sm:$0xff]
    %v93 = vld [vmem:[%s1 + $0x1e8] sm:$0xff]
    %v94 = vld [vmem:[%s1 + $0x1f0] sm:$0xff]
    %v95 = vld [vmem:[%s1 + $0x1f8] sm:$0xff]
    %v96 = vld [vmem:[%s1 + $0x200] sm:$0xff]
    %v97 = vld [vmem:[%s1 + $0x208] sm:$0xff]
    %v98 = vld [vmem:[%s1 + $0x210] sm:$0xff]
    %v99 = vld [vmem:[%s1 + $0x218] sm:$0xff]
    %v100 = vld [vmem:[%s1 + $0x220] sm:$0xff]
    %v101 = vld [vmem:[%s1 + $0x228] sm:$0xff]
    %v102 = vld [vmem:[%s1 + $0x230] sm:$0xff]
    %v103 = vld [vmem:[%s1 + $0x238] sm:$0xff]
    %v104 = vld [vmem:[%s1 + $0x240] sm:$0xff]
    %v105 = vld [vmem:[%s1 + $0x248] sm:$0xff]
    %v106 = vld [vmem:[%s1 + $0x250] sm:$0xff]
    %v107 = vld [vmem:[%s1 + $0x258] sm:$0xff]
    %v108 = vld [vmem:[%s1 + $0x260] sm:$0xff]
    %v109 = vld [vmem:[%s1 + $0x268] sm:$0xff]
    %v110 = vld [vmem:[%s1 + $0x270] sm:$0xff]
    %v111 = vld [vmem:[%s1 + $0x278] sm:$0xff]
    %v112 = vld [vmem:[%s1 + $0x280] sm:$0xff]
    %v113 = vld [vmem:[%s1 + $0x288] sm:$0xff]
    %v114 = vld [vmem:[%s1 + $0x290] sm:$0xff]
    %v115 = vld [vmem:[%s1 + $0x298] sm:$0xff]
    %v116 = vld [vmem:[%s1 + $0x2a0] sm:$0xff]
    %v117 = vld [vmem:[%s1 + $0x2a8] sm:$0xff]
    %v118 = vld [vmem:[%s1 + $0x2b0] sm:$0xff]
    %v119 = vld [vmem:[%s1 + $0x2b8] sm:$0xff]
    %v120 = vld [vmem:[%s1 + $0x2c0] sm:$0xff]
    %v121 = vld [vmem:[%s1 + $0x2c8] sm:$0xff]
    %v122 = vld [vmem:[%s1 + $0x2d0] sm:$0xff]
    %v123 = vld [vmem:[%s1 + $0x2d8] sm:$0xff]
    %v124 = vld [vmem:[%s1 + $0x2e0] sm:$0xff]
    %v125 = vld [vmem:[%s1 + $0x2e8] sm:$0xff]
    %v126 = vld [vmem:[%s1 + $0x2f0] sm:$0xff]
    %v127 = vld [vmem:[%s1 + $0x2f8] sm:$0xff]
    %v128 = vld [vmem:[%s1 + $0x300] sm:$0xff]
    %v129 = vld [vmem:[%s1 + $0x308] sm:$0xff]
    %v130 = vld [vmem:[%s1 + $0x310] sm:$0xff]
    %v131 = vld [vmem:[%s1 + $0x318] sm:$0xff]
    %v132 = vld [vmem:[%s1 + $0x320] sm:$0xff]
    %v133 = vld [vmem:[%s1 + $0x328] sm:$0xff]
    %v134 = vld [vmem:[%s1 + $0x330] sm:$0xff]
    %v135 = vld [vmem:[%s1 + $0x338] sm:$0xff]
    %v136 = vld [vmem:[%s1 + $0x340] sm:$0xff]
    %v137 = vld [vmem:[%s1 + $0x348] sm:$0xff]
    %v138 = vld [vmem:[%s1 + $0x350] sm:$0xff]
    %v139 = vld [vmem:[%s1 + $0x358] sm:$0xff]
    %v140 = vld [vmem:[%s1 + $0x360] sm:$0xff]
    %v141 = vld [vmem:[%s1 + $0x368] sm:$0xff]
    %v142 = vld [vmem:[%s1 + $0x370] sm:$0xff]
    %v143 = vld [vmem:[%s1 + $0x378] sm:$0xff]
    %v144 = vld [vmem:[%s1 + $0x380] sm:$0xff]
    %v145 = vld [vmem:[%s1 + $0x388] sm:$0xff]
    %v146 = vld [vmem:[%s1 + $0x390] sm:$0xff]
    %v147 = vld [vmem:[%s1 + $0x398] sm:$0xff]
    %v148 = vld [vmem:[%s1 + $0x3a0] sm:$0xff]
    %v149 = vld [vmem:[%s1 + $0x3a8] sm:$0xff]
    %v150 = vld [vmem:[%s1 + $0x3b0] sm:$0xff]
    %v151 = vld [vmem:[%s1 + $0x3b8] sm:$0xff]
    %v152 = vld [vmem:[%s1 + $0x3c0] sm:$0xff]
    %v153 = vld [vmem:[%s1 + $0x3c8] sm:$0xff]
    %v154 = vld [vmem:[%s1 + $0x3d0] sm:$0xff]
    %v155 = vld [vmem:[%s1 + $0x3d8] sm:$0xff]
    %v156 = vld [vmem:[%s1 + $0x3e0] sm:$0xff]
    %v157 = vld [vmem:[%s1 + $0x3e8] sm:$0xff]
    %v158 = vld [vmem:[%s1 + $0x3f0] sm:$0xff]
    %v159 = vld [vmem:[%s1 + $0x3f8] sm:$0xff]
    %v160 = vld [vmem:[%s1 + $0x400] sm:$0xff]
    %v161 = vld [vmem:[%s1 + $0x408] sm:$0xff]
    %v162 = vld [vmem:[%s1 + $0x410] sm:$0xff]
    %v163 = vld [vmem:[%s1 + $0x418] sm:$0xff]
    %v164 = vld [vmem:[%s1 + $0x420] sm:$0xff]
    %v165 = vld [vmem:[%s1 + $0x428] sm:$0xff]
    %v166 = vld [vmem:[%s1 + $0x430] sm:$0xff]
    %v167 = vld [vmem:[%s1 + $0x438] sm:$0xff]
    %v168 = vld [vmem:[%s1 + $0x440] sm:$0xff]
    %v169 = vld [vmem:[%s1 + $0x448] sm:$0xff]
    %v170 = vld [vmem:[%s1 + $0x450] sm:$0xff]
    %v171 = vld [vmem:[%s1 + $0x458] sm:$0xff]
    %v172 = vld [vmem:[%s1 + $0x460] sm:$0xff]
    %v173 = vld [vmem:[%s1 + $0x468] sm:$0xff]
    %v174 = vld [vmem:[%s1 + $0x470] sm:$0xff]
    %v175 = vld [vmem:[%s1 + $0x478] sm:$0xff]
    %v176 = vld [vmem:[%s1 + $0x480] sm:$0xff]
    %v177 = vld [vmem:[%s1 + $0x488] sm:$0xff]
    %v178 = vld [vmem:[%s1 + $0x490] sm:$0xff]
    %v179 = vld [vmem:[%s1 + $0x498] sm:$0xff]
    %v180 = vld [vmem:[%s1 + $0x4a0] sm:$0xff]
    %v181 = vld [vmem:[%s1 + $0x4a8] sm:$0xff]
    %v182 = vld [vmem:[%s1 + $0x4b0] sm:$0xff]
    %v183 = vld [vmem:[%s1 + $0x4b8] sm:$0xff]
    %v184 = vld [vmem:[%s1 + $0x4c0] sm:$0xff]
    %v185 = vld [vmem:[%s1 + $0x4c8] sm:$0xff]
    %v186 = vld [vmem:[%s1 + $0x4d0] sm:$0xff]
    %v187 = vld [vmem:[%s1 + $0x4d8] sm:$0xff]
    %v188 = vld [vmem:[%s1 + $0x4e0] sm:$0xff]
    %v189 = vld [vmem:[%s1 + $0x4e8] sm:$0xff]
    %v190 = vld [vmem:[%s1 + $0x4f0] sm:$0xff]
    %v191 = vld [vmem:[%s1 + $0x4f8] sm:$0xff]
    %v192 = vld [vmem:[%s1 + $0x500] sm:$0xff]
    %v193 = vld [vmem:[%s1 + $0x508] sm:$0xff]
    %v194 = vld [vmem:[%s1 + $0x510] sm:$0xff]
    %v195 = vld [vmem:[%s1 + $0x518] sm:$0xff]
    %v196 = vld [vmem:[%s1 + $0x520] sm:$0xff]
    %v197 = vld [vmem:[%s1 + $0x528] sm:$0xff]
    %v198 = vld [vmem:[%s1 + $0x530] sm:$0xff]
    %v199 = vld [vmem:[%s1 + $0x538] sm:$0xff]
    %v200 = vld [vmem:[%s1 + $0x540] sm:$0xff]
    %v201 = vld [vmem:[%s1 + $0x548] sm:$0xff]
    %v202 = vld [vmem:[%s1 + $0x550] sm:$0xff]
    %v203 = vld [vmem:[%s1 + $0x558] sm:$0xff]
    %v204 = vld [vmem:[%s1 + $0x560] sm:$0xff]
    %v205 = vld [vmem:[%s1 + $0x568] sm:$0xff]
    %v206 = vld [vmem:[%s1 + $0x570] sm:$0xff]
    %v207 = vld [vmem:[%s1 + $0x578] sm:$0xff]
    %v208 = vld [vmem:[%s1 + $0x580] sm:$0xff]
    %v209 = vld [vmem:[%s1 + $0x588] sm:$0xff]
    %v210 = vld [vmem:[%s1 + $0x590] sm:$0xff]
    %v211 = vld [vmem:[%s1 + $0x598] sm:$0xff]
    %v212 = vld [vmem:[%s1 + $0x5a0] sm:$0xff]
    %v213 = vld [vmem:[%s1 + $0x5a8] sm:$0xff]
    %v214 = vld [vmem:[%s1 + $0x5b0] sm:$0xff]
    %v215 = vld [vmem:[%s1 + $0x5b8] sm:$0xff]
    %v216 = vld [vmem:[%s1 + $0x5c0] sm:$0xff]
    %v217 = vld [vmem:[%s1 + $0x5c8] sm:$0xff]
    %v218 = vld [vmem:[%s1 + $0x5d0] sm:$0xff]
    %v219 = vld [vmem:[%s1 + $0x5d8] sm:$0xff]
    %v220 = vld [vmem:[%s1 + $0x5e0] sm:$0xff]
    %v221 = vld [vmem:[%s1 + $0x5e8] sm:$0xff]
    %v222 = vld [vmem:[%s1 + $0x5f0] sm:$0xff]
    %v223 = vld [vmem:[%s1 + $0x5f8] sm:$0xff]
    %v224 = vld [vmem:[%s1 + $0x600] sm:$0xff]
    %v225 = vld [vmem:[%s1 + $0x608] sm:$0xff]
    %v226 = vld [vmem:[%s1 + $0x610] sm:$0xff]
    %v227 = vld [vmem:[%s1 + $0x618] sm:$0xff]
    %v228 = vld [vmem:[%s1 + $0x620] sm:$0xff]
    %v229 = vld [vmem:[%s1 + $0x628] sm:$0xff]
    %v230 = vld [vmem:[%s1 + $0x630] sm:$0xff]
    %v231 = vld [vmem:[%s1 + $0x638] sm:$0xff]
    %v232 = vld [vmem:[%s1 + $0x640] sm:$0xff]
    %v233 = vld [vmem:[%s1 + $0x648] sm:$0xff]
    %v234 = vld [vmem:[%s1 + $0x650] sm:$0xff]
    %v235 = vld [vmem:[%s1 + $0x658] sm:$0xff]
    %v236 = vld [vmem:[%s1 + $0x660] sm:$0xff]
    %v237 = vld [vmem:[%s1 + $0x668] sm:$0xff]
    %v238 = vld [vmem:[%s1 + $0x670] sm:$0xff]
    %v239 = vld [vmem:[%s1 + $0x678] sm:$0xff]
    %v240 = vld [vmem:[%s1 + $0x680] sm:$0xff]
    %v241 = vld [vmem:[%s1 + $0x688] sm:$0xff]
    %v242 = vld [vmem:[%s1 + $0x690] sm:$0xff]
    %v243 = vld [vmem:[%s1 + $0x698] sm:$0xff]
    %v244 = vld [vmem:[%s1 + $0x6a0] sm:$0xff]
    %v245 = vld [vmem:[%s1 + $0x6a8] sm:$0xff]
    %v246 = vld [vmem:[%s1 + $0x6b0] sm:$0xff]
    %v247 = vld [vmem:[%s1 + $0x6b8] sm:$0xff]
    %v248 = vld [vmem:[%s1 + $0x6c0] sm:$0xff]
    %v249 = vld [vmem:[%s1 + $0x6c8] sm:$0xff]
    %v250 = vld [vmem:[%s1 + $0x6d0] sm:$0xff]
    %v251 = vld [vmem:[%s1 + $0x6d8] sm:$0xff]
    %v252 = vld [vmem:[%s1 + $0x6e0] sm:$0xff]
    %v253 = vld [vmem:[%s1 + $0x6e8] sm:$0xff]
    %v254 = vld [vmem:[%s1 + $0x6f0] sm:$0xff]
    %v255 = vld [vmem:[%s1 + $0x6f8] sm:$0xff]
    %v256 = vld [vmem:[%s1 + $0x700] sm:$0xff]
    %v257 = vld [vmem:[%s1 + $0x708] sm:$0xff]
    %v258 = vld [vmem:[%s1 + $0x710] sm:$0xff]
    %v259 = vld [vmem:[%s1 + $0x718] sm:$0xff]
    %v260 = vld [vmem:[%s1 + $0x720] sm:$0xff]
    %v261 = vld [vmem:[%s1 + $0x728] sm:$0xff]
    %v262 = vld [vmem:[%s1 + $0x730] sm:$0xff]
    %v263 = vld [vmem:[%s1 + $0x738] sm:$0xff]
    %v264 = vld [vmem:[%s1 + $0x740] sm:$0xff]
    %v265 = vld [vmem:[%s1 + $0x748] sm:$0xff]
    %v266 = vld [vmem:[%s1 + $0x750] sm:$0xff]
    %v267 = vld [vmem:[%s1 + $0x758] sm:$0xff]
    %v268 = vld [vmem:[%s1 + $0x760] sm:$0xff]
    %v269 = vld [vmem:[%s1 + $0x768] sm:$0xff]
    %v270 = vld [vmem:[%s1 + $0x770] sm:$0xff]
    %v271 = vld [vmem:[%s1 + $0x778] sm:$0xff]
    %v272 = vld [vmem:[%s1 + $0x780] sm:$0xff]
    %v273 = vld [vmem:[%s1 + $0x788] sm:$0xff]
    %v274 = vld [vmem:[%s1 + $0x790] sm:$0xff]
    %v275 = vld [vmem:[%s1 + $0x798] sm:$0xff]
    %v276 = vld [vmem:[%s1 + $0x7a0] sm:$0xff]
    %v277 = vld [vmem:[%s1 + $0x7a8] sm:$0xff]
    %v278 = vld [vmem:[%s1 + $0x7b0] sm:$0xff]
    %v279 = vld [vmem:[%s1 + $0x7b8] sm:$0xff]
    %v280 = vld [vmem:[%s1 + $0x7c0] sm:$0xff]
    %v281 = vld [vmem:[%s1 + $0x7c8] sm:$0xff]
    %v282 = vld [vmem:[%s1 + $0x7d0] sm:$0xff]
    %v283 = vld [vmem:[%s1 + $0x7d8] sm:$0xff]
    %v284 = vld [vmem:[%s1 + $0x7e0] sm:$0xff]
    %v285 = vld [vmem:[%s1 + $0x7e8] sm:$0xff]
    %v286 = vld [vmem:[%s1 + $0x7f0] sm:$0xff]
    %v287 = vld [vmem:[%s1 + $0x7f8] sm:$0xff]
    %v288 = vld [vmem:[%s1 + $0x800] sm:$0xff]
    %v289 = vld [vmem:[%s1 + $0x808] sm:$0xff]
    %v290 = vld [vmem:[%s1 + $0x810] sm:$0xff]
    %v291 = vld [vmem:[%s1 + $0x818] sm:$0xff]
    %v292 = vld [vmem:[%s1 + $0x820] sm:$0xff]
    %v293 = vld [vmem:[%s1 + $0x828] sm:$0xff]
    %v294 = vld [vmem:[%s1 + $0x830] sm:$0xff]
    %v295 = vld [vmem:[%s1 + $0x838] sm:$0xff]
    %v296 = vld [vmem:[%s1 + $0x840] sm:$0xff]
    %v297 = vld [vmem:[%s1 + $0x848] sm:$0xff]
    %v298 = vld [vmem:[%s1 + $0x850] sm:$0xff]
    %v299 = vld [vmem:[%s1 + $0x858] sm:$0xff]
    %v300 = vld [vmem:[%s1 + $0x860] sm:$0xff]
    %v301 = vld [vmem:[%s1 + $0x868] sm:$0xff]
    %v302 = vld [vmem:[%s1 + $0x870] sm:$0xff]
    %v303 = vld [vmem:[%s1 + $0x878] sm:$0xff]
    %v304 = vld [vmem:[%s1 + $0x880] sm:$0xff]
    %v305 = vld [vmem:[%s1 + $0x888] sm:$0xff]
    %v306 = vld [vmem:[%s1 + $0x890] sm:$0xff]
    %v307 = vld [vmem:[%s1 + $0x898] sm:$0xff]
    %v308 = vld [vmem:[%s1 + $0x8a0] sm:$0xff]
    %v309 = vld [vmem:[%s1 + $0x8a8] sm:$0xff]
    %v310 = vld [vmem:[%s1 + $0x8b0] sm:$0xff]
    %v311 = vld [vmem:[%s1 + $0x8b8] sm:$0xff]
    %v312 = vld [vmem:[%s1 + $0x8c0] sm:$0xff]
    %v313 = vld [vmem:[%s1 + $0x8c8] sm:$0xff]
    %v314 = vld [vmem:[%s1 + $0x8d0] sm:$0xff]
    %v315 = vld [vmem:[%s1 + $0x8d8] sm:$0xff]
    %v316 = vld [vmem:[%s1 + $0x8e0] sm:$0xff]
    %v317 = vld [vmem:[%s1 + $0x8e8] sm:$0xff]
    %v318 = vld [vmem:[%s1 + $0x8f0] sm:$0xff]
    %v319 = vld [vmem:[%s1 + $0x8f8] sm:$0xff]
    %v320 = vld [vmem:[%s1 + $0x900] sm:$0xff]
    %v321 = vld [vmem:[%s1 + $0x908] sm:$0xff]
    %v322 = vld [vmem:[%s1 + $0x910] sm:$0xff]
    %v323 = vld [vmem:[%s1 + $0x918] sm:$0xff]
    %v324 = vld [vmem:[%s1 + $0x920] sm:$0xff]
    %v325 = vld [vmem:[%s1 + $0x928] sm:$0xff]
    %v326 = vld [vmem:[%s1 + $0x930] sm:$0xff]
    %v327 = vld [vmem:[%s1 + $0x938] sm:$0xff]
    %v328 = vld [vmem:[%s1 + $0x940] sm:$0xff]
    %v329 = vld [vmem:[%s1 + $0x948] sm:$0xff]
    %v330 = vld [vmem:[%s1 + $0x950] sm:$0xff]
    %v331 = vld [vmem:[%s1 + $0x958] sm:$0xff]
    %v332 = vld [vmem:[%s1 + $0x960] sm:$0xff]
    %v333 = vld [vmem:[%s1 + $0x968] sm:$0xff]
    %v334 = vld [vmem:[%s1 + $0x970] sm:$0xff]
    %v335 = vld [vmem:[%s1 + $0x978] sm:$0xff]
    %v336 = vld [vmem:[%s1 + $0x980] sm:$0xff]
    %v337 = vld [vmem:[%s1 + $0x988] sm:$0xff]
    %v338 = vld [vmem:[%s1 + $0x990] sm:$0xff]
    %v339 = vld [vmem:[%s1 + $0x998] sm:$0xff]
    %v340 = vld [vmem:[%s1 + $0x9a0] sm:$0xff]
    %v341 = vld [vmem:[%s1 + $0x9a8] sm:$0xff]
    %v342 = vld [vmem:[%s1 + $0x9b0] sm:$0xff]
    %v343 = vld [vmem:[%s1 + $0x9b8] sm:$0xff]
    %v344 = vld [vmem:[%s1 + $0x9c0] sm:$0xff]
    %v345 = vld [vmem:[%s1 + $0x9c8] sm:$0xff]
    %v346 = vld [vmem:[%s1 + $0x9d0] sm:$0xff]
    %v347 = vld [vmem:[%s1 + $0x9d8] sm:$0xff]
    %v348 = vld [vmem:[%s1 + $0x9e0] sm:$0xff]
    %v349 = vld [vmem:[%s1 + $0x9e8] sm:$0xff]
    %v350 = vld [vmem:[%s1 + $0x9f0] sm:$0xff]
    %v351 = vld [vmem:[%s1 + $0x9f8] sm:$0xff]
    %v352 = vld [vmem:[%s1 + $0xa00] sm:$0xff]
    %v353 = vld [vmem:[%s1 + $0xa08] sm:$0xff]
    %v354 = vld [vmem:[%s1 + $0xa10] sm:$0xff]
    %v355 = vld [vmem:[%s1 + $0xa18] sm:$0xff]
    %v356 = vld [vmem:[%s1 + $0xa20] sm:$0xff]
    %v357 = vld [vmem:[%s1 + $0xa28] sm:$0xff]
    %v358 = vld [vmem:[%s1 + $0xa30] sm:$0xff]
    %v359 = vld [vmem:[%s1 + $0xa38] sm:$0xff]
    %v360 = vld [vmem:[%s1 + $0xa40] sm:$0xff]
    %v361 = vld [vmem:[%s1 + $0xa48] sm:$0xff]
    %v362 = vld [vmem:[%s1 + $0xa50] sm:$0xff]
    %v363 = vld [vmem:[%s1 + $0xa58] sm:$0xff]
    %v364 = vld [vmem:[%s1 + $0xa60] sm:$0xff]
    %v365 = vld [vmem:[%s1 + $0xa68] sm:$0xff]
    %v366 = vld [vmem:[%s1 + $0xa70] sm:$0xff]
    %v367 = vld [vmem:[%s1 + $0xa78] sm:$0xff]
    %v368 = vld [vmem:[%s1 + $0xa80] sm:$0xff]
    %v369 = vld [vmem:[%s1 + $0xa88] sm:$0xff]
    %v370 = vld [vmem:[%s1 + $0xa90] sm:$0xff]
    %v371 = vld [vmem:[%s1 + $0xa98] sm:$0xff]
    %v372 = vld [vmem:[%s1 + $0xaa0] sm:$0xff]
    %v373 = vld [vmem:[%s1 + $0xaa8] sm:$0xff]
    %v374 = vld [vmem:[%s1 + $0xab0] sm:$0xff]
    %v375 = vld [vmem:[%s1 + $0xab8] sm:$0xff]
    %v376 = vld [vmem:[%s1 + $0xac0] sm:$0xff]
    %v377 = vld [vmem:[%s1 + $0xac8] sm:$0xff]
    %v378 = vld [vmem:[%s1 + $0xad0] sm:$0xff]
    %v379 = vld [vmem:[%s1 + $0xad8] sm:$0xff]
    %v380 = vld [vmem:[%s1 + $0xae0] sm:$0xff]
    %v381 = vld [vmem:[%s1 + $0xae8] sm:$0xff]
    %v382 = vld [vmem:[%s1 + $0xaf0] sm:$0xff]
    %v383 = vld [vmem:[%s1 + $0xaf8] sm:$0xff]
    %v384 = vld [vmem:[%s1 + $0xb00] sm:$0xff]
    %v385 = vld [vmem:[%s1 + $0xb08] sm:$0xff]
    %v386 = vld [vmem:[%s1 + $0xb10] sm:$0xff]
    %v387 = vld [vmem:[%s1 + $0xb18] sm:$0xff]
    %v388 = vld [vmem:[%s1 + $0xb20] sm:$0xff]
    %v389 = vld [vmem:[%s1 + $0xb28] sm:$0xff]
    %v390 = vld [vmem:[%s1 + $0xb30] sm:$0xff]
    %v391 = vld [vmem:[%s1 + $0xb38] sm:$0xff]
    %v392 = vld [vmem:[%s1 + $0xb40] sm:$0xff]
    %v393 = vld [vmem:[%s1 + $0xb48] sm:$0xff]
    %v394 = vld [vmem:[%s1 + $0xb50] sm:$0xff]
    %v395 = vld [vmem:[%s1 + $0xb58] sm:$0xff]
    %v396 = vld [vmem:[%s1 + $0xb60] sm:$0xff]
    %v397 = vld [vmem:[%s1 + $0xb68] sm:$0xff]
    %v398 = vld [vmem:[%s1 + $0xb70] sm:$0xff]
    %v399 = vld [vmem:[%s1 + $0xb78] sm:$0xff]
    %v400 = vld [vmem:[%s1 + $0xb80] sm:$0xff]
    %v401 = vld [vmem:[%s1 + $0xb88] sm:$0xff]
    %v402 = vld [vmem:[%s1 + $0xb90] sm:$0xff]
    %v403 = vld [vmem:[%s1 + $0xb98] sm:$0xff]
    %v404 = vld [vmem:[%s1 + $0xba0] sm:$0xff]
    %v405 = vld [vmem:[%s1 + $0xba8] sm:$0xff]
    %v406 = vld [vmem:[%s1 + $0xbb0] sm:$0xff]
    %v407 = vld [vmem:[%s1 + $0xbb8] sm:$0xff]
    %v408 = vld [vmem:[%s1 + $0xbc0] sm:$0xff]
    %v409 = vld [vmem:[%s1 + $0xbc8] sm:$0xff]
    %v410 = vld [vmem:[%s1 + $0xbd0] sm:$0xff]
    %v411 = vld [vmem:[%s1 + $0xbd8] sm:$0xff]
    %v412 = vld [vmem:[%s1 + $0xbe0] sm:$0xff]
    %v413 = vld [vmem:[%s1 + $0xbe8] sm:$0xff]
    %v414 = vld [vmem:[%s1 + $0xbf0] sm:$0xff]
    %v415 = vld [vmem:[%s1 + $0xbf8] sm:$0xff]
    %v416 = vld [vmem:[%s1 + $0xc00] sm:$0xff]
    %v417 = vld [vmem:[%s1 + $0xc08] sm:$0xff]
    %v418 = vld [vmem:[%s1 + $0xc10] sm:$0xff]
    %v419 = vld [vmem:[%s1 + $0xc18] sm:$0xff]
    %v420 = vld [vmem:[%s1 + $0xc20] sm:$0xff]
    %v421 = vld [vmem:[%s1 + $0xc28] sm:$0xff]
    %v422 = vld [vmem:[%s1 + $0xc30] sm:$0xff]
    %v423 = vld [vmem:[%s1 + $0xc38] sm:$0xff]
    %v424 = vld [vmem:[%s1 + $0xc40] sm:$0xff]
    %v425 = vld [vmem:[%s1 + $0xc48] sm:$0xff]
    %v426 = vld [vmem:[%s1 + $0xc50] sm:$0xff]
    %v427 = vld [vmem:[%s1 + $0xc58] sm:$0xff]
    %v428 = vld [vmem:[%s1 + $0xc60] sm:$0xff]
    %v429 = vld [vmem:[%s1 + $0xc68] sm:$0xff]
    %v430 = vld [vmem:[%s1 + $0xc70] sm:$0xff]
    %v431 = vld [vmem:[%s1 + $0xc78] sm:$0xff]
    %v432 = vld [vmem:[%s1 + $0xc80] sm:$0xff]
    %v433 = vld [vmem:[%s1 + $0xc88] sm:$0xff]
    %v434 = vld [vmem:[%s1 + $0xc90] sm:$0xff]
    %v435 = vld [vmem:[%s1 + $0xc98] sm:$0xff]
    %v436 = vld [vmem:[%s1 + $0xca0] sm:$0xff]
    %v437 = vld [vmem:[%s1 + $0xca8] sm:$0xff]
    %v438 = vld [vmem:[%s1 + $0xcb0] sm:$0xff]
    %v439 = vld [vmem:[%s1 + $0xcb8] sm:$0xff]
    %v440 = vld [vmem:[%s1 + $0xcc0] sm:$0xff]
    %v441 = vld [vmem:[%s1 + $0xcc8] sm:$0xff]
    %v442 = vld [vmem:[%s1 + $0xcd0] sm:$0xff]
    %v443 = vld [vmem:[%s1 + $0xcd8] sm:$0xff]
    %v444 = vld [vmem:[%s1 + $0xce0] sm:$0xff]
    %v445 = vld [vmem:[%s1 + $0xce8] sm:$0xff]
    %v446 = vld [vmem:[%s1 + $0xcf0] sm:$0xff]
    %v447 = vld [vmem:[%s1 + $0xcf8] sm:$0xff]
    %v448 = vld [vmem:[%s1 + $0xd00] sm:$0xff]
    %v449 = vld [vmem:[%s1 + $0xd08] sm:$0xff]
    %v450 = vld [vmem:[%s1 + $0xd10] sm:$0xff]
    %v451 = vld [vmem:[%s1 + $0xd18] sm:$0xff]
    %v452 = vld [vmem:[%s1 + $0xd20] sm:$0xff]
    %v453 = vld [vmem:[%s1 + $0xd28] sm:$0xff]
    %v454 = vld [vmem:[%s1 + $0xd30] sm:$0xff]
    %v455 = vld [vmem:[%s1 + $0xd38] sm:$0xff]
    %v456 = vld [vmem:[%s1 + $0xd40] sm:$0xff]
    %v457 = vld [vmem:[%s1 + $0xd48] sm:$0xff]
    %v458 = vld [vmem:[%s1 + $0xd50] sm:$0xff]
    %v459 = vld [vmem:[%s1 + $0xd58] sm:$0xff]
    %v460 = vld [vmem:[%s1 + $0xd60] sm:$0xff]
    %v461 = vld [vmem:[%s1 + $0xd68] sm:$0xff]
    %v462 = vld [vmem:[%s1 + $0xd70] sm:$0xff]
    %v463 = vld [vmem:[%s1 + $0xd78] sm:$0xff]
    %v464 = vld [vmem:[%s1 + $0xd80] sm:$0xff]
    %v465 = vld [vmem:[%s1 + $0xd88] sm:$0xff]
    %v466 = vld [vmem:[%s1 + $0xd90] sm:$0xff]
    %v467 = vld [vmem:[%s1 + $0xd98] sm:$0xff]
    %v468 = vld [vmem:[%s1 + $0xda0] sm:$0xff]
    %v469 = vld [vmem:[%s1 + $0xda8] sm:$0xff]
    %v470 = vld [vmem:[%s1 + $0xdb0] sm:$0xff]
    %v471 = vld [vmem:[%s1 + $0xdb8] sm:$0xff]
    %v472 = vld [vmem:[%s1 + $0xdc0] sm:$0xff]
    %v473 = vld [vmem:[%s1 + $0xdc8] sm:$0xff]
    %v474 = vld [vmem:[%s1 + $0xdd0] sm:$0xff]
    %v475 = vld [vmem:[%s1 + $0xdd8] sm:$0xff]
    %v476 = vld [vmem:[%s1 + $0xde0] sm:$0xff]
    %v477 = vld [vmem:[%s1 + $0xde8] sm:$0xff]
    %v478 = vld [vmem:[%s1 + $0xdf0] sm:$0xff]
    %v479 = vld [vmem:[%s1 + $0xdf8] sm:$0xff]
    %v480 = vld [vmem:[%s1 + $0xe00] sm:$0xff]
    %v481 = vld [vmem:[%s1 + $0xe08] sm:$0xff]
    %v482 = vld [vmem:[%s1 + $0xe10] sm:$0xff]
    %v483 = vld [vmem:[%s1 + $0xe18] sm:$0xff]
    %v484 = vld [vmem:[%s1 + $0xe20] sm:$0xff]
    %v485 = vld [vmem:[%s1 + $0xe28] sm:$0xff]
    %v486 = vld [vmem:[%s1 + $0xe30] sm:$0xff]
    %v487 = vld [vmem:[%s1 + $0xe38] sm:$0xff]
    %v488 = vld [vmem:[%s1 + $0xe40] sm:$0xff]
    %v489 = vld [vmem:[%s1 + $0xe48] sm:$0xff]
    %v490 = vld [vmem:[%s1 + $0xe50] sm:$0xff]
    %v491 = vld [vmem:[%s1 + $0xe58] sm:$0xff]
    %v492 = vld [vmem:[%s1 + $0xe60] sm:$0xff]
    %v493 = vld [vmem:[%s1 + $0xe68] sm:$0xff]
    %v494 = vld [vmem:[%s1 + $0xe70] sm:$0xff]
    %v495 = vld [vmem:[%s1 + $0xe78] sm:$0xff]
    %v496 = vld [vmem:[%s1 + $0xe80] sm:$0xff]
    %v497 = vld [vmem:[%s1 + $0xe88] sm:$0xff]
    %v498 = vld [vmem:[%s1 + $0xe90] sm:$0xff]
    %v499 = vld [vmem:[%s1 + $0xe98] sm:$0xff]
    %v500 = vld [vmem:[%s1 + $0xea0] sm:$0xff]
    %v501 = vld [vmem:[%s1 + $0xea8] sm:$0xff]
    %v502 = vld [vmem:[%s1 + $0xeb0] sm:$0xff]
    %v503 = vld [vmem:[%s1 + $0xeb8] sm:$0xff]
    %v504 = vld [vmem:[%s1 + $0xec0] sm:$0xff]
    %v505 = vld [vmem:[%s1 + $0xec8] sm:$0xff]
    %v506 = vld [vmem:[%s1 + $0xed0] sm:$0xff]
    %v507 = vld [vmem:[%s1 + $0xed8] sm:$0xff]
    %v508 = vld [vmem:[%s1 + $0xee0] sm:$0xff]
    %v509 = vld [vmem:[%s1 + $0xee8] sm:$0xff]
    %v510 = vld [vmem:[%s1 + $0xef0] sm:$0xff]
    %v511 = vld [vmem:[%s1 + $0xef8] sm:$0xff]
    %v512 = vld [vmem:[%s1 + $0xf00] sm:$0xff]
    %v513 = vld [vmem:[%s1 + $0xf08] sm:$0xff]
    %v514 = vld [vmem:[%s1 + $0xf10] sm:$0xff]
    %v515 = vld [vmem:[%s1 + $0xf18] sm:$0xff]
    %v516 = vld [vmem:[%s1 + $0xf20] sm:$0xff]
    %v517 = vld [vmem:[%s1 + $0xf28] sm:$0xff]
    %v518 = vld [vmem:[%s1 + $0xf30] sm:$0xff]
    %v519 = vld [vmem:[%s1 + $0xf38] sm:$0xff]
    %v520 = vld [vmem:[%s1 + $0xf40] sm:$0xff]
    %v521 = vld [vmem:[%s1 + $0xf48] sm:$0xff]
    %v522 = vld [vmem:[%s1 + $0xf50] sm:$0xff]
    %v523 = vld [vmem:[%s1 + $0xf58] sm:$0xff]
    %v524 = vld [vmem:[%s1 + $0xf60] sm:$0xff]
    %v525 = vld [vmem:[%s1 + $0xf68] sm:$0xff]
    %v526 = vld [vmem:[%s1 + $0xf70] sm:$0xff]
    %v527 = vld [vmem:[%s1 + $0xf78] sm:$0xff]
    %v528 = vld [vmem:[%s1 + $0xf80] sm:$0xff]
    %v529 = vld [vmem:[%s1 + $0xf88] sm:$0xff]
    %v530 = vld [vmem:[%s1 + $0xf90] sm:$0xff]
    %v531 = vld [vmem:[%s1 + $0xf98] sm:$0xff]
    %v532 = vld [vmem:[%s1 + $0xfa0] sm:$0xff]
    %v533 = vld [vmem:[%s1 + $0xfa8] sm:$0xff]
    %v534 = vld [vmem:[%s1 + $0xfb0] sm:$0xff]
    %v535 = vld [vmem:[%s1 + $0xfb8] sm:$0xff]
    %v536 = vld [vmem:[%s1 + $0xfc0] sm:$0xff]
    %v537 = vld [vmem:[%s1 + $0xfc8] sm:$0xff]
    %v538 = vld [vmem:[%s1 + $0xfd0] sm:$0xff]
    %v539 = vld [vmem:[%s1 + $0xfd8] sm:$0xff]
    %v540 = vld [vmem:[%s1 + $0xfe0] sm:$0xff]
    %v541 = vld [vmem:[%s1 + $0xfe8] sm:$0xff]
    %v542 = vld [vmem:[%s1 + $0xff0] sm:$0xff]
    %v543 = vld [vmem:[%s1 + $0xff8] sm:$0xff]
    %v544 = vld [vmem:[%s1 + $0x1000] sm:$0xff]
    %v545 = vld [vmem:[%s1 + $0x1008] sm:$0xff]
    %v546 = vld [vmem:[%s1 + $0x1010] sm:$0xff]
    %v547 = vld [vmem:[%s1 + $0x1018] sm:$0xff]
    %v548 = vld [vmem:[%s1 + $0x1020] sm:$0xff]
    %v549 = vld [vmem:[%s1 + $0x1028] sm:$0xff]
    %v550 = vld [vmem:[%s1 + $0x1030] sm:$0xff]
    %v551 = vld [vmem:[%s1 + $0x1038] sm:$0xff]
    %v552 = vld [vmem:[%s1 + $0x1040] sm:$0xff]
    %v553 = vld [vmem:[%s1 + $0x1048] sm:$0xff]
    %v554 = vld [vmem:[%s1 + $0x1050] sm:$0xff]
    %v555 = vld [vmem:[%s1 + $0x1058] sm:$0xff]
    %v556 = vld [vmem:[%s1 + $0x1060] sm:$0xff]
    %v557 = vld [vmem:[%s1 + $0x1068] sm:$0xff]
    %v558 = vld [vmem:[%s1 + $0x1070] sm:$0xff]
    %v559 = vld [vmem:[%s1 + $0x1078] sm:$0xff]
    %v560 = vld [vmem:[%s1 + $0x1080] sm:$0xff]
    %v561 = vld [vmem:[%s1 + $0x1088] sm:$0xff]
    %v562 = vld [vmem:[%s1 + $0x1090] sm:$0xff]
    %v563 = vld [vmem:[%s1 + $0x1098] sm:$0xff]
    %v564 = vld [vmem:[%s1 + $0x10a0] sm:$0xff]
    %v565 = vld [vmem:[%s1 + $0x10a8] sm:$0xff]
    %v566 = vld [vmem:[%s1 + $0x10b0] sm:$0xff]
    %v567 = vld [vmem:[%s1 + $0x10b8] sm:$0xff]
    %v568 = vld [vmem:[%s1 + $0x10c0] sm:$0xff]
    %v569 = vld [vmem:[%s1 + $0x10c8] sm:$0xff]
    %v570 = vld [vmem:[%s1 + $0x10d0] sm:$0xff]
    %v571 = vld [vmem:[%s1 + $0x10d8] sm:$0xff]
    %v572 = vld [vmem:[%s1 + $0x10e0] sm:$0xff]
    %v573 = vld [vmem:[%s1 + $0x10e8] sm:$0xff]
    %v574 = vld [vmem:[%s1 + $0x10f0] sm:$0xff]
    %v575 = vld [vmem:[%s1 + $0x10f8] sm:$0xff]
    %v576 = vld [vmem:[%s1 + $0x1100] sm:$0xff]
    %v577 = vld [vmem:[%s1 + $0x1108] sm:$0xff]
    %v578 = vld [vmem:[%s1 + $0x1110] sm:$0xff]
    %v579 = vld [vmem:[%s1 + $0x1118] sm:$0xff]
    %v580 = vld [vmem:[%s1 + $0x1120] sm:$0xff]
    %v581 = vld [vmem:[%s1 + $0x1128] sm:$0xff]
    %v582 = vld [vmem:[%s1 + $0x1130] sm:$0xff]
    %v583 = vld [vmem:[%s1 + $0x1138] sm:$0xff]
    %v584 = vld [vmem:[%s1 + $0x1140] sm:$0xff]
    %v585 = vld [vmem:[%s1 + $0x1148] sm:$0xff]
    %v586 = vld [vmem:[%s1 + $0x1150] sm:$0xff]
    %v587 = vld [vmem:[%s1 + $0x1158] sm:$0xff]
    %v588 = vld [vmem:[%s1 + $0x1160] sm:$0xff]
    %v589 = vld [vmem:[%s1 + $0x1168] sm:$0xff]
    %v590 = vld [vmem:[%s1 + $0x1170] sm:$0xff]
    %v591 = vld [vmem:[%s1 + $0x1178] sm:$0xff]
    %v592 = vld [vmem:[%s1 + $0x1180] sm:$0xff]
    %v593 = vld [vmem:[%s1 + $0x1188] sm:$0xff]
    %v594 = vld [vmem:[%s1 + $0x1190] sm:$0xff]
    %v595 = vld [vmem:[%s1 + $0x1198] sm:$0xff]
    %v596 = vld [vmem:[%s1 + $0x11a0] sm:$0xff]
    %v597 = vld [vmem:[%s1 + $0x11a8] sm:$0xff]
    %v598 = vld [vmem:[%s1 + $0x11b0] sm:$0xff]
    %v599 = vld [vmem:[%s1 + $0x11b8] sm:$0xff]
    %v600 = vld [vmem:[%s1 + $0x11c0] sm:$0xff]
    %v601 = vld [vmem:[%s1 + $0x11c8] sm:$0xff]
    %v602 = vld [vmem:[%s1 + $0x11d0] sm:$0xff]
    %v603 = vld [vmem:[%s1 + $0x11d8] sm:$0xff]
    %v604 = vld [vmem:[%s1 + $0x11e0] sm:$0xff]
    %v605 = vld [vmem:[%s1 + $0x11e8] sm:$0xff]
    %v606 = vld [vmem:[%s1 + $0x11f0] sm:$0xff]
    %v607 = vld [vmem:[%s1 + $0x11f8] sm:$0xff]
    %v608 = vld [vmem:[%s1 + $0x1200] sm:$0xff]
    %v609 = vld [vmem:[%s1 + $0x1208] sm:$0xff]
    %v610 = vld [vmem:[%s1 + $0x1210] sm:$0xff]
    %v611 = vld [vmem:[%s1 + $0x1218] sm:$0xff]
    %v612 = vld [vmem:[%s1 + $0x1220] sm:$0xff]
    %v613 = vld [vmem:[%s1 + $0x1228] sm:$0xff]
    %v614 = vld [vmem:[%s1 + $0x1230] sm:$0xff]
    %v615 = vld [vmem:[%s1 + $0x1238] sm:$0xff]
    %v616 = vld [vmem:[%s1 + $0x1240] sm:$0xff]
    %v617 = vld [vmem:[%s1 + $0x1248] sm:$0xff]
    %v618 = vld [vmem:[%s1 + $0x1250] sm:$0xff]
    %v619 = vld [vmem:[%s1 + $0x1258] sm:$0xff]
    %v620 = vld [vmem:[%s1 + $0x1260] sm:$0xff]
    %v621 = vld [vmem:[%s1 + $0x1268] sm:$0xff]
    %v622 = vld [vmem:[%s1 + $0x1270] sm:$0xff]
    %v623 = vld [vmem:[%s1 + $0x1278] sm:$0xff]
    %v624 = vld [vmem:[%s1 + $0x1280] sm:$0xff]
    %v625 = vld [vmem:[%s1 + $0x1288] sm:$0xff]
    %v626 = vld [vmem:[%s1 + $0x1290] sm:$0xff]
    %v627 = vld [vmem:[%s1 + $0x1298] sm:$0xff]
    %v628 = vld [vmem:[%s1 + $0x12a0] sm:$0xff]
    %v629 = vld [vmem:[%s1 + $0x12a8] sm:$0xff]
    %v630 = vld [vmem:[%s1 + $0x12b0] sm:$0xff]
    %v631 = vld [vmem:[%s1 + $0x12b8] sm:$0xff]
    %v632 = vld [vmem:[%s1 + $0x12c0] sm:$0xff]
    %v633 = vld [vmem:[%s1 + $0x12c8] sm:$0xff]
    %v634 = vld [vmem:[%s1 + $0x12d0] sm:$0xff]
    %v635 = vld [vmem:[%s1 + $0x12d8] sm:$0xff]
    %v636 = vld [vmem:[%s1 + $0x12e0] sm:$0xff]
    %v637 = vld [vmem:[%s1 + $0x12e8] sm:$0xff]
    %v638 = vld [vmem:[%s1 + $0x12f0] sm:$0xff]
    %v639 = vld [vmem:[%s1 + $0x12f8] sm:$0xff]
    %v640 = vld [vmem:[%s1 + $0x1300] sm:$0xff]
    %v641 = vld [vmem:[%s1 + $0x1308] sm:$0xff]
    %v642 = vld [vmem:[%s1 + $0x1310] sm:$0xff]
    %v643 = vld [vmem:[%s1 + $0x1318] sm:$0xff]
    %v644 = vld [vmem:[%s1 + $0x1320] sm:$0xff]
    %v645 = vld [vmem:[%s1 + $0x1328] sm:$0xff]
    %v646 = vld [vmem:[%s1 + $0x1330] sm:$0xff]
    %v647 = vld [vmem:[%s1 + $0x1338] sm:$0xff]
    %v648 = vld [vmem:[%s1 + $0x1340] sm:$0xff]
    %v649 = vld [vmem:[%s1 + $0x1348] sm:$0xff]
    %v650 = vld [vmem:[%s1 + $0x1350] sm:$0xff]
    %v651 = vld [vmem:[%s1 + $0x1358] sm:$0xff]
    %v652 = vld [vmem:[%s1 + $0x1360] sm:$0xff]
    %v653 = vld [vmem:[%s1 + $0x1368] sm:$0xff]
    %v654 = vld [vmem:[%s1 + $0x1370] sm:$0xff]
    %v655 = vld [vmem:[%s1 + $0x1378] sm:$0xff]
    %v656 = vld [vmem:[%s1 + $0x1380] sm:$0xff]
    %v657 = vld [vmem:[%s1 + $0x1388] sm:$0xff]
    %v658 = vld [vmem:[%s1 + $0x1390] sm:$0xff]
    %v659 = vld [vmem:[%s1 + $0x1398] sm:$0xff]
    %v660 = vld [vmem:[%s1 + $0x13a0] sm:$0xff]
    %v661 = vld [vmem:[%s1 + $0x13a8] sm:$0xff]
    %v662 = vld [vmem:[%s1 + $0x13b0] sm:$0xff]
    %v663 = vld [vmem:[%s1 + $0x13b8] sm:$0xff]
    %v664 = vld [vmem:[%s1 + $0x13c0] sm:$0xff]
    %v665 = vld [vmem:[%s1 + $0x13c8] sm:$0xff]
    %v666 = vld [vmem:[%s1 + $0x13d0] sm:$0xff]
    %v667 = vld [vmem:[%s1 + $0x13d8] sm:$0xff]
    %v668 = vld [vmem:[%s1 + $0x13e0] sm:$0xff]
    %v669 = vld [vmem:[%s1 + $0x13e8] sm:$0xff]
    %v670 = vld [vmem:[%s1 + $0x13f0] sm:$0xff]
    %v671 = vld [vmem:[%s1 + $0x13f8] sm:$0xff]
    %v672 = vld [vmem:[%s2] sm:$0xff]
    %v674 = vlaneseq
    %v675 = vshrl.u32 %v674, 7
    %v676 = vsub.s32 0, %v675
    %v677 = vrot.slane %v672, %v676
    %v678 = vlaneseq
    %v679 = vshrl.u32 %v678, 7
    %v680 = vsub.s32 1, %v679
    %v681 = vrot.slane %v672, %v680
    %v682 = vlaneseq
    %v683 = vshrl.u32 %v682, 7
    %v684 = vsub.s32 2, %v683
    %v685 = vrot.slane %v672, %v684
    %v686 = vlaneseq
    %v687 = vshrl.u32 %v686, 7
    %v688 = vsub.s32 3, %v687
    %v689 = vrot.slane %v672, %v688
    %v690 = vlaneseq
    %v691 = vshrl.u32 %v690, 7
    %v692 = vsub.s32 4, %v691
    %v693 = vrot.slane %v672, %v692
    %v694 = vlaneseq
    %v695 = vshrl.u32 %v694, 7
    %v696 = vsub.s32 5, %v695
    %v697 = vrot.slane %v672, %v696
    %v698 = vlaneseq
    %v699 = vshrl.u32 %v698, 7
    %v700 = vsub.s32 6, %v699
    %v701 = vrot.slane %v672, %v700
    %v702 = vlaneseq
    %v703 = vshrl.u32 %v702, 7
    %v704 = vsub.s32 7, %v703
    %v705 = vrot.slane %v672, %v704
    %v716 = vcombine.high %v30, %v30
    %v718 = vunpack.c.l.s4 1966171168
    %v719 = vunpack.c.0.s8 %v718
    %v720 = vlaneseq
    %v721 = vshrl.u32 %v720, 7
    %v722 = vsub.s32 %v719, %v721
    %v723 = vrot.slane %v30, %v722
    %v725 = vunpack.c.l.s4 1966171168
    %v726 = vunpack.c.0.s8 %v725
    %v727 = vlaneseq
    %v728 = vshrl.u32 %v727, 7
    %v729 = vsub.s32 %v726, %v728
    %v730 = vrot.slane %v716, %v729
    %v731 = vcombine.high %v723, %v723
    %v732 = vcombine.high %v730, %v730
    %v734 = vunpack.c.l.s4 1966171168
    %v735 = vunpack.c.0.s8 %v734
    %v736 = vlaneseq
    %v737 = vshrl.u32 %v736, 7
    %v738 = vsub.s32 %v735, %v737
    %v739 = vrot.slane %v723, %v738
    %v741 = vunpack.c.l.s4 1966171168
    %v742 = vunpack.c.0.s8 %v741
    %v743 = vlaneseq
    %v744 = vshrl.u32 %v743, 7
    %v745 = vsub.s32 %v742, %v744
    %v746 = vrot.slane %v730, %v745
    %v748 = vunpack.c.l.s4 1966171168
    %v749 = vunpack.c.0.s8 %v748
    %v750 = vlaneseq
    %v751 = vshrl.u32 %v750, 7
    %v752 = vsub.s32 %v749, %v751
    %v753 = vrot.slane %v731, %v752
    %v755 = vunpack.c.l.s4 1966171168
    %v756 = vunpack.c.0.s8 %v755
    %v757 = vlaneseq
    %v758 = vshrl.u32 %v757, 7
    %v759 = vsub.s32 %v756, %v758
    %v760 = vrot.slane %v732, %v759
    %v761 = vcombine.high %v739, %v739
    %v762 = vcombine.high %v746, %v746
    %v763 = vcombine.high %v753, %v753
    %v764 = vcombine.high %v760, %v760
    %v766 = vunpack.c.l.s4 1966171168
    %v767 = vunpack.c.0.s8 %v766
    %v768 = vlaneseq
    %v769 = vshrl.u32 %v768, 7
    %v770 = vsub.s32 %v767, %v769
    %v771 = vrot.slane %v31, %v770
    %v772 = vcombine.high %v771, %v771
    %v774 = vunpack.c.l.s4 1966171168
    %v775 = vunpack.c.0.s8 %v774
    %v776 = vlaneseq
    %v777 = vshrl.u32 %v776, 7
    %v778 = vsub.s32 %v775, %v777
    %v779 = vrot.slane %v771, %v778
    %v781 = vunpack.c.l.s4 1966171168
    %v782 = vunpack.c.0.s8 %v781
    %v783 = vlaneseq
    %v784 = vshrl.u32 %v783, 7
    %v785 = vsub.s32 %v782, %v784
    %v786 = vrot.slane %v772, %v785
    %v1437 = vunpack.c.l.b16 %v32
    %v1438 = vunpack.c.h.b16 %v32
    %v1439 = vunpack.c.l.b16 %v33
    %v1440 = vunpack.c.h.b16 %v33
    %v1441 = vunpack.c.l.b16 %v34
    %v1442 = vunpack.c.h.b16 %v34
    %v1443 = vunpack.c.l.b16 %v35
    %v1444 = vunpack.c.h.b16 %v35
    %v1445 = vunpack.c.l.b16 %v36
    %v1446 = vunpack.c.h.b16 %v36
    %v1447 = vunpack.c.l.b16 %v37
    %v1448 = vunpack.c.h.b16 %v37
    %v1449 = vunpack.c.l.b16 %v38
    %v1450 = vunpack.c.h.b16 %v38
    %v1451 = vunpack.c.l.b16 %v39
    %v1452 = vunpack.c.h.b16 %v39
    %v1453 = vunpack.c.l.b16 %v40
    %v1454 = vunpack.c.h.b16 %v40
    %v1455 = vunpack.c.l.b16 %v41
    %v1456 = vunpack.c.h.b16 %v41
    %v1457 = vunpack.c.l.b16 %v42
    %v1458 = vunpack.c.h.b16 %v42
    %v1459 = vunpack.c.l.b16 %v43
    %v1460 = vunpack.c.h.b16 %v43
    %v1461 = vunpack.c.l.b16 %v44
    %v1462 = vunpack.c.h.b16 %v44
    %v1463 = vunpack.c.l.b16 %v45
    %v1464 = vunpack.c.h.b16 %v45
    %v1465 = vunpack.c.l.b16 %v46
    %v1466 = vunpack.c.h.b16 %v46
    %v1467 = vunpack.c.l.b16 %v47
    %v1468 = vunpack.c.h.b16 %v47
    %v1469 = vunpack.c.l.b16 %v48
    %v1470 = vunpack.c.h.b16 %v48
    %v1471 = vunpack.c.l.b16 %v49
    %v1472 = vunpack.c.h.b16 %v49
    %v1473 = vunpack.c.l.b16 %v50
    %v1474 = vunpack.c.h.b16 %v50
    %v1475 = vunpack.c.l.b16 %v51
    %v1476 = vunpack.c.h.b16 %v51
    %v1477 = vunpack.c.l.b16 %v52
    %v1478 = vunpack.c.h.b16 %v52
    %v1479 = vunpack.c.l.b16 %v53
    %v1480 = vunpack.c.h.b16 %v53
    %v1481 = vunpack.c.l.b16 %v54
    %v1482 = vunpack.c.h.b16 %v54
    %v1483 = vunpack.c.l.b16 %v55
    %v1484 = vunpack.c.h.b16 %v55
    %v1485 = vunpack.c.l.b16 %v56
    %v1486 = vunpack.c.h.b16 %v56
    %v1487 = vunpack.c.l.b16 %v57
    %v1488 = vunpack.c.h.b16 %v57
    %v1489 = vunpack.c.l.b16 %v58
    %v1490 = vunpack.c.h.b16 %v58
    %v1491 = vunpack.c.l.b16 %v59
    %v1492 = vunpack.c.h.b16 %v59
    %v1493 = vunpack.c.l.b16 %v60
    %v1494 = vunpack.c.h.b16 %v60
    %v1495 = vunpack.c.l.b16 %v61
    %v1496 = vunpack.c.h.b16 %v61
    %v1497 = vunpack.c.l.b16 %v62
    %v1498 = vunpack.c.h.b16 %v62
    %v1499 = vunpack.c.l.b16 %v63
    %v1500 = vunpack.c.h.b16 %v63
    %v1501 = vunpack.c.l.b16 %v64
    %v1502 = vunpack.c.h.b16 %v64
    %v1503 = vunpack.c.l.b16 %v65
    %v1504 = vunpack.c.h.b16 %v65
    %v1505 = vunpack.c.l.b16 %v66
    %v1506 = vunpack.c.h.b16 %v66
    %v1507 = vunpack.c.l.b16 %v67
    %v1508 = vunpack.c.h.b16 %v67
    %v1509 = vunpack.c.l.b16 %v68
    %v1510 = vunpack.c.h.b16 %v68
    %v1511 = vunpack.c.l.b16 %v69
    %v1512 = vunpack.c.h.b16 %v69
    %v1513 = vunpack.c.l.b16 %v70
    %v1514 = vunpack.c.h.b16 %v70
    %v1515 = vunpack.c.l.b16 %v71
    %v1516 = vunpack.c.h.b16 %v71
    %v1517 = vunpack.c.l.b16 %v72
    %v1518 = vunpack.c.h.b16 %v72
    %v1519 = vunpack.c.l.b16 %v73
    %v1520 = vunpack.c.h.b16 %v73
    %v1521 = vunpack.c.l.b16 %v74
    %v1522 = vunpack.c.h.b16 %v74
    %v1523 = vunpack.c.l.b16 %v75
    %v1524 = vunpack.c.h.b16 %v75
    %v1525 = vunpack.c.l.b16 %v76
    %v1526 = vunpack.c.h.b16 %v76
    %v1527 = vunpack.c.l.b16 %v77
    %v1528 = vunpack.c.h.b16 %v77
    %v1529 = vunpack.c.l.b16 %v78
    %v1530 = vunpack.c.h.b16 %v78
    %v1531 = vunpack.c.l.b16 %v79
    %v1532 = vunpack.c.h.b16 %v79
    %v1533 = vunpack.c.l.b16 %v80
    %v1534 = vunpack.c.h.b16 %v80
    %v1535 = vunpack.c.l.b16 %v81
    %v1536 = vunpack.c.h.b16 %v81
    %v1537 = vunpack.c.l.b16 %v82
    %v1538 = vunpack.c.h.b16 %v82
    %v1539 = vunpack.c.l.b16 %v83
    %v1540 = vunpack.c.h.b16 %v83
    %v1541 = vunpack.c.l.b16 %v84
    %v1542 = vunpack.c.h.b16 %v84
    %v1543 = vunpack.c.l.b16 %v85
    %v1544 = vunpack.c.h.b16 %v85
    %v1545 = vunpack.c.l.b16 %v86
    %v1546 = vunpack.c.h.b16 %v86
    %v1547 = vunpack.c.l.b16 %v87
    %v1548 = vunpack.c.h.b16 %v87
    %v1549 = vunpack.c.l.b16 %v88
    %v1550 = vunpack.c.h.b16 %v88
    %v1551 = vunpack.c.l.b16 %v89
    %v1552 = vunpack.c.h.b16 %v89
    %v1553 = vunpack.c.l.b16 %v90
    %v1554 = vunpack.c.h.b16 %v90
    %v1555 = vunpack.c.l.b16 %v91
    %v1556 = vunpack.c.h.b16 %v91
    %v1557 = vunpack.c.l.b16 %v92
    %v1558 = vunpack.c.h.b16 %v92
    %v1559 = vunpack.c.l.b16 %v93
    %v1560 = vunpack.c.h.b16 %v93
    %v1561 = vunpack.c.l.b16 %v94
    %v1562 = vunpack.c.h.b16 %v94
    %v1563 = vunpack.c.l.b16 %v95
    %v1564 = vunpack.c.h.b16 %v95
    %v1565 = vunpack.c.l.b16 %v96
    %v1566 = vunpack.c.h.b16 %v96
    %v1567 = vunpack.c.l.b16 %v97
    %v1568 = vunpack.c.h.b16 %v97
    %v1569 = vunpack.c.l.b16 %v98
    %v1570 = vunpack.c.h.b16 %v98
    %v1571 = vunpack.c.l.b16 %v99
    %v1572 = vunpack.c.h.b16 %v99
    %v1573 = vunpack.c.l.b16 %v100
    %v1574 = vunpack.c.h.b16 %v100
    %v1575 = vunpack.c.l.b16 %v101
    %v1576 = vunpack.c.h.b16 %v101
    %v1577 = vunpack.c.l.b16 %v102
    %v1578 = vunpack.c.h.b16 %v102
    %v1579 = vunpack.c.l.b16 %v103
    %v1580 = vunpack.c.h.b16 %v103
    %v1581 = vunpack.c.l.b16 %v104
    %v1582 = vunpack.c.h.b16 %v104
    %v1583 = vunpack.c.l.b16 %v105
    %v1584 = vunpack.c.h.b16 %v105
    %v1585 = vunpack.c.l.b16 %v106
    %v1586 = vunpack.c.h.b16 %v106
    %v1587 = vunpack.c.l.b16 %v107
    %v1588 = vunpack.c.h.b16 %v107
    %v1589 = vunpack.c.l.b16 %v108
    %v1590 = vunpack.c.h.b16 %v108
    %v1591 = vunpack.c.l.b16 %v109
    %v1592 = vunpack.c.h.b16 %v109
    %v1593 = vunpack.c.l.b16 %v110
    %v1594 = vunpack.c.h.b16 %v110
    %v1595 = vunpack.c.l.b16 %v111
    %v1596 = vunpack.c.h.b16 %v111
    %v1597 = vunpack.c.l.b16 %v112
    %v1598 = vunpack.c.h.b16 %v112
    %v1599 = vunpack.c.l.b16 %v113
    %v1600 = vunpack.c.h.b16 %v113
    %v1601 = vunpack.c.l.b16 %v114
    %v1602 = vunpack.c.h.b16 %v114
    %v1603 = vunpack.c.l.b16 %v115
    %v1604 = vunpack.c.h.b16 %v115
    %v1605 = vunpack.c.l.b16 %v116
    %v1606 = vunpack.c.h.b16 %v116
    %v1607 = vunpack.c.l.b16 %v117
    %v1608 = vunpack.c.h.b16 %v117
    %v1609 = vunpack.c.l.b16 %v118
    %v1610 = vunpack.c.h.b16 %v118
    %v1611 = vunpack.c.l.b16 %v119
    %v1612 = vunpack.c.h.b16 %v119
    %v1613 = vunpack.c.l.b16 %v120
    %v1614 = vunpack.c.h.b16 %v120
    %v1615 = vunpack.c.l.b16 %v121
    %v1616 = vunpack.c.h.b16 %v121
    %v1617 = vunpack.c.l.b16 %v122
    %v1618 = vunpack.c.h.b16 %v122
    %v1619 = vunpack.c.l.b16 %v123
    %v1620 = vunpack.c.h.b16 %v123
    %v1621 = vunpack.c.l.b16 %v124
    %v1622 = vunpack.c.h.b16 %v124
    %v1623 = vunpack.c.l.b16 %v125
    %v1624 = vunpack.c.h.b16 %v125
    %v1625 = vunpack.c.l.b16 %v126
    %v1626 = vunpack.c.h.b16 %v126
    %v1627 = vunpack.c.l.b16 %v127
    %v1628 = vunpack.c.h.b16 %v127
    %v1629 = vunpack.c.l.b16 %v128
    %v1630 = vunpack.c.h.b16 %v128
    %v1631 = vunpack.c.l.b16 %v129
    %v1632 = vunpack.c.h.b16 %v129
    %v1633 = vunpack.c.l.b16 %v130
    %v1634 = vunpack.c.h.b16 %v130
    %v1635 = vunpack.c.l.b16 %v131
    %v1636 = vunpack.c.h.b16 %v131
    %v1637 = vunpack.c.l.b16 %v132
    %v1638 = vunpack.c.h.b16 %v132
    %v1639 = vunpack.c.l.b16 %v133
    %v1640 = vunpack.c.h.b16 %v133
    %v1641 = vunpack.c.l.b16 %v134
    %v1642 = vunpack.c.h.b16 %v134
    %v1643 = vunpack.c.l.b16 %v135
    %v1644 = vunpack.c.h.b16 %v135
    %v1645 = vunpack.c.l.b16 %v136
    %v1646 = vunpack.c.h.b16 %v136
    %v1647 = vunpack.c.l.b16 %v137
    %v1648 = vunpack.c.h.b16 %v137
    %v1649 = vunpack.c.l.b16 %v138
    %v1650 = vunpack.c.h.b16 %v138
    %v1651 = vunpack.c.l.b16 %v139
    %v1652 = vunpack.c.h.b16 %v139
    %v1653 = vunpack.c.l.b16 %v140
    %v1654 = vunpack.c.h.b16 %v140
    %v1655 = vunpack.c.l.b16 %v141
    %v1656 = vunpack.c.h.b16 %v141
    %v1657 = vunpack.c.l.b16 %v142
    %v1658 = vunpack.c.h.b16 %v142
    %v1659 = vunpack.c.l.b16 %v143
    %v1660 = vunpack.c.h.b16 %v143
    %v1661 = vunpack.c.l.b16 %v144
    %v1662 = vunpack.c.h.b16 %v144
    %v1663 = vunpack.c.l.b16 %v145
    %v1664 = vunpack.c.h.b16 %v145
    %v1665 = vunpack.c.l.b16 %v146
    %v1666 = vunpack.c.h.b16 %v146
    %v1667 = vunpack.c.l.b16 %v147
    %v1668 = vunpack.c.h.b16 %v147
    %v1669 = vunpack.c.l.b16 %v148
    %v1670 = vunpack.c.h.b16 %v148
    %v1671 = vunpack.c.l.b16 %v149
    %v1672 = vunpack.c.h.b16 %v149
    %v1673 = vunpack.c.l.b16 %v150
    %v1674 = vunpack.c.h.b16 %v150
    %v1675 = vunpack.c.l.b16 %v151
    %v1676 = vunpack.c.h.b16 %v151
    %v1677 = vunpack.c.l.b16 %v152
    %v1678 = vunpack.c.h.b16 %v152
    %v1679 = vunpack.c.l.b16 %v153
    %v1680 = vunpack.c.h.b16 %v153
    %v1681 = vunpack.c.l.b16 %v154
    %v1682 = vunpack.c.h.b16 %v154
    %v1683 = vunpack.c.l.b16 %v155
    %v1684 = vunpack.c.h.b16 %v155
    %v1685 = vunpack.c.l.b16 %v156
    %v1686 = vunpack.c.h.b16 %v156
    %v1687 = vunpack.c.l.b16 %v157
    %v1688 = vunpack.c.h.b16 %v157
    %v1689 = vunpack.c.l.b16 %v158
    %v1690 = vunpack.c.h.b16 %v158
    %v1691 = vunpack.c.l.b16 %v159
    %v1692 = vunpack.c.h.b16 %v159
    %v1693 = vunpack.c.l.b16 %v160
    %v1694 = vunpack.c.h.b16 %v160
    %v1695 = vunpack.c.l.b16 %v161
    %v1696 = vunpack.c.h.b16 %v161
    %v1697 = vunpack.c.l.b16 %v162
    %v1698 = vunpack.c.h.b16 %v162
    %v1699 = vunpack.c.l.b16 %v163
    %v1700 = vunpack.c.h.b16 %v163
    %v1701 = vunpack.c.l.b16 %v164
    %v1702 = vunpack.c.h.b16 %v164
    %v1703 = vunpack.c.l.b16 %v165
    %v1704 = vunpack.c.h.b16 %v165
    %v1705 = vunpack.c.l.b16 %v166
    %v1706 = vunpack.c.h.b16 %v166
    %v1707 = vunpack.c.l.b16 %v167
    %v1708 = vunpack.c.h.b16 %v167
    %v1709 = vunpack.c.l.b16 %v168
    %v1710 = vunpack.c.h.b16 %v168
    %v1711 = vunpack.c.l.b16 %v169
    %v1712 = vunpack.c.h.b16 %v169
    %v1713 = vunpack.c.l.b16 %v170
    %v1714 = vunpack.c.h.b16 %v170
    %v1715 = vunpack.c.l.b16 %v171
    %v1716 = vunpack.c.h.b16 %v171
    %v1717 = vunpack.c.l.b16 %v172
    %v1718 = vunpack.c.h.b16 %v172
    %v1719 = vunpack.c.l.b16 %v173
    %v1720 = vunpack.c.h.b16 %v173
    %v1721 = vunpack.c.l.b16 %v174
    %v1722 = vunpack.c.h.b16 %v174
    %v1723 = vunpack.c.l.b16 %v175
    %v1724 = vunpack.c.h.b16 %v175
    %v1725 = vunpack.c.l.b16 %v176
    %v1726 = vunpack.c.h.b16 %v176
    %v1727 = vunpack.c.l.b16 %v177
    %v1728 = vunpack.c.h.b16 %v177
    %v1729 = vunpack.c.l.b16 %v178
    %v1730 = vunpack.c.h.b16 %v178
    %v1731 = vunpack.c.l.b16 %v179
    %v1732 = vunpack.c.h.b16 %v179
    %v1733 = vunpack.c.l.b16 %v180
    %v1734 = vunpack.c.h.b16 %v180
    %v1735 = vunpack.c.l.b16 %v181
    %v1736 = vunpack.c.h.b16 %v181
    %v1737 = vunpack.c.l.b16 %v182
    %v1738 = vunpack.c.h.b16 %v182
    %v1739 = vunpack.c.l.b16 %v183
    %v1740 = vunpack.c.h.b16 %v183
    %v1741 = vunpack.c.l.b16 %v184
    %v1742 = vunpack.c.h.b16 %v184
    %v1743 = vunpack.c.l.b16 %v185
    %v1744 = vunpack.c.h.b16 %v185
    %v1745 = vunpack.c.l.b16 %v186
    %v1746 = vunpack.c.h.b16 %v186
    %v1747 = vunpack.c.l.b16 %v187
    %v1748 = vunpack.c.h.b16 %v187
    %v1749 = vunpack.c.l.b16 %v188
    %v1750 = vunpack.c.h.b16 %v188
    %v1751 = vunpack.c.l.b16 %v189
    %v1752 = vunpack.c.h.b16 %v189
    %v1753 = vunpack.c.l.b16 %v190
    %v1754 = vunpack.c.h.b16 %v190
    %v1755 = vunpack.c.l.b16 %v191
    %v1756 = vunpack.c.h.b16 %v191
    %v1757 = vunpack.c.l.b16 %v192
    %v1758 = vunpack.c.h.b16 %v192
    %v1759 = vunpack.c.l.b16 %v193
    %v1760 = vunpack.c.h.b16 %v193
    %v1761 = vunpack.c.l.b16 %v194
    %v1762 = vunpack.c.h.b16 %v194
    %v1763 = vunpack.c.l.b16 %v195
    %v1764 = vunpack.c.h.b16 %v195
    %v1765 = vunpack.c.l.b16 %v196
    %v1766 = vunpack.c.h.b16 %v196
    %v1767 = vunpack.c.l.b16 %v197
    %v1768 = vunpack.c.h.b16 %v197
    %v1769 = vunpack.c.l.b16 %v198
    %v1770 = vunpack.c.h.b16 %v198
    %v1771 = vunpack.c.l.b16 %v199
    %v1772 = vunpack.c.h.b16 %v199
    %v1773 = vunpack.c.l.b16 %v200
    %v1774 = vunpack.c.h.b16 %v200
    %v1775 = vunpack.c.l.b16 %v201
    %v1776 = vunpack.c.h.b16 %v201
    %v1777 = vunpack.c.l.b16 %v202
    %v1778 = vunpack.c.h.b16 %v202
    %v1779 = vunpack.c.l.b16 %v203
    %v1780 = vunpack.c.h.b16 %v203
    %v1781 = vunpack.c.l.b16 %v204
    %v1782 = vunpack.c.h.b16 %v204
    %v1783 = vunpack.c.l.b16 %v205
    %v1784 = vunpack.c.h.b16 %v205
    %v1785 = vunpack.c.l.b16 %v206
    %v1786 = vunpack.c.h.b16 %v206
    %v1787 = vunpack.c.l.b16 %v207
    %v1788 = vunpack.c.h.b16 %v207
    %v1789 = vunpack.c.l.b16 %v208
    %v1790 = vunpack.c.h.b16 %v208
    %v1791 = vunpack.c.l.b16 %v209
    %v1792 = vunpack.c.h.b16 %v209
    %v1793 = vunpack.c.l.b16 %v210
    %v1794 = vunpack.c.h.b16 %v210
    %v1795 = vunpack.c.l.b16 %v211
    %v1796 = vunpack.c.h.b16 %v211
    %v1797 = vunpack.c.l.b16 %v212
    %v1798 = vunpack.c.h.b16 %v212
    %v1799 = vunpack.c.l.b16 %v213
    %v1800 = vunpack.c.h.b16 %v213
    %v1801 = vunpack.c.l.b16 %v214
    %v1802 = vunpack.c.h.b16 %v214
    %v1803 = vunpack.c.l.b16 %v215
    %v1804 = vunpack.c.h.b16 %v215
    %v1805 = vunpack.c.l.b16 %v216
    %v1806 = vunpack.c.h.b16 %v216
    %v1807 = vunpack.c.l.b16 %v217
    %v1808 = vunpack.c.h.b16 %v217
    %v1809 = vunpack.c.l.b16 %v218
    %v1810 = vunpack.c.h.b16 %v218
    %v1811 = vunpack.c.l.b16 %v219
    %v1812 = vunpack.c.h.b16 %v219
    %v1813 = vunpack.c.l.b16 %v220
    %v1814 = vunpack.c.h.b16 %v220
    %v1815 = vunpack.c.l.b16 %v221
    %v1816 = vunpack.c.h.b16 %v221
    %v1817 = vunpack.c.l.b16 %v222
    %v1818 = vunpack.c.h.b16 %v222
    %v1819 = vunpack.c.l.b16 %v223
    %v1820 = vunpack.c.h.b16 %v223
    %v1821 = vunpack.c.l.b16 %v224
    %v1822 = vunpack.c.h.b16 %v224
    %v1823 = vunpack.c.l.b16 %v225
    %v1824 = vunpack.c.h.b16 %v225
    %v1825 = vunpack.c.l.b16 %v226
    %v1826 = vunpack.c.h.b16 %v226
    %v1827 = vunpack.c.l.b16 %v227
    %v1828 = vunpack.c.h.b16 %v227
    %v1829 = vunpack.c.l.b16 %v228
    %v1830 = vunpack.c.h.b16 %v228
    %v1831 = vunpack.c.l.b16 %v229
    %v1832 = vunpack.c.h.b16 %v229
    %v1833 = vunpack.c.l.b16 %v230
    %v1834 = vunpack.c.h.b16 %v230
    %v1835 = vunpack.c.l.b16 %v231
    %v1836 = vunpack.c.h.b16 %v231
    %v1837 = vunpack.c.l.b16 %v232
    %v1838 = vunpack.c.h.b16 %v232
    %v1839 = vunpack.c.l.b16 %v233
    %v1840 = vunpack.c.h.b16 %v233
    %v1841 = vunpack.c.l.b16 %v234
    %v1842 = vunpack.c.h.b16 %v234
    %v1843 = vunpack.c.l.b16 %v235
    %v1844 = vunpack.c.h.b16 %v235
    %v1845 = vunpack.c.l.b16 %v236
    %v1846 = vunpack.c.h.b16 %v236
    %v1847 = vunpack.c.l.b16 %v237
    %v1848 = vunpack.c.h.b16 %v237
    %v1849 = vunpack.c.l.b16 %v238
    %v1850 = vunpack.c.h.b16 %v238
    %v1851 = vunpack.c.l.b16 %v239
    %v1852 = vunpack.c.h.b16 %v239
    %v1853 = vunpack.c.l.b16 %v240
    %v1854 = vunpack.c.h.b16 %v240
    %v1855 = vunpack.c.l.b16 %v241
    %v1856 = vunpack.c.h.b16 %v241
    %v1857 = vunpack.c.l.b16 %v242
    %v1858 = vunpack.c.h.b16 %v242
    %v1859 = vunpack.c.l.b16 %v243
    %v1860 = vunpack.c.h.b16 %v243
    %v1861 = vunpack.c.l.b16 %v244
    %v1862 = vunpack.c.h.b16 %v244
    %v1863 = vunpack.c.l.b16 %v245
    %v1864 = vunpack.c.h.b16 %v245
    %v1865 = vunpack.c.l.b16 %v246
    %v1866 = vunpack.c.h.b16 %v246
    %v1867 = vunpack.c.l.b16 %v247
    %v1868 = vunpack.c.h.b16 %v247
    %v1869 = vunpack.c.l.b16 %v248
    %v1870 = vunpack.c.h.b16 %v248
    %v1871 = vunpack.c.l.b16 %v249
    %v1872 = vunpack.c.h.b16 %v249
    %v1873 = vunpack.c.l.b16 %v250
    %v1874 = vunpack.c.h.b16 %v250
    %v1875 = vunpack.c.l.b16 %v251
    %v1876 = vunpack.c.h.b16 %v251
    %v1877 = vunpack.c.l.b16 %v252
    %v1878 = vunpack.c.h.b16 %v252
    %v1879 = vunpack.c.l.b16 %v253
    %v1880 = vunpack.c.h.b16 %v253
    %v1881 = vunpack.c.l.b16 %v254
    %v1882 = vunpack.c.h.b16 %v254
    %v1883 = vunpack.c.l.b16 %v255
    %v1884 = vunpack.c.h.b16 %v255
    %v1885 = vunpack.c.l.b16 %v256
    %v1886 = vunpack.c.h.b16 %v256
    %v1887 = vunpack.c.l.b16 %v257
    %v1888 = vunpack.c.h.b16 %v257
    %v1889 = vunpack.c.l.b16 %v258
    %v1890 = vunpack.c.h.b16 %v258
    %v1891 = vunpack.c.l.b16 %v259
    %v1892 = vunpack.c.h.b16 %v259
    %v1893 = vunpack.c.l.b16 %v260
    %v1894 = vunpack.c.h.b16 %v260
    %v1895 = vunpack.c.l.b16 %v261
    %v1896 = vunpack.c.h.b16 %v261
    %v1897 = vunpack.c.l.b16 %v262
    %v1898 = vunpack.c.h.b16 %v262
    %v1899 = vunpack.c.l.b16 %v263
    %v1900 = vunpack.c.h.b16 %v263
    %v1901 = vunpack.c.l.b16 %v264
    %v1902 = vunpack.c.h.b16 %v264
    %v1903 = vunpack.c.l.b16 %v265
    %v1904 = vunpack.c.h.b16 %v265
    %v1905 = vunpack.c.l.b16 %v266
    %v1906 = vunpack.c.h.b16 %v266
    %v1907 = vunpack.c.l.b16 %v267
    %v1908 = vunpack.c.h.b16 %v267
    %v1909 = vunpack.c.l.b16 %v268
    %v1910 = vunpack.c.h.b16 %v268
    %v1911 = vunpack.c.l.b16 %v269
    %v1912 = vunpack.c.h.b16 %v269
    %v1913 = vunpack.c.l.b16 %v270
    %v1914 = vunpack.c.h.b16 %v270
    %v1915 = vunpack.c.l.b16 %v271
    %v1916 = vunpack.c.h.b16 %v271
    %v1917 = vunpack.c.l.b16 %v272
    %v1918 = vunpack.c.h.b16 %v272
    %v1919 = vunpack.c.l.b16 %v273
    %v1920 = vunpack.c.h.b16 %v273
    %v1921 = vunpack.c.l.b16 %v274
    %v1922 = vunpack.c.h.b16 %v274
    %v1923 = vunpack.c.l.b16 %v275
    %v1924 = vunpack.c.h.b16 %v275
    %v1925 = vunpack.c.l.b16 %v276
    %v1926 = vunpack.c.h.b16 %v276
    %v1927 = vunpack.c.l.b16 %v277
    %v1928 = vunpack.c.h.b16 %v277
    %v1929 = vunpack.c.l.b16 %v278
    %v1930 = vunpack.c.h.b16 %v278
    %v1931 = vunpack.c.l.b16 %v279
    %v1932 = vunpack.c.h.b16 %v279
    %v1933 = vunpack.c.l.b16 %v280
    %v1934 = vunpack.c.h.b16 %v280
    %v1935 = vunpack.c.l.b16 %v281
    %v1936 = vunpack.c.h.b16 %v281
    %v1937 = vunpack.c.l.b16 %v282
    %v1938 = vunpack.c.h.b16 %v282
    %v1939 = vunpack.c.l.b16 %v283
    %v1940 = vunpack.c.h.b16 %v283
    %v1941 = vunpack.c.l.b16 %v284
    %v1942 = vunpack.c.h.b16 %v284
    %v1943 = vunpack.c.l.b16 %v285
    %v1944 = vunpack.c.h.b16 %v285
    %v1945 = vunpack.c.l.b16 %v286
    %v1946 = vunpack.c.h.b16 %v286
    %v1947 = vunpack.c.l.b16 %v287
    %v1948 = vunpack.c.h.b16 %v287
    %v1949 = vunpack.c.l.b16 %v288
    %v1950 = vunpack.c.h.b16 %v288
    %v1951 = vunpack.c.l.b16 %v289
    %v1952 = vunpack.c.h.b16 %v289
    %v1953 = vunpack.c.l.b16 %v290
    %v1954 = vunpack.c.h.b16 %v290
    %v1955 = vunpack.c.l.b16 %v291
    %v1956 = vunpack.c.h.b16 %v291
    %v1957 = vunpack.c.l.b16 %v292
    %v1958 = vunpack.c.h.b16 %v292
    %v1959 = vunpack.c.l.b16 %v293
    %v1960 = vunpack.c.h.b16 %v293
    %v1961 = vunpack.c.l.b16 %v294
    %v1962 = vunpack.c.h.b16 %v294
    %v1963 = vunpack.c.l.b16 %v295
    %v1964 = vunpack.c.h.b16 %v295
    %v1965 = vunpack.c.l.b16 %v296
    %v1966 = vunpack.c.h.b16 %v296
    %v1967 = vunpack.c.l.b16 %v297
    %v1968 = vunpack.c.h.b16 %v297
    %v1969 = vunpack.c.l.b16 %v298
    %v1970 = vunpack.c.h.b16 %v298
    %v1971 = vunpack.c.l.b16 %v299
    %v1972 = vunpack.c.h.b16 %v299
    %v1973 = vunpack.c.l.b16 %v300
    %v1974 = vunpack.c.h.b16 %v300
    %v1975 = vunpack.c.l.b16 %v301
    %v1976 = vunpack.c.h.b16 %v301
    %v1977 = vunpack.c.l.b16 %v302
    %v1978 = vunpack.c.h.b16 %v302
    %v1979 = vunpack.c.l.b16 %v303
    %v1980 = vunpack.c.h.b16 %v303
    %v1981 = vunpack.c.l.b16 %v304
    %v1982 = vunpack.c.h.b16 %v304
    %v1983 = vunpack.c.l.b16 %v305
    %v1984 = vunpack.c.h.b16 %v305
    %v1985 = vunpack.c.l.b16 %v306
    %v1986 = vunpack.c.h.b16 %v306
    %v1987 = vunpack.c.l.b16 %v307
    %v1988 = vunpack.c.h.b16 %v307
    %v1989 = vunpack.c.l.b16 %v308
    %v1990 = vunpack.c.h.b16 %v308
    %v1991 = vunpack.c.l.b16 %v309
    %v1992 = vunpack.c.h.b16 %v309
    %v1993 = vunpack.c.l.b16 %v310
    %v1994 = vunpack.c.h.b16 %v310
    %v1995 = vunpack.c.l.b16 %v311
    %v1996 = vunpack.c.h.b16 %v311
    %v1997 = vunpack.c.l.b16 %v312
    %v1998 = vunpack.c.h.b16 %v312
    %v1999 = vunpack.c.l.b16 %v313
    %v2000 = vunpack.c.h.b16 %v313
    %v2001 = vunpack.c.l.b16 %v314
    %v2002 = vunpack.c.h.b16 %v314
    %v2003 = vunpack.c.l.b16 %v315
    %v2004 = vunpack.c.h.b16 %v315
    %v2005 = vunpack.c.l.b16 %v316
    %v2006 = vunpack.c.h.b16 %v316
    %v2007 = vunpack.c.l.b16 %v317
    %v2008 = vunpack.c.h.b16 %v317
    %v2009 = vunpack.c.l.b16 %v318
    %v2010 = vunpack.c.h.b16 %v318
    %v2011 = vunpack.c.l.b16 %v319
    %v2012 = vunpack.c.h.b16 %v319
    %v2013 = vunpack.c.l.b16 %v320
    %v2014 = vunpack.c.h.b16 %v320
    %v2015 = vunpack.c.l.b16 %v321
    %v2016 = vunpack.c.h.b16 %v321
    %v2017 = vunpack.c.l.b16 %v322
    %v2018 = vunpack.c.h.b16 %v322
    %v2019 = vunpack.c.l.b16 %v323
    %v2020 = vunpack.c.h.b16 %v323
    %v2021 = vunpack.c.l.b16 %v324
    %v2022 = vunpack.c.h.b16 %v324
    %v2023 = vunpack.c.l.b16 %v325
    %v2024 = vunpack.c.h.b16 %v325
    %v2025 = vunpack.c.l.b16 %v326
    %v2026 = vunpack.c.h.b16 %v326
    %v2027 = vunpack.c.l.b16 %v327
    %v2028 = vunpack.c.h.b16 %v327
    %v2029 = vunpack.c.l.b16 %v328
    %v2030 = vunpack.c.h.b16 %v328
    %v2031 = vunpack.c.l.b16 %v329
    %v2032 = vunpack.c.h.b16 %v329
    %v2033 = vunpack.c.l.b16 %v330
    %v2034 = vunpack.c.h.b16 %v330
    %v2035 = vunpack.c.l.b16 %v331
    %v2036 = vunpack.c.h.b16 %v331
    %v2037 = vunpack.c.l.b16 %v332
    %v2038 = vunpack.c.h.b16 %v332
    %v2039 = vunpack.c.l.b16 %v333
    %v2040 = vunpack.c.h.b16 %v333
    %v2041 = vunpack.c.l.b16 %v334
    %v2042 = vunpack.c.h.b16 %v334
    %v2043 = vunpack.c.l.b16 %v335
    %v2044 = vunpack.c.h.b16 %v335
    %v2045 = vunpack.c.l.b16 %v336
    %v2046 = vunpack.c.h.b16 %v336
    %v2047 = vunpack.c.l.b16 %v337
    %v2048 = vunpack.c.h.b16 %v337
    %v2049 = vunpack.c.l.b16 %v338
    %v2050 = vunpack.c.h.b16 %v338
    %v2051 = vunpack.c.l.b16 %v339
    %v2052 = vunpack.c.h.b16 %v339
    %v2053 = vunpack.c.l.b16 %v340
    %v2054 = vunpack.c.h.b16 %v340
    %v2055 = vunpack.c.l.b16 %v341
    %v2056 = vunpack.c.h.b16 %v341
    %v2057 = vunpack.c.l.b16 %v342
    %v2058 = vunpack.c.h.b16 %v342
    %v2059 = vunpack.c.l.b16 %v343
    %v2060 = vunpack.c.h.b16 %v343
    %v2061 = vunpack.c.l.b16 %v344
    %v2062 = vunpack.c.h.b16 %v344
    %v2063 = vunpack.c.l.b16 %v345
    %v2064 = vunpack.c.h.b16 %v345
    %v2065 = vunpack.c.l.b16 %v346
    %v2066 = vunpack.c.h.b16 %v346
    %v2067 = vunpack.c.l.b16 %v347
    %v2068 = vunpack.c.h.b16 %v347
    %v2069 = vunpack.c.l.b16 %v348
    %v2070 = vunpack.c.h.b16 %v348
    %v2071 = vunpack.c.l.b16 %v349
    %v2072 = vunpack.c.h.b16 %v349
    %v2073 = vunpack.c.l.b16 %v350
    %v2074 = vunpack.c.h.b16 %v350
    %v2075 = vunpack.c.l.b16 %v351
    %v2076 = vunpack.c.h.b16 %v351
    %v2077 = vunpack.c.l.b16 %v352
    %v2078 = vunpack.c.h.b16 %v352
    %v2079 = vunpack.c.l.b16 %v353
    %v2080 = vunpack.c.h.b16 %v353
    %v2081 = vunpack.c.l.b16 %v354
    %v2082 = vunpack.c.h.b16 %v354
    %v2083 = vunpack.c.l.b16 %v355
    %v2084 = vunpack.c.h.b16 %v355
    %v2085 = vunpack.c.l.b16 %v356
    %v2086 = vunpack.c.h.b16 %v356
    %v2087 = vunpack.c.l.b16 %v357
    %v2088 = vunpack.c.h.b16 %v357
    %v2089 = vunpack.c.l.b16 %v358
    %v2090 = vunpack.c.h.b16 %v358
    %v2091 = vunpack.c.l.b16 %v359
    %v2092 = vunpack.c.h.b16 %v359
    %v2093 = vunpack.c.l.b16 %v360
    %v2094 = vunpack.c.h.b16 %v360
    %v2095 = vunpack.c.l.b16 %v361
    %v2096 = vunpack.c.h.b16 %v361
    %v2097 = vunpack.c.l.b16 %v362
    %v2098 = vunpack.c.h.b16 %v362
    %v2099 = vunpack.c.l.b16 %v363
    %v2100 = vunpack.c.h.b16 %v363
    %v2101 = vunpack.c.l.b16 %v364
    %v2102 = vunpack.c.h.b16 %v364
    %v2103 = vunpack.c.l.b16 %v365
    %v2104 = vunpack.c.h.b16 %v365
    %v2105 = vunpack.c.l.b16 %v366
    %v2106 = vunpack.c.h.b16 %v366
    %v2107 = vunpack.c.l.b16 %v367
    %v2108 = vunpack.c.h.b16 %v367
    %v2109 = vunpack.c.l.b16 %v368
    %v2110 = vunpack.c.h.b16 %v368
    %v2111 = vunpack.c.l.b16 %v369
    %v2112 = vunpack.c.h.b16 %v369
    %v2113 = vunpack.c.l.b16 %v370
    %v2114 = vunpack.c.h.b16 %v370
    %v2115 = vunpack.c.l.b16 %v371
    %v2116 = vunpack.c.h.b16 %v371
    %v2117 = vunpack.c.l.b16 %v372
    %v2118 = vunpack.c.h.b16 %v372
    %v2119 = vunpack.c.l.b16 %v373
    %v2120 = vunpack.c.h.b16 %v373
    %v2121 = vunpack.c.l.b16 %v374
    %v2122 = vunpack.c.h.b16 %v374
    %v2123 = vunpack.c.l.b16 %v375
    %v2124 = vunpack.c.h.b16 %v375
    %v2125 = vunpack.c.l.b16 %v376
    %v2126 = vunpack.c.h.b16 %v376
    %v2127 = vunpack.c.l.b16 %v377
    %v2128 = vunpack.c.h.b16 %v377
    %v2129 = vunpack.c.l.b16 %v378
    %v2130 = vunpack.c.h.b16 %v378
    %v2131 = vunpack.c.l.b16 %v379
    %v2132 = vunpack.c.h.b16 %v379
    %v2133 = vunpack.c.l.b16 %v380
    %v2134 = vunpack.c.h.b16 %v380
    %v2135 = vunpack.c.l.b16 %v381
    %v2136 = vunpack.c.h.b16 %v381
    %v2137 = vunpack.c.l.b16 %v382
    %v2138 = vunpack.c.h.b16 %v382
    %v2139 = vunpack.c.l.b16 %v383
    %v2140 = vunpack.c.h.b16 %v383
    %v2141 = vunpack.c.l.b16 %v384
    %v2142 = vunpack.c.h.b16 %v384
    %v2143 = vunpack.c.l.b16 %v385
    %v2144 = vunpack.c.h.b16 %v385
    %v2145 = vunpack.c.l.b16 %v386
    %v2146 = vunpack.c.h.b16 %v386
    %v2147 = vunpack.c.l.b16 %v387
    %v2148 = vunpack.c.h.b16 %v387
    %v2149 = vunpack.c.l.b16 %v388
    %v2150 = vunpack.c.h.b16 %v388
    %v2151 = vunpack.c.l.b16 %v389
    %v2152 = vunpack.c.h.b16 %v389
    %v2153 = vunpack.c.l.b16 %v390
    %v2154 = vunpack.c.h.b16 %v390
    %v2155 = vunpack.c.l.b16 %v391
    %v2156 = vunpack.c.h.b16 %v391
    %v2157 = vunpack.c.l.b16 %v392
    %v2158 = vunpack.c.h.b16 %v392
    %v2159 = vunpack.c.l.b16 %v393
    %v2160 = vunpack.c.h.b16 %v393
    %v2161 = vunpack.c.l.b16 %v394
    %v2162 = vunpack.c.h.b16 %v394
    %v2163 = vunpack.c.l.b16 %v395
    %v2164 = vunpack.c.h.b16 %v395
    %v2165 = vunpack.c.l.b16 %v396
    %v2166 = vunpack.c.h.b16 %v396
    %v2167 = vunpack.c.l.b16 %v397
    %v2168 = vunpack.c.h.b16 %v397
    %v2169 = vunpack.c.l.b16 %v398
    %v2170 = vunpack.c.h.b16 %v398
    %v2171 = vunpack.c.l.b16 %v399
    %v2172 = vunpack.c.h.b16 %v399
    %v2173 = vunpack.c.l.b16 %v400
    %v2174 = vunpack.c.h.b16 %v400
    %v2175 = vunpack.c.l.b16 %v401
    %v2176 = vunpack.c.h.b16 %v401
    %v2177 = vunpack.c.l.b16 %v402
    %v2178 = vunpack.c.h.b16 %v402
    %v2179 = vunpack.c.l.b16 %v403
    %v2180 = vunpack.c.h.b16 %v403
    %v2181 = vunpack.c.l.b16 %v404
    %v2182 = vunpack.c.h.b16 %v404
    %v2183 = vunpack.c.l.b16 %v405
    %v2184 = vunpack.c.h.b16 %v405
    %v2185 = vunpack.c.l.b16 %v406
    %v2186 = vunpack.c.h.b16 %v406
    %v2187 = vunpack.c.l.b16 %v407
    %v2188 = vunpack.c.h.b16 %v407
    %v2189 = vunpack.c.l.b16 %v408
    %v2190 = vunpack.c.h.b16 %v408
    %v2191 = vunpack.c.l.b16 %v409
    %v2192 = vunpack.c.h.b16 %v409
    %v2193 = vunpack.c.l.b16 %v410
    %v2194 = vunpack.c.h.b16 %v410
    %v2195 = vunpack.c.l.b16 %v411
    %v2196 = vunpack.c.h.b16 %v411
    %v2197 = vunpack.c.l.b16 %v412
    %v2198 = vunpack.c.h.b16 %v412
    %v2199 = vunpack.c.l.b16 %v413
    %v2200 = vunpack.c.h.b16 %v413
    %v2201 = vunpack.c.l.b16 %v414
    %v2202 = vunpack.c.h.b16 %v414
    %v2203 = vunpack.c.l.b16 %v415
    %v2204 = vunpack.c.h.b16 %v415
    %v2205 = vunpack.c.l.b16 %v416
    %v2206 = vunpack.c.h.b16 %v416
    %v2207 = vunpack.c.l.b16 %v417
    %v2208 = vunpack.c.h.b16 %v417
    %v2209 = vunpack.c.l.b16 %v418
    %v2210 = vunpack.c.h.b16 %v418
    %v2211 = vunpack.c.l.b16 %v419
    %v2212 = vunpack.c.h.b16 %v419
    %v2213 = vunpack.c.l.b16 %v420
    %v2214 = vunpack.c.h.b16 %v420
    %v2215 = vunpack.c.l.b16 %v421
    %v2216 = vunpack.c.h.b16 %v421
    %v2217 = vunpack.c.l.b16 %v422
    %v2218 = vunpack.c.h.b16 %v422
    %v2219 = vunpack.c.l.b16 %v423
    %v2220 = vunpack.c.h.b16 %v423
    %v2221 = vunpack.c.l.b16 %v424
    %v2222 = vunpack.c.h.b16 %v424
    %v2223 = vunpack.c.l.b16 %v425
    %v2224 = vunpack.c.h.b16 %v425
    %v2225 = vunpack.c.l.b16 %v426
    %v2226 = vunpack.c.h.b16 %v426
    %v2227 = vunpack.c.l.b16 %v427
    %v2228 = vunpack.c.h.b16 %v427
    %v2229 = vunpack.c.l.b16 %v428
    %v2230 = vunpack.c.h.b16 %v428
    %v2231 = vunpack.c.l.b16 %v429
    %v2232 = vunpack.c.h.b16 %v429
    %v2233 = vunpack.c.l.b16 %v430
    %v2234 = vunpack.c.h.b16 %v430
    %v2235 = vunpack.c.l.b16 %v431
    %v2236 = vunpack.c.h.b16 %v431
    %v2237 = vunpack.c.l.b16 %v432
    %v2238 = vunpack.c.h.b16 %v432
    %v2239 = vunpack.c.l.b16 %v433
    %v2240 = vunpack.c.h.b16 %v433
    %v2241 = vunpack.c.l.b16 %v434
    %v2242 = vunpack.c.h.b16 %v434
    %v2243 = vunpack.c.l.b16 %v435
    %v2244 = vunpack.c.h.b16 %v435
    %v2245 = vunpack.c.l.b16 %v436
    %v2246 = vunpack.c.h.b16 %v436
    %v2247 = vunpack.c.l.b16 %v437
    %v2248 = vunpack.c.h.b16 %v437
    %v2249 = vunpack.c.l.b16 %v438
    %v2250 = vunpack.c.h.b16 %v438
    %v2251 = vunpack.c.l.b16 %v439
    %v2252 = vunpack.c.h.b16 %v439
    %v2253 = vunpack.c.l.b16 %v440
    %v2254 = vunpack.c.h.b16 %v440
    %v2255 = vunpack.c.l.b16 %v441
    %v2256 = vunpack.c.h.b16 %v441
    %v2257 = vunpack.c.l.b16 %v442
    %v2258 = vunpack.c.h.b16 %v442
    %v2259 = vunpack.c.l.b16 %v443
    %v2260 = vunpack.c.h.b16 %v443
    %v2261 = vunpack.c.l.b16 %v444
    %v2262 = vunpack.c.h.b16 %v444
    %v2263 = vunpack.c.l.b16 %v445
    %v2264 = vunpack.c.h.b16 %v445
    %v2265 = vunpack.c.l.b16 %v446
    %v2266 = vunpack.c.h.b16 %v446
    %v2267 = vunpack.c.l.b16 %v447
    %v2268 = vunpack.c.h.b16 %v447
    %v2269 = vunpack.c.l.b16 %v448
    %v2270 = vunpack.c.h.b16 %v448
    %v2271 = vunpack.c.l.b16 %v449
    %v2272 = vunpack.c.h.b16 %v449
    %v2273 = vunpack.c.l.b16 %v450
    %v2274 = vunpack.c.h.b16 %v450
    %v2275 = vunpack.c.l.b16 %v451
    %v2276 = vunpack.c.h.b16 %v451
    %v2277 = vunpack.c.l.b16 %v452
    %v2278 = vunpack.c.h.b16 %v452
    %v2279 = vunpack.c.l.b16 %v453
    %v2280 = vunpack.c.h.b16 %v453
    %v2281 = vunpack.c.l.b16 %v454
    %v2282 = vunpack.c.h.b16 %v454
    %v2283 = vunpack.c.l.b16 %v455
    %v2284 = vunpack.c.h.b16 %v455
    %v2285 = vunpack.c.l.b16 %v456
    %v2286 = vunpack.c.h.b16 %v456
    %v2287 = vunpack.c.l.b16 %v457
    %v2288 = vunpack.c.h.b16 %v457
    %v2289 = vunpack.c.l.b16 %v458
    %v2290 = vunpack.c.h.b16 %v458
    %v2291 = vunpack.c.l.b16 %v459
    %v2292 = vunpack.c.h.b16 %v459
    %v2293 = vunpack.c.l.b16 %v460
    %v2294 = vunpack.c.h.b16 %v460
    %v2295 = vunpack.c.l.b16 %v461
    %v2296 = vunpack.c.h.b16 %v461
    %v2297 = vunpack.c.l.b16 %v462
    %v2298 = vunpack.c.h.b16 %v462
    %v2299 = vunpack.c.l.b16 %v463
    %v2300 = vunpack.c.h.b16 %v463
    %v2301 = vunpack.c.l.b16 %v464
    %v2302 = vunpack.c.h.b16 %v464
    %v2303 = vunpack.c.l.b16 %v465
    %v2304 = vunpack.c.h.b16 %v465
    %v2305 = vunpack.c.l.b16 %v466
    %v2306 = vunpack.c.h.b16 %v466
    %v2307 = vunpack.c.l.b16 %v467
    %v2308 = vunpack.c.h.b16 %v467
    %v2309 = vunpack.c.l.b16 %v468
    %v2310 = vunpack.c.h.b16 %v468
    %v2311 = vunpack.c.l.b16 %v469
    %v2312 = vunpack.c.h.b16 %v469
    %v2313 = vunpack.c.l.b16 %v470
    %v2314 = vunpack.c.h.b16 %v470
    %v2315 = vunpack.c.l.b16 %v471
    %v2316 = vunpack.c.h.b16 %v471
    %v2317 = vunpack.c.l.b16 %v472
    %v2318 = vunpack.c.h.b16 %v472
    %v2319 = vunpack.c.l.b16 %v473
    %v2320 = vunpack.c.h.b16 %v473
    %v2321 = vunpack.c.l.b16 %v474
    %v2322 = vunpack.c.h.b16 %v474
    %v2323 = vunpack.c.l.b16 %v475
    %v2324 = vunpack.c.h.b16 %v475
    %v2325 = vunpack.c.l.b16 %v476
    %v2326 = vunpack.c.h.b16 %v476
    %v2327 = vunpack.c.l.b16 %v477
    %v2328 = vunpack.c.h.b16 %v477
    %v2329 = vunpack.c.l.b16 %v478
    %v2330 = vunpack.c.h.b16 %v478
    %v2331 = vunpack.c.l.b16 %v479
    %v2332 = vunpack.c.h.b16 %v479
    %v2333 = vunpack.c.l.b16 %v480
    %v2334 = vunpack.c.h.b16 %v480
    %v2335 = vunpack.c.l.b16 %v481
    %v2336 = vunpack.c.h.b16 %v481
    %v2337 = vunpack.c.l.b16 %v482
    %v2338 = vunpack.c.h.b16 %v482
    %v2339 = vunpack.c.l.b16 %v483
    %v2340 = vunpack.c.h.b16 %v483
    %v2341 = vunpack.c.l.b16 %v484
    %v2342 = vunpack.c.h.b16 %v484
    %v2343 = vunpack.c.l.b16 %v485
    %v2344 = vunpack.c.h.b16 %v485
    %v2345 = vunpack.c.l.b16 %v486
    %v2346 = vunpack.c.h.b16 %v486
    %v2347 = vunpack.c.l.b16 %v487
    %v2348 = vunpack.c.h.b16 %v487
    %v2349 = vunpack.c.l.b16 %v488
    %v2350 = vunpack.c.h.b16 %v488
    %v2351 = vunpack.c.l.b16 %v489
    %v2352 = vunpack.c.h.b16 %v489
    %v2353 = vunpack.c.l.b16 %v490
    %v2354 = vunpack.c.h.b16 %v490
    %v2355 = vunpack.c.l.b16 %v491
    %v2356 = vunpack.c.h.b16 %v491
    %v2357 = vunpack.c.l.b16 %v492
    %v2358 = vunpack.c.h.b16 %v492
    %v2359 = vunpack.c.l.b16 %v493
    %v2360 = vunpack.c.h.b16 %v493
    %v2361 = vunpack.c.l.b16 %v494
    %v2362 = vunpack.c.h.b16 %v494
    %v2363 = vunpack.c.l.b16 %v495
    %v2364 = vunpack.c.h.b16 %v495
    %v2365 = vunpack.c.l.b16 %v496
    %v2366 = vunpack.c.h.b16 %v496
    %v2367 = vunpack.c.l.b16 %v497
    %v2368 = vunpack.c.h.b16 %v497
    %v2369 = vunpack.c.l.b16 %v498
    %v2370 = vunpack.c.h.b16 %v498
    %v2371 = vunpack.c.l.b16 %v499
    %v2372 = vunpack.c.h.b16 %v499
    %v2373 = vunpack.c.l.b16 %v500
    %v2374 = vunpack.c.h.b16 %v500
    %v2375 = vunpack.c.l.b16 %v501
    %v2376 = vunpack.c.h.b16 %v501
    %v2377 = vunpack.c.l.b16 %v502
    %v2378 = vunpack.c.h.b16 %v502
    %v2379 = vunpack.c.l.b16 %v503
    %v2380 = vunpack.c.h.b16 %v503
    %v2381 = vunpack.c.l.b16 %v504
    %v2382 = vunpack.c.h.b16 %v504
    %v2383 = vunpack.c.l.b16 %v505
    %v2384 = vunpack.c.h.b16 %v505
    %v2385 = vunpack.c.l.b16 %v506
    %v2386 = vunpack.c.h.b16 %v506
    %v2387 = vunpack.c.l.b16 %v507
    %v2388 = vunpack.c.h.b16 %v507
    %v2389 = vunpack.c.l.b16 %v508
    %v2390 = vunpack.c.h.b16 %v508
    %v2391 = vunpack.c.l.b16 %v509
    %v2392 = vunpack.c.h.b16 %v509
    %v2393 = vunpack.c.l.b16 %v510
    %v2394 = vunpack.c.h.b16 %v510
    %v2395 = vunpack.c.l.b16 %v511
    %v2396 = vunpack.c.h.b16 %v511
    %v2397 = vunpack.c.l.b16 %v512
    %v2398 = vunpack.c.h.b16 %v512
    %v2399 = vunpack.c.l.b16 %v513
    %v2400 = vunpack.c.h.b16 %v513
    %v2401 = vunpack.c.l.b16 %v514
    %v2402 = vunpack.c.h.b16 %v514
    %v2403 = vunpack.c.l.b16 %v515
    %v2404 = vunpack.c.h.b16 %v515
    %v2405 = vunpack.c.l.b16 %v516
    %v2406 = vunpack.c.h.b16 %v516
    %v2407 = vunpack.c.l.b16 %v517
    %v2408 = vunpack.c.h.b16 %v517
    %v2409 = vunpack.c.l.b16 %v518
    %v2410 = vunpack.c.h.b16 %v518
    %v2411 = vunpack.c.l.b16 %v519
    %v2412 = vunpack.c.h.b16 %v519
    %v2413 = vunpack.c.l.b16 %v520
    %v2414 = vunpack.c.h.b16 %v520
    %v2415 = vunpack.c.l.b16 %v521
    %v2416 = vunpack.c.h.b16 %v521
    %v2417 = vunpack.c.l.b16 %v522
    %v2418 = vunpack.c.h.b16 %v522
    %v2419 = vunpack.c.l.b16 %v523
    %v2420 = vunpack.c.h.b16 %v523
    %v2421 = vunpack.c.l.b16 %v524
    %v2422 = vunpack.c.h.b16 %v524
    %v2423 = vunpack.c.l.b16 %v525
    %v2424 = vunpack.c.h.b16 %v525
    %v2425 = vunpack.c.l.b16 %v526
    %v2426 = vunpack.c.h.b16 %v526
    %v2427 = vunpack.c.l.b16 %v527
    %v2428 = vunpack.c.h.b16 %v527
    %v2429 = vunpack.c.l.b16 %v528
    %v2430 = vunpack.c.h.b16 %v528
    %v2431 = vunpack.c.l.b16 %v529
    %v2432 = vunpack.c.h.b16 %v529
    %v2433 = vunpack.c.l.b16 %v530
    %v2434 = vunpack.c.h.b16 %v530
    %v2435 = vunpack.c.l.b16 %v531
    %v2436 = vunpack.c.h.b16 %v531
    %v2437 = vunpack.c.l.b16 %v532
    %v2438 = vunpack.c.h.b16 %v532
    %v2439 = vunpack.c.l.b16 %v533
    %v2440 = vunpack.c.h.b16 %v533
    %v2441 = vunpack.c.l.b16 %v534
    %v2442 = vunpack.c.h.b16 %v534
    %v2443 = vunpack.c.l.b16 %v535
    %v2444 = vunpack.c.h.b16 %v535
    %v2445 = vunpack.c.l.b16 %v536
    %v2446 = vunpack.c.h.b16 %v536
    %v2447 = vunpack.c.l.b16 %v537
    %v2448 = vunpack.c.h.b16 %v537
    %v2449 = vunpack.c.l.b16 %v538
    %v2450 = vunpack.c.h.b16 %v538
    %v2451 = vunpack.c.l.b16 %v539
    %v2452 = vunpack.c.h.b16 %v539
    %v2453 = vunpack.c.l.b16 %v540
    %v2454 = vunpack.c.h.b16 %v540
    %v2455 = vunpack.c.l.b16 %v541
    %v2456 = vunpack.c.h.b16 %v541
    %v2457 = vunpack.c.l.b16 %v542
    %v2458 = vunpack.c.h.b16 %v542
    %v2459 = vunpack.c.l.b16 %v543
    %v2460 = vunpack.c.h.b16 %v543
    %v2461 = vunpack.c.l.b16 %v544
    %v2462 = vunpack.c.h.b16 %v544
    %v2463 = vunpack.c.l.b16 %v545
    %v2464 = vunpack.c.h.b16 %v545
    %v2465 = vunpack.c.l.b16 %v546
    %v2466 = vunpack.c.h.b16 %v546
    %v2467 = vunpack.c.l.b16 %v547
    %v2468 = vunpack.c.h.b16 %v547
    %v2469 = vunpack.c.l.b16 %v548
    %v2470 = vunpack.c.h.b16 %v548
    %v2471 = vunpack.c.l.b16 %v549
    %v2472 = vunpack.c.h.b16 %v549
    %v2473 = vunpack.c.l.b16 %v550
    %v2474 = vunpack.c.h.b16 %v550
    %v2475 = vunpack.c.l.b16 %v551
    %v2476 = vunpack.c.h.b16 %v551
    %v2477 = vunpack.c.l.b16 %v552
    %v2478 = vunpack.c.h.b16 %v552
    %v2479 = vunpack.c.l.b16 %v553
    %v2480 = vunpack.c.h.b16 %v553
    %v2481 = vunpack.c.l.b16 %v554
    %v2482 = vunpack.c.h.b16 %v554
    %v2483 = vunpack.c.l.b16 %v555
    %v2484 = vunpack.c.h.b16 %v555
    %v2485 = vunpack.c.l.b16 %v556
    %v2486 = vunpack.c.h.b16 %v556
    %v2487 = vunpack.c.l.b16 %v557
    %v2488 = vunpack.c.h.b16 %v557
    %v2489 = vunpack.c.l.b16 %v558
    %v2490 = vunpack.c.h.b16 %v558
    %v2491 = vunpack.c.l.b16 %v559
    %v2492 = vunpack.c.h.b16 %v559
    %v2493 = vunpack.c.l.b16 %v560
    %v2494 = vunpack.c.h.b16 %v560
    %v2495 = vunpack.c.l.b16 %v561
    %v2496 = vunpack.c.h.b16 %v561
    %v2497 = vunpack.c.l.b16 %v562
    %v2498 = vunpack.c.h.b16 %v562
    %v2499 = vunpack.c.l.b16 %v563
    %v2500 = vunpack.c.h.b16 %v563
    %v2501 = vunpack.c.l.b16 %v564
    %v2502 = vunpack.c.h.b16 %v564
    %v2503 = vunpack.c.l.b16 %v565
    %v2504 = vunpack.c.h.b16 %v565
    %v2505 = vunpack.c.l.b16 %v566
    %v2506 = vunpack.c.h.b16 %v566
    %v2507 = vunpack.c.l.b16 %v567
    %v2508 = vunpack.c.h.b16 %v567
    %v2509 = vunpack.c.l.b16 %v568
    %v2510 = vunpack.c.h.b16 %v568
    %v2511 = vunpack.c.l.b16 %v569
    %v2512 = vunpack.c.h.b16 %v569
    %v2513 = vunpack.c.l.b16 %v570
    %v2514 = vunpack.c.h.b16 %v570
    %v2515 = vunpack.c.l.b16 %v571
    %v2516 = vunpack.c.h.b16 %v571
    %v2517 = vunpack.c.l.b16 %v572
    %v2518 = vunpack.c.h.b16 %v572
    %v2519 = vunpack.c.l.b16 %v573
    %v2520 = vunpack.c.h.b16 %v573
    %v2521 = vunpack.c.l.b16 %v574
    %v2522 = vunpack.c.h.b16 %v574
    %v2523 = vunpack.c.l.b16 %v575
    %v2524 = vunpack.c.h.b16 %v575
    %v2525 = vunpack.c.l.b16 %v576
    %v2526 = vunpack.c.h.b16 %v576
    %v2527 = vunpack.c.l.b16 %v577
    %v2528 = vunpack.c.h.b16 %v577
    %v2529 = vunpack.c.l.b16 %v578
    %v2530 = vunpack.c.h.b16 %v578
    %v2531 = vunpack.c.l.b16 %v579
    %v2532 = vunpack.c.h.b16 %v579
    %v2533 = vunpack.c.l.b16 %v580
    %v2534 = vunpack.c.h.b16 %v580
    %v2535 = vunpack.c.l.b16 %v581
    %v2536 = vunpack.c.h.b16 %v581
    %v2537 = vunpack.c.l.b16 %v582
    %v2538 = vunpack.c.h.b16 %v582
    %v2539 = vunpack.c.l.b16 %v583
    %v2540 = vunpack.c.h.b16 %v583
    %v2541 = vunpack.c.l.b16 %v584
    %v2542 = vunpack.c.h.b16 %v584
    %v2543 = vunpack.c.l.b16 %v585
    %v2544 = vunpack.c.h.b16 %v585
    %v2545 = vunpack.c.l.b16 %v586
    %v2546 = vunpack.c.h.b16 %v586
    %v2547 = vunpack.c.l.b16 %v587
    %v2548 = vunpack.c.h.b16 %v587
    %v2549 = vunpack.c.l.b16 %v588
    %v2550 = vunpack.c.h.b16 %v588
    %v2551 = vunpack.c.l.b16 %v589
    %v2552 = vunpack.c.h.b16 %v589
    %v2553 = vunpack.c.l.b16 %v590
    %v2554 = vunpack.c.h.b16 %v590
    %v2555 = vunpack.c.l.b16 %v591
    %v2556 = vunpack.c.h.b16 %v591
    %v2557 = vunpack.c.l.b16 %v592
    %v2558 = vunpack.c.h.b16 %v592
    %v2559 = vunpack.c.l.b16 %v593
    %v2560 = vunpack.c.h.b16 %v593
    %v2561 = vunpack.c.l.b16 %v594
    %v2562 = vunpack.c.h.b16 %v594
    %v2563 = vunpack.c.l.b16 %v595
    %v2564 = vunpack.c.h.b16 %v595
    %v2565 = vunpack.c.l.b16 %v596
    %v2566 = vunpack.c.h.b16 %v596
    %v2567 = vunpack.c.l.b16 %v597
    %v2568 = vunpack.c.h.b16 %v597
    %v2569 = vunpack.c.l.b16 %v598
    %v2570 = vunpack.c.h.b16 %v598
    %v2571 = vunpack.c.l.b16 %v599
    %v2572 = vunpack.c.h.b16 %v599
    %v2573 = vunpack.c.l.b16 %v600
    %v2574 = vunpack.c.h.b16 %v600
    %v2575 = vunpack.c.l.b16 %v601
    %v2576 = vunpack.c.h.b16 %v601
    %v2577 = vunpack.c.l.b16 %v602
    %v2578 = vunpack.c.h.b16 %v602
    %v2579 = vunpack.c.l.b16 %v603
    %v2580 = vunpack.c.h.b16 %v603
    %v2581 = vunpack.c.l.b16 %v604
    %v2582 = vunpack.c.h.b16 %v604
    %v2583 = vunpack.c.l.b16 %v605
    %v2584 = vunpack.c.h.b16 %v605
    %v2585 = vunpack.c.l.b16 %v606
    %v2586 = vunpack.c.h.b16 %v606
    %v2587 = vunpack.c.l.b16 %v607
    %v2588 = vunpack.c.h.b16 %v607
    %v2589 = vunpack.c.l.b16 %v608
    %v2590 = vunpack.c.h.b16 %v608
    %v2591 = vunpack.c.l.b16 %v609
    %v2592 = vunpack.c.h.b16 %v609
    %v2593 = vunpack.c.l.b16 %v610
    %v2594 = vunpack.c.h.b16 %v610
    %v2595 = vunpack.c.l.b16 %v611
    %v2596 = vunpack.c.h.b16 %v611
    %v2597 = vunpack.c.l.b16 %v612
    %v2598 = vunpack.c.h.b16 %v612
    %v2599 = vunpack.c.l.b16 %v613
    %v2600 = vunpack.c.h.b16 %v613
    %v2601 = vunpack.c.l.b16 %v614
    %v2602 = vunpack.c.h.b16 %v614
    %v2603 = vunpack.c.l.b16 %v615
    %v2604 = vunpack.c.h.b16 %v615
    %v2605 = vunpack.c.l.b16 %v616
    %v2606 = vunpack.c.h.b16 %v616
    %v2607 = vunpack.c.l.b16 %v617
    %v2608 = vunpack.c.h.b16 %v617
    %v2609 = vunpack.c.l.b16 %v618
    %v2610 = vunpack.c.h.b16 %v618
    %v2611 = vunpack.c.l.b16 %v619
    %v2612 = vunpack.c.h.b16 %v619
    %v2613 = vunpack.c.l.b16 %v620
    %v2614 = vunpack.c.h.b16 %v620
    %v2615 = vunpack.c.l.b16 %v621
    %v2616 = vunpack.c.h.b16 %v621
    %v2617 = vunpack.c.l.b16 %v622
    %v2618 = vunpack.c.h.b16 %v622
    %v2619 = vunpack.c.l.b16 %v623
    %v2620 = vunpack.c.h.b16 %v623
    %v2621 = vunpack.c.l.b16 %v624
    %v2622 = vunpack.c.h.b16 %v624
    %v2623 = vunpack.c.l.b16 %v625
    %v2624 = vunpack.c.h.b16 %v625
    %v2625 = vunpack.c.l.b16 %v626
    %v2626 = vunpack.c.h.b16 %v626
    %v2627 = vunpack.c.l.b16 %v627
    %v2628 = vunpack.c.h.b16 %v627
    %v2629 = vunpack.c.l.b16 %v628
    %v2630 = vunpack.c.h.b16 %v628
    %v2631 = vunpack.c.l.b16 %v629
    %v2632 = vunpack.c.h.b16 %v629
    %v2633 = vunpack.c.l.b16 %v630
    %v2634 = vunpack.c.h.b16 %v630
    %v2635 = vunpack.c.l.b16 %v631
    %v2636 = vunpack.c.h.b16 %v631
    %v2637 = vunpack.c.l.b16 %v632
    %v2638 = vunpack.c.h.b16 %v632
    %v2639 = vunpack.c.l.b16 %v633
    %v2640 = vunpack.c.h.b16 %v633
    %v2641 = vunpack.c.l.b16 %v634
    %v2642 = vunpack.c.h.b16 %v634
    %v2643 = vunpack.c.l.b16 %v635
    %v2644 = vunpack.c.h.b16 %v635
    %v2645 = vunpack.c.l.b16 %v636
    %v2646 = vunpack.c.h.b16 %v636
    %v2647 = vunpack.c.l.b16 %v637
    %v2648 = vunpack.c.h.b16 %v637
    %v2649 = vunpack.c.l.b16 %v638
    %v2650 = vunpack.c.h.b16 %v638
    %v2651 = vunpack.c.l.b16 %v639
    %v2652 = vunpack.c.h.b16 %v639
    %v2653 = vunpack.c.l.b16 %v640
    %v2654 = vunpack.c.h.b16 %v640
    %v2655 = vunpack.c.l.b16 %v641
    %v2656 = vunpack.c.h.b16 %v641
    %v2657 = vunpack.c.l.b16 %v642
    %v2658 = vunpack.c.h.b16 %v642
    %v2659 = vunpack.c.l.b16 %v643
    %v2660 = vunpack.c.h.b16 %v643
    %v2661 = vunpack.c.l.b16 %v644
    %v2662 = vunpack.c.h.b16 %v644
    %v2663 = vunpack.c.l.b16 %v645
    %v2664 = vunpack.c.h.b16 %v645
    %v2665 = vunpack.c.l.b16 %v646
    %v2666 = vunpack.c.h.b16 %v646
    %v2667 = vunpack.c.l.b16 %v647
    %v2668 = vunpack.c.h.b16 %v647
    %v2669 = vunpack.c.l.b16 %v648
    %v2670 = vunpack.c.h.b16 %v648
    %v2671 = vunpack.c.l.b16 %v649
    %v2672 = vunpack.c.h.b16 %v649
    %v2673 = vunpack.c.l.b16 %v650
    %v2674 = vunpack.c.h.b16 %v650
    %v2675 = vunpack.c.l.b16 %v651
    %v2676 = vunpack.c.h.b16 %v651
    %v2677 = vunpack.c.l.b16 %v652
    %v2678 = vunpack.c.h.b16 %v652
    %v2679 = vunpack.c.l.b16 %v653
    %v2680 = vunpack.c.h.b16 %v653
    %v2681 = vunpack.c.l.b16 %v654
    %v2682 = vunpack.c.h.b16 %v654
    %v2683 = vunpack.c.l.b16 %v655
    %v2684 = vunpack.c.h.b16 %v655
    %v2685 = vunpack.c.l.b16 %v656
    %v2686 = vunpack.c.h.b16 %v656
    %v2687 = vunpack.c.l.b16 %v657
    %v2688 = vunpack.c.h.b16 %v657
    %v2689 = vunpack.c.l.b16 %v658
    %v2690 = vunpack.c.h.b16 %v658
    %v2691 = vunpack.c.l.b16 %v659
    %v2692 = vunpack.c.h.b16 %v659
    %v2693 = vunpack.c.l.b16 %v660
    %v2694 = vunpack.c.h.b16 %v660
    %v2695 = vunpack.c.l.b16 %v661
    %v2696 = vunpack.c.h.b16 %v661
    %v2697 = vunpack.c.l.b16 %v662
    %v2698 = vunpack.c.h.b16 %v662
    %v2699 = vunpack.c.l.b16 %v663
    %v2700 = vunpack.c.h.b16 %v663
    %v2701 = vunpack.c.l.b16 %v664
    %v2702 = vunpack.c.h.b16 %v664
    %v2703 = vunpack.c.l.b16 %v665
    %v2704 = vunpack.c.h.b16 %v665
    %v2705 = vunpack.c.l.b16 %v666
    %v2706 = vunpack.c.h.b16 %v666
    %v2707 = vunpack.c.l.b16 %v667
    %v2708 = vunpack.c.h.b16 %v667
    %v2709 = vunpack.c.l.b16 %v668
    %v2710 = vunpack.c.h.b16 %v668
    %v2711 = vunpack.c.l.b16 %v669
    %v2712 = vunpack.c.h.b16 %v669
    %v2713 = vunpack.c.l.b16 %v670
    %v2714 = vunpack.c.h.b16 %v670
    %v2715 = vunpack.c.l.b16 %v671
    %v2716 = vunpack.c.h.b16 %v671
    %v2717 = vpack.c.b16 %v1445, %v1437
    %v2718 = vpack.c.b16 %v1446, %v1438
    %v2719 = vpack.c.b16 %v1447, %v1439
    %v2720 = vpack.c.b16 %v1448, %v1440
    %v2721 = vpack.c.b16 %v1449, %v1441
    %v2722 = vpack.c.b16 %v1450, %v1442
    %v2723 = vpack.c.b16 %v1451, %v1443
    %v2724 = vpack.c.b16 %v1452, %v1444
    %v2725 = vpack.c.b16 %v1461, %v1453
    %v2726 = vpack.c.b16 %v1462, %v1454
    %v2727 = vpack.c.b16 %v1463, %v1455
    %v2728 = vpack.c.b16 %v1464, %v1456
    %v2729 = vpack.c.b16 %v1465, %v1457
    %v2730 = vpack.c.b16 %v1466, %v1458
    %v2731 = vpack.c.b16 %v1467, %v1459
    %v2732 = vpack.c.b16 %v1468, %v1460
    %v2733 = vpack.c.b16 %v1477, %v1469
    %v2734 = vpack.c.b16 %v1478, %v1470
    %v2735 = vpack.c.b16 %v1479, %v1471
    %v2736 = vpack.c.b16 %v1480, %v1472
    %v2737 = vpack.c.b16 %v1481, %v1473
    %v2738 = vpack.c.b16 %v1482, %v1474
    %v2739 = vpack.c.b16 %v1483, %v1475
    %v2740 = vpack.c.b16 %v1484, %v1476
    %v2741 = vpack.c.b16 %v1493, %v1485
    %v2742 = vpack.c.b16 %v1494, %v1486
    %v2743 = vpack.c.b16 %v1495, %v1487
    %v2744 = vpack.c.b16 %v1496, %v1488
    %v2745 = vpack.c.b16 %v1497, %v1489
    %v2746 = vpack.c.b16 %v1498, %v1490
    %v2747 = vpack.c.b16 %v1499, %v1491
    %v2748 = vpack.c.b16 %v1500, %v1492
    %v2749 = vpack.c.b16 %v1509, %v1501
    %v2750 = vpack.c.b16 %v1510, %v1502
    %v2751 = vpack.c.b16 %v1511, %v1503
    %v2752 = vpack.c.b16 %v1512, %v1504
    %v2753 = vpack.c.b16 %v1513, %v1505
    %v2754 = vpack.c.b16 %v1514, %v1506
    %v2755 = vpack.c.b16 %v1515, %v1507
    %v2756 = vpack.c.b16 %v1516, %v1508
    %v2757 = vpack.c.b16 %v1525, %v1517
    %v2758 = vpack.c.b16 %v1526, %v1518
    %v2759 = vpack.c.b16 %v1527, %v1519
    %v2760 = vpack.c.b16 %v1528, %v1520
    %v2761 = vpack.c.b16 %v1529, %v1521
    %v2762 = vpack.c.b16 %v1530, %v1522
    %v2763 = vpack.c.b16 %v1531, %v1523
    %v2764 = vpack.c.b16 %v1532, %v1524
    %v2765 = vpack.c.b16 %v1541, %v1533
    %v2766 = vpack.c.b16 %v1542, %v1534
    %v2767 = vpack.c.b16 %v1543, %v1535
    %v2768 = vpack.c.b16 %v1544, %v1536
    %v2769 = vpack.c.b16 %v1545, %v1537
    %v2770 = vpack.c.b16 %v1546, %v1538
    %v2771 = vpack.c.b16 %v1547, %v1539
    %v2772 = vpack.c.b16 %v1548, %v1540
    %v2773 = vpack.c.b16 %v1557, %v1549
    %v2774 = vpack.c.b16 %v1558, %v1550
    %v2775 = vpack.c.b16 %v1559, %v1551
    %v2776 = vpack.c.b16 %v1560, %v1552
    %v2777 = vpack.c.b16 %v1561, %v1553
    %v2778 = vpack.c.b16 %v1562, %v1554
    %v2779 = vpack.c.b16 %v1563, %v1555
    %v2780 = vpack.c.b16 %v1564, %v1556
    %v2781 = vpack.c.b16 %v1573, %v1565
    %v2782 = vpack.c.b16 %v1574, %v1566
    %v2783 = vpack.c.b16 %v1575, %v1567
    %v2784 = vpack.c.b16 %v1576, %v1568
    %v2785 = vpack.c.b16 %v1577, %v1569
    %v2786 = vpack.c.b16 %v1578, %v1570
    %v2787 = vpack.c.b16 %v1579, %v1571
    %v2788 = vpack.c.b16 %v1580, %v1572
    %v2789 = vpack.c.b16 %v1589, %v1581
    %v2790 = vpack.c.b16 %v1590, %v1582
    %v2791 = vpack.c.b16 %v1591, %v1583
    %v2792 = vpack.c.b16 %v1592, %v1584
    %v2793 = vpack.c.b16 %v1593, %v1585
    %v2794 = vpack.c.b16 %v1594, %v1586
    %v2795 = vpack.c.b16 %v1595, %v1587
    %v2796 = vpack.c.b16 %v1596, %v1588
    %v2797 = vpack.c.b16 %v1605, %v1597
    %v2798 = vpack.c.b16 %v1606, %v1598
    %v2799 = vpack.c.b16 %v1607, %v1599
    %v2800 = vpack.c.b16 %v1608, %v1600
    %v2801 = vpack.c.b16 %v1609, %v1601
    %v2802 = vpack.c.b16 %v1610, %v1602
    %v2803 = vpack.c.b16 %v1611, %v1603
    %v2804 = vpack.c.b16 %v1612, %v1604
    %v2805 = vpack.c.b16 %v1621, %v1613
    %v2806 = vpack.c.b16 %v1622, %v1614
    %v2807 = vpack.c.b16 %v1623, %v1615
    %v2808 = vpack.c.b16 %v1624, %v1616
    %v2809 = vpack.c.b16 %v1625, %v1617
    %v2810 = vpack.c.b16 %v1626, %v1618
    %v2811 = vpack.c.b16 %v1627, %v1619
    %v2812 = vpack.c.b16 %v1628, %v1620
    %v2813 = vpack.c.b16 %v1637, %v1629
    %v2814 = vpack.c.b16 %v1638, %v1630
    %v2815 = vpack.c.b16 %v1639, %v1631
    %v2816 = vpack.c.b16 %v1640, %v1632
    %v2817 = vpack.c.b16 %v1641, %v1633
    %v2818 = vpack.c.b16 %v1642, %v1634
    %v2819 = vpack.c.b16 %v1643, %v1635
    %v2820 = vpack.c.b16 %v1644, %v1636
    %v2821 = vpack.c.b16 %v1653, %v1645
    %v2822 = vpack.c.b16 %v1654, %v1646
    %v2823 = vpack.c.b16 %v1655, %v1647
    %v2824 = vpack.c.b16 %v1656, %v1648
    %v2825 = vpack.c.b16 %v1657, %v1649
    %v2826 = vpack.c.b16 %v1658, %v1650
    %v2827 = vpack.c.b16 %v1659, %v1651
    %v2828 = vpack.c.b16 %v1660, %v1652
    %v2829 = vpack.c.b16 %v1669, %v1661
    %v2830 = vpack.c.b16 %v1670, %v1662
    %v2831 = vpack.c.b16 %v1671, %v1663
    %v2832 = vpack.c.b16 %v1672, %v1664
    %v2833 = vpack.c.b16 %v1673, %v1665
    %v2834 = vpack.c.b16 %v1674, %v1666
    %v2835 = vpack.c.b16 %v1675, %v1667
    %v2836 = vpack.c.b16 %v1676, %v1668
    %v2837 = vpack.c.b16 %v1685, %v1677
    %v2838 = vpack.c.b16 %v1686, %v1678
    %v2839 = vpack.c.b16 %v1687, %v1679
    %v2840 = vpack.c.b16 %v1688, %v1680
    %v2841 = vpack.c.b16 %v1689, %v1681
    %v2842 = vpack.c.b16 %v1690, %v1682
    %v2843 = vpack.c.b16 %v1691, %v1683
    %v2844 = vpack.c.b16 %v1692, %v1684
    %v2845 = vpack.c.b16 %v1701, %v1693
    %v2846 = vpack.c.b16 %v1702, %v1694
    %v2847 = vpack.c.b16 %v1703, %v1695
    %v2848 = vpack.c.b16 %v1704, %v1696
    %v2849 = vpack.c.b16 %v1705, %v1697
    %v2850 = vpack.c.b16 %v1706, %v1698
    %v2851 = vpack.c.b16 %v1707, %v1699
    %v2852 = vpack.c.b16 %v1708, %v1700
    %v2853 = vpack.c.b16 %v1717, %v1709
    %v2854 = vpack.c.b16 %v1718, %v1710
    %v2855 = vpack.c.b16 %v1719, %v1711
    %v2856 = vpack.c.b16 %v1720, %v1712
    %v2857 = vpack.c.b16 %v1721, %v1713
    %v2858 = vpack.c.b16 %v1722, %v1714
    %v2859 = vpack.c.b16 %v1723, %v1715
    %v2860 = vpack.c.b16 %v1724, %v1716
    %v2861 = vpack.c.b16 %v1733, %v1725
    %v2862 = vpack.c.b16 %v1734, %v1726
    %v2863 = vpack.c.b16 %v1735, %v1727
    %v2864 = vpack.c.b16 %v1736, %v1728
    %v2865 = vpack.c.b16 %v1737, %v1729
    %v2866 = vpack.c.b16 %v1738, %v1730
    %v2867 = vpack.c.b16 %v1739, %v1731
    %v2868 = vpack.c.b16 %v1740, %v1732
    %v2869 = vpack.c.b16 %v1749, %v1741
    %v2870 = vpack.c.b16 %v1750, %v1742
    %v2871 = vpack.c.b16 %v1751, %v1743
    %v2872 = vpack.c.b16 %v1752, %v1744
    %v2873 = vpack.c.b16 %v1753, %v1745
    %v2874 = vpack.c.b16 %v1754, %v1746
    %v2875 = vpack.c.b16 %v1755, %v1747
    %v2876 = vpack.c.b16 %v1756, %v1748
    %v2877 = vpack.c.b16 %v1765, %v1757
    %v2878 = vpack.c.b16 %v1766, %v1758
    %v2879 = vpack.c.b16 %v1767, %v1759
    %v2880 = vpack.c.b16 %v1768, %v1760
    %v2881 = vpack.c.b16 %v1769, %v1761
    %v2882 = vpack.c.b16 %v1770, %v1762
    %v2883 = vpack.c.b16 %v1771, %v1763
    %v2884 = vpack.c.b16 %v1772, %v1764
    %v2885 = vpack.c.b16 %v1781, %v1773
    %v2886 = vpack.c.b16 %v1782, %v1774
    %v2887 = vpack.c.b16 %v1783, %v1775
    %v2888 = vpack.c.b16 %v1784, %v1776
    %v2889 = vpack.c.b16 %v1785, %v1777
    %v2890 = vpack.c.b16 %v1786, %v1778
    %v2891 = vpack.c.b16 %v1787, %v1779
    %v2892 = vpack.c.b16 %v1788, %v1780
    %v2893 = vpack.c.b16 %v1797, %v1789
    %v2894 = vpack.c.b16 %v1798, %v1790
    %v2895 = vpack.c.b16 %v1799, %v1791
    %v2896 = vpack.c.b16 %v1800, %v1792
    %v2897 = vpack.c.b16 %v1801, %v1793
    %v2898 = vpack.c.b16 %v1802, %v1794
    %v2899 = vpack.c.b16 %v1803, %v1795
    %v2900 = vpack.c.b16 %v1804, %v1796
    %v2901 = vpack.c.b16 %v1813, %v1805
    %v2902 = vpack.c.b16 %v1814, %v1806
    %v2903 = vpack.c.b16 %v1815, %v1807
    %v2904 = vpack.c.b16 %v1816, %v1808
    %v2905 = vpack.c.b16 %v1817, %v1809
    %v2906 = vpack.c.b16 %v1818, %v1810
    %v2907 = vpack.c.b16 %v1819, %v1811
    %v2908 = vpack.c.b16 %v1820, %v1812
    %v2909 = vpack.c.b16 %v1829, %v1821
    %v2910 = vpack.c.b16 %v1830, %v1822
    %v2911 = vpack.c.b16 %v1831, %v1823
    %v2912 = vpack.c.b16 %v1832, %v1824
    %v2913 = vpack.c.b16 %v1833, %v1825
    %v2914 = vpack.c.b16 %v1834, %v1826
    %v2915 = vpack.c.b16 %v1835, %v1827
    %v2916 = vpack.c.b16 %v1836, %v1828
    %v2917 = vpack.c.b16 %v1845, %v1837
    %v2918 = vpack.c.b16 %v1846, %v1838
    %v2919 = vpack.c.b16 %v1847, %v1839
    %v2920 = vpack.c.b16 %v1848, %v1840
    %v2921 = vpack.c.b16 %v1849, %v1841
    %v2922 = vpack.c.b16 %v1850, %v1842
    %v2923 = vpack.c.b16 %v1851, %v1843
    %v2924 = vpack.c.b16 %v1852, %v1844
    %v2925 = vpack.c.b16 %v1861, %v1853
    %v2926 = vpack.c.b16 %v1862, %v1854
    %v2927 = vpack.c.b16 %v1863, %v1855
    %v2928 = vpack.c.b16 %v1864, %v1856
    %v2929 = vpack.c.b16 %v1865, %v1857
    %v2930 = vpack.c.b16 %v1866, %v1858
    %v2931 = vpack.c.b16 %v1867, %v1859
    %v2932 = vpack.c.b16 %v1868, %v1860
    %v2933 = vpack.c.b16 %v1877, %v1869
    %v2934 = vpack.c.b16 %v1878, %v1870
    %v2935 = vpack.c.b16 %v1879, %v1871
    %v2936 = vpack.c.b16 %v1880, %v1872
    %v2937 = vpack.c.b16 %v1881, %v1873
    %v2938 = vpack.c.b16 %v1882, %v1874
    %v2939 = vpack.c.b16 %v1883, %v1875
    %v2940 = vpack.c.b16 %v1884, %v1876
    %v2941 = vpack.c.b16 %v1893, %v1885
    %v2942 = vpack.c.b16 %v1894, %v1886
    %v2943 = vpack.c.b16 %v1895, %v1887
    %v2944 = vpack.c.b16 %v1896, %v1888
    %v2945 = vpack.c.b16 %v1897, %v1889
    %v2946 = vpack.c.b16 %v1898, %v1890
    %v2947 = vpack.c.b16 %v1899, %v1891
    %v2948 = vpack.c.b16 %v1900, %v1892
    %v2949 = vpack.c.b16 %v1909, %v1901
    %v2950 = vpack.c.b16 %v1910, %v1902
    %v2951 = vpack.c.b16 %v1911, %v1903
    %v2952 = vpack.c.b16 %v1912, %v1904
    %v2953 = vpack.c.b16 %v1913, %v1905
    %v2954 = vpack.c.b16 %v1914, %v1906
    %v2955 = vpack.c.b16 %v1915, %v1907
    %v2956 = vpack.c.b16 %v1916, %v1908
    %v2957 = vpack.c.b16 %v1925, %v1917
    %v2958 = vpack.c.b16 %v1926, %v1918
    %v2959 = vpack.c.b16 %v1927, %v1919
    %v2960 = vpack.c.b16 %v1928, %v1920
    %v2961 = vpack.c.b16 %v1929, %v1921
    %v2962 = vpack.c.b16 %v1930, %v1922
    %v2963 = vpack.c.b16 %v1931, %v1923
    %v2964 = vpack.c.b16 %v1932, %v1924
    %v2965 = vpack.c.b16 %v1941, %v1933
    %v2966 = vpack.c.b16 %v1942, %v1934
    %v2967 = vpack.c.b16 %v1943, %v1935
    %v2968 = vpack.c.b16 %v1944, %v1936
    %v2969 = vpack.c.b16 %v1945, %v1937
    %v2970 = vpack.c.b16 %v1946, %v1938
    %v2971 = vpack.c.b16 %v1947, %v1939
    %v2972 = vpack.c.b16 %v1948, %v1940
    %v2973 = vpack.c.b16 %v1957, %v1949
    %v2974 = vpack.c.b16 %v1958, %v1950
    %v2975 = vpack.c.b16 %v1959, %v1951
    %v2976 = vpack.c.b16 %v1960, %v1952
    %v2977 = vpack.c.b16 %v1961, %v1953
    %v2978 = vpack.c.b16 %v1962, %v1954
    %v2979 = vpack.c.b16 %v1963, %v1955
    %v2980 = vpack.c.b16 %v1964, %v1956
    %v2981 = vpack.c.b16 %v1973, %v1965
    %v2982 = vpack.c.b16 %v1974, %v1966
    %v2983 = vpack.c.b16 %v1975, %v1967
    %v2984 = vpack.c.b16 %v1976, %v1968
    %v2985 = vpack.c.b16 %v1977, %v1969
    %v2986 = vpack.c.b16 %v1978, %v1970
    %v2987 = vpack.c.b16 %v1979, %v1971
    %v2988 = vpack.c.b16 %v1980, %v1972
    %v2989 = vpack.c.b16 %v1989, %v1981
    %v2990 = vpack.c.b16 %v1990, %v1982
    %v2991 = vpack.c.b16 %v1991, %v1983
    %v2992 = vpack.c.b16 %v1992, %v1984
    %v2993 = vpack.c.b16 %v1993, %v1985
    %v2994 = vpack.c.b16 %v1994, %v1986
    %v2995 = vpack.c.b16 %v1995, %v1987
    %v2996 = vpack.c.b16 %v1996, %v1988
    %v2997 = vpack.c.b16 %v2005, %v1997
    %v2998 = vpack.c.b16 %v2006, %v1998
    %v2999 = vpack.c.b16 %v2007, %v1999
    %v3000 = vpack.c.b16 %v2008, %v2000
    %v3001 = vpack.c.b16 %v2009, %v2001
    %v3002 = vpack.c.b16 %v2010, %v2002
    %v3003 = vpack.c.b16 %v2011, %v2003
    %v3004 = vpack.c.b16 %v2012, %v2004
    %v3005 = vpack.c.b16 %v2021, %v2013
    %v3006 = vpack.c.b16 %v2022, %v2014
    %v3007 = vpack.c.b16 %v2023, %v2015
    %v3008 = vpack.c.b16 %v2024, %v2016
    %v3009 = vpack.c.b16 %v2025, %v2017
    %v3010 = vpack.c.b16 %v2026, %v2018
    %v3011 = vpack.c.b16 %v2027, %v2019
    %v3012 = vpack.c.b16 %v2028, %v2020
    %v3013 = vpack.c.b16 %v2037, %v2029
    %v3014 = vpack.c.b16 %v2038, %v2030
    %v3015 = vpack.c.b16 %v2039, %v2031
    %v3016 = vpack.c.b16 %v2040, %v2032
    %v3017 = vpack.c.b16 %v2041, %v2033
    %v3018 = vpack.c.b16 %v2042, %v2034
    %v3019 = vpack.c.b16 %v2043, %v2035
    %v3020 = vpack.c.b16 %v2044, %v2036
    %v3021 = vpack.c.b16 %v2053, %v2045
    %v3022 = vpack.c.b16 %v2054, %v2046
    %v3023 = vpack.c.b16 %v2055, %v2047
    %v3024 = vpack.c.b16 %v2056, %v2048
    %v3025 = vpack.c.b16 %v2057, %v2049
    %v3026 = vpack.c.b16 %v2058, %v2050
    %v3027 = vpack.c.b16 %v2059, %v2051
    %v3028 = vpack.c.b16 %v2060, %v2052
    %v3029 = vpack.c.b16 %v2069, %v2061
    %v3030 = vpack.c.b16 %v2070, %v2062
    %v3031 = vpack.c.b16 %v2071, %v2063
    %v3032 = vpack.c.b16 %v2072, %v2064
    %v3033 = vpack.c.b16 %v2073, %v2065
    %v3034 = vpack.c.b16 %v2074, %v2066
    %v3035 = vpack.c.b16 %v2075, %v2067
    %v3036 = vpack.c.b16 %v2076, %v2068
    %v3037 = vpack.c.b16 %v2085, %v2077
    %v3038 = vpack.c.b16 %v2086, %v2078
    %v3039 = vpack.c.b16 %v2087, %v2079
    %v3040 = vpack.c.b16 %v2088, %v2080
    %v3041 = vpack.c.b16 %v2089, %v2081
    %v3042 = vpack.c.b16 %v2090, %v2082
    %v3043 = vpack.c.b16 %v2091, %v2083
    %v3044 = vpack.c.b16 %v2092, %v2084
    %v3045 = vpack.c.b16 %v2101, %v2093
    %v3046 = vpack.c.b16 %v2102, %v2094
    %v3047 = vpack.c.b16 %v2103, %v2095
    %v3048 = vpack.c.b16 %v2104, %v2096
    %v3049 = vpack.c.b16 %v2105, %v2097
    %v3050 = vpack.c.b16 %v2106, %v2098
    %v3051 = vpack.c.b16 %v2107, %v2099
    %v3052 = vpack.c.b16 %v2108, %v2100
    %v3053 = vpack.c.b16 %v2117, %v2109
    %v3054 = vpack.c.b16 %v2118, %v2110
    %v3055 = vpack.c.b16 %v2119, %v2111
    %v3056 = vpack.c.b16 %v2120, %v2112
    %v3057 = vpack.c.b16 %v2121, %v2113
    %v3058 = vpack.c.b16 %v2122, %v2114
    %v3059 = vpack.c.b16 %v2123, %v2115
    %v3060 = vpack.c.b16 %v2124, %v2116
    %v3061 = vpack.c.b16 %v2133, %v2125
    %v3062 = vpack.c.b16 %v2134, %v2126
    %v3063 = vpack.c.b16 %v2135, %v2127
    %v3064 = vpack.c.b16 %v2136, %v2128
    %v3065 = vpack.c.b16 %v2137, %v2129
    %v3066 = vpack.c.b16 %v2138, %v2130
    %v3067 = vpack.c.b16 %v2139, %v2131
    %v3068 = vpack.c.b16 %v2140, %v2132
    %v3069 = vpack.c.b16 %v2149, %v2141
    %v3070 = vpack.c.b16 %v2150, %v2142
    %v3071 = vpack.c.b16 %v2151, %v2143
    %v3072 = vpack.c.b16 %v2152, %v2144
    %v3073 = vpack.c.b16 %v2153, %v2145
    %v3074 = vpack.c.b16 %v2154, %v2146
    %v3075 = vpack.c.b16 %v2155, %v2147
    %v3076 = vpack.c.b16 %v2156, %v2148
    %v3077 = vpack.c.b16 %v2165, %v2157
    %v3078 = vpack.c.b16 %v2166, %v2158
    %v3079 = vpack.c.b16 %v2167, %v2159
    %v3080 = vpack.c.b16 %v2168, %v2160
    %v3081 = vpack.c.b16 %v2169, %v2161
    %v3082 = vpack.c.b16 %v2170, %v2162
    %v3083 = vpack.c.b16 %v2171, %v2163
    %v3084 = vpack.c.b16 %v2172, %v2164
    %v3085 = vpack.c.b16 %v2181, %v2173
    %v3086 = vpack.c.b16 %v2182, %v2174
    %v3087 = vpack.c.b16 %v2183, %v2175
    %v3088 = vpack.c.b16 %v2184, %v2176
    %v3089 = vpack.c.b16 %v2185, %v2177
    %v3090 = vpack.c.b16 %v2186, %v2178
    %v3091 = vpack.c.b16 %v2187, %v2179
    %v3092 = vpack.c.b16 %v2188, %v2180
    %v3093 = vpack.c.b16 %v2197, %v2189
    %v3094 = vpack.c.b16 %v2198, %v2190
    %v3095 = vpack.c.b16 %v2199, %v2191
    %v3096 = vpack.c.b16 %v2200, %v2192
    %v3097 = vpack.c.b16 %v2201, %v2193
    %v3098 = vpack.c.b16 %v2202, %v2194
    %v3099 = vpack.c.b16 %v2203, %v2195
    %v3100 = vpack.c.b16 %v2204, %v2196
    %v3101 = vpack.c.b16 %v2213, %v2205
    %v3102 = vpack.c.b16 %v2214, %v2206
    %v3103 = vpack.c.b16 %v2215, %v2207
    %v3104 = vpack.c.b16 %v2216, %v2208
    %v3105 = vpack.c.b16 %v2217, %v2209
    %v3106 = vpack.c.b16 %v2218, %v2210
    %v3107 = vpack.c.b16 %v2219, %v2211
    %v3108 = vpack.c.b16 %v2220, %v2212
    %v3109 = vpack.c.b16 %v2229, %v2221
    %v3110 = vpack.c.b16 %v2230, %v2222
    %v3111 = vpack.c.b16 %v2231, %v2223
    %v3112 = vpack.c.b16 %v2232, %v2224
    %v3113 = vpack.c.b16 %v2233, %v2225
    %v3114 = vpack.c.b16 %v2234, %v2226
    %v3115 = vpack.c.b16 %v2235, %v2227
    %v3116 = vpack.c.b16 %v2236, %v2228
    %v3117 = vpack.c.b16 %v2245, %v2237
    %v3118 = vpack.c.b16 %v2246, %v2238
    %v3119 = vpack.c.b16 %v2247, %v2239
    %v3120 = vpack.c.b16 %v2248, %v2240
    %v3121 = vpack.c.b16 %v2249, %v2241
    %v3122 = vpack.c.b16 %v2250, %v2242
    %v3123 = vpack.c.b16 %v2251, %v2243
    %v3124 = vpack.c.b16 %v2252, %v2244
    %v3125 = vpack.c.b16 %v2261, %v2253
    %v3126 = vpack.c.b16 %v2262, %v2254
    %v3127 = vpack.c.b16 %v2263, %v2255
    %v3128 = vpack.c.b16 %v2264, %v2256
    %v3129 = vpack.c.b16 %v2265, %v2257
    %v3130 = vpack.c.b16 %v2266, %v2258
    %v3131 = vpack.c.b16 %v2267, %v2259
    %v3132 = vpack.c.b16 %v2268, %v2260
    %v3133 = vpack.c.b16 %v2277, %v2269
    %v3134 = vpack.c.b16 %v2278, %v2270
    %v3135 = vpack.c.b16 %v2279, %v2271
    %v3136 = vpack.c.b16 %v2280, %v2272
    %v3137 = vpack.c.b16 %v2281, %v2273
    %v3138 = vpack.c.b16 %v2282, %v2274
    %v3139 = vpack.c.b16 %v2283, %v2275
    %v3140 = vpack.c.b16 %v2284, %v2276
    %v3141 = vpack.c.b16 %v2293, %v2285
    %v3142 = vpack.c.b16 %v2294, %v2286
    %v3143 = vpack.c.b16 %v2295, %v2287
    %v3144 = vpack.c.b16 %v2296, %v2288
    %v3145 = vpack.c.b16 %v2297, %v2289
    %v3146 = vpack.c.b16 %v2298, %v2290
    %v3147 = vpack.c.b16 %v2299, %v2291
    %v3148 = vpack.c.b16 %v2300, %v2292
    %v3149 = vpack.c.b16 %v2309, %v2301
    %v3150 = vpack.c.b16 %v2310, %v2302
    %v3151 = vpack.c.b16 %v2311, %v2303
    %v3152 = vpack.c.b16 %v2312, %v2304
    %v3153 = vpack.c.b16 %v2313, %v2305
    %v3154 = vpack.c.b16 %v2314, %v2306
    %v3155 = vpack.c.b16 %v2315, %v2307
    %v3156 = vpack.c.b16 %v2316, %v2308
    %v3157 = vpack.c.b16 %v2325, %v2317
    %v3158 = vpack.c.b16 %v2326, %v2318
    %v3159 = vpack.c.b16 %v2327, %v2319
    %v3160 = vpack.c.b16 %v2328, %v2320
    %v3161 = vpack.c.b16 %v2329, %v2321
    %v3162 = vpack.c.b16 %v2330, %v2322
    %v3163 = vpack.c.b16 %v2331, %v2323
    %v3164 = vpack.c.b16 %v2332, %v2324
    %v3165 = vpack.c.b16 %v2341, %v2333
    %v3166 = vpack.c.b16 %v2342, %v2334
    %v3167 = vpack.c.b16 %v2343, %v2335
    %v3168 = vpack.c.b16 %v2344, %v2336
    %v3169 = vpack.c.b16 %v2345, %v2337
    %v3170 = vpack.c.b16 %v2346, %v2338
    %v3171 = vpack.c.b16 %v2347, %v2339
    %v3172 = vpack.c.b16 %v2348, %v2340
    %v3173 = vpack.c.b16 %v2357, %v2349
    %v3174 = vpack.c.b16 %v2358, %v2350
    %v3175 = vpack.c.b16 %v2359, %v2351
    %v3176 = vpack.c.b16 %v2360, %v2352
    %v3177 = vpack.c.b16 %v2361, %v2353
    %v3178 = vpack.c.b16 %v2362, %v2354
    %v3179 = vpack.c.b16 %v2363, %v2355
    %v3180 = vpack.c.b16 %v2364, %v2356
    %v3181 = vpack.c.b16 %v2373, %v2365
    %v3182 = vpack.c.b16 %v2374, %v2366
    %v3183 = vpack.c.b16 %v2375, %v2367
    %v3184 = vpack.c.b16 %v2376, %v2368
    %v3185 = vpack.c.b16 %v2377, %v2369
    %v3186 = vpack.c.b16 %v2378, %v2370
    %v3187 = vpack.c.b16 %v2379, %v2371
    %v3188 = vpack.c.b16 %v2380, %v2372
    %v3189 = vpack.c.b16 %v2389, %v2381
    %v3190 = vpack.c.b16 %v2390, %v2382
    %v3191 = vpack.c.b16 %v2391, %v2383
    %v3192 = vpack.c.b16 %v2392, %v2384
    %v3193 = vpack.c.b16 %v2393, %v2385
    %v3194 = vpack.c.b16 %v2394, %v2386
    %v3195 = vpack.c.b16 %v2395, %v2387
    %v3196 = vpack.c.b16 %v2396, %v2388
    %v3197 = vpack.c.b16 %v2405, %v2397
    %v3198 = vpack.c.b16 %v2406, %v2398
    %v3199 = vpack.c.b16 %v2407, %v2399
    %v3200 = vpack.c.b16 %v2408, %v2400
    %v3201 = vpack.c.b16 %v2409, %v2401
    %v3202 = vpack.c.b16 %v2410, %v2402
    %v3203 = vpack.c.b16 %v2411, %v2403
    %v3204 = vpack.c.b16 %v2412, %v2404
    %v3205 = vpack.c.b16 %v2421, %v2413
    %v3206 = vpack.c.b16 %v2422, %v2414
    %v3207 = vpack.c.b16 %v2423, %v2415
    %v3208 = vpack.c.b16 %v2424, %v2416
    %v3209 = vpack.c.b16 %v2425, %v2417
    %v3210 = vpack.c.b16 %v2426, %v2418
    %v3211 = vpack.c.b16 %v2427, %v2419
    %v3212 = vpack.c.b16 %v2428, %v2420
    %v3213 = vpack.c.b16 %v2437, %v2429
    %v3214 = vpack.c.b16 %v2438, %v2430
    %v3215 = vpack.c.b16 %v2439, %v2431
    %v3216 = vpack.c.b16 %v2440, %v2432
    %v3217 = vpack.c.b16 %v2441, %v2433
    %v3218 = vpack.c.b16 %v2442, %v2434
    %v3219 = vpack.c.b16 %v2443, %v2435
    %v3220 = vpack.c.b16 %v2444, %v2436
    %v3221 = vpack.c.b16 %v2453, %v2445
    %v3222 = vpack.c.b16 %v2454, %v2446
    %v3223 = vpack.c.b16 %v2455, %v2447
    %v3224 = vpack.c.b16 %v2456, %v2448
    %v3225 = vpack.c.b16 %v2457, %v2449
    %v3226 = vpack.c.b16 %v2458, %v2450
    %v3227 = vpack.c.b16 %v2459, %v2451
    %v3228 = vpack.c.b16 %v2460, %v2452
    %v3229 = vpack.c.b16 %v2469, %v2461
    %v3230 = vpack.c.b16 %v2470, %v2462
    %v3231 = vpack.c.b16 %v2471, %v2463
    %v3232 = vpack.c.b16 %v2472, %v2464
    %v3233 = vpack.c.b16 %v2473, %v2465
    %v3234 = vpack.c.b16 %v2474, %v2466
    %v3235 = vpack.c.b16 %v2475, %v2467
    %v3236 = vpack.c.b16 %v2476, %v2468
    %v3237 = vpack.c.b16 %v2485, %v2477
    %v3238 = vpack.c.b16 %v2486, %v2478
    %v3239 = vpack.c.b16 %v2487, %v2479
    %v3240 = vpack.c.b16 %v2488, %v2480
    %v3241 = vpack.c.b16 %v2489, %v2481
    %v3242 = vpack.c.b16 %v2490, %v2482
    %v3243 = vpack.c.b16 %v2491, %v2483
    %v3244 = vpack.c.b16 %v2492, %v2484
    %v3245 = vpack.c.b16 %v2501, %v2493
    %v3246 = vpack.c.b16 %v2502, %v2494
    %v3247 = vpack.c.b16 %v2503, %v2495
    %v3248 = vpack.c.b16 %v2504, %v2496
    %v3249 = vpack.c.b16 %v2505, %v2497
    %v3250 = vpack.c.b16 %v2506, %v2498
    %v3251 = vpack.c.b16 %v2507, %v2499
    %v3252 = vpack.c.b16 %v2508, %v2500
    %v3253 = vpack.c.b16 %v2517, %v2509
    %v3254 = vpack.c.b16 %v2518, %v2510
    %v3255 = vpack.c.b16 %v2519, %v2511
    %v3256 = vpack.c.b16 %v2520, %v2512
    %v3257 = vpack.c.b16 %v2521, %v2513
    %v3258 = vpack.c.b16 %v2522, %v2514
    %v3259 = vpack.c.b16 %v2523, %v2515
    %v3260 = vpack.c.b16 %v2524, %v2516
    %v3261 = vpack.c.b16 %v2533, %v2525
    %v3262 = vpack.c.b16 %v2534, %v2526
    %v3263 = vpack.c.b16 %v2535, %v2527
    %v3264 = vpack.c.b16 %v2536, %v2528
    %v3265 = vpack.c.b16 %v2537, %v2529
    %v3266 = vpack.c.b16 %v2538, %v2530
    %v3267 = vpack.c.b16 %v2539, %v2531
    %v3268 = vpack.c.b16 %v2540, %v2532
    %v3269 = vpack.c.b16 %v2549, %v2541
    %v3270 = vpack.c.b16 %v2550, %v2542
    %v3271 = vpack.c.b16 %v2551, %v2543
    %v3272 = vpack.c.b16 %v2552, %v2544
    %v3273 = vpack.c.b16 %v2553, %v2545
    %v3274 = vpack.c.b16 %v2554, %v2546
    %v3275 = vpack.c.b16 %v2555, %v2547
    %v3276 = vpack.c.b16 %v2556, %v2548
    %v3277 = vpack.c.b16 %v2565, %v2557
    %v3278 = vpack.c.b16 %v2566, %v2558
    %v3279 = vpack.c.b16 %v2567, %v2559
    %v3280 = vpack.c.b16 %v2568, %v2560
    %v3281 = vpack.c.b16 %v2569, %v2561
    %v3282 = vpack.c.b16 %v2570, %v2562
    %v3283 = vpack.c.b16 %v2571, %v2563
    %v3284 = vpack.c.b16 %v2572, %v2564
    %v3285 = vpack.c.b16 %v2581, %v2573
    %v3286 = vpack.c.b16 %v2582, %v2574
    %v3287 = vpack.c.b16 %v2583, %v2575
    %v3288 = vpack.c.b16 %v2584, %v2576
    %v3289 = vpack.c.b16 %v2585, %v2577
    %v3290 = vpack.c.b16 %v2586, %v2578
    %v3291 = vpack.c.b16 %v2587, %v2579
    %v3292 = vpack.c.b16 %v2588, %v2580
    %v3293 = vpack.c.b16 %v2597, %v2589
    %v3294 = vpack.c.b16 %v2598, %v2590
    %v3295 = vpack.c.b16 %v2599, %v2591
    %v3296 = vpack.c.b16 %v2600, %v2592
    %v3297 = vpack.c.b16 %v2601, %v2593
    %v3298 = vpack.c.b16 %v2602, %v2594
    %v3299 = vpack.c.b16 %v2603, %v2595
    %v3300 = vpack.c.b16 %v2604, %v2596
    %v3301 = vpack.c.b16 %v2613, %v2605
    %v3302 = vpack.c.b16 %v2614, %v2606
    %v3303 = vpack.c.b16 %v2615, %v2607
    %v3304 = vpack.c.b16 %v2616, %v2608
    %v3305 = vpack.c.b16 %v2617, %v2609
    %v3306 = vpack.c.b16 %v2618, %v2610
    %v3307 = vpack.c.b16 %v2619, %v2611
    %v3308 = vpack.c.b16 %v2620, %v2612
    %v3309 = vpack.c.b16 %v2629, %v2621
    %v3310 = vpack.c.b16 %v2630, %v2622
    %v3311 = vpack.c.b16 %v2631, %v2623
    %v3312 = vpack.c.b16 %v2632, %v2624
    %v3313 = vpack.c.b16 %v2633, %v2625
    %v3314 = vpack.c.b16 %v2634, %v2626
    %v3315 = vpack.c.b16 %v2635, %v2627
    %v3316 = vpack.c.b16 %v2636, %v2628
    %v3317 = vpack.c.b16 %v2645, %v2637
    %v3318 = vpack.c.b16 %v2646, %v2638
    %v3319 = vpack.c.b16 %v2647, %v2639
    %v3320 = vpack.c.b16 %v2648, %v2640
    %v3321 = vpack.c.b16 %v2649, %v2641
    %v3322 = vpack.c.b16 %v2650, %v2642
    %v3323 = vpack.c.b16 %v2651, %v2643
    %v3324 = vpack.c.b16 %v2652, %v2644
    %v3325 = vpack.c.b16 %v2661, %v2653
    %v3326 = vpack.c.b16 %v2662, %v2654
    %v3327 = vpack.c.b16 %v2663, %v2655
    %v3328 = vpack.c.b16 %v2664, %v2656
    %v3329 = vpack.c.b16 %v2665, %v2657
    %v3330 = vpack.c.b16 %v2666, %v2658
    %v3331 = vpack.c.b16 %v2667, %v2659
    %v3332 = vpack.c.b16 %v2668, %v2660
    %v3333 = vpack.c.b16 %v2677, %v2669
    %v3334 = vpack.c.b16 %v2678, %v2670
    %v3335 = vpack.c.b16 %v2679, %v2671
    %v3336 = vpack.c.b16 %v2680, %v2672
    %v3337 = vpack.c.b16 %v2681, %v2673
    %v3338 = vpack.c.b16 %v2682, %v2674
    %v3339 = vpack.c.b16 %v2683, %v2675
    %v3340 = vpack.c.b16 %v2684, %v2676
    %v3341 = vpack.c.b16 %v2693, %v2685
    %v3342 = vpack.c.b16 %v2694, %v2686
    %v3343 = vpack.c.b16 %v2695, %v2687
    %v3344 = vpack.c.b16 %v2696, %v2688
    %v3345 = vpack.c.b16 %v2697, %v2689
    %v3346 = vpack.c.b16 %v2698, %v2690
    %v3347 = vpack.c.b16 %v2699, %v2691
    %v3348 = vpack.c.b16 %v2700, %v2692
    %v3349 = vpack.c.b16 %v2709, %v2701
    %v3350 = vpack.c.b16 %v2710, %v2702
    %v3351 = vpack.c.b16 %v2711, %v2703
    %v3352 = vpack.c.b16 %v2712, %v2704
    %v3353 = vpack.c.b16 %v2713, %v2705
    %v3354 = vpack.c.b16 %v2714, %v2706
    %v3355 = vpack.c.b16 %v2715, %v2707
    %v3356 = vpack.c.b16 %v2716, %v2708
    %3997 = vmatprep.subr.bf16.mxu0 %v2718
    %3998 = vmatpush1.bf16.msra.mxu0 %v2717
    %3999 = vmatprep.subr.bf16.mxu0 %v2726
    %4000 = vmatpush1.bf16.msra.mxu0 %v2725
    %4001 = vmatprep.subr.bf16.mxu0 %v2734
    %4002 = vmatpush1.bf16.msra.mxu0 %v2733
    %4003 = vmatprep.subr.bf16.mxu0 %v2742
    %4004 = vmatpush1.bf16.msra.mxu0 %v2741
    %4005 = vmatprep.subr.bf16.mxu0 %v2750
    %4006 = vmatpush1.bf16.msra.mxu0 %v2749
    %4007 = vmatprep.subr.bf16.mxu0 %v2758
    %4008 = vmatpush1.bf16.msra.mxu0 %v2757
    %4009 = vmatprep.subr.bf16.mxu0 %v2766
    %4010 = vmatpush1.bf16.msra.mxu0 %v2765
    %4011 = vmatprep.subr.bf16.mxu0 %v2774
    %4012 = vmatpush1.bf16.msra.mxu0 %v2773
    %4013 = vmatprep.subr.bf16.mxu0 %v2782
    %4014 = vmatpush1.bf16.msra.mxu0 %v2781
    %4015 = vmatprep.subr.bf16.mxu0 %v2790
    %4016 = vmatpush1.bf16.msra.mxu0 %v2789
    %4017 = vmatprep.subr.bf16.mxu0 %v2798
    %4018 = vmatpush1.bf16.msra.mxu0 %v2797
    %4019 = vmatprep.subr.bf16.mxu0 %v2806
    %4020 = vmatpush1.bf16.msra.mxu0 %v2805
    %4021 = vmatprep.subr.bf16.mxu0 %v2814
    %4022 = vmatpush1.bf16.msra.mxu0 %v2813
    %4023 = vmatprep.subr.bf16.mxu0 %v2822
    %4024 = vmatpush1.bf16.msra.mxu0 %v2821
    %4025 = vmatprep.subr.bf16.mxu0 %v2830
    %4026 = vmatpush1.bf16.msra.mxu0 %v2829
    %4027 = vmatprep.subr.bf16.mxu0 %v2838
    %4028 = vmatpush1.bf16.msra.mxu0 %v2837
    %4029 = vmatprep.mubr.bf16.mxu0 %v753
    %4030 = vmatmul.mubr.bf16.gmra.mrb[0].mxu0 %v739
    %v4031 = vpop.f32.mrb[0].mxu0
    %v4032 = vadd.f32 %v677, %v4031
    %v4033 = vpop.f32.mrb[0].mxu0
    %v4034 = vadd.f32 %v681, %v4033
    %v4035 = vpop.f32.mrb[0].mxu0
    %v4036 = vpop.f32.mrb[0].mxu0
    %4037 = vdwg.mxu0
    %4038 = vmatprep.subr.bf16.mxu0 %v2846
    %4039 = vmatpush1.bf16.msra.mxu0 %v2845
    %4040 = vmatprep.subr.bf16.mxu0 %v2854
    %4041 = vmatpush1.bf16.msra.mxu0 %v2853
    %4042 = vmatprep.subr.bf16.mxu0 %v2862
    %4043 = vmatpush1.bf16.msra.mxu0 %v2861
    %4044 = vmatprep.subr.bf16.mxu0 %v2870
    %4045 = vmatpush1.bf16.msra.mxu0 %v2869
    %4046 = vmatprep.subr.bf16.mxu0 %v2878
    %4047 = vmatpush1.bf16.msra.mxu0 %v2877
    %4048 = vmatprep.subr.bf16.mxu0 %v2886
    %4049 = vmatpush1.bf16.msra.mxu0 %v2885
    %4050 = vmatprep.subr.bf16.mxu0 %v2894
    %4051 = vmatpush1.bf16.msra.mxu0 %v2893
    %4052 = vmatprep.subr.bf16.mxu0 %v2902
    %4053 = vmatpush1.bf16.msra.mxu0 %v2901
    %4054 = vmatprep.subr.bf16.mxu0 %v2910
    %4055 = vmatpush1.bf16.msra.mxu0 %v2909
    %4056 = vmatprep.subr.bf16.mxu0 %v2918
    %4057 = vmatpush1.bf16.msra.mxu0 %v2917
    %4058 = vmatprep.subr.bf16.mxu0 %v2926
    %4059 = vmatpush1.bf16.msra.mxu0 %v2925
    %4060 = vmatprep.subr.bf16.mxu0 %v2934
    %4061 = vmatpush1.bf16.msra.mxu0 %v2933
    %4062 = vmatprep.subr.bf16.mxu0 %v2942
    %4063 = vmatpush1.bf16.msra.mxu0 %v2941
    %4064 = vmatprep.subr.bf16.mxu0 %v2950
    %4065 = vmatpush1.bf16.msra.mxu0 %v2949
    %4066 = vmatprep.subr.bf16.mxu0 %v2958
    %4067 = vmatpush1.bf16.msra.mxu0 %v2957
    %4068 = vmatprep.subr.bf16.mxu0 %v2966
    %4069 = vmatpush1.bf16.msra.mxu0 %v2965
    %4070 = vmatprep.mubr.bf16.mxu0 %v763
    %4071 = vmatmul.mubr.bf16.gmra.mrb[0].mxu0 %v761
    %v4072 = vpop.f32.mrb[0].mxu0
    %v4073 = vadd.f32 %v4032, %v4072
    %v4074 = vpop.f32.mrb[0].mxu0
    %v4075 = vadd.f32 %v4034, %v4074
    %v4076 = vpop.f32.mrb[0].mxu0
    %v4077 = vpop.f32.mrb[0].mxu0
    %4078 = vdwg.mxu0
    %4079 = vmatprep.subr.bf16.mxu0 %v2974
    %4080 = vmatpush1.bf16.msra.mxu0 %v2973
    %4081 = vmatprep.subr.bf16.mxu0 %v2982
    %4082 = vmatpush1.bf16.msra.mxu0 %v2981
    %4083 = vmatprep.subr.bf16.mxu0 %v2990
    %4084 = vmatpush1.bf16.msra.mxu0 %v2989
    %4085 = vmatprep.subr.bf16.mxu0 %v2998
    %4086 = vmatpush1.bf16.msra.mxu0 %v2997
    %4087 = vmatprep.subr.bf16.mxu0 %v3006
    %4088 = vmatpush1.bf16.msra.mxu0 %v3005
    %4089 = vmatprep.subr.bf16.mxu0 %v3014
    %4090 = vmatpush1.bf16.msra.mxu0 %v3013
    %4091 = vmatprep.subr.bf16.mxu0 %v3022
    %4092 = vmatpush1.bf16.msra.mxu0 %v3021
    %4093 = vmatprep.subr.bf16.mxu0 %v3030
    %4094 = vmatpush1.bf16.msra.mxu0 %v3029
    %4095 = vmatprep.subr.bf16.mxu0 %v3038
    %4096 = vmatpush1.bf16.msra.mxu0 %v3037
    %4097 = vmatprep.subr.bf16.mxu0 %v3046
    %4098 = vmatpush1.bf16.msra.mxu0 %v3045
    %4099 = vmatprep.subr.bf16.mxu0 %v3054
    %4100 = vmatpush1.bf16.msra.mxu0 %v3053
    %4101 = vmatprep.subr.bf16.mxu0 %v3062
    %4102 = vmatpush1.bf16.msra.mxu0 %v3061
    %4103 = vmatprep.subr.bf16.mxu0 %v3070
    %4104 = vmatpush1.bf16.msra.mxu0 %v3069
    %4105 = vmatprep.subr.bf16.mxu0 %v3078
    %4106 = vmatpush1.bf16.msra.mxu0 %v3077
    %4107 = vmatprep.subr.bf16.mxu0 %v3086
    %4108 = vmatpush1.bf16.msra.mxu0 %v3085
    %4109 = vmatprep.subr.bf16.mxu0 %v3094
    %4110 = vmatpush1.bf16.msra.mxu0 %v3093
    %4111 = vmatprep.mubr.bf16.mxu0 %v760
    %4112 = vmatmul.mubr.bf16.gmra.mrb[0].mxu0 %v746
    %v4113 = vpop.f32.mrb[0].mxu0
    %v4114 = vadd.f32 %v4073, %v4113
    %v4115 = vpop.f32.mrb[0].mxu0
    %v4116 = vadd.f32 %v4075, %v4115
    %v4117 = vpop.f32.mrb[0].mxu0
    %v4118 = vpop.f32.mrb[0].mxu0
    %4119 = vdwg.mxu0
    %4120 = vmatprep.subr.bf16.mxu0 %v3102
    %4121 = vmatpush1.bf16.msra.mxu0 %v3101
    %4122 = vmatprep.subr.bf16.mxu0 %v3110
    %4123 = vmatpush1.bf16.msra.mxu0 %v3109
    %4124 = vmatprep.subr.bf16.mxu0 %v3118
    %4125 = vmatpush1.bf16.msra.mxu0 %v3117
    %4126 = vmatprep.subr.bf16.mxu0 %v3126
    %4127 = vmatpush1.bf16.msra.mxu0 %v3125
    %4128 = vmatprep.subr.bf16.mxu0 %v3134
    %4129 = vmatpush1.bf16.msra.mxu0 %v3133
    %4130 = vmatprep.subr.bf16.mxu0 %v3142
    %4131 = vmatpush1.bf16.msra.mxu0 %v3141
    %4132 = vmatprep.subr.bf16.mxu0 %v3150
    %4133 = vmatpush1.bf16.msra.mxu0 %v3149
    %4134 = vmatprep.subr.bf16.mxu0 %v3158
    %4135 = vmatpush1.bf16.msra.mxu0 %v3157
    %4136 = vmatprep.subr.bf16.mxu0 %v3166
    %4137 = vmatpush1.bf16.msra.mxu0 %v3165
    %4138 = vmatprep.subr.bf16.mxu0 %v3174
    %4139 = vmatpush1.bf16.msra.mxu0 %v3173
    %4140 = vmatprep.subr.bf16.mxu0 %v3182
    %4141 = vmatpush1.bf16.msra.mxu0 %v3181
    %4142 = vmatprep.subr.bf16.mxu0 %v3190
    %4143 = vmatpush1.bf16.msra.mxu0 %v3189
    %4144 = vmatprep.subr.bf16.mxu0 %v3198
    %4145 = vmatpush1.bf16.msra.mxu0 %v3197
    %4146 = vmatprep.subr.bf16.mxu0 %v3206
    %4147 = vmatpush1.bf16.msra.mxu0 %v3205
    %4148 = vmatprep.subr.bf16.mxu0 %v3214
    %4149 = vmatpush1.bf16.msra.mxu0 %v3213
    %4150 = vmatprep.subr.bf16.mxu0 %v3222
    %4151 = vmatpush1.bf16.msra.mxu0 %v3221
    %4152 = vmatprep.mubr.bf16.mxu0 %v764
    %4153 = vmatmul.mubr.bf16.gmra.mrb[0].mxu0 %v762
    %v4154 = vpop.f32.mrb[0].mxu0
    %v4155 = vadd.f32 %v4114, %v4154
    %v4156 = vpop.f32.mrb[0].mxu0
    %v4157 = vadd.f32 %v4116, %v4156
    %v4158 = vpop.f32.mrb[0].mxu0
    %v4159 = vpop.f32.mrb[0].mxu0
    %4160 = vdwg.mxu0
    %4161 = vmatprep.subr.bf16.mxu0 %v3230
    %4162 = vmatpush1.bf16.msra.mxu0 %v3229
    %4163 = vmatprep.subr.bf16.mxu0 %v3238
    %4164 = vmatpush1.bf16.msra.mxu0 %v3237
    %4165 = vmatprep.subr.bf16.mxu0 %v3246
    %4166 = vmatpush1.bf16.msra.mxu0 %v3245
    %4167 = vmatprep.subr.bf16.mxu0 %v3254
    %4168 = vmatpush1.bf16.msra.mxu0 %v3253
    %4169 = vmatprep.subr.bf16.mxu0 %v3262
    %4170 = vmatpush1.bf16.msra.mxu0 %v3261
    %4171 = vmatprep.subr.bf16.mxu0 %v3270
    %4172 = vmatpush1.bf16.msra.mxu0 %v3269
    %4173 = vmatprep.subr.bf16.mxu0 %v3278
    %4174 = vmatpush1.bf16.msra.mxu0 %v3277
    %4175 = vmatprep.subr.bf16.mxu0 %v3286
    %4176 = vmatpush1.bf16.msra.mxu0 %v3285
    %4177 = vmatprep.subr.bf16.mxu0 %v3294
    %4178 = vmatpush1.bf16.msra.mxu0 %v3293
    %4179 = vmatprep.subr.bf16.mxu0 %v3302
    %4180 = vmatpush1.bf16.msra.mxu0 %v3301
    %4181 = vmatprep.subr.bf16.mxu0 %v3310
    %4182 = vmatpush1.bf16.msra.mxu0 %v3309
    %4183 = vmatprep.subr.bf16.mxu0 %v3318
    %4184 = vmatpush1.bf16.msra.mxu0 %v3317
    %4185 = vmatprep.subr.bf16.mxu0 %v3326
    %4186 = vmatpush1.bf16.msra.mxu0 %v3325
    %4187 = vmatprep.subr.bf16.mxu0 %v3334
    %4188 = vmatpush1.bf16.msra.mxu0 %v3333
    %4189 = vmatprep.subr.bf16.mxu0 %v3342
    %4190 = vmatpush1.bf16.msra.mxu0 %v3341
    %4191 = vmatprep.subr.bf16.mxu0 %v3350
    %4192 = vmatpush1.bf16.msra.mxu0 %v3349
    %4193 = vmatprep.mubr.bf16.mxu0 %v786
    %4194 = vmatmul.mubr.bf16.gmra.mrb[0].mxu0 %v779
    %v4195 = vpop.f32.mrb[0].mxu0
    %v4196 = vadd.f32 %v4155, %v4195
    %v4197 = vpop.f32.mrb[0].mxu0
    %v4198 = vadd.f32 %v4157, %v4197
    %v4199 = vpop.f32.mrb[0].mxu0
    %v4200 = vpop.f32.mrb[0].mxu0
    %4201 = vdwg.mxu0
    %4202 = vmatprep.subr.bf16.mxu0 %v2720
    %4203 = vmatpush1.bf16.msra.mxu0 %v2719
    %4204 = vmatprep.subr.bf16.mxu0 %v2728
    %4205 = vmatpush1.bf16.msra.mxu0 %v2727
    %4206 = vmatprep.subr.bf16.mxu0 %v2736
    %4207 = vmatpush1.bf16.msra.mxu0 %v2735
    %4208 = vmatprep.subr.bf16.mxu0 %v2744
    %4209 = vmatpush1.bf16.msra.mxu0 %v2743
    %4210 = vmatprep.subr.bf16.mxu0 %v2752
    %4211 = vmatpush1.bf16.msra.mxu0 %v2751
    %4212 = vmatprep.subr.bf16.mxu0 %v2760
    %4213 = vmatpush1.bf16.msra.mxu0 %v2759
    %4214 = vmatprep.subr.bf16.mxu0 %v2768
    %4215 = vmatpush1.bf16.msra.mxu0 %v2767
    %4216 = vmatprep.subr.bf16.mxu0 %v2776
    %4217 = vmatpush1.bf16.msra.mxu0 %v2775
    %4218 = vmatprep.subr.bf16.mxu0 %v2784
    %4219 = vmatpush1.bf16.msra.mxu0 %v2783
    %4220 = vmatprep.subr.bf16.mxu0 %v2792
    %4221 = vmatpush1.bf16.msra.mxu0 %v2791
    %4222 = vmatprep.subr.bf16.mxu0 %v2800
    %4223 = vmatpush1.bf16.msra.mxu0 %v2799
    %4224 = vmatprep.subr.bf16.mxu0 %v2808
    %4225 = vmatpush1.bf16.msra.mxu0 %v2807
    %4226 = vmatprep.subr.bf16.mxu0 %v2816
    %4227 = vmatpush1.bf16.msra.mxu0 %v2815
    %4228 = vmatprep.subr.bf16.mxu0 %v2824
    %4229 = vmatpush1.bf16.msra.mxu0 %v2823
    %4230 = vmatprep.subr.bf16.mxu0 %v2832
    %4231 = vmatpush1.bf16.msra.mxu0 %v2831
    %4232 = vmatprep.subr.bf16.mxu0 %v2840
    %4233 = vmatpush1.bf16.msra.mxu0 %v2839
    %4234 = vmatprep.mubr.bf16.mxu0 %v753
    %4235 = vmatmul.mubr.bf16.gmra.mrb[0].mxu0 %v739
    %v4236 = vpop.f32.mrb[0].mxu0
    %v4237 = vadd.f32 %v685, %v4236
    %v4238 = vpop.f32.mrb[0].mxu0
    %v4239 = vadd.f32 %v689, %v4238
    %v4240 = vpop.f32.mrb[0].mxu0
    %v4241 = vpop.f32.mrb[0].mxu0
    %4242 = vdwg.mxu0
    %4243 = vmatprep.subr.bf16.mxu0 %v2848
    %4244 = vmatpush1.bf16.msra.mxu0 %v2847
    %4245 = vmatprep.subr.bf16.mxu0 %v2856
    %4246 = vmatpush1.bf16.msra.mxu0 %v2855
    %4247 = vmatprep.subr.bf16.mxu0 %v2864
    %4248 = vmatpush1.bf16.msra.mxu0 %v2863
    %4249 = vmatprep.subr.bf16.mxu0 %v2872
    %4250 = vmatpush1.bf16.msra.mxu0 %v2871
    %4251 = vmatprep.subr.bf16.mxu0 %v2880
    %4252 = vmatpush1.bf16.msra.mxu0 %v2879
    %4253 = vmatprep.subr.bf16.mxu0 %v2888
    %4254 = vmatpush1.bf16.msra.mxu0 %v2887
    %4255 = vmatprep.subr.bf16.mxu0 %v2896
    %4256 = vmatpush1.bf16.msra.mxu0 %v2895
    %4257 = vmatprep.subr.bf16.mxu0 %v2904
    %4258 = vmatpush1.bf16.msra.mxu0 %v2903
    %4259 = vmatprep.subr.bf16.mxu0 %v2912
    %4260 = vmatpush1.bf16.msra.mxu0 %v2911
    %4261 = vmatprep.subr.bf16.mxu0 %v2920
    %4262 = vmatpush1.bf16.msra.mxu0 %v2919
    %4263 = vmatprep.subr.bf16.mxu0 %v2928
    %4264 = vmatpush1.bf16.msra.mxu0 %v2927
    %4265 = vmatprep.subr.bf16.mxu0 %v2936
    %4266 = vmatpush1.bf16.msra.mxu0 %v2935
    %4267 = vmatprep.subr.bf16.mxu0 %v2944
    %4268 = vmatpush1.bf16.msra.mxu0 %v2943
    %4269 = vmatprep.subr.bf16.mxu0 %v2952
    %4270 = vmatpush1.bf16.msra.mxu0 %v2951
    %4271 = vmatprep.subr.bf16.mxu0 %v2960
    %4272 = vmatpush1.bf16.msra.mxu0 %v2959
    %4273 = vmatprep.subr.bf16.mxu0 %v2968
    %4274 = vmatpush1.bf16.msra.mxu0 %v2967
    %4275 = vmatprep.mubr.bf16.mxu0 %v763
    %4276 = vmatmul.mubr.bf16.gmra.mrb[0].mxu0 %v761
    %v4277 = vpop.f32.mrb[0].mxu0
    %v4278 = vadd.f32 %v4237, %v4277
    %v4279 = vpop.f32.mrb[0].mxu0
    %v4280 = vadd.f32 %v4239, %v4279
    %v4281 = vpop.f32.mrb[0].mxu0
    %v4282 = vpop.f32.mrb[0].mxu0
    %4283 = vdwg.mxu0
    %4284 = vmatprep.subr.bf16.mxu0 %v2976
    %4285 = vmatpush1.bf16.msra.mxu0 %v2975
    %4286 = vmatprep.subr.bf16.mxu0 %v2984
    %4287 = vmatpush1.bf16.msra.mxu0 %v2983
    %4288 = vmatprep.subr.bf16.mxu0 %v2992
    %4289 = vmatpush1.bf16.msra.mxu0 %v2991
    %4290 = vmatprep.subr.bf16.mxu0 %v3000
    %4291 = vmatpush1.bf16.msra.mxu0 %v2999
    %4292 = vmatprep.subr.bf16.mxu0 %v3008
    %4293 = vmatpush1.bf16.msra.mxu0 %v3007
    %4294 = vmatprep.subr.bf16.mxu0 %v3016
    %4295 = vmatpush1.bf16.msra.mxu0 %v3015
    %4296 = vmatprep.subr.bf16.mxu0 %v3024
    %4297 = vmatpush1.bf16.msra.mxu0 %v3023
    %4298 = vmatprep.subr.bf16.mxu0 %v3032
    %4299 = vmatpush1.bf16.msra.mxu0 %v3031
    %4300 = vmatprep.subr.bf16.mxu0 %v3040
    %4301 = vmatpush1.bf16.msra.mxu0 %v3039
    %4302 = vmatprep.subr.bf16.mxu0 %v3048
    %4303 = vmatpush1.bf16.msra.mxu0 %v3047
    %4304 = vmatprep.subr.bf16.mxu0 %v3056
    %4305 = vmatpush1.bf16.msra.mxu0 %v3055
    %4306 = vmatprep.subr.bf16.mxu0 %v3064
    %4307 = vmatpush1.bf16.msra.mxu0 %v3063
    %4308 = vmatprep.subr.bf16.mxu0 %v3072
    %4309 = vmatpush1.bf16.msra.mxu0 %v3071
    %4310 = vmatprep.subr.bf16.mxu0 %v3080
    %4311 = vmatpush1.bf16.msra.mxu0 %v3079
    %4312 = vmatprep.subr.bf16.mxu0 %v3088
    %4313 = vmatpush1.bf16.msra.mxu0 %v3087
    %4314 = vmatprep.subr.bf16.mxu0 %v3096
    %4315 = vmatpush1.bf16.msra.mxu0 %v3095
    %4316 = vmatprep.mubr.bf16.mxu0 %v760
    %4317 = vmatmul.mubr.bf16.gmra.mrb[0].mxu0 %v746
    %v4318 = vpop.f32.mrb[0].mxu0
    %v4319 = vadd.f32 %v4278, %v4318
    %v4320 = vpop.f32.mrb[0].mxu0
    %v4321 = vadd.f32 %v4280, %v4320
    %v4322 = vpop.f32.mrb[0].mxu0
    %v4323 = vpop.f32.mrb[0].mxu0
    %4324 = vdwg.mxu0
    %4325 = vmatprep.subr.bf16.mxu0 %v3104
    %4326 = vmatpush1.bf16.msra.mxu0 %v3103
    %4327 = vmatprep.subr.bf16.mxu0 %v3112
    %4328 = vmatpush1.bf16.msra.mxu0 %v3111
    %4329 = vmatprep.subr.bf16.mxu0 %v3120
    %4330 = vmatpush1.bf16.msra.mxu0 %v3119
    %4331 = vmatprep.subr.bf16.mxu0 %v3128
    %4332 = vmatpush1.bf16.msra.mxu0 %v3127
    %4333 = vmatprep.subr.bf16.mxu0 %v3136
    %4334 = vmatpush1.bf16.msra.mxu0 %v3135
    %4335 = vmatprep.subr.bf16.mxu0 %v3144
    %4336 = vmatpush1.bf16.msra.mxu0 %v3143
    %4337 = vmatprep.subr.bf16.mxu0 %v3152
    %4338 = vmatpush1.bf16.msra.mxu0 %v3151
    %4339 = vmatprep.subr.bf16.mxu0 %v3160
    %4340 = vmatpush1.bf16.msra.mxu0 %v3159
    %4341 = vmatprep.subr.bf16.mxu0 %v3168
    %4342 = vmatpush1.bf16.msra.mxu0 %v3167
    %4343 = vmatprep.subr.bf16.mxu0 %v3176
    %4344 = vmatpush1.bf16.msra.mxu0 %v3175
    %4345 = vmatprep.subr.bf16.mxu0 %v3184
    %4346 = vmatpush1.bf16.msra.mxu0 %v3183
    %4347 = vmatprep.subr.bf16.mxu0 %v3192
    %4348 = vmatpush1.bf16.msra.mxu0 %v3191
    %4349 = vmatprep.subr.bf16.mxu0 %v3200
    %4350 = vmatpush1.bf16.msra.mxu0 %v3199
    %4351 = vmatprep.subr.bf16.mxu0 %v3208
    %4352 = vmatpush1.bf16.msra.mxu0 %v3207
    %4353 = vmatprep.subr.bf16.mxu0 %v3216
    %4354 = vmatpush1.bf16.msra.mxu0 %v3215
    %4355 = vmatprep.subr.bf16.mxu0 %v3224
    %4356 = vmatpush1.bf16.msra.mxu0 %v3223
    %4357 = vmatprep.mubr.bf16.mxu0 %v764
    %4358 = vmatmul.mubr.bf16.gmra.mrb[0].mxu0 %v762
    %v4359 = vpop.f32.mrb[0].mxu0
    %v4360 = vadd.f32 %v4319, %v4359
    %v4361 = vpop.f32.mrb[0].mxu0
    %v4362 = vadd.f32 %v4321, %v4361
    %v4363 = vpop.f32.mrb[0].mxu0
    %v4364 = vpop.f32.mrb[0].mxu0
    %4365 = vdwg.mxu0
    %4366 = vmatprep.subr.bf16.mxu0 %v3232
    %4367 = vmatpush1.bf16.msra.mxu0 %v3231
    %4368 = vmatprep.subr.bf16.mxu0 %v3240
    %4369 = vmatpush1.bf16.msra.mxu0 %v3239
    %4370 = vmatprep.subr.bf16.mxu0 %v3248
    %4371 = vmatpush1.bf16.msra.mxu0 %v3247
    %4372 = vmatprep.subr.bf16.mxu0 %v3256
    %4373 = vmatpush1.bf16.msra.mxu0 %v3255
    %4374 = vmatprep.subr.bf16.mxu0 %v3264
    %4375 = vmatpush1.bf16.msra.mxu0 %v3263
    %4376 = vmatprep.subr.bf16.mxu0 %v3272
    %4377 = vmatpush1.bf16.msra.mxu0 %v3271
    %4378 = vmatprep.subr.bf16.mxu0 %v3280
    %4379 = vmatpush1.bf16.msra.mxu0 %v3279
    %4380 = vmatprep.subr.bf16.mxu0 %v3288
    %4381 = vmatpush1.bf16.msra.mxu0 %v3287
    %4382 = vmatprep.subr.bf16.mxu0 %v3296
    %4383 = vmatpush1.bf16.msra.mxu0 %v3295
    %4384 = vmatprep.subr.bf16.mxu0 %v3304
    %4385 = vmatpush1.bf16.msra.mxu0 %v3303
    %4386 = vmatprep.subr.bf16.mxu0 %v3312
    %4387 = vmatpush1.bf16.msra.mxu0 %v3311
    %4388 = vmatprep.subr.bf16.mxu0 %v3320
    %4389 = vmatpush1.bf16.msra.mxu0 %v3319
    %4390 = vmatprep.subr.bf16.mxu0 %v3328
    %4391 = vmatpush1.bf16.msra.mxu0 %v3327
    %4392 = vmatprep.subr.bf16.mxu0 %v3336
    %4393 = vmatpush1.bf16.msra.mxu0 %v3335
    %4394 = vmatprep.subr.bf16.mxu0 %v3344
    %4395 = vmatpush1.bf16.msra.mxu0 %v3343
    %4396 = vmatprep.subr.bf16.mxu0 %v3352
    %4397 = vmatpush1.bf16.msra.mxu0 %v3351
    %4398 = vmatprep.mubr.bf16.mxu0 %v786
    %4399 = vmatmul.mubr.bf16.gmra.mrb[0].mxu0 %v779
    %v4400 = vpop.f32.mrb[0].mxu0
    %v4401 = vadd.f32 %v4360, %v4400
    %v4402 = vpop.f32.mrb[0].mxu0
    %v4403 = vadd.f32 %v4362, %v4402
    %v4404 = vpop.f32.mrb[0].mxu0
    %v4405 = vpop.f32.mrb[0].mxu0
    %4406 = vdwg.mxu0
    %4407 = vmatprep.subr.bf16.mxu0 %v2722
    %4408 = vmatpush1.bf16.msra.mxu0 %v2721
    %4409 = vmatprep.subr.bf16.mxu0 %v2730
    %4410 = vmatpush1.bf16.msra.mxu0 %v2729
    %4411 = vmatprep.subr.bf16.mxu0 %v2738
    %4412 = vmatpush1.bf16.msra.mxu0 %v2737
    %4413 = vmatprep.subr.bf16.mxu0 %v2746
    %4414 = vmatpush1.bf16.msra.mxu0 %v2745
    %4415 = vmatprep.subr.bf16.mxu0 %v2754
    %4416 = vmatpush1.bf16.msra.mxu0 %v2753
    %4417 = vmatprep.subr.bf16.mxu0 %v2762
    %4418 = vmatpush1.bf16.msra.mxu0 %v2761
    %4419 = vmatprep.subr.bf16.mxu0 %v2770
    %4420 = vmatpush1.bf16.msra.mxu0 %v2769
    %4421 = vmatprep.subr.bf16.mxu0 %v2778
    %4422 = vmatpush1.bf16.msra.mxu0 %v2777
    %4423 = vmatprep.subr.bf16.mxu0 %v2786
    %4424 = vmatpush1.bf16.msra.mxu0 %v2785
    %4425 = vmatprep.subr.bf16.mxu0 %v2794
    %4426 = vmatpush1.bf16.msra.mxu0 %v2793
    %4427 = vmatprep.subr.bf16.mxu0 %v2802
    %4428 = vmatpush1.bf16.msra.mxu0 %v2801
    %4429 = vmatprep.subr.bf16.mxu0 %v2810
    %4430 = vmatpush1.bf16.msra.mxu0 %v2809
    %4431 = vmatprep.subr.bf16.mxu0 %v2818
    %4432 = vmatpush1.bf16.msra.mxu0 %v2817
    %4433 = vmatprep.subr.bf16.mxu0 %v2826
    %4434 = vmatpush1.bf16.msra.mxu0 %v2825
    %4435 = vmatprep.subr.bf16.mxu0 %v2834
    %4436 = vmatpush1.bf16.msra.mxu0 %v2833
    %4437 = vmatprep.subr.bf16.mxu0 %v2842
    %4438 = vmatpush1.bf16.msra.mxu0 %v2841
    %4439 = vmatprep.mubr.bf16.mxu0 %v753
    %4440 = vmatmul.mubr.bf16.gmra.mrb[0].mxu0 %v739
    %v4441 = vpop.f32.mrb[0].mxu0
    %v4442 = vadd.f32 %v693, %v4441
    %v4443 = vpop.f32.mrb[0].mxu0
    %v4444 = vadd.f32 %v697, %v4443
    %v4445 = vpop.f32.mrb[0].mxu0
    %v4446 = vpop.f32.mrb[0].mxu0
    %4447 = vdwg.mxu0
    %4448 = vmatprep.subr.bf16.mxu0 %v2850
    %4449 = vmatpush1.bf16.msra.mxu0 %v2849
    %4450 = vmatprep.subr.bf16.mxu0 %v2858
    %4451 = vmatpush1.bf16.msra.mxu0 %v2857
    %4452 = vmatprep.subr.bf16.mxu0 %v2866
    %4453 = vmatpush1.bf16.msra.mxu0 %v2865
    %4454 = vmatprep.subr.bf16.mxu0 %v2874
    %4455 = vmatpush1.bf16.msra.mxu0 %v2873
    %4456 = vmatprep.subr.bf16.mxu0 %v2882
    %4457 = vmatpush1.bf16.msra.mxu0 %v2881
    %4458 = vmatprep.subr.bf16.mxu0 %v2890
    %4459 = vmatpush1.bf16.msra.mxu0 %v2889
    %4460 = vmatprep.subr.bf16.mxu0 %v2898
    %4461 = vmatpush1.bf16.msra.mxu0 %v2897
    %4462 = vmatprep.subr.bf16.mxu0 %v2906
    %4463 = vmatpush1.bf16.msra.mxu0 %v2905
    %4464 = vmatprep.subr.bf16.mxu0 %v2914
    %4465 = vmatpush1.bf16.msra.mxu0 %v2913
    %4466 = vmatprep.subr.bf16.mxu0 %v2922
    %4467 = vmatpush1.bf16.msra.mxu0 %v2921
    %4468 = vmatprep.subr.bf16.mxu0 %v2930
    %4469 = vmatpush1.bf16.msra.mxu0 %v2929
    %4470 = vmatprep.subr.bf16.mxu0 %v2938
    %4471 = vmatpush1.bf16.msra.mxu0 %v2937
    %4472 = vmatprep.subr.bf16.mxu0 %v2946
    %4473 = vmatpush1.bf16.msra.mxu0 %v2945
    %4474 = vmatprep.subr.bf16.mxu0 %v2954
    %4475 = vmatpush1.bf16.msra.mxu0 %v2953
    %4476 = vmatprep.subr.bf16.mxu0 %v2962
    %4477 = vmatpush1.bf16.msra.mxu0 %v2961
    %4478 = vmatprep.subr.bf16.mxu0 %v2970
    %4479 = vmatpush1.bf16.msra.mxu0 %v2969
    %4480 = vmatprep.mubr.bf16.mxu0 %v763
    %4481 = vmatmul.mubr.bf16.gmra.mrb[0].mxu0 %v761
    %v4482 = vpop.f32.mrb[0].mxu0
    %v4483 = vadd.f32 %v4442, %v4482
    %v4484 = vpop.f32.mrb[0].mxu0
    %v4485 = vadd.f32 %v4444, %v4484
    %v4486 = vpop.f32.mrb[0].mxu0
    %v4487 = vpop.f32.mrb[0].mxu0
    %4488 = vdwg.mxu0
    %4489 = vmatprep.subr.bf16.mxu0 %v2978
    %4490 = vmatpush1.bf16.msra.mxu0 %v2977
    %4491 = vmatprep.subr.bf16.mxu0 %v2986
    %4492 = vmatpush1.bf16.msra.mxu0 %v2985
    %4493 = vmatprep.subr.bf16.mxu0 %v2994
    %4494 = vmatpush1.bf16.msra.mxu0 %v2993
    %4495 = vmatprep.subr.bf16.mxu0 %v3002
    %4496 = vmatpush1.bf16.msra.mxu0 %v3001
    %4497 = vmatprep.subr.bf16.mxu0 %v3010
    %4498 = vmatpush1.bf16.msra.mxu0 %v3009
    %4499 = vmatprep.subr.bf16.mxu0 %v3018
    %4500 = vmatpush1.bf16.msra.mxu0 %v3017
    %4501 = vmatprep.subr.bf16.mxu0 %v3026
    %4502 = vmatpush1.bf16.msra.mxu0 %v3025
    %4503 = vmatprep.subr.bf16.mxu0 %v3034
    %4504 = vmatpush1.bf16.msra.mxu0 %v3033
    %4505 = vmatprep.subr.bf16.mxu0 %v3042
    %4506 = vmatpush1.bf16.msra.mxu0 %v3041
    %4507 = vmatprep.subr.bf16.mxu0 %v3050
    %4508 = vmatpush1.bf16.msra.mxu0 %v3049
    %4509 = vmatprep.subr.bf16.mxu0 %v3058
    %4510 = vmatpush1.bf16.msra.mxu0 %v3057
    %4511 = vmatprep.subr.bf16.mxu0 %v3066
    %4512 = vmatpush1.bf16.msra.mxu0 %v3065
    %4513 = vmatprep.subr.bf16.mxu0 %v3074
    %4514 = vmatpush1.bf16.msra.mxu0 %v3073
    %4515 = vmatprep.subr.bf16.mxu0 %v3082
    %4516 = vmatpush1.bf16.msra.mxu0 %v3081
    %4517 = vmatprep.subr.bf16.mxu0 %v3090
    %4518 = vmatpush1.bf16.msra.mxu0 %v3089
    %4519 = vmatprep.subr.bf16.mxu0 %v3098
    %4520 = vmatpush1.bf16.msra.mxu0 %v3097
    %4521 = vmatprep.mubr.bf16.mxu0 %v760
    %4522 = vmatmul.mubr.bf16.gmra.mrb[0].mxu0 %v746
    %v4523 = vpop.f32.mrb[0].mxu0
    %v4524 = vadd.f32 %v4483, %v4523
    %v4525 = vpop.f32.mrb[0].mxu0
    %v4526 = vadd.f32 %v4485, %v4525
    %v4527 = vpop.f32.mrb[0].mxu0
    %v4528 = vpop.f32.mrb[0].mxu0
    %4529 = vdwg.mxu0
    %4530 = vmatprep.subr.bf16.mxu0 %v3106
    %4531 = vmatpush1.bf16.msra.mxu0 %v3105
    %4532 = vmatprep.subr.bf16.mxu0 %v3114
    %4533 = vmatpush1.bf16.msra.mxu0 %v3113
    %4534 = vmatprep.subr.bf16.mxu0 %v3122
    %4535 = vmatpush1.bf16.msra.mxu0 %v3121
    %4536 = vmatprep.subr.bf16.mxu0 %v3130
    %4537 = vmatpush1.bf16.msra.mxu0 %v3129
    %4538 = vmatprep.subr.bf16.mxu0 %v3138
    %4539 = vmatpush1.bf16.msra.mxu0 %v3137
    %4540 = vmatprep.subr.bf16.mxu0 %v3146
    %4541 = vmatpush1.bf16.msra.mxu0 %v3145
    %4542 = vmatprep.subr.bf16.mxu0 %v3154
    %4543 = vmatpush1.bf16.msra.mxu0 %v3153
    %4544 = vmatprep.subr.bf16.mxu0 %v3162
    %4545 = vmatpush1.bf16.msra.mxu0 %v3161
    %4546 = vmatprep.subr.bf16.mxu0 %v3170
    %4547 = vmatpush1.bf16.msra.mxu0 %v3169
    %4548 = vmatprep.subr.bf16.mxu0 %v3178
    %4549 = vmatpush1.bf16.msra.mxu0 %v3177
    %4550 = vmatprep.subr.bf16.mxu0 %v3186
    %4551 = vmatpush1.bf16.msra.mxu0 %v3185
    %4552 = vmatprep.subr.bf16.mxu0 %v3194
    %4553 = vmatpush1.bf16.msra.mxu0 %v3193
    %4554 = vmatprep.subr.bf16.mxu0 %v3202
    %4555 = vmatpush1.bf16.msra.mxu0 %v3201
    %4556 = vmatprep.subr.bf16.mxu0 %v3210
    %4557 = vmatpush1.bf16.msra.mxu0 %v3209
    %4558 = vmatprep.subr.bf16.mxu0 %v3218
    %4559 = vmatpush1.bf16.msra.mxu0 %v3217
    %4560 = vmatprep.subr.bf16.mxu0 %v3226
    %4561 = vmatpush1.bf16.msra.mxu0 %v3225
    %4562 = vmatprep.mubr.bf16.mxu0 %v764
    %4563 = vmatmul.mubr.bf16.gmra.mrb[0].mxu0 %v762
    %v4564 = vpop.f32.mrb[0].mxu0
    %v4565 = vadd.f32 %v4524, %v4564
    %v4566 = vpop.f32.mrb[0].mxu0
    %v4567 = vadd.f32 %v4526, %v4566
    %v4568 = vpop.f32.mrb[0].mxu0
    %v4569 = vpop.f32.mrb[0].mxu0
    %4570 = vdwg.mxu0
    %4571 = vmatprep.subr.bf16.mxu0 %v3234
    %4572 = vmatpush1.bf16.msra.mxu0 %v3233
    %4573 = vmatprep.subr.bf16.mxu0 %v3242
    %4574 = vmatpush1.bf16.msra.mxu0 %v3241
    %4575 = vmatprep.subr.bf16.mxu0 %v3250
    %4576 = vmatpush1.bf16.msra.mxu0 %v3249
    %4577 = vmatprep.subr.bf16.mxu0 %v3258
    %4578 = vmatpush1.bf16.msra.mxu0 %v3257
    %4579 = vmatprep.subr.bf16.mxu0 %v3266
    %4580 = vmatpush1.bf16.msra.mxu0 %v3265
    %4581 = vmatprep.subr.bf16.mxu0 %v3274
    %4582 = vmatpush1.bf16.msra.mxu0 %v3273
    %4583 = vmatprep.subr.bf16.mxu0 %v3282
    %4584 = vmatpush1.bf16.msra.mxu0 %v3281
    %4585 = vmatprep.subr.bf16.mxu0 %v3290
    %4586 = vmatpush1.bf16.msra.mxu0 %v3289
    %4587 = vmatprep.subr.bf16.mxu0 %v3298
    %4588 = vmatpush1.bf16.msra.mxu0 %v3297
    %4589 = vmatprep.subr.bf16.mxu0 %v3306
    %4590 = vmatpush1.bf16.msra.mxu0 %v3305
    %4591 = vmatprep.subr.bf16.mxu0 %v3314
    %4592 = vmatpush1.bf16.msra.mxu0 %v3313
    %4593 = vmatprep.subr.bf16.mxu0 %v3322
    %4594 = vmatpush1.bf16.msra.mxu0 %v3321
    %4595 = vmatprep.subr.bf16.mxu0 %v3330
    %4596 = vmatpush1.bf16.msra.mxu0 %v3329
    %4597 = vmatprep.subr.bf16.mxu0 %v3338
    %4598 = vmatpush1.bf16.msra.mxu0 %v3337
    %4599 = vmatprep.subr.bf16.mxu0 %v3346
    %4600 = vmatpush1.bf16.msra.mxu0 %v3345
    %4601 = vmatprep.subr.bf16.mxu0 %v3354
    %4602 = vmatpush1.bf16.msra.mxu0 %v3353
    %4603 = vmatprep.mubr.bf16.mxu0 %v786
    %4604 = vmatmul.mubr.bf16.gmra.mrb[0].mxu0 %v779
    %v4605 = vpop.f32.mrb[0].mxu0
    %v4606 = vadd.f32 %v4565, %v4605
    %v4607 = vpop.f32.mrb[0].mxu0
    %v4608 = vadd.f32 %v4567, %v4607
    %v4609 = vpop.f32.mrb[0].mxu0
    %v4610 = vpop.f32.mrb[0].mxu0
    %4611 = vdwg.mxu0
    %4612 = vmatprep.subr.bf16.mxu0 %v2724
    %4613 = vmatpush1.bf16.msra.mxu0 %v2723
    %4614 = vmatprep.subr.bf16.mxu0 %v2732
    %4615 = vmatpush1.bf16.msra.mxu0 %v2731
    %4616 = vmatprep.subr.bf16.mxu0 %v2740
    %4617 = vmatpush1.bf16.msra.mxu0 %v2739
    %4618 = vmatprep.subr.bf16.mxu0 %v2748
    %4619 = vmatpush1.bf16.msra.mxu0 %v2747
    %4620 = vmatprep.subr.bf16.mxu0 %v2756
    %4621 = vmatpush1.bf16.msra.mxu0 %v2755
    %4622 = vmatprep.subr.bf16.mxu0 %v2764
    %4623 = vmatpush1.bf16.msra.mxu0 %v2763
    %4624 = vmatprep.subr.bf16.mxu0 %v2772
    %4625 = vmatpush1.bf16.msra.mxu0 %v2771
    %4626 = vmatprep.subr.bf16.mxu0 %v2780
    %4627 = vmatpush1.bf16.msra.mxu0 %v2779
    %4628 = vmatprep.subr.bf16.mxu0 %v2788
    %4629 = vmatpush1.bf16.msra.mxu0 %v2787
    %4630 = vmatprep.subr.bf16.mxu0 %v2796
    %4631 = vmatpush1.bf16.msra.mxu0 %v2795
    %4632 = vmatprep.subr.bf16.mxu0 %v2804
    %4633 = vmatpush1.bf16.msra.mxu0 %v2803
    %4634 = vmatprep.subr.bf16.mxu0 %v2812
    %4635 = vmatpush1.bf16.msra.mxu0 %v2811
    %4636 = vmatprep.subr.bf16.mxu0 %v2820
    %4637 = vmatpush1.bf16.msra.mxu0 %v2819
    %4638 = vmatprep.subr.bf16.mxu0 %v2828
    %4639 = vmatpush1.bf16.msra.mxu0 %v2827
    %4640 = vmatprep.subr.bf16.mxu0 %v2836
    %4641 = vmatpush1.bf16.msra.mxu0 %v2835
    %4642 = vmatprep.subr.bf16.mxu0 %v2844
    %4643 = vmatpush1.bf16.msra.mxu0 %v2843
    %4644 = vmatprep.mubr.bf16.mxu0 %v753
    %4645 = vmatmul.mubr.bf16.gmra.mrb[0].mxu0 %v739
    %v4646 = vpop.f32.mrb[0].mxu0
    %v4647 = vadd.f32 %v701, %v4646
    %v4648 = vpop.f32.mrb[0].mxu0
    %v4649 = vadd.f32 %v705, %v4648
    %v4650 = vpop.f32.mrb[0].mxu0
    %v4651 = vpop.f32.mrb[0].mxu0
    %4652 = vdwg.mxu0
    %4653 = vmatprep.subr.bf16.mxu0 %v2852
    %4654 = vmatpush1.bf16.msra.mxu0 %v2851
    %4655 = vmatprep.subr.bf16.mxu0 %v2860
    %4656 = vmatpush1.bf16.msra.mxu0 %v2859
    %4657 = vmatprep.subr.bf16.mxu0 %v2868
    %4658 = vmatpush1.bf16.msra.mxu0 %v2867
    %4659 = vmatprep.subr.bf16.mxu0 %v2876
    %4660 = vmatpush1.bf16.msra.mxu0 %v2875
    %4661 = vmatprep.subr.bf16.mxu0 %v2884
    %4662 = vmatpush1.bf16.msra.mxu0 %v2883
    %4663 = vmatprep.subr.bf16.mxu0 %v2892
    %4664 = vmatpush1.bf16.msra.mxu0 %v2891
    %4665 = vmatprep.subr.bf16.mxu0 %v2900
    %4666 = vmatpush1.bf16.msra.mxu0 %v2899
    %4667 = vmatprep.subr.bf16.mxu0 %v2908
    %4668 = vmatpush1.bf16.msra.mxu0 %v2907
    %4669 = vmatprep.subr.bf16.mxu0 %v2916
    %4670 = vmatpush1.bf16.msra.mxu0 %v2915
    %4671 = vmatprep.subr.bf16.mxu0 %v2924
    %4672 = vmatpush1.bf16.msra.mxu0 %v2923
    %4673 = vmatprep.subr.bf16.mxu0 %v2932
    %4674 = vmatpush1.bf16.msra.mxu0 %v2931
    %4675 = vmatprep.subr.bf16.mxu0 %v2940
    %4676 = vmatpush1.bf16.msra.mxu0 %v2939
    %4677 = vmatprep.subr.bf16.mxu0 %v2948
    %4678 = vmatpush1.bf16.msra.mxu0 %v2947
    %4679 = vmatprep.subr.bf16.mxu0 %v2956
    %4680 = vmatpush1.bf16.msra.mxu0 %v2955
    %4681 = vmatprep.subr.bf16.mxu0 %v2964
    %4682 = vmatpush1.bf16.msra.mxu0 %v2963
    %4683 = vmatprep.subr.bf16.mxu0 %v2972
    %4684 = vmatpush1.bf16.msra.mxu0 %v2971
    %4685 = vmatprep.mubr.bf16.mxu0 %v763
    %4686 = vmatmul.mubr.bf16.gmra.mrb[0].mxu0 %v761
    %v4687 = vpop.f32.mrb[0].mxu0
    %v4688 = vadd.f32 %v4647, %v4687
    %v4689 = vpop.f32.mrb[0].mxu0
    %v4690 = vadd.f32 %v4649, %v4689
    %v4691 = vpop.f32.mrb[0].mxu0
    %v4692 = vpop.f32.mrb[0].mxu0
    %4693 = vdwg.mxu0
    %4694 = vmatprep.subr.bf16.mxu0 %v2980
    %4695 = vmatpush1.bf16.msra.mxu0 %v2979
    %4696 = vmatprep.subr.bf16.mxu0 %v2988
    %4697 = vmatpush1.bf16.msra.mxu0 %v2987
    %4698 = vmatprep.subr.bf16.mxu0 %v2996
    %4699 = vmatpush1.bf16.msra.mxu0 %v2995
    %4700 = vmatprep.subr.bf16.mxu0 %v3004
    %4701 = vmatpush1.bf16.msra.mxu0 %v3003
    %4702 = vmatprep.subr.bf16.mxu0 %v3012
    %4703 = vmatpush1.bf16.msra.mxu0 %v3011
    %4704 = vmatprep.subr.bf16.mxu0 %v3020
    %4705 = vmatpush1.bf16.msra.mxu0 %v3019
    %4706 = vmatprep.subr.bf16.mxu0 %v3028
    %4707 = vmatpush1.bf16.msra.mxu0 %v3027
    %4708 = vmatprep.subr.bf16.mxu0 %v3036
    %4709 = vmatpush1.bf16.msra.mxu0 %v3035
    %4710 = vmatprep.subr.bf16.mxu0 %v3044
    %4711 = vmatpush1.bf16.msra.mxu0 %v3043
    %4712 = vmatprep.subr.bf16.mxu0 %v3052
    %4713 = vmatpush1.bf16.msra.mxu0 %v3051
    %4714 = vmatprep.subr.bf16.mxu0 %v3060
    %4715 = vmatpush1.bf16.msra.mxu0 %v3059
    %4716 = vmatprep.subr.bf16.mxu0 %v3068
    %4717 = vmatpush1.bf16.msra.mxu0 %v3067
    %4718 = vmatprep.subr.bf16.mxu0 %v3076
    %4719 = vmatpush1.bf16.msra.mxu0 %v3075
    %4720 = vmatprep.subr.bf16.mxu0 %v3084
    %4721 = vmatpush1.bf16.msra.mxu0 %v3083
    %4722 = vmatprep.subr.bf16.mxu0 %v3092
    %4723 = vmatpush1.bf16.msra.mxu0 %v3091
    %4724 = vmatprep.subr.bf16.mxu0 %v3100
    %4725 = vmatpush1.bf16.msra.mxu0 %v3099
    %4726 = vmatprep.mubr.bf16.mxu0 %v760
    %4727 = vmatmul.mubr.bf16.gmra.mrb[0].mxu0 %v746
    %v4728 = vpop.f32.mrb[0].mxu0
    %v4729 = vadd.f32 %v4688, %v4728
    %v4730 = vpop.f32.mrb[0].mxu0
    %v4731 = vadd.f32 %v4690, %v4730
    %v4732 = vpop.f32.mrb[0].mxu0
    %v4733 = vpop.f32.mrb[0].mxu0
    %4734 = vdwg.mxu0
    %4735 = vmatprep.subr.bf16.mxu0 %v3108
    %4736 = vmatpush1.bf16.msra.mxu0 %v3107
    %4737 = vmatprep.subr.bf16.mxu0 %v3116
    %4738 = vmatpush1.bf16.msra.mxu0 %v3115
    %4739 = vmatprep.subr.bf16.mxu0 %v3124
    %4740 = vmatpush1.bf16.msra.mxu0 %v3123
    %4741 = vmatprep.subr.bf16.mxu0 %v3132
    %4742 = vmatpush1.bf16.msra.mxu0 %v3131
    %4743 = vmatprep.subr.bf16.mxu0 %v3140
    %4744 = vmatpush1.bf16.msra.mxu0 %v3139
    %4745 = vmatprep.subr.bf16.mxu0 %v3148
    %4746 = vmatpush1.bf16.msra.mxu0 %v3147
    %4747 = vmatprep.subr.bf16.mxu0 %v3156
    %4748 = vmatpush1.bf16.msra.mxu0 %v3155
    %4749 = vmatprep.subr.bf16.mxu0 %v3164
    %4750 = vmatpush1.bf16.msra.mxu0 %v3163
    %4751 = vmatprep.subr.bf16.mxu0 %v3172
    %4752 = vmatpush1.bf16.msra.mxu0 %v3171
    %4753 = vmatprep.subr.bf16.mxu0 %v3180
    %4754 = vmatpush1.bf16.msra.mxu0 %v3179
    %4755 = vmatprep.subr.bf16.mxu0 %v3188
    %4756 = vmatpush1.bf16.msra.mxu0 %v3187
    %4757 = vmatprep.subr.bf16.mxu0 %v3196
    %4758 = vmatpush1.bf16.msra.mxu0 %v3195
    %4759 = vmatprep.subr.bf16.mxu0 %v3204
    %4760 = vmatpush1.bf16.msra.mxu0 %v3203
    %4761 = vmatprep.subr.bf16.mxu0 %v3212
    %4762 = vmatpush1.bf16.msra.mxu0 %v3211
    %4763 = vmatprep.subr.bf16.mxu0 %v3220
    %4764 = vmatpush1.bf16.msra.mxu0 %v3219
    %4765 = vmatprep.subr.bf16.mxu0 %v3228
    %4766 = vmatpush1.bf16.msra.mxu0 %v3227
    %4767 = vmatprep.mubr.bf16.mxu0 %v764
    %4768 = vmatmul.mubr.bf16.gmra.mrb[0].mxu0 %v762
    %v4769 = vpop.f32.mrb[0].mxu0
    %v4770 = vadd.f32 %v4729, %v4769
    %v4771 = vpop.f32.mrb[0].mxu0
    %v4772 = vadd.f32 %v4731, %v4771
    %v4773 = vpop.f32.mrb[0].mxu0
    %v4774 = vpop.f32.mrb[0].mxu0
    %4775 = vdwg.mxu0
    %4776 = vmatprep.subr.bf16.mxu0 %v3236
    %4777 = vmatpush1.bf16.msra.mxu0 %v3235
    %4778 = vmatprep.subr.bf16.mxu0 %v3244
    %4779 = vmatpush1.bf16.msra.mxu0 %v3243
    %4780 = vmatprep.subr.bf16.mxu0 %v3252
    %4781 = vmatpush1.bf16.msra.mxu0 %v3251
    %4782 = vmatprep.subr.bf16.mxu0 %v3260
    %4783 = vmatpush1.bf16.msra.mxu0 %v3259
    %4784 = vmatprep.subr.bf16.mxu0 %v3268
    %4785 = vmatpush1.bf16.msra.mxu0 %v3267
    %4786 = vmatprep.subr.bf16.mxu0 %v3276
    %4787 = vmatpush1.bf16.msra.mxu0 %v3275
    %4788 = vmatprep.subr.bf16.mxu0 %v3284
    %4789 = vmatpush1.bf16.msra.mxu0 %v3283
    %4790 = vmatprep.subr.bf16.mxu0 %v3292
    %4791 = vmatpush1.bf16.msra.mxu0 %v3291
    %4792 = vmatprep.subr.bf16.mxu0 %v3300
    %4793 = vmatpush1.bf16.msra.mxu0 %v3299
    %4794 = vmatprep.subr.bf16.mxu0 %v3308
    %4795 = vmatpush1.bf16.msra.mxu0 %v3307
    %4796 = vmatprep.subr.bf16.mxu0 %v3316
    %4797 = vmatpush1.bf16.msra.mxu0 %v3315
    %4798 = vmatprep.subr.bf16.mxu0 %v3324
    %4799 = vmatpush1.bf16.msra.mxu0 %v3323
    %4800 = vmatprep.subr.bf16.mxu0 %v3332
    %4801 = vmatpush1.bf16.msra.mxu0 %v3331
    %4802 = vmatprep.subr.bf16.mxu0 %v3340
    %4803 = vmatpush1.bf16.msra.mxu0 %v3339
    %4804 = vmatprep.subr.bf16.mxu0 %v3348
    %4805 = vmatpush1.bf16.msra.mxu0 %v3347
    %4806 = vmatprep.subr.bf16.mxu0 %v3356
    %4807 = vmatpush1.bf16.msra.mxu0 %v3355
    %4808 = vmatprep.mubr.bf16.mxu0 %v786
    %4809 = vmatmul.mubr.bf16.gmra.mrb[0].mxu0 %v779
    %v4810 = vpop.f32.mrb[0].mxu0
    %v4811 = vadd.f32 %v4770, %v4810
    %v4812 = vpop.f32.mrb[0].mxu0
    %v4813 = vadd.f32 %v4772, %v4812
    %v4814 = vpop.f32.mrb[0].mxu0
    %v4815 = vpop.f32.mrb[0].mxu0
    %4816 = vdwg.mxu0
    %v4817 = vmax.f32 %v4196, 0.0
    %v4818 = vmax.f32 %v4198, 0.0
    %v4819 = vmax.f32 %v4401, 0.0
    %v4820 = vmax.f32 %v4403, 0.0
    %v4821 = vmax.f32 %v4606, 0.0
    %v4822 = vmax.f32 %v4608, 0.0
    %v4823 = vmax.f32 %v4811, 0.0
    %v4824 = vmax.f32 %v4813, 0.0
    %v4825 = vpack.c.bf16 %v4817, %v4817
    %v4826 = vpack.c.bf16 %v4818, %v4818
    %v4827 = vpack.c.bf16 %v4819, %v4819
    %v4828 = vpack.c.bf16 %v4820, %v4820
    %v4829 = vpack.c.bf16 %v4821, %v4821
    %v4830 = vpack.c.bf16 %v4822, %v4822
    %v4831 = vpack.c.bf16 %v4823, %v4823
    %v4832 = vpack.c.bf16 %v4824, %v4824
    %v4833 = vld [vmem:[%s3] sm:$0xf]
    %v4834 = vld [vmem:[%s3 + $0x4] sm:$0xf]
    %v4835 = vld [vmem:[%s3 + $0x8] sm:$0xf]
    %v4836 = vld [vmem:[%s3 + $0xc] sm:$0xf]
    %v4837 = vld [vmem:[%s3 + $0x10] sm:$0xf]
    %v4838 = vld [vmem:[%s3 + $0x14] sm:$0xf]
    %v4839 = vld [vmem:[%s3 + $0x18] sm:$0xf]
    %v4840 = vld [vmem:[%s3 + $0x1c] sm:$0xf]
    %v4841 = vld [vmem:[%s3 + $0x20] sm:$0xf]
    %v4842 = vld [vmem:[%s3 + $0x24] sm:$0xf]
    %v4843 = vld [vmem:[%s3 + $0x28] sm:$0xf]
    %v4844 = vld [vmem:[%s3 + $0x2c] sm:$0xf]
    %v4845 = vld [vmem:[%s3 + $0x30] sm:$0xf]
    %v4846 = vld [vmem:[%s3 + $0x34] sm:$0xf]
    %v4847 = vld [vmem:[%s3 + $0x38] sm:$0xf]
    %v4848 = vld [vmem:[%s3 + $0x3c] sm:$0xf]
    %v4849 = vld [vmem:[%s3 + $0x40] sm:$0xf]
    %v4850 = vld [vmem:[%s3 + $0x44] sm:$0xf]
    %v4851 = vld [vmem:[%s3 + $0x48] sm:$0xf]
    %v4852 = vld [vmem:[%s3 + $0x4c] sm:$0xf]
    %v4853 = vld [vmem:[%s3 + $0x50] sm:$0xf]
    %v4854 = vld [vmem:[%s3 + $0x54] sm:$0xf]
    %v4855 = vld [vmem:[%s3 + $0x58] sm:$0xf]
    %v4856 = vld [vmem:[%s3 + $0x5c] sm:$0xf]
    %v4857 = vld [vmem:[%s3 + $0x60] sm:$0xf]
    %v4858 = vld [vmem:[%s3 + $0x64] sm:$0xf]
    %v4859 = vld [vmem:[%s3 + $0x68] sm:$0xf]
    %v4860 = vld [vmem:[%s3 + $0x6c] sm:$0xf]
    %v4861 = vld [vmem:[%s3 + $0x70] sm:$0xf]
    %v4862 = vld [vmem:[%s3 + $0x74] sm:$0xf]
    %v4863 = vld [vmem:[%s3 + $0x78] sm:$0xf]
    %v4864 = vld [vmem:[%s3 + $0x7c] sm:$0xf]
    %v4865 = vld [vmem:[%s3 + $0x80] sm:$0xf]
    %v4866 = vld [vmem:[%s3 + $0x84] sm:$0xf]
    %v4867 = vld [vmem:[%s3 + $0x88] sm:$0xf]
    %v4868 = vld [vmem:[%s3 + $0x8c] sm:$0xf]
    %v4869 = vld [vmem:[%s3 + $0x90] sm:$0xf]
    %v4870 = vld [vmem:[%s3 + $0x94] sm:$0xf]
    %v4871 = vld [vmem:[%s3 + $0x98] sm:$0xf]
    %v4872 = vld [vmem:[%s3 + $0x9c] sm:$0xf]
    %v4873 = vld [vmem:[%s3 + $0xa0] sm:$0xf]
    %v4874 = vld [vmem:[%s3 + $0xa4] sm:$0xf]
    %v4875 = vld [vmem:[%s3 + $0xa8] sm:$0xf]
    %v4876 = vld [vmem:[%s3 + $0xac] sm:$0xf]
    %v4877 = vld [vmem:[%s3 + $0xb0] sm:$0xf]
    %v4878 = vld [vmem:[%s3 + $0xb4] sm:$0xf]
    %v4879 = vld [vmem:[%s3 + $0xb8] sm:$0xf]
    %v4880 = vld [vmem:[%s3 + $0xbc] sm:$0xf]
    %v4881 = vld [vmem:[%s3 + $0xc0] sm:$0xf]
    %v4882 = vld [vmem:[%s3 + $0xc4] sm:$0xf]
    %v4883 = vld [vmem:[%s3 + $0xc8] sm:$0xf]
    %v4884 = vld [vmem:[%s3 + $0xcc] sm:$0xf]
    %v4885 = vld [vmem:[%s3 + $0xd0] sm:$0xf]
    %v4886 = vld [vmem:[%s3 + $0xd4] sm:$0xf]
    %v4887 = vld [vmem:[%s3 + $0xd8] sm:$0xf]
    %v4888 = vld [vmem:[%s3 + $0xdc] sm:$0xf]
    %v4889 = vld [vmem:[%s3 + $0xe0] sm:$0xf]
    %v4890 = vld [vmem:[%s3 + $0xe4] sm:$0xf]
    %v4891 = vld [vmem:[%s3 + $0xe8] sm:$0xf]
    %v4892 = vld [vmem:[%s3 + $0xec] sm:$0xf]
    %v4893 = vld [vmem:[%s3 + $0xf0] sm:$0xf]
    %v4894 = vld [vmem:[%s3 + $0xf4] sm:$0xf]
    %v4895 = vld [vmem:[%s3 + $0xf8] sm:$0xf]
    %v4896 = vld [vmem:[%s3 + $0xfc] sm:$0xf]
    %v4897 = vld [vmem:[#allocation2] sm:$0x1]
    %v4899 = vlaneseq
    %v4900 = vshrl.u32 %v4899, 7
    %v4901 = vsub.s32 0, %v4900
    %v4902 = vrot.slane %v4897, %v4901
    %v4968 = vunpack.c.l.b16 %v4833
    %v4969 = vunpack.c.l.b16 %v4834
    %v4970 = vunpack.c.l.b16 %v4835
    %v4971 = vunpack.c.l.b16 %v4836
    %v4972 = vunpack.c.l.b16 %v4837
    %v4973 = vunpack.c.l.b16 %v4838
    %v4974 = vunpack.c.l.b16 %v4839
    %v4975 = vunpack.c.l.b16 %v4840
    %v4976 = vunpack.c.l.b16 %v4841
    %v4977 = vunpack.c.l.b16 %v4842
    %v4978 = vunpack.c.l.b16 %v4843
    %v4979 = vunpack.c.l.b16 %v4844
    %v4980 = vunpack.c.l.b16 %v4845
    %v4981 = vunpack.c.l.b16 %v4846
    %v4982 = vunpack.c.l.b16 %v4847
    %v4983 = vunpack.c.l.b16 %v4848
    %v4984 = vunpack.c.l.b16 %v4849
    %v4985 = vunpack.c.l.b16 %v4850
    %v4986 = vunpack.c.l.b16 %v4851
    %v4987 = vunpack.c.l.b16 %v4852
    %v4988 = vunpack.c.l.b16 %v4853
    %v4989 = vunpack.c.l.b16 %v4854
    %v4990 = vunpack.c.l.b16 %v4855
    %v4991 = vunpack.c.l.b16 %v4856
    %v4992 = vunpack.c.l.b16 %v4857
    %v4993 = vunpack.c.l.b16 %v4858
    %v4994 = vunpack.c.l.b16 %v4859
    %v4995 = vunpack.c.l.b16 %v4860
    %v4996 = vunpack.c.l.b16 %v4861
    %v4997 = vunpack.c.l.b16 %v4862
    %v4998 = vunpack.c.l.b16 %v4863
    %v4999 = vunpack.c.l.b16 %v4864
    %v5000 = vunpack.c.l.b16 %v4865
    %v5001 = vunpack.c.l.b16 %v4866
    %v5002 = vunpack.c.l.b16 %v4867
    %v5003 = vunpack.c.l.b16 %v4868
    %v5004 = vunpack.c.l.b16 %v4869
    %v5005 = vunpack.c.l.b16 %v4870
    %v5006 = vunpack.c.l.b16 %v4871
    %v5007 = vunpack.c.l.b16 %v4872
    %v5008 = vunpack.c.l.b16 %v4873
    %v5009 = vunpack.c.l.b16 %v4874
    %v5010 = vunpack.c.l.b16 %v4875
    %v5011 = vunpack.c.l.b16 %v4876
    %v5012 = vunpack.c.l.b16 %v4877
    %v5013 = vunpack.c.l.b16 %v4878
    %v5014 = vunpack.c.l.b16 %v4879
    %v5015 = vunpack.c.l.b16 %v4880
    %v5016 = vunpack.c.l.b16 %v4881
    %v5017 = vunpack.c.l.b16 %v4882
    %v5018 = vunpack.c.l.b16 %v4883
    %v5019 = vunpack.c.l.b16 %v4884
    %v5020 = vunpack.c.l.b16 %v4885
    %v5021 = vunpack.c.l.b16 %v4886
    %v5022 = vunpack.c.l.b16 %v4887
    %v5023 = vunpack.c.l.b16 %v4888
    %v5024 = vunpack.c.l.b16 %v4889
    %v5025 = vunpack.c.l.b16 %v4890
    %v5026 = vunpack.c.l.b16 %v4891
    %v5027 = vunpack.c.l.b16 %v4892
    %v5028 = vunpack.c.l.b16 %v4893
    %v5029 = vunpack.c.l.b16 %v4894
    %v5030 = vunpack.c.l.b16 %v4895
    %v5031 = vunpack.c.l.b16 %v4896
    %v5032 = vpack.c.b16 %v4969, %v4968
    %v5033 = vpack.c.b16 %v4971, %v4970
    %v5034 = vpack.c.b16 %v4973, %v4972
    %v5035 = vpack.c.b16 %v4975, %v4974
    %v5036 = vpack.c.b16 %v4977, %v4976
    %v5037 = vpack.c.b16 %v4979, %v4978
    %v5038 = vpack.c.b16 %v4981, %v4980
    %v5039 = vpack.c.b16 %v4983, %v4982
    %v5040 = vpack.c.b16 %v4985, %v4984
    %v5041 = vpack.c.b16 %v4987, %v4986
    %v5042 = vpack.c.b16 %v4989, %v4988
    %v5043 = vpack.c.b16 %v4991, %v4990
    %v5044 = vpack.c.b16 %v4993, %v4992
    %v5045 = vpack.c.b16 %v4995, %v4994
    %v5046 = vpack.c.b16 %v4997, %v4996
    %v5047 = vpack.c.b16 %v4999, %v4998
    %v5048 = vpack.c.b16 %v5001, %v5000
    %v5049 = vpack.c.b16 %v5003, %v5002
    %v5050 = vpack.c.b16 %v5005, %v5004
    %v5051 = vpack.c.b16 %v5007, %v5006
    %v5052 = vpack.c.b16 %v5009, %v5008
    %v5053 = vpack.c.b16 %v5011, %v5010
    %v5054 = vpack.c.b16 %v5013, %v5012
    %v5055 = vpack.c.b16 %v5015, %v5014
    %v5056 = vpack.c.b16 %v5017, %v5016
    %v5057 = vpack.c.b16 %v5019, %v5018
    %v5058 = vpack.c.b16 %v5021, %v5020
    %v5059 = vpack.c.b16 %v5023, %v5022
    %v5060 = vpack.c.b16 %v5025, %v5024
    %v5061 = vpack.c.b16 %v5027, %v5026
    %v5062 = vpack.c.b16 %v5029, %v5028
    %v5063 = vpack.c.b16 %v5031, %v5030
    %5096 = vmatprep.subr.bf16.mxu0 0
    %5097 = vmatpush1.bf16.msra.mxu0 %v5032
    %5098 = vmatprep.subr.bf16.mxu0 0
    %5099 = vmatpush1.bf16.msra.mxu0 %v5033
    %5100 = vmatprep.subr.bf16.mxu0 0
    %5101 = vmatpush1.bf16.msra.mxu0 %v5034
    %5102 = vmatprep.subr.bf16.mxu0 0
    %5103 = vmatpush1.bf16.msra.mxu0 %v5035
    %5104 = vmatprep.subr.bf16.mxu0 0
    %5105 = vmatpush1.bf16.msra.mxu0 %v5036
    %5106 = vmatprep.subr.bf16.mxu0 0
    %5107 = vmatpush1.bf16.msra.mxu0 %v5037
    %5108 = vmatprep.subr.bf16.mxu0 0
    %5109 = vmatpush1.bf16.msra.mxu0 %v5038
    %5110 = vmatprep.subr.bf16.mxu0 0
    %5111 = vmatpush1.bf16.msra.mxu0 %v5039
    %5112 = vmatprep.subr.bf16.mxu0 0
    %5113 = vmatpush1.bf16.msra.mxu0 %v5040
    %5114 = vmatprep.subr.bf16.mxu0 0
    %5115 = vmatpush1.bf16.msra.mxu0 %v5041
    %5116 = vmatprep.subr.bf16.mxu0 0
    %5117 = vmatpush1.bf16.msra.mxu0 %v5042
    %5118 = vmatprep.subr.bf16.mxu0 0
    %5119 = vmatpush1.bf16.msra.mxu0 %v5043
    %5120 = vmatprep.subr.bf16.mxu0 0
    %5121 = vmatpush1.bf16.msra.mxu0 %v5044
    %5122 = vmatprep.subr.bf16.mxu0 0
    %5123 = vmatpush1.bf16.msra.mxu0 %v5045
    %5124 = vmatprep.subr.bf16.mxu0 0
    %5125 = vmatpush1.bf16.msra.mxu0 %v5046
    %5126 = vmatprep.subr.bf16.mxu0 0
    %5127 = vmatpush1.bf16.msra.mxu0 %v5047
    %5128 = vmatprep.mubr.bf16.mxu0 %v4826
    %5129 = vmatmul.mubr.bf16.gmra.mrb[0].mxu0 %v4825
    %v5130 = vpop.f32.mrb[0].mxu0
    %v5131 = vadd.f32 %v4902, %v5130
    %v5132 = vpop.f32.mrb[0].mxu0
    %v5133 = vpop.f32.mrb[0].mxu0
    %v5134 = vpop.f32.mrb[0].mxu0
    %5135 = vdwg.mxu0
    %5136 = vmatprep.subr.bf16.mxu0 0
    %5137 = vmatpush1.bf16.msra.mxu0 %v5048
    %5138 = vmatprep.subr.bf16.mxu0 0
    %5139 = vmatpush1.bf16.msra.mxu0 %v5049
    %5140 = vmatprep.subr.bf16.mxu0 0
    %5141 = vmatpush1.bf16.msra.mxu0 %v5050
    %5142 = vmatprep.subr.bf16.mxu0 0
    %5143 = vmatpush1.bf16.msra.mxu0 %v5051
    %5144 = vmatprep.subr.bf16.mxu0 0
    %5145 = vmatpush1.bf16.msra.mxu0 %v5052
    %5146 = vmatprep.subr.bf16.mxu0 0
    %5147 = vmatpush1.bf16.msra.mxu0 %v5053
    %5148 = vmatprep.subr.bf16.mxu0 0
    %5149 = vmatpush1.bf16.msra.mxu0 %v5054
    %5150 = vmatprep.subr.bf16.mxu0 0
    %5151 = vmatpush1.bf16.msra.mxu0 %v5055
    %5152 = vmatprep.subr.bf16.mxu0 0
    %5153 = vmatpush1.bf16.msra.mxu0 %v5056
    %5154 = vmatprep.subr.bf16.mxu0 0
    %5155 = vmatpush1.bf16.msra.mxu0 %v5057
    %5156 = vmatprep.subr.bf16.mxu0 0
    %5157 = vmatpush1.bf16.msra.mxu0 %v5058
    %5158 = vmatprep.subr.bf16.mxu0 0
    %5159 = vmatpush1.bf16.msra.mxu0 %v5059
    %5160 = vmatprep.subr.bf16.mxu0 0
    %5161 = vmatpush1.bf16.msra.mxu0 %v5060
    %5162 = vmatprep.subr.bf16.mxu0 0
    %5163 = vmatpush1.bf16.msra.mxu0 %v5061
    %5164 = vmatprep.subr.bf16.mxu0 0
    %5165 = vmatpush1.bf16.msra.mxu0 %v5062
    %5166 = vmatprep.subr.bf16.mxu0 0
    %5167 = vmatpush1.bf16.msra.mxu0 %v5063
    %5168 = vmatprep.mubr.bf16.mxu0 %v4828
    %5169 = vmatmul.mubr.bf16.gmra.mrb[0].mxu0 %v4827
    %v5170 = vpop.f32.mrb[0].mxu0
    %v5171 = vadd.f32 %v5131, %v5170
    %v5172 = vpop.f32.mrb[0].mxu0
    %v5173 = vpop.f32.mrb[0].mxu0
    %v5174 = vpop.f32.mrb[0].mxu0
    %5175 = vdwg.mxu0
    %v5176 = vld [vmem:[%s5] sm:$0xf]
    %v5177 = vld [vmem:[%s5 + $0x4] sm:$0xf]
    %v5178 = vld [vmem:[%s5 + $0x8] sm:$0xf]
    %v5179 = vld [vmem:[%s5 + $0xc] sm:$0xf]
    %v5180 = vld [vmem:[%s5 + $0x10] sm:$0xf]
    %v5181 = vld [vmem:[%s5 + $0x14] sm:$0xf]
    %v5182 = vld [vmem:[%s5 + $0x18] sm:$0xf]
    %v5183 = vld [vmem:[%s5 + $0x1c] sm:$0xf]
    %v5184 = vld [vmem:[%s5 + $0x20] sm:$0xf]
    %v5185 = vld [vmem:[%s5 + $0x24] sm:$0xf]
    %v5186 = vld [vmem:[%s5 + $0x28] sm:$0xf]
    %v5187 = vld [vmem:[%s5 + $0x2c] sm:$0xf]
    %v5188 = vld [vmem:[%s5 + $0x30] sm:$0xf]
    %v5189 = vld [vmem:[%s5 + $0x34] sm:$0xf]
    %v5190 = vld [vmem:[%s5 + $0x38] sm:$0xf]
    %v5191 = vld [vmem:[%s5 + $0x3c] sm:$0xf]
    %v5192 = vld [vmem:[%s5 + $0x40] sm:$0xf]
    %v5193 = vld [vmem:[%s5 + $0x44] sm:$0xf]
    %v5194 = vld [vmem:[%s5 + $0x48] sm:$0xf]
    %v5195 = vld [vmem:[%s5 + $0x4c] sm:$0xf]
    %v5196 = vld [vmem:[%s5 + $0x50] sm:$0xf]
    %v5197 = vld [vmem:[%s5 + $0x54] sm:$0xf]
    %v5198 = vld [vmem:[%s5 + $0x58] sm:$0xf]
    %v5199 = vld [vmem:[%s5 + $0x5c] sm:$0xf]
    %v5200 = vld [vmem:[%s5 + $0x60] sm:$0xf]
    %v5201 = vld [vmem:[%s5 + $0x64] sm:$0xf]
    %v5202 = vld [vmem:[%s5 + $0x68] sm:$0xf]
    %v5203 = vld [vmem:[%s5 + $0x6c] sm:$0xf]
    %v5204 = vld [vmem:[%s5 + $0x70] sm:$0xf]
    %v5205 = vld [vmem:[%s5 + $0x74] sm:$0xf]
    %v5206 = vld [vmem:[%s5 + $0x78] sm:$0xf]
    %v5207 = vld [vmem:[%s5 + $0x7c] sm:$0xf]
    %v5208 = vld [vmem:[%s5 + $0x80] sm:$0xf]
    %v5209 = vld [vmem:[%s5 + $0x84] sm:$0xf]
    %v5210 = vld [vmem:[%s5 + $0x88] sm:$0xf]
    %v5211 = vld [vmem:[%s5 + $0x8c] sm:$0xf]
    %v5212 = vld [vmem:[%s5 + $0x90] sm:$0xf]
    %v5213 = vld [vmem:[%s5 + $0x94] sm:$0xf]
    %v5214 = vld [vmem:[%s5 + $0x98] sm:$0xf]
    %v5215 = vld [vmem:[%s5 + $0x9c] sm:$0xf]
    %v5216 = vld [vmem:[%s5 + $0xa0] sm:$0xf]
    %v5217 = vld [vmem:[%s5 + $0xa4] sm:$0xf]
    %v5218 = vld [vmem:[%s5 + $0xa8] sm:$0xf]
    %v5219 = vld [vmem:[%s5 + $0xac] sm:$0xf]
    %v5220 = vld [vmem:[%s5 + $0xb0] sm:$0xf]
    %v5221 = vld [vmem:[%s5 + $0xb4] sm:$0xf]
    %v5222 = vld [vmem:[%s5 + $0xb8] sm:$0xf]
    %v5223 = vld [vmem:[%s5 + $0xbc] sm:$0xf]
    %v5224 = vld [vmem:[%s5 + $0xc0] sm:$0xf]
    %v5225 = vld [vmem:[%s5 + $0xc4] sm:$0xf]
    %v5226 = vld [vmem:[%s5 + $0xc8] sm:$0xf]
    %v5227 = vld [vmem:[%s5 + $0xcc] sm:$0xf]
    %v5228 = vld [vmem:[%s5 + $0xd0] sm:$0xf]
    %v5229 = vld [vmem:[%s5 + $0xd4] sm:$0xf]
    %v5230 = vld [vmem:[%s5 + $0xd8] sm:$0xf]
    %v5231 = vld [vmem:[%s5 + $0xdc] sm:$0xf]
    %v5232 = vld [vmem:[%s5 + $0xe0] sm:$0xf]
    %v5233 = vld [vmem:[%s5 + $0xe4] sm:$0xf]
    %v5234 = vld [vmem:[%s5 + $0xe8] sm:$0xf]
    %v5235 = vld [vmem:[%s5 + $0xec] sm:$0xf]
    %v5236 = vld [vmem:[%s5 + $0xf0] sm:$0xf]
    %v5237 = vld [vmem:[%s5 + $0xf4] sm:$0xf]
    %v5238 = vld [vmem:[%s5 + $0xf8] sm:$0xf]
    %v5239 = vld [vmem:[%s5 + $0xfc] sm:$0xf]
    %v5240 = vld [vmem:[%s6] sm:$0x1]
    %v5242 = vlaneseq
    %v5243 = vshrl.u32 %v5242, 7
    %v5244 = vsub.s32 0, %v5243
    %v5245 = vrot.slane %v5240, %v5244
    %v5311 = vunpack.c.l.b16 %v5176
    %v5312 = vunpack.c.l.b16 %v5177
    %v5313 = vunpack.c.l.b16 %v5178
    %v5314 = vunpack.c.l.b16 %v5179
    %v5315 = vunpack.c.l.b16 %v5180
    %v5316 = vunpack.c.l.b16 %v5181
    %v5317 = vunpack.c.l.b16 %v5182
    %v5318 = vunpack.c.l.b16 %v5183
    %v5319 = vunpack.c.l.b16 %v5184
    %v5320 = vunpack.c.l.b16 %v5185
    %v5321 = vunpack.c.l.b16 %v5186
    %v5322 = vunpack.c.l.b16 %v5187
    %v5323 = vunpack.c.l.b16 %v5188
    %v5324 = vunpack.c.l.b16 %v5189
    %v5325 = vunpack.c.l.b16 %v5190
    %v5326 = vunpack.c.l.b16 %v5191
    %v5327 = vunpack.c.l.b16 %v5192
    %v5328 = vunpack.c.l.b16 %v5193
    %v5329 = vunpack.c.l.b16 %v5194
    %v5330 = vunpack.c.l.b16 %v5195
    %v5331 = vunpack.c.l.b16 %v5196
    %v5332 = vunpack.c.l.b16 %v5197
    %v5333 = vunpack.c.l.b16 %v5198
    %v5334 = vunpack.c.l.b16 %v5199
    %v5335 = vunpack.c.l.b16 %v5200
    %v5336 = vunpack.c.l.b16 %v5201
    %v5337 = vunpack.c.l.b16 %v5202
    %v5338 = vunpack.c.l.b16 %v5203
    %v5339 = vunpack.c.l.b16 %v5204
    %v5340 = vunpack.c.l.b16 %v5205
    %v5341 = vunpack.c.l.b16 %v5206
    %v5342 = vunpack.c.l.b16 %v5207
    %v5343 = vunpack.c.l.b16 %v5208
    %v5344 = vunpack.c.l.b16 %v5209
    %v5345 = vunpack.c.l.b16 %v5210
    %v5346 = vunpack.c.l.b16 %v5211
    %v5347 = vunpack.c.l.b16 %v5212
    %v5348 = vunpack.c.l.b16 %v5213
    %v5349 = vunpack.c.l.b16 %v5214
    %v5350 = vunpack.c.l.b16 %v5215
    %v5351 = vunpack.c.l.b16 %v5216
    %v5352 = vunpack.c.l.b16 %v5217
    %v5353 = vunpack.c.l.b16 %v5218
    %v5354 = vunpack.c.l.b16 %v5219
    %v5355 = vunpack.c.l.b16 %v5220
    %v5356 = vunpack.c.l.b16 %v5221
    %v5357 = vunpack.c.l.b16 %v5222
    %v5358 = vunpack.c.l.b16 %v5223
    %v5359 = vunpack.c.l.b16 %v5224
    %v5360 = vunpack.c.l.b16 %v5225
    %v5361 = vunpack.c.l.b16 %v5226
    %v5362 = vunpack.c.l.b16 %v5227
    %v5363 = vunpack.c.l.b16 %v5228
    %v5364 = vunpack.c.l.b16 %v5229
    %v5365 = vunpack.c.l.b16 %v5230
    %v5366 = vunpack.c.l.b16 %v5231
    %v5367 = vunpack.c.l.b16 %v5232
    %v5368 = vunpack.c.l.b16 %v5233
    %v5369 = vunpack.c.l.b16 %v5234
    %v5370 = vunpack.c.l.b16 %v5235
    %v5371 = vunpack.c.l.b16 %v5236
    %v5372 = vunpack.c.l.b16 %v5237
    %v5373 = vunpack.c.l.b16 %v5238
    %v5374 = vunpack.c.l.b16 %v5239
    %v5375 = vpack.c.b16 %v5312, %v5311
    %v5376 = vpack.c.b16 %v5314, %v5313
    %v5377 = vpack.c.b16 %v5316, %v5315
    %v5378 = vpack.c.b16 %v5318, %v5317
    %v5379 = vpack.c.b16 %v5320, %v5319
    %v5380 = vpack.c.b16 %v5322, %v5321
    %v5381 = vpack.c.b16 %v5324, %v5323
    %v5382 = vpack.c.b16 %v5326, %v5325
    %v5383 = vpack.c.b16 %v5328, %v5327
    %v5384 = vpack.c.b16 %v5330, %v5329
    %v5385 = vpack.c.b16 %v5332, %v5331
    %v5386 = vpack.c.b16 %v5334, %v5333
    %v5387 = vpack.c.b16 %v5336, %v5335
    %v5388 = vpack.c.b16 %v5338, %v5337
    %v5389 = vpack.c.b16 %v5340, %v5339
    %v5390 = vpack.c.b16 %v5342, %v5341
    %v5391 = vpack.c.b16 %v5344, %v5343
    %v5392 = vpack.c.b16 %v5346, %v5345
    %v5393 = vpack.c.b16 %v5348, %v5347
    %v5394 = vpack.c.b16 %v5350, %v5349
    %v5395 = vpack.c.b16 %v5352, %v5351
    %v5396 = vpack.c.b16 %v5354, %v5353
    %v5397 = vpack.c.b16 %v5356, %v5355
    %v5398 = vpack.c.b16 %v5358, %v5357
    %v5399 = vpack.c.b16 %v5360, %v5359
    %v5400 = vpack.c.b16 %v5362, %v5361
    %v5401 = vpack.c.b16 %v5364, %v5363
    %v5402 = vpack.c.b16 %v5366, %v5365
    %v5403 = vpack.c.b16 %v5368, %v5367
    %v5404 = vpack.c.b16 %v5370, %v5369
    %v5405 = vpack.c.b16 %v5372, %v5371
    %v5406 = vpack.c.b16 %v5374, %v5373
    %5439 = vmatprep.subr.bf16.mxu0 0
    %5440 = vmatpush1.bf16.msra.mxu0 %v5375
    %5441 = vmatprep.subr.bf16.mxu0 0
    %5442 = vmatpush1.bf16.msra.mxu0 %v5376
    %5443 = vmatprep.subr.bf16.mxu0 0
    %5444 = vmatpush1.bf16.msra.mxu0 %v5377
    %5445 = vmatprep.subr.bf16.mxu0 0
    %5446 = vmatpush1.bf16.msra.mxu0 %v5378
    %5447 = vmatprep.subr.bf16.mxu0 0
    %5448 = vmatpush1.bf16.msra.mxu0 %v5379
    %5449 = vmatprep.subr.bf16.mxu0 0
    %5450 = vmatpush1.bf16.msra.mxu0 %v5380
    %5451 = vmatprep.subr.bf16.mxu0 0
    %5452 = vmatpush1.bf16.msra.mxu0 %v5381
    %5453 = vmatprep.subr.bf16.mxu0 0
    %5454 = vmatpush1.bf16.msra.mxu0 %v5382
    %5455 = vmatprep.subr.bf16.mxu0 0
    %5456 = vmatpush1.bf16.msra.mxu0 %v5383
    %5457 = vmatprep.subr.bf16.mxu0 0
    %5458 = vmatpush1.bf16.msra.mxu0 %v5384
    %5459 = vmatprep.subr.bf16.mxu0 0
    %5460 = vmatpush1.bf16.msra.mxu0 %v5385
    %5461 = vmatprep.subr.bf16.mxu0 0
    %5462 = vmatpush1.bf16.msra.mxu0 %v5386
    %5463 = vmatprep.subr.bf16.mxu0 0
    %5464 = vmatpush1.bf16.msra.mxu0 %v5387
    %5465 = vmatprep.subr.bf16.mxu0 0
    %5466 = vmatpush1.bf16.msra.mxu0 %v5388
    %5467 = vmatprep.subr.bf16.mxu0 0
    %5468 = vmatpush1.bf16.msra.mxu0 %v5389
    %5469 = vmatprep.subr.bf16.mxu0 0
    %5470 = vmatpush1.bf16.msra.mxu0 %v5390
    %5471 = vmatprep.mubr.bf16.mxu0 %v4830
    %5472 = vmatmul.mubr.bf16.gmra.mrb[0].mxu0 %v4829
    %v5473 = vpop.f32.mrb[0].mxu0
    %v5474 = vadd.f32 %v5245, %v5473
    %v5475 = vpop.f32.mrb[0].mxu0
    %v5476 = vpop.f32.mrb[0].mxu0
    %v5477 = vpop.f32.mrb[0].mxu0
    %5478 = vdwg.mxu0
    %5479 = vmatprep.subr.bf16.mxu0 0
    %5480 = vmatpush1.bf16.msra.mxu0 %v5391
    %5481 = vmatprep.subr.bf16.mxu0 0
    %5482 = vmatpush1.bf16.msra.mxu0 %v5392
    %5483 = vmatprep.subr.bf16.mxu0 0
    %5484 = vmatpush1.bf16.msra.mxu0 %v5393
    %5485 = vmatprep.subr.bf16.mxu0 0
    %5486 = vmatpush1.bf16.msra.mxu0 %v5394
    %5487 = vmatprep.subr.bf16.mxu0 0
    %5488 = vmatpush1.bf16.msra.mxu0 %v5395
    %5489 = vmatprep.subr.bf16.mxu0 0
    %5490 = vmatpush1.bf16.msra.mxu0 %v5396
    %5491 = vmatprep.subr.bf16.mxu0 0
    %5492 = vmatpush1.bf16.msra.mxu0 %v5397
    %5493 = vmatprep.subr.bf16.mxu0 0
    %5494 = vmatpush1.bf16.msra.mxu0 %v5398
    %5495 = vmatprep.subr.bf16.mxu0 0
    %5496 = vmatpush1.bf16.msra.mxu0 %v5399
    %5497 = vmatprep.subr.bf16.mxu0 0
    %5498 = vmatpush1.bf16.msra.mxu0 %v5400
    %5499 = vmatprep.subr.bf16.mxu0 0
    %5500 = vmatpush1.bf16.msra.mxu0 %v5401
    %5501 = vmatprep.subr.bf16.mxu0 0
    %5502 = vmatpush1.bf16.msra.mxu0 %v5402
    %5503 = vmatprep.subr.bf16.mxu0 0
    %5504 = vmatpush1.bf16.msra.mxu0 %v5403
    %5505 = vmatprep.subr.bf16.mxu0 0
    %5506 = vmatpush1.bf16.msra.mxu0 %v5404
    %5507 = vmatprep.subr.bf16.mxu0 0
    %5508 = vmatpush1.bf16.msra.mxu0 %v5405
    %5509 = vmatprep.subr.bf16.mxu0 0
    %5510 = vmatpush1.bf16.msra.mxu0 %v5406
    %5511 = vmatprep.mubr.bf16.mxu0 %v4832
    %5512 = vmatmul.mubr.bf16.gmra.mrb[0].mxu0 %v4831
    %v5513 = vpop.f32.mrb[0].mxu0
    %v5514 = vadd.f32 %v5474, %v5513
    %v5515 = vpop.f32.mrb[0].mxu0
    %v5516 = vpop.f32.mrb[0].mxu0
    %v5517 = vpop.f32.mrb[0].mxu0
    %5518 = vdwg.mxu0
    %vm5519 = vcmask 41984
    %v5520 = vsel %vm5519, %v5514, 0.0
    %5521 = vadd.xlane.f32.xlu0 %v5520
    %v5522 = vpop.xlane.xlu0 %5521
    %v5523 = vrcp.pop 6.0
    %v5524 = vmul.f32 %v5522, %v5523
    %5526 = vset.pattern.permute.xlu0 0
    %5527 = vperm.xlu0 %5526, %v5171
    %v5528 = vpop.permute.xlu0 %5527
    %v5530 = vadd.f32 %v5528, %v5514
    %v5531 = vsub.f32 %v5530, %v5524
    %5532 = vst.msk [vmem:[#allocation3] sm:$0x3] %vm5519, %v5531
    // Predicated region
    $region30: #{dddqnet_forward.7} parent=1 // pred_check
      _
    $region31: #{dddqnet_forward.7} parent=1 // pred_check_branch
      %5534 = sbr.rel (0) target = $region33
    $region32: #{dddqnet_forward.7} parent=1 // pred_region
      %s5536 = ssub.s32 32, 32
      %5537 = vsyncadd [#allocation4], %s5536
      %s5539 = sshll.u32 [#allocation3], 4
      %s5540 = int_to_ptr.vmem [resolvable:$true] %s5539
      %5542 = dma.vmem_to_hbm [thread:$0]  %s5540, 32, %s7, [#allocation4]
    $region33: #{dddqnet_forward.7} parent=1 // pred_fallthru
      _
    // Predicated region
    $region34: #{dddqnet_forward.7} parent=1 // pred_check
      _
    $region35: #{dddqnet_forward.7} parent=1 // pred_check_branch
      %5544 = sbr.rel (0) target = $region37
    $region36: #{dddqnet_forward.7} parent=1 // pred_region
      %5545 = dma.done [#allocation4], 32
    $region37: #{dddqnet_forward.7} parent=1 // pred_fallthru
      _
    %5546 = vsyncpa [#allocation4], 1

</llo_original>
